<compile_context>
chip_gen: v5e
topology: v5e:2x2
jax: 0.10.0
libtpu: 0.0.40
codegen_flags: <defaults>
</compile_context>

<pallas_src>
import functools

import jax
import jax.numpy as jnp
from jax import lax
from jax.experimental import pallas as pl
from jax.experimental.pallas import tpu as pltpu


def _round_up(x, m):
    return (x + m - 1) // m * m


# ----------------------------------------------------------------------------
# Pallas kernel: fused 3x3/s2 conv (9 shifted matmuls) + folded-BN bias + GELU
# ----------------------------------------------------------------------------
def _conv_bn_act_kernel(xq_ref, w_ref, b_ref, o_ref, *, M, Wq, apply_gelu):
    # xq_ref: (1, 2, 2, L, Cin_p)  flattened stride-2 parity planes of the
    #                              zero-padded input image (one batch item).
    # w_ref : (9, Cin_p, Cout_p)   conv weights with BN scale folded in.
    # b_ref : (1, Cout_p)          folded conv-bias + BN shift (f32).
    # o_ref : (1, M, Cout_p)       output rows a = ho*Wq + wo (wo == Wq-1 junk).
    cout_p = w_ref.shape[2]
    acc = jnp.zeros((M, cout_p), jnp.float32)
    for kh in range(3):
        for kw in range(3):
            # Output row a needs the padded-input pixel stored at flattened
            # parity-plane row a + off, off = (kh//2)*Wq + (kw//2): the 9 conv
            # taps are 9 *contiguous* row slices -> 9 accumulated MXU matmuls.
            off = (kh // 2) * Wq + (kw // 2)
            lhs = xq_ref[0, kh % 2, kw % 2, off:off + M, :]
            acc = acc + jnp.dot(lhs, w_ref[kh * 3 + kw],
                                preferred_element_type=jnp.float32)
    y = acc + b_ref[...]
    if apply_gelu:
        # exact GELU (torch.nn.GELU default): 0.5*x*(1+erf(x/sqrt(2)))
        y = 0.5 * y * (1.0 + lax.erf(y * 0.7071067811865476))
    o_ref[0] = y.astype(o_ref.dtype)


def _conv_stage(xqf, w9, bias, *, M, Wq, apply_gelu, out_dtype):
    B = xqf.shape[0]
    L, cin_p = xqf.shape[3], xqf.shape[4]
    cout_p = w9.shape[2]
    kernel = functools.partial(_conv_bn_act_kernel, M=M, Wq=Wq,
                               apply_gelu=apply_gelu)
    return pl.pallas_call(
        kernel,
        out_shape=jax.ShapeDtypeStruct((B, M, cout_p), out_dtype),
        grid_spec=pltpu.PrefetchScalarGridSpec(
            num_scalar_prefetch=0,
            grid=(B,),  # one whole image per step; >= 2 steps for megacore
            in_specs=[
                pl.BlockSpec((1, 2, 2, L, cin_p), lambda b: (b, 0, 0, 0, 0)),
                pl.BlockSpec((9, cin_p, cout_p), lambda b: (0, 0, 0)),
                pl.BlockSpec((1, cout_p), lambda b: (0, 0)),
            ],
            out_specs=pl.BlockSpec((1, M, cout_p), lambda b: (b, 0, 0)),
        ),
        compiler_params=pltpu.CompilerParams(
            dimension_semantics=("parallel",),
            vmem_limit_bytes=32 * 1024 * 1024,
        ),
    )(xqf, w9, bias)


# ----------------------------------------------------------------------------
# Plain-JAX glue: stride-2 parity split of the spatially zero-padded input.
# (Single pass over the activation, ~1x HBM traffic; replaces the 9x im2col.)
# ----------------------------------------------------------------------------
def _to_parity_planes(x_nhwc, cin_p, compute_dtype):
    """(B, H, W, C) NHWC -> xqf (B, 2, 2, L, cin_p) with
       xqf[b, p, q, i*Wq + j, :] = zero_pad(x)[b, 2i+p, 2j+q, :cin_p]."""
    B, H, W, C = x_nhwc.shape
    assert H % 2 == 0 and W % 2 == 0, (H, W)
    Ho, Wo = H // 2, W // 2
    Hq, Wq = Ho + 1, Wo + 1
    xp = jnp.pad(x_nhwc, ((0, 0), (1, 1), (1, 1), (0, cin_p - C)))
    xq = xp.reshape(B, Hq, 2, Wq, 2, cin_p).transpose(0, 2, 4, 1, 3, 5)
    xqf = xq.reshape(B, 2, 2, Hq * Wq, cin_p)
    L = _round_up(Hq * Wq + 1, 8)  # +1 covers the (kh,kw)=(2,2) junk-row read
    xqf = jnp.pad(xqf, ((0, 0), (0, 0), (0, 0), (0, L - Hq * Wq), (0, 0)))
    return xqf.astype(compute_dtype), Ho, Wo, Wq


# ----------------------------------------------------------------------------
# Parameter construction (deterministic, synthetic)
# ----------------------------------------------------------------------------
def make_params(key, in_chans, embed_dim):
    chans = [in_chans, embed_dim // 8, embed_dim // 4, embed_dim // 2, embed_dim]
    # Lane-dense channel padding: intermediates -> multiple of 128; the tiny
    # network input (3 channels) only to 8 (padding it to 128 would inflate
    # its HBM footprint ~42x for no gain).
    cps = [8 if in_chans <= 8 else _round_up(in_chans, 128)]
    cps += [_round_up(c, 128) for c in chans[1:]]
    eps = 1e-5
    params = []
    for li in range(4):
        cin, cout = chans[li], chans[li + 1]
        cp_in, cp_out = cps[li], cps[li + 1]
        key, k1, k2, k3, k4, k5, k6 = jax.random.split(key, 7)
        w = jax.random.normal(k1, (cout, cin, 3, 3), jnp.float32) * 0.1
        b = jax.random.normal(k2, (cout,), jnp.float32) * 0.05
        gamma = 1.0 + 0.1 * jax.random.normal(k3, (cout,), jnp.float32)
        beta = 0.1 * jax.random.normal(k4, (cout,), jnp.float32)
        rmean = 0.05 * jax.random.normal(k5, (cout,), jnp.float32)
        rvar = 1.0 + 0.1 * jax.random.uniform(k6, (cout,), jnp.float32)
        # Fold BN(eval) scale into the weights, BN shift + conv bias into bias.
        scale = gamma / jnp.sqrt(rvar + eps)                    # (cout,)
        bias = (b - rmean) * scale + beta                       # (cout,)
        w_hwio = jnp.transpose(w, (2, 3, 1, 0)) * scale[None, None, None, :]
        w9 = jnp.zeros((9, cp_in, cp_out), jnp.float32)
        w9 = w9.at[:, :cin, :cout].set(w_hwio.reshape(9, cin, cout))
        bias_pad = jnp.zeros((1, cp_out), jnp.float32).at[0, :cout].set(bias)
        params.append(dict(
            w_conv=w, b_conv=b, gamma=gamma, beta=beta, rmean=rmean,
            rvar=rvar, eps=eps,
            w9=w9, bias_pad=bias_pad, cp_in=cp_in, cp_out=cp_out, cout=cout))
    return params


# ----------------------------------------------------------------------------
# PatchEmbed forward (Pallas)
# ----------------------------------------------------------------------------
def patch_embed_forward(x, params, *, compute_dtype=jnp.float32):
    """x: (B, C, H, W) f32 -> (B, (H//16)*(W//16), embed_dim)."""
    B = x.shape[0]
    cur = jnp.transpose(x, (0, 2, 3, 1))   # single NCHW->NHWC at the boundary
    for li, p in enumerate(params):
        xqf, Ho, Wo, Wq = _to_parity_planes(cur, p["cp_in"], compute_dtype)
        M = Ho * Wq
        out = _conv_stage(
            xqf, p["w9"].astype(compute_dtype), p["bias_pad"],
            M=M, Wq=Wq, apply_gelu=(li < 3), out_dtype=compute_dtype)
        # padded-width rows (a = ho*Wq + wo) -> NHWC, dropping the junk column.
        # Channel padding (exact zeros) is kept as the next stage's lane pad.
        cur = out.reshape(B, Ho, Wq, p["cp_out"])[:, :, :Wo, :]
    embed_dim = params[-1]["cout"]
    _, Hf, Wf, _ = cur.shape
    # (B, Hf, Wf, C)[:, :, :, :embed] -> (B, Hf*Wf, embed)
    #  == flatten(2).transpose(1, 2) of the NCHW conv output.
    return cur[..., :embed_dim].reshape(B, Hf * Wf, embed_dim)


# ----------------------------------------------------------------------------
# Pure-JAX reference (for correctness check)
# ----------------------------------------------------------------------------
def patch_embed_reference(x, params):
    cur = x
    for li, p in enumerate(params):
        y = lax.conv_general_dilated(
            cur, p["w_conv"], window_strides=(2, 2), padding=((1, 1), (1, 1)),
            dimension_numbers=("NCHW", "OIHW", "NCHW"),
        ) + p["b_conv"][None, :, None, None]
        inv_std = p["gamma"] / jnp.sqrt(p["rvar"] + p["eps"])
        y = (y - p["rmean"][None, :, None, None]) * inv_std[None, :, None, None] \
            + p["beta"][None, :, None, None]
        if li < 3:
            y = 0.5 * y * (1.0 + lax.erf(y * 0.7071067811865476))
        cur = y
    B, C, H, W = cur.shape
    return cur.reshape(B, C, H * W).transpose(0, 2, 1)


if __name__ == "__main__":
    key = jax.random.PRNGKey(0)
    kx, kp = jax.random.split(key)

    # Small shapes: B=2, in_chans=3, 32x32 image, embed_dim=64
    B, C, H, W = 2, 3, 32, 32
    embed_dim = 64
    x = jax.random.normal(kx, (B, C, H, W), jnp.float32)
    params = make_params(kp, C, embed_dim)

    ref = jax.block_until_ready(patch_embed_reference(x, params))

    # f32 operand path (exact-match check).
    fwd_f32 = jax.jit(lambda xx: patch_embed_forward(
        xx, params, compute_dtype=jnp.float32))
    out = jax.block_until_ready(fwd_f32(x))
    assert out.shape == (B, (H // 16) * (W // 16), embed_dim), out.shape
    assert jnp.allclose(out, ref, rtol=1e-4, atol=1e-4), \
        float(jnp.max(jnp.abs(out - ref)))

    # bf16 operand path (v6e/v7x MXU-native; halves HBM/VMEM traffic).
    # Accumulation and the BN/GELU epilogue stay f32; tolerance loosened.
    fwd_bf16 = jax.jit(lambda xx: patch_embed_forward(
        xx, params, compute_dtype=jnp.bfloat16))
    out_bf16 = jax.block_until_ready(fwd_bf16(x)).astype(jnp.float32)
    assert out_bf16.shape == (B, (H // 16) * (W // 16), embed_dim)
    assert jnp.allclose(out_bf16, ref, rtol=1e-1, atol=1e-1), \
        float(jnp.max(jnp.abs(out_bf16 - ref)))

    print("KERNEL_OK")
</pallas_src>

<mosaic_0001>
module attributes {stable_mosaic.version = 11 : i64} {
  func.func @_conv_bn_act_kernel(%arg0: i32, %arg1: memref<1x2x2x296x8xf32, #tpu.memory_space<vmem>>, %arg2: memref<9x8x128xf32, #tpu.memory_space<vmem>>, %arg3: memref<1x128xf32, #tpu.memory_space<vmem>>, %arg4: memref<1x272x128xf32, #tpu.memory_space<vmem>>) attributes {dimension_semantics = [#tpu.dimension_semantics<parallel>], iteration_bounds = array<i64: 2>, scalar_prefetch = 0 : i64, scratch_operands = 0 : i64, tpu.core_type = #tpu.core_type<tc>, window_params = [{transform_indices = @transform_0, window_bounds = array<i64: 1, 2, 2, 296, 8>}, {pipeline_mode = #tpu.pipeline_mode<synchronous>, transform_indices = @transform_1, window_bounds = array<i64: 9, 8, 128>}, {pipeline_mode = #tpu.pipeline_mode<synchronous>, transform_indices = @transform_2, window_bounds = array<i64: 1, 128>}, {transform_indices = @transform_3, window_bounds = array<i64: 1, 272, 128>}]} {
    %cst = arith.constant 0.000000e+00 : f32
    %0 = vector.broadcast %cst : f32 to vector<272x128xf32>
    %c0 = arith.constant 0 : index
    %c0_0 = arith.constant 0 : index
    %c0_1 = arith.constant 0 : index
    %c0_2 = arith.constant 0 : index
    %c0_3 = arith.constant 0 : index
    %1 = vector.load %arg1[%c0, %c0_0, %c0_1, %c0_2, %c0_3] : memref<1x2x2x296x8xf32, #tpu.memory_space<vmem>>, vector<1x1x1x272x8xf32>
    %2 = vector.shape_cast %1 : vector<1x1x1x272x8xf32> to vector<272x8xf32>
    %c0_4 = arith.constant 0 : index
    %c0_5 = arith.constant 0 : index
    %c0_6 = arith.constant 0 : index
    %3 = vector.load %arg2[%c0_4, %c0_5, %c0_6] : memref<9x8x128xf32, #tpu.memory_space<vmem>>, vector<1x8x128xf32>
    %4 = vector.shape_cast %3 : vector<1x8x128xf32> to vector<8x128xf32>
    %cst_7 = arith.constant dense<0.000000e+00> : vector<272x128xf32>
    %5 = tpu.matmul %2, %4, %cst_7 {dimension_numbers = #tpu.dot_dimension_numbers<[1], [0], [0], [1], [0, 0, 1, 1], [], []>} : vector<272x8xf32>, vector<8x128xf32>, vector<272x128xf32> -> vector<272x128xf32>
    %6 = arith.addf %0, %5 : vector<272x128xf32>
    %c0_8 = arith.constant 0 : index
    %c0_9 = arith.constant 0 : index
    %c1 = arith.constant 1 : index
    %c0_10 = arith.constant 0 : index
    %c0_11 = arith.constant 0 : index
    %7 = vector.load %arg1[%c0_8, %c0_9, %c1, %c0_10, %c0_11] : memref<1x2x2x296x8xf32, #tpu.memory_space<vmem>>, vector<1x1x1x272x8xf32>
    %8 = vector.shape_cast %7 : vector<1x1x1x272x8xf32> to vector<272x8xf32>
    %c1_12 = arith.constant 1 : index
    %c0_13 = arith.constant 0 : index
    %c0_14 = arith.constant 0 : index
    %9 = vector.load %arg2[%c1_12, %c0_13, %c0_14] : memref<9x8x128xf32, #tpu.memory_space<vmem>>, vector<1x8x128xf32>
    %10 = vector.shape_cast %9 : vector<1x8x128xf32> to vector<8x128xf32>
    %cst_15 = arith.constant dense<0.000000e+00> : vector<272x128xf32>
    %11 = tpu.matmul %8, %10, %cst_15 {dimension_numbers = #tpu.dot_dimension_numbers<[1], [0], [0], [1], [0, 0, 1, 1], [], []>} : vector<272x8xf32>, vector<8x128xf32>, vector<272x128xf32> -> vector<272x128xf32>
    %12 = arith.addf %6, %11 : vector<272x128xf32>
    %c0_16 = arith.constant 0 : index
    %c0_17 = arith.constant 0 : index
    %c0_18 = arith.constant 0 : index
    %c1_19 = arith.constant 1 : index
    %c0_20 = arith.constant 0 : index
    %13 = vector.load %arg1[%c0_16, %c0_17, %c0_18, %c1_19, %c0_20] : memref<1x2x2x296x8xf32, #tpu.memory_space<vmem>>, vector<1x1x1x272x8xf32>
    %14 = vector.shape_cast %13 : vector<1x1x1x272x8xf32> to vector<272x8xf32>
    %c2 = arith.constant 2 : index
    %c0_21 = arith.constant 0 : index
    %c0_22 = arith.constant 0 : index
    %15 = vector.load %arg2[%c2, %c0_21, %c0_22] : memref<9x8x128xf32, #tpu.memory_space<vmem>>, vector<1x8x128xf32>
    %16 = vector.shape_cast %15 : vector<1x8x128xf32> to vector<8x128xf32>
    %cst_23 = arith.constant dense<0.000000e+00> : vector<272x128xf32>
    %17 = tpu.matmul %14, %16, %cst_23 {dimension_numbers = #tpu.dot_dimension_numbers<[1], [0], [0], [1], [0, 0, 1, 1], [], []>} : vector<272x8xf32>, vector<8x128xf32>, vector<272x128xf32> -> vector<272x128xf32>
    %18 = arith.addf %12, %17 : vector<272x128xf32>
    %c0_24 = arith.constant 0 : index
    %c1_25 = arith.constant 1 : index
    %c0_26 = arith.constant 0 : index
    %c0_27 = arith.constant 0 : index
    %c0_28 = arith.constant 0 : index
    %19 = vector.load %arg1[%c0_24, %c1_25, %c0_26, %c0_27, %c0_28] : memref<1x2x2x296x8xf32, #tpu.memory_space<vmem>>, vector<1x1x1x272x8xf32>
    %20 = vector.shape_cast %19 : vector<1x1x1x272x8xf32> to vector<272x8xf32>
    %c3 = arith.constant 3 : index
    %c0_29 = arith.constant 0 : index
    %c0_30 = arith.constant 0 : index
    %21 = vector.load %arg2[%c3, %c0_29, %c0_30] : memref<9x8x128xf32, #tpu.memory_space<vmem>>, vector<1x8x128xf32>
    %22 = vector.shape_cast %21 : vector<1x8x128xf32> to vector<8x128xf32>
    %cst_31 = arith.constant dense<0.000000e+00> : vector<272x128xf32>
    %23 = tpu.matmul %20, %22, %cst_31 {dimension_numbers = #tpu.dot_dimension_numbers<[1], [0], [0], [1], [0, 0, 1, 1], [], []>} : vector<272x8xf32>, vector<8x128xf32>, vector<272x128xf32> -> vector<272x128xf32>
    %24 = arith.addf %18, %23 : vector<272x128xf32>
    %c0_32 = arith.constant 0 : index
    %c1_33 = arith.constant 1 : index
    %c1_34 = arith.constant 1 : index
    %c0_35 = arith.constant 0 : index
    %c0_36 = arith.constant 0 : index
    %25 = vector.load %arg1[%c0_32, %c1_33, %c1_34, %c0_35, %c0_36] : memref<1x2x2x296x8xf32, #tpu.memory_space<vmem>>, vector<1x1x1x272x8xf32>
    %26 = vector.shape_cast %25 : vector<1x1x1x272x8xf32> to vector<272x8xf32>
    %c4 = arith.constant 4 : index
    %c0_37 = arith.constant 0 : index
    %c0_38 = arith.constant 0 : index
    %27 = vector.load %arg2[%c4, %c0_37, %c0_38] : memref<9x8x128xf32, #tpu.memory_space<vmem>>, vector<1x8x128xf32>
    %28 = vector.shape_cast %27 : vector<1x8x128xf32> to vector<8x128xf32>
    %cst_39 = arith.constant dense<0.000000e+00> : vector<272x128xf32>
    %29 = tpu.matmul %26, %28, %cst_39 {dimension_numbers = #tpu.dot_dimension_numbers<[1], [0], [0], [1], [0, 0, 1, 1], [], []>} : vector<272x8xf32>, vector<8x128xf32>, vector<272x128xf32> -> vector<272x128xf32>
    %30 = arith.addf %24, %29 : vector<272x128xf32>
    %c0_40 = arith.constant 0 : index
    %c1_41 = arith.constant 1 : index
    %c0_42 = arith.constant 0 : index
    %c1_43 = arith.constant 1 : index
    %c0_44 = arith.constant 0 : index
    %31 = vector.load %arg1[%c0_40, %c1_41, %c0_42, %c1_43, %c0_44] : memref<1x2x2x296x8xf32, #tpu.memory_space<vmem>>, vector<1x1x1x272x8xf32>
    %32 = vector.shape_cast %31 : vector<1x1x1x272x8xf32> to vector<272x8xf32>
    %c5 = arith.constant 5 : index
    %c0_45 = arith.constant 0 : index
    %c0_46 = arith.constant 0 : index
    %33 = vector.load %arg2[%c5, %c0_45, %c0_46] : memref<9x8x128xf32, #tpu.memory_space<vmem>>, vector<1x8x128xf32>
    %34 = vector.shape_cast %33 : vector<1x8x128xf32> to vector<8x128xf32>
    %cst_47 = arith.constant dense<0.000000e+00> : vector<272x128xf32>
    %35 = tpu.matmul %32, %34, %cst_47 {dimension_numbers = #tpu.dot_dimension_numbers<[1], [0], [0], [1], [0, 0, 1, 1], [], []>} : vector<272x8xf32>, vector<8x128xf32>, vector<272x128xf32> -> vector<272x128xf32>
    %36 = arith.addf %30, %35 : vector<272x128xf32>
    %c0_48 = arith.constant 0 : index
    %c0_49 = arith.constant 0 : index
    %c0_50 = arith.constant 0 : index
    %c17 = arith.constant 17 : index
    %c0_51 = arith.constant 0 : index
    %37 = vector.load %arg1[%c0_48, %c0_49, %c0_50, %c17, %c0_51] : memref<1x2x2x296x8xf32, #tpu.memory_space<vmem>>, vector<1x1x1x272x8xf32>
    %38 = vector.shape_cast %37 : vector<1x1x1x272x8xf32> to vector<272x8xf32>
    %c6 = arith.constant 6 : index
    %c0_52 = arith.constant 0 : index
    %c0_53 = arith.constant 0 : index
    %39 = vector.load %arg2[%c6, %c0_52, %c0_53] : memref<9x8x128xf32, #tpu.memory_space<vmem>>, vector<1x8x128xf32>
    %40 = vector.shape_cast %39 : vector<1x8x128xf32> to vector<8x128xf32>
    %cst_54 = arith.constant dense<0.000000e+00> : vector<272x128xf32>
    %41 = tpu.matmul %38, %40, %cst_54 {dimension_numbers = #tpu.dot_dimension_numbers<[1], [0], [0], [1], [0, 0, 1, 1], [], []>} : vector<272x8xf32>, vector<8x128xf32>, vector<272x128xf32> -> vector<272x128xf32>
    %42 = arith.addf %36, %41 : vector<272x128xf32>
    %c0_55 = arith.constant 0 : index
    %c0_56 = arith.constant 0 : index
    %c1_57 = arith.constant 1 : index
    %c17_58 = arith.constant 17 : index
    %c0_59 = arith.constant 0 : index
    %43 = vector.load %arg1[%c0_55, %c0_56, %c1_57, %c17_58, %c0_59] : memref<1x2x2x296x8xf32, #tpu.memory_space<vmem>>, vector<1x1x1x272x8xf32>
    %44 = vector.shape_cast %43 : vector<1x1x1x272x8xf32> to vector<272x8xf32>
    %c7 = arith.constant 7 : index
    %c0_60 = arith.constant 0 : index
    %c0_61 = arith.constant 0 : index
    %45 = vector.load %arg2[%c7, %c0_60, %c0_61] : memref<9x8x128xf32, #tpu.memory_space<vmem>>, vector<1x8x128xf32>
    %46 = vector.shape_cast %45 : vector<1x8x128xf32> to vector<8x128xf32>
    %cst_62 = arith.constant dense<0.000000e+00> : vector<272x128xf32>
    %47 = tpu.matmul %44, %46, %cst_62 {dimension_numbers = #tpu.dot_dimension_numbers<[1], [0], [0], [1], [0, 0, 1, 1], [], []>} : vector<272x8xf32>, vector<8x128xf32>, vector<272x128xf32> -> vector<272x128xf32>
    %48 = arith.addf %42, %47 : vector<272x128xf32>
    %c0_63 = arith.constant 0 : index
    %c0_64 = arith.constant 0 : index
    %c0_65 = arith.constant 0 : index
    %c18 = arith.constant 18 : index
    %c0_66 = arith.constant 0 : index
    %49 = vector.load %arg1[%c0_63, %c0_64, %c0_65, %c18, %c0_66] : memref<1x2x2x296x8xf32, #tpu.memory_space<vmem>>, vector<1x1x1x272x8xf32>
    %50 = vector.shape_cast %49 : vector<1x1x1x272x8xf32> to vector<272x8xf32>
    %c8 = arith.constant 8 : index
    %c0_67 = arith.constant 0 : index
    %c0_68 = arith.constant 0 : index
    %51 = vector.load %arg2[%c8, %c0_67, %c0_68] : memref<9x8x128xf32, #tpu.memory_space<vmem>>, vector<1x8x128xf32>
    %52 = vector.shape_cast %51 : vector<1x8x128xf32> to vector<8x128xf32>
    %cst_69 = arith.constant dense<0.000000e+00> : vector<272x128xf32>
    %53 = tpu.matmul %50, %52, %cst_69 {dimension_numbers = #tpu.dot_dimension_numbers<[1], [0], [0], [1], [0, 0, 1, 1], [], []>} : vector<272x8xf32>, vector<8x128xf32>, vector<272x128xf32> -> vector<272x128xf32>
    %54 = arith.addf %48, %53 : vector<272x128xf32>
    %c0_70 = arith.constant 0 : index
    %c0_71 = arith.constant 0 : index
    %55 = vector.load %arg3[%c0_70, %c0_71] : memref<1x128xf32, #tpu.memory_space<vmem>>, vector<1x128xf32>
    %56 = vector.broadcast %55 : vector<1x128xf32> to vector<272x128xf32>
    %57 = arith.addf %54, %56 : vector<272x128xf32>
    %cst_72 = arith.constant 5.000000e-01 : f32
    %58 = vector.broadcast %cst_72 : f32 to vector<272x128xf32>
    %59 = arith.mulf %58, %57 : vector<272x128xf32>
    %cst_73 = arith.constant 0.707106769 : f32
    %60 = vector.broadcast %cst_73 : f32 to vector<272x128xf32>
    %61 = arith.mulf %57, %60 : vector<272x128xf32>
    %62 = math.erf %61 : vector<272x128xf32>
    %cst_74 = arith.constant 1.000000e+00 : f32
    %63 = vector.broadcast %cst_74 : f32 to vector<272x128xf32>
    %64 = arith.addf %63, %62 : vector<272x128xf32>
    %65 = arith.mulf %59, %64 : vector<272x128xf32>
    %c0_75 = arith.constant 0 : index
    %c0_76 = arith.constant 0 : index
    %c0_77 = arith.constant 0 : index
    %66 = vector.load %arg4[%c0_75, %c0_76, %c0_77] : memref<1x272x128xf32, #tpu.memory_space<vmem>>, vector<1x272x128xf32>
    %67 = vector.shape_cast %66 : vector<1x272x128xf32> to vector<272x128xf32>
    %68 = vector.shape_cast %65 : vector<272x128xf32> to vector<1x272x128xf32>
    tpu.vector_store %arg4[%c0_75, %c0_76, %c0_77], %68 {strides = array<i32>} : memref<1x272x128xf32, #tpu.memory_space<vmem>>, vector<1x272x128xf32>,
    return
  }
  func.func @transform_0(%arg0: i32) -> (i32, i32, i32, i32, i32) {
    %c0_i32 = arith.constant 0 : i32
    %c0_i32_0 = arith.constant 0 : i32
    %c0_i32_1 = arith.constant 0 : i32
    %c0_i32_2 = arith.constant 0 : i32
    %c0_i32_3 = arith.constant 0 : i32
    return %arg0, %c0_i32, %c0_i32_0, %c0_i32_1, %c0_i32_2 : i32, i32, i32, i32, i32
  }
  func.func @transform_1(%arg0: i32) -> (i32, i32, i32) {
    %c0_i32 = arith.constant 0 : i32
    %c0_i32_0 = arith.constant 0 : i32
    %c0_i32_1 = arith.constant 0 : i32
    %c0_i32_2 = arith.constant 0 : i32
    return %c0_i32, %c0_i32_0, %c0_i32_1 : i32, i32, i32
  }
  func.func @transform_2(%arg0: i32) -> (i32, i32) {
    %c0_i32 = arith.constant 0 : i32
    %c0_i32_0 = arith.constant 0 : i32
    %c0_i32_1 = arith.constant 0 : i32
    return %c0_i32, %c0_i32_0 : i32, i32
  }
  func.func @transform_3(%arg0: i32) -> (i32, i32, i32) {
    %c0_i32 = arith.constant 0 : i32
    %c0_i32_0 = arith.constant 0 : i32
    %c0_i32_1 = arith.constant 0 : i32
    return %arg0, %c0_i32, %c0_i32_0 : i32, i32, i32
  }
}

module attributes {stable_mosaic.version = 11 : i64} {
  func.func @_conv_bn_act_kernel(%arg0: i32, %arg1: memref<1x2x2x88x128xf32, #tpu.memory_space<vmem>>, %arg2: memref<9x128x128xf32, #tpu.memory_space<vmem>>, %arg3: memref<1x128xf32, #tpu.memory_space<vmem>>, %arg4: memref<1x72x128xf32, #tpu.memory_space<vmem>>) attributes {dimension_semantics = [#tpu.dimension_semantics<parallel>], iteration_bounds = array<i64: 2>, scalar_prefetch = 0 : i64, scratch_operands = 0 : i64, tpu.core_type = #tpu.core_type<tc>, window_params = [{transform_indices = @transform_0, window_bounds = array<i64: 1, 2, 2, 88, 128>}, {pipeline_mode = #tpu.pipeline_mode<synchronous>, transform_indices = @transform_1, window_bounds = array<i64: 9, 128, 128>}, {pipeline_mode = #tpu.pipeline_mode<synchronous>, transform_indices = @transform_2, window_bounds = array<i64: 1, 128>}, {transform_indices = @transform_3, window_bounds = array<i64: 1, 72, 128>}]} {
    %cst = arith.constant 0.000000e+00 : f32
    %0 = vector.broadcast %cst : f32 to vector<72x128xf32>
    %c0 = arith.constant 0 : index
    %c0_0 = arith.constant 0 : index
    %c0_1 = arith.constant 0 : index
    %c0_2 = arith.constant 0 : index
    %c0_3 = arith.constant 0 : index
    %1 = vector.load %arg1[%c0, %c0_0, %c0_1, %c0_2, %c0_3] : memref<1x2x2x88x128xf32, #tpu.memory_space<vmem>>, vector<1x1x1x72x128xf32>
    %2 = vector.shape_cast %1 : vector<1x1x1x72x128xf32> to vector<72x128xf32>
    %c0_4 = arith.constant 0 : index
    %c0_5 = arith.constant 0 : index
    %c0_6 = arith.constant 0 : index
    %3 = vector.load %arg2[%c0_4, %c0_5, %c0_6] : memref<9x128x128xf32, #tpu.memory_space<vmem>>, vector<1x128x128xf32>
    %4 = vector.shape_cast %3 : vector<1x128x128xf32> to vector<128x128xf32>
    %cst_7 = arith.constant dense<0.000000e+00> : vector<72x128xf32>
    %5 = tpu.matmul %2, %4, %cst_7 {dimension_numbers = #tpu.dot_dimension_numbers<[1], [0], [0], [1], [0, 0, 1, 1], [], []>} : vector<72x128xf32>, vector<128x128xf32>, vector<72x128xf32> -> vector<72x128xf32>
    %6 = arith.addf %0, %5 : vector<72x128xf32>
    %c0_8 = arith.constant 0 : index
    %c0_9 = arith.constant 0 : index
    %c1 = arith.constant 1 : index
    %c0_10 = arith.constant 0 : index
    %c0_11 = arith.constant 0 : index
    %7 = vector.load %arg1[%c0_8, %c0_9, %c1, %c0_10, %c0_11] : memref<1x2x2x88x128xf32, #tpu.memory_space<vmem>>, vector<1x1x1x72x128xf32>
    %8 = vector.shape_cast %7 : vector<1x1x1x72x128xf32> to vector<72x128xf32>
    %c1_12 = arith.constant 1 : index
    %c0_13 = arith.constant 0 : index
    %c0_14 = arith.constant 0 : index
    %9 = vector.load %arg2[%c1_12, %c0_13, %c0_14] : memref<9x128x128xf32, #tpu.memory_space<vmem>>, vector<1x128x128xf32>
    %10 = vector.shape_cast %9 : vector<1x128x128xf32> to vector<128x128xf32>
    %cst_15 = arith.constant dense<0.000000e+00> : vector<72x128xf32>
    %11 = tpu.matmul %8, %10, %cst_15 {dimension_numbers = #tpu.dot_dimension_numbers<[1], [0], [0], [1], [0, 0, 1, 1], [], []>} : vector<72x128xf32>, vector<128x128xf32>, vector<72x128xf32> -> vector<72x128xf32>
    %12 = arith.addf %6, %11 : vector<72x128xf32>
    %c0_16 = arith.constant 0 : index
    %c0_17 = arith.constant 0 : index
    %c0_18 = arith.constant 0 : index
    %c1_19 = arith.constant 1 : index
    %c0_20 = arith.constant 0 : index
    %13 = vector.load %arg1[%c0_16, %c0_17, %c0_18, %c1_19, %c0_20] : memref<1x2x2x88x128xf32, #tpu.memory_space<vmem>>, vector<1x1x1x72x128xf32>
    %14 = vector.shape_cast %13 : vector<1x1x1x72x128xf32> to vector<72x128xf32>
    %c2 = arith.constant 2 : index
    %c0_21 = arith.constant 0 : index
    %c0_22 = arith.constant 0 : index
    %15 = vector.load %arg2[%c2, %c0_21, %c0_22] : memref<9x128x128xf32, #tpu.memory_space<vmem>>, vector<1x128x128xf32>
    %16 = vector.shape_cast %15 : vector<1x128x128xf32> to vector<128x128xf32>
    %cst_23 = arith.constant dense<0.000000e+00> : vector<72x128xf32>
    %17 = tpu.matmul %14, %16, %cst_23 {dimension_numbers = #tpu.dot_dimension_numbers<[1], [0], [0], [1], [0, 0, 1, 1], [], []>} : vector<72x128xf32>, vector<128x128xf32>, vector<72x128xf32> -> vector<72x128xf32>
    %18 = arith.addf %12, %17 : vector<72x128xf32>
    %c0_24 = arith.constant 0 : index
    %c1_25 = arith.constant 1 : index
    %c0_26 = arith.constant 0 : index
    %c0_27 = arith.constant 0 : index
    %c0_28 = arith.constant 0 : index
    %19 = vector.load %arg1[%c0_24, %c1_25, %c0_26, %c0_27, %c0_28] : memref<1x2x2x88x128xf32, #tpu.memory_space<vmem>>, vector<1x1x1x72x128xf32>
    %20 = vector.shape_cast %19 : vector<1x1x1x72x128xf32> to vector<72x128xf32>
    %c3 = arith.constant 3 : index
    %c0_29 = arith.constant 0 : index
    %c0_30 = arith.constant 0 : index
    %21 = vector.load %arg2[%c3, %c0_29, %c0_30] : memref<9x128x128xf32, #tpu.memory_space<vmem>>, vector<1x128x128xf32>
    %22 = vector.shape_cast %21 : vector<1x128x128xf32> to vector<128x128xf32>
    %cst_31 = arith.constant dense<0.000000e+00> : vector<72x128xf32>
    %23 = tpu.matmul %20, %22, %cst_31 {dimension_numbers = #tpu.dot_dimension_numbers<[1], [0], [0], [1], [0, 0, 1, 1], [], []>} : vector<72x128xf32>, vector<128x128xf32>, vector<72x128xf32> -> vector<72x128xf32>
    %24 = arith.addf %18, %23 : vector<72x128xf32>
    %c0_32 = arith.constant 0 : index
    %c1_33 = arith.constant 1 : index
    %c1_34 = arith.constant 1 : index
    %c0_35 = arith.constant 0 : index
    %c0_36 = arith.constant 0 : index
    %25 = vector.load %arg1[%c0_32, %c1_33, %c1_34, %c0_35, %c0_36] : memref<1x2x2x88x128xf32, #tpu.memory_space<vmem>>, vector<1x1x1x72x128xf32>
    %26 = vector.shape_cast %25 : vector<1x1x1x72x128xf32> to vector<72x128xf32>
    %c4 = arith.constant 4 : index
    %c0_37 = arith.constant 0 : index
    %c0_38 = arith.constant 0 : index
    %27 = vector.load %arg2[%c4, %c0_37, %c0_38] : memref<9x128x128xf32, #tpu.memory_space<vmem>>, vector<1x128x128xf32>
    %28 = vector.shape_cast %27 : vector<1x128x128xf32> to vector<128x128xf32>
    %cst_39 = arith.constant dense<0.000000e+00> : vector<72x128xf32>
    %29 = tpu.matmul %26, %28, %cst_39 {dimension_numbers = #tpu.dot_dimension_numbers<[1], [0], [0], [1], [0, 0, 1, 1], [], []>} : vector<72x128xf32>, vector<128x128xf32>, vector<72x128xf32> -> vector<72x128xf32>
    %30 = arith.addf %24, %29 : vector<72x128xf32>
    %c0_40 = arith.constant 0 : index
    %c1_41 = arith.constant 1 : index
    %c0_42 = arith.constant 0 : index
    %c1_43 = arith.constant 1 : index
    %c0_44 = arith.constant 0 : index
    %31 = vector.load %arg1[%c0_40, %c1_41, %c0_42, %c1_43, %c0_44] : memref<1x2x2x88x128xf32, #tpu.memory_space<vmem>>, vector<1x1x1x72x128xf32>
    %32 = vector.shape_cast %31 : vector<1x1x1x72x128xf32> to vector<72x128xf32>
    %c5 = arith.constant 5 : index
    %c0_45 = arith.constant 0 : index
    %c0_46 = arith.constant 0 : index
    %33 = vector.load %arg2[%c5, %c0_45, %c0_46] : memref<9x128x128xf32, #tpu.memory_space<vmem>>, vector<1x128x128xf32>
    %34 = vector.shape_cast %33 : vector<1x128x128xf32> to vector<128x128xf32>
    %cst_47 = arith.constant dense<0.000000e+00> : vector<72x128xf32>
    %35 = tpu.matmul %32, %34, %cst_47 {dimension_numbers = #tpu.dot_dimension_numbers<[1], [0], [0], [1], [0, 0, 1, 1], [], []>} : vector<72x128xf32>, vector<128x128xf32>, vector<72x128xf32> -> vector<72x128xf32>
    %36 = arith.addf %30, %35 : vector<72x128xf32>
    %c0_48 = arith.constant 0 : index
    %c0_49 = arith.constant 0 : index
    %c0_50 = arith.constant 0 : index
    %c9 = arith.constant 9 : index
    %c0_51 = arith.constant 0 : index
    %37 = vector.load %arg1[%c0_48, %c0_49, %c0_50, %c9, %c0_51] : memref<1x2x2x88x128xf32, #tpu.memory_space<vmem>>, vector<1x1x1x72x128xf32>
    %38 = vector.shape_cast %37 : vector<1x1x1x72x128xf32> to vector<72x128xf32>
    %c6 = arith.constant 6 : index
    %c0_52 = arith.constant 0 : index
    %c0_53 = arith.constant 0 : index
    %39 = vector.load %arg2[%c6, %c0_52, %c0_53] : memref<9x128x128xf32, #tpu.memory_space<vmem>>, vector<1x128x128xf32>
    %40 = vector.shape_cast %39 : vector<1x128x128xf32> to vector<128x128xf32>
    %cst_54 = arith.constant dense<0.000000e+00> : vector<72x128xf32>
    %41 = tpu.matmul %38, %40, %cst_54 {dimension_numbers = #tpu.dot_dimension_numbers<[1], [0], [0], [1], [0, 0, 1, 1], [], []>} : vector<72x128xf32>, vector<128x128xf32>, vector<72x128xf32> -> vector<72x128xf32>
    %42 = arith.addf %36, %41 : vector<72x128xf32>
    %c0_55 = arith.constant 0 : index
    %c0_56 = arith.constant 0 : index
    %c1_57 = arith.constant 1 : index
    %c9_58 = arith.constant 9 : index
    %c0_59 = arith.constant 0 : index
    %43 = vector.load %arg1[%c0_55, %c0_56, %c1_57, %c9_58, %c0_59] : memref<1x2x2x88x128xf32, #tpu.memory_space<vmem>>, vector<1x1x1x72x128xf32>
    %44 = vector.shape_cast %43 : vector<1x1x1x72x128xf32> to vector<72x128xf32>
    %c7 = arith.constant 7 : index
    %c0_60 = arith.constant 0 : index
    %c0_61 = arith.constant 0 : index
    %45 = vector.load %arg2[%c7, %c0_60, %c0_61] : memref<9x128x128xf32, #tpu.memory_space<vmem>>, vector<1x128x128xf32>
    %46 = vector.shape_cast %45 : vector<1x128x128xf32> to vector<128x128xf32>
    %cst_62 = arith.constant dense<0.000000e+00> : vector<72x128xf32>
    %47 = tpu.matmul %44, %46, %cst_62 {dimension_numbers = #tpu.dot_dimension_numbers<[1], [0], [0], [1], [0, 0, 1, 1], [], []>} : vector<72x128xf32>, vector<128x128xf32>, vector<72x128xf32> -> vector<72x128xf32>
    %48 = arith.addf %42, %47 : vector<72x128xf32>
    %c0_63 = arith.constant 0 : index
    %c0_64 = arith.constant 0 : index
    %c0_65 = arith.constant 0 : index
    %c10 = arith.constant 10 : index
    %c0_66 = arith.constant 0 : index
    %49 = vector.load %arg1[%c0_63, %c0_64, %c0_65, %c10, %c0_66] : memref<1x2x2x88x128xf32, #tpu.memory_space<vmem>>, vector<1x1x1x72x128xf32>
    %50 = vector.shape_cast %49 : vector<1x1x1x72x128xf32> to vector<72x128xf32>
    %c8 = arith.constant 8 : index
    %c0_67 = arith.constant 0 : index
    %c0_68 = arith.constant 0 : index
    %51 = vector.load %arg2[%c8, %c0_67, %c0_68] : memref<9x128x128xf32, #tpu.memory_space<vmem>>, vector<1x128x128xf32>
    %52 = vector.shape_cast %51 : vector<1x128x128xf32> to vector<128x128xf32>
    %cst_69 = arith.constant dense<0.000000e+00> : vector<72x128xf32>
    %53 = tpu.matmul %50, %52, %cst_69 {dimension_numbers = #tpu.dot_dimension_numbers<[1], [0], [0], [1], [0, 0, 1, 1], [], []>} : vector<72x128xf32>, vector<128x128xf32>, vector<72x128xf32> -> vector<72x128xf32>
    %54 = arith.addf %48, %53 : vector<72x128xf32>
    %c0_70 = arith.constant 0 : index
    %c0_71 = arith.constant 0 : index
    %55 = vector.load %arg3[%c0_70, %c0_71] : memref<1x128xf32, #tpu.memory_space<vmem>>, vector<1x128xf32>
    %56 = vector.broadcast %55 : vector<1x128xf32> to vector<72x128xf32>
    %57 = arith.addf %54, %56 : vector<72x128xf32>
    %cst_72 = arith.constant 5.000000e-01 : f32
    %58 = vector.broadcast %cst_72 : f32 to vector<72x128xf32>
    %59 = arith.mulf %58, %57 : vector<72x128xf32>
    %cst_73 = arith.constant 0.707106769 : f32
    %60 = vector.broadcast %cst_73 : f32 to vector<72x128xf32>
    %61 = arith.mulf %57, %60 : vector<72x128xf32>
    %62 = math.erf %61 : vector<72x128xf32>
    %cst_74 = arith.constant 1.000000e+00 : f32
    %63 = vector.broadcast %cst_74 : f32 to vector<72x128xf32>
    %64 = arith.addf %63, %62 : vector<72x128xf32>
    %65 = arith.mulf %59, %64 : vector<72x128xf32>
    %c0_75 = arith.constant 0 : index
    %c0_76 = arith.constant 0 : index
    %c0_77 = arith.constant 0 : index
    %66 = vector.load %arg4[%c0_75, %c0_76, %c0_77] : memref<1x72x128xf32, #tpu.memory_space<vmem>>, vector<1x72x128xf32>
    %67 = vector.shape_cast %66 : vector<1x72x128xf32> to vector<72x128xf32>
    %68 = vector.shape_cast %65 : vector<72x128xf32> to vector<1x72x128xf32>
    tpu.vector_store %arg4[%c0_75, %c0_76, %c0_77], %68 {strides = array<i32>} : memref<1x72x128xf32, #tpu.memory_space<vmem>>, vector<1x72x128xf32>,
    return
  }
  func.func @transform_0(%arg0: i32) -> (i32, i32, i32, i32, i32) {
    %c0_i32 = arith.constant 0 : i32
    %c0_i32_0 = arith.constant 0 : i32
    %c0_i32_1 = arith.constant 0 : i32
    %c0_i32_2 = arith.constant 0 : i32
    %c0_i32_3 = arith.constant 0 : i32
    return %arg0, %c0_i32, %c0_i32_0, %c0_i32_1, %c0_i32_2 : i32, i32, i32, i32, i32
  }
  func.func @transform_1(%arg0: i32) -> (i32, i32, i32) {
    %c0_i32 = arith.constant 0 : i32
    %c0_i32_0 = arith.constant 0 : i32
    %c0_i32_1 = arith.constant 0 : i32
    %c0_i32_2 = arith.constant 0 : i32
    return %c0_i32, %c0_i32_0, %c0_i32_1 : i32, i32, i32
  }
  func.func @transform_2(%arg0: i32) -> (i32, i32) {
    %c0_i32 = arith.constant 0 : i32
    %c0_i32_0 = arith.constant 0 : i32
    %c0_i32_1 = arith.constant 0 : i32
    return %c0_i32, %c0_i32_0 : i32, i32
  }
  func.func @transform_3(%arg0: i32) -> (i32, i32, i32) {
    %c0_i32 = arith.constant 0 : i32
    %c0_i32_0 = arith.constant 0 : i32
    %c0_i32_1 = arith.constant 0 : i32
    return %arg0, %c0_i32, %c0_i32_0 : i32, i32, i32
  }
}

module attributes {stable_mosaic.version = 11 : i64} {
  func.func @_conv_bn_act_kernel(%arg0: i32, %arg1: memref<1x2x2x32x128xf32, #tpu.memory_space<vmem>>, %arg2: memref<9x128x128xf32, #tpu.memory_space<vmem>>, %arg3: memref<1x128xf32, #tpu.memory_space<vmem>>, %arg4: memref<1x20x128xf32, #tpu.memory_space<vmem>>) attributes {dimension_semantics = [#tpu.dimension_semantics<parallel>], iteration_bounds = array<i64: 2>, scalar_prefetch = 0 : i64, scratch_operands = 0 : i64, tpu.core_type = #tpu.core_type<tc>, window_params = [{transform_indices = @transform_0, window_bounds = array<i64: 1, 2, 2, 32, 128>}, {pipeline_mode = #tpu.pipeline_mode<synchronous>, transform_indices = @transform_1, window_bounds = array<i64: 9, 128, 128>}, {pipeline_mode = #tpu.pipeline_mode<synchronous>, transform_indices = @transform_2, window_bounds = array<i64: 1, 128>}, {transform_indices = @transform_3, window_bounds = array<i64: 1, 20, 128>}]} {
    %cst = arith.constant 0.000000e+00 : f32
    %0 = vector.broadcast %cst : f32 to vector<20x128xf32>
    %c0 = arith.constant 0 : index
    %c0_0 = arith.constant 0 : index
    %c0_1 = arith.constant 0 : index
    %c0_2 = arith.constant 0 : index
    %c0_3 = arith.constant 0 : index
    %1 = vector.load %arg1[%c0, %c0_0, %c0_1, %c0_2, %c0_3] : memref<1x2x2x32x128xf32, #tpu.memory_space<vmem>>, vector<1x1x1x20x128xf32>
    %2 = vector.shape_cast %1 : vector<1x1x1x20x128xf32> to vector<20x128xf32>
    %c0_4 = arith.constant 0 : index
    %c0_5 = arith.constant 0 : index
    %c0_6 = arith.constant 0 : index
    %3 = vector.load %arg2[%c0_4, %c0_5, %c0_6] : memref<9x128x128xf32, #tpu.memory_space<vmem>>, vector<1x128x128xf32>
    %4 = vector.shape_cast %3 : vector<1x128x128xf32> to vector<128x128xf32>
    %cst_7 = arith.constant dense<0.000000e+00> : vector<20x128xf32>
    %5 = tpu.matmul %2, %4, %cst_7 {dimension_numbers = #tpu.dot_dimension_numbers<[1], [0], [0], [1], [0, 0, 1, 1], [], []>} : vector<20x128xf32>, vector<128x128xf32>, vector<20x128xf32> -> vector<20x128xf32>
    %6 = arith.addf %0, %5 : vector<20x128xf32>
    %c0_8 = arith.constant 0 : index
    %c0_9 = arith.constant 0 : index
    %c1 = arith.constant 1 : index
    %c0_10 = arith.constant 0 : index
    %c0_11 = arith.constant 0 : index
    %7 = vector.load %arg1[%c0_8, %c0_9, %c1, %c0_10, %c0_11] : memref<1x2x2x32x128xf32, #tpu.memory_space<vmem>>, vector<1x1x1x20x128xf32>
    %8 = vector.shape_cast %7 : vector<1x1x1x20x128xf32> to vector<20x128xf32>
    %c1_12 = arith.constant 1 : index
    %c0_13 = arith.constant 0 : index
    %c0_14 = arith.constant 0 : index
    %9 = vector.load %arg2[%c1_12, %c0_13, %c0_14] : memref<9x128x128xf32, #tpu.memory_space<vmem>>, vector<1x128x128xf32>
    %10 = vector.shape_cast %9 : vector<1x128x128xf32> to vector<128x128xf32>
    %cst_15 = arith.constant dense<0.000000e+00> : vector<20x128xf32>
    %11 = tpu.matmul %8, %10, %cst_15 {dimension_numbers = #tpu.dot_dimension_numbers<[1], [0], [0], [1], [0, 0, 1, 1], [], []>} : vector<20x128xf32>, vector<128x128xf32>, vector<20x128xf32> -> vector<20x128xf32>
    %12 = arith.addf %6, %11 : vector<20x128xf32>
    %c0_16 = arith.constant 0 : index
    %c0_17 = arith.constant 0 : index
    %c0_18 = arith.constant 0 : index
    %c1_19 = arith.constant 1 : index
    %c0_20 = arith.constant 0 : index
    %13 = vector.load %arg1[%c0_16, %c0_17, %c0_18, %c1_19, %c0_20] : memref<1x2x2x32x128xf32, #tpu.memory_space<vmem>>, vector<1x1x1x20x128xf32>
    %14 = vector.shape_cast %13 : vector<1x1x1x20x128xf32> to vector<20x128xf32>
    %c2 = arith.constant 2 : index
    %c0_21 = arith.constant 0 : index
    %c0_22 = arith.constant 0 : index
    %15 = vector.load %arg2[%c2, %c0_21, %c0_22] : memref<9x128x128xf32, #tpu.memory_space<vmem>>, vector<1x128x128xf32>
    %16 = vector.shape_cast %15 : vector<1x128x128xf32> to vector<128x128xf32>
    %cst_23 = arith.constant dense<0.000000e+00> : vector<20x128xf32>
    %17 = tpu.matmul %14, %16, %cst_23 {dimension_numbers = #tpu.dot_dimension_numbers<[1], [0], [0], [1], [0, 0, 1, 1], [], []>} : vector<20x128xf32>, vector<128x128xf32>, vector<20x128xf32> -> vector<20x128xf32>
    %18 = arith.addf %12, %17 : vector<20x128xf32>
    %c0_24 = arith.constant 0 : index
    %c1_25 = arith.constant 1 : index
    %c0_26 = arith.constant 0 : index
    %c0_27 = arith.constant 0 : index
    %c0_28 = arith.constant 0 : index
    %19 = vector.load %arg1[%c0_24, %c1_25, %c0_26, %c0_27, %c0_28] : memref<1x2x2x32x128xf32, #tpu.memory_space<vmem>>, vector<1x1x1x20x128xf32>
    %20 = vector.shape_cast %19 : vector<1x1x1x20x128xf32> to vector<20x128xf32>
    %c3 = arith.constant 3 : index
    %c0_29 = arith.constant 0 : index
    %c0_30 = arith.constant 0 : index
    %21 = vector.load %arg2[%c3, %c0_29, %c0_30] : memref<9x128x128xf32, #tpu.memory_space<vmem>>, vector<1x128x128xf32>
    %22 = vector.shape_cast %21 : vector<1x128x128xf32> to vector<128x128xf32>
    %cst_31 = arith.constant dense<0.000000e+00> : vector<20x128xf32>
    %23 = tpu.matmul %20, %22, %cst_31 {dimension_numbers = #tpu.dot_dimension_numbers<[1], [0], [0], [1], [0, 0, 1, 1], [], []>} : vector<20x128xf32>, vector<128x128xf32>, vector<20x128xf32> -> vector<20x128xf32>
    %24 = arith.addf %18, %23 : vector<20x128xf32>
    %c0_32 = arith.constant 0 : index
    %c1_33 = arith.constant 1 : index
    %c1_34 = arith.constant 1 : index
    %c0_35 = arith.constant 0 : index
    %c0_36 = arith.constant 0 : index
    %25 = vector.load %arg1[%c0_32, %c1_33, %c1_34, %c0_35, %c0_36] : memref<1x2x2x32x128xf32, #tpu.memory_space<vmem>>, vector<1x1x1x20x128xf32>
    %26 = vector.shape_cast %25 : vector<1x1x1x20x128xf32> to vector<20x128xf32>
    %c4 = arith.constant 4 : index
    %c0_37 = arith.constant 0 : index
    %c0_38 = arith.constant 0 : index
    %27 = vector.load %arg2[%c4, %c0_37, %c0_38] : memref<9x128x128xf32, #tpu.memory_space<vmem>>, vector<1x128x128xf32>
    %28 = vector.shape_cast %27 : vector<1x128x128xf32> to vector<128x128xf32>
    %cst_39 = arith.constant dense<0.000000e+00> : vector<20x128xf32>
    %29 = tpu.matmul %26, %28, %cst_39 {dimension_numbers = #tpu.dot_dimension_numbers<[1], [0], [0], [1], [0, 0, 1, 1], [], []>} : vector<20x128xf32>, vector<128x128xf32>, vector<20x128xf32> -> vector<20x128xf32>
    %30 = arith.addf %24, %29 : vector<20x128xf32>
    %c0_40 = arith.constant 0 : index
    %c1_41 = arith.constant 1 : index
    %c0_42 = arith.constant 0 : index
    %c1_43 = arith.constant 1 : index
    %c0_44 = arith.constant 0 : index
    %31 = vector.load %arg1[%c0_40, %c1_41, %c0_42, %c1_43, %c0_44] : memref<1x2x2x32x128xf32, #tpu.memory_space<vmem>>, vector<1x1x1x20x128xf32>
    %32 = vector.shape_cast %31 : vector<1x1x1x20x128xf32> to vector<20x128xf32>
    %c5 = arith.constant 5 : index
    %c0_45 = arith.constant 0 : index
    %c0_46 = arith.constant 0 : index
    %33 = vector.load %arg2[%c5, %c0_45, %c0_46] : memref<9x128x128xf32, #tpu.memory_space<vmem>>, vector<1x128x128xf32>
    %34 = vector.shape_cast %33 : vector<1x128x128xf32> to vector<128x128xf32>
    %cst_47 = arith.constant dense<0.000000e+00> : vector<20x128xf32>
    %35 = tpu.matmul %32, %34, %cst_47 {dimension_numbers = #tpu.dot_dimension_numbers<[1], [0], [0], [1], [0, 0, 1, 1], [], []>} : vector<20x128xf32>, vector<128x128xf32>, vector<20x128xf32> -> vector<20x128xf32>
    %36 = arith.addf %30, %35 : vector<20x128xf32>
    %c0_48 = arith.constant 0 : index
    %c0_49 = arith.constant 0 : index
    %c0_50 = arith.constant 0 : index
    %c5_51 = arith.constant 5 : index
    %c0_52 = arith.constant 0 : index
    %37 = vector.load %arg1[%c0_48, %c0_49, %c0_50, %c5_51, %c0_52] : memref<1x2x2x32x128xf32, #tpu.memory_space<vmem>>, vector<1x1x1x20x128xf32>
    %38 = vector.shape_cast %37 : vector<1x1x1x20x128xf32> to vector<20x128xf32>
    %c6 = arith.constant 6 : index
    %c0_53 = arith.constant 0 : index
    %c0_54 = arith.constant 0 : index
    %39 = vector.load %arg2[%c6, %c0_53, %c0_54] : memref<9x128x128xf32, #tpu.memory_space<vmem>>, vector<1x128x128xf32>
    %40 = vector.shape_cast %39 : vector<1x128x128xf32> to vector<128x128xf32>
    %cst_55 = arith.constant dense<0.000000e+00> : vector<20x128xf32>
    %41 = tpu.matmul %38, %40, %cst_55 {dimension_numbers = #tpu.dot_dimension_numbers<[1], [0], [0], [1], [0, 0, 1, 1], [], []>} : vector<20x128xf32>, vector<128x128xf32>, vector<20x128xf32> -> vector<20x128xf32>
    %42 = arith.addf %36, %41 : vector<20x128xf32>
    %c0_56 = arith.constant 0 : index
    %c0_57 = arith.constant 0 : index
    %c1_58 = arith.constant 1 : index
    %c5_59 = arith.constant 5 : index
    %c0_60 = arith.constant 0 : index
    %43 = vector.load %arg1[%c0_56, %c0_57, %c1_58, %c5_59, %c0_60] : memref<1x2x2x32x128xf32, #tpu.memory_space<vmem>>, vector<1x1x1x20x128xf32>
    %44 = vector.shape_cast %43 : vector<1x1x1x20x128xf32> to vector<20x128xf32>
    %c7 = arith.constant 7 : index
    %c0_61 = arith.constant 0 : index
    %c0_62 = arith.constant 0 : index
    %45 = vector.load %arg2[%c7, %c0_61, %c0_62] : memref<9x128x128xf32, #tpu.memory_space<vmem>>, vector<1x128x128xf32>
    %46 = vector.shape_cast %45 : vector<1x128x128xf32> to vector<128x128xf32>
    %cst_63 = arith.constant dense<0.000000e+00> : vector<20x128xf32>
    %47 = tpu.matmul %44, %46, %cst_63 {dimension_numbers = #tpu.dot_dimension_numbers<[1], [0], [0], [1], [0, 0, 1, 1], [], []>} : vector<20x128xf32>, vector<128x128xf32>, vector<20x128xf32> -> vector<20x128xf32>
    %48 = arith.addf %42, %47 : vector<20x128xf32>
    %c0_64 = arith.constant 0 : index
    %c0_65 = arith.constant 0 : index
    %c0_66 = arith.constant 0 : index
    %c6_67 = arith.constant 6 : index
    %c0_68 = arith.constant 0 : index
    %49 = vector.load %arg1[%c0_64, %c0_65, %c0_66, %c6_67, %c0_68] : memref<1x2x2x32x128xf32, #tpu.memory_space<vmem>>, vector<1x1x1x20x128xf32>
    %50 = vector.shape_cast %49 : vector<1x1x1x20x128xf32> to vector<20x128xf32>
    %c8 = arith.constant 8 : index
    %c0_69 = arith.constant 0 : index
    %c0_70 = arith.constant 0 : index
    %51 = vector.load %arg2[%c8, %c0_69, %c0_70] : memref<9x128x128xf32, #tpu.memory_space<vmem>>, vector<1x128x128xf32>
    %52 = vector.shape_cast %51 : vector<1x128x128xf32> to vector<128x128xf32>
    %cst_71 = arith.constant dense<0.000000e+00> : vector<20x128xf32>
    %53 = tpu.matmul %50, %52, %cst_71 {dimension_numbers = #tpu.dot_dimension_numbers<[1], [0], [0], [1], [0, 0, 1, 1], [], []>} : vector<20x128xf32>, vector<128x128xf32>, vector<20x128xf32> -> vector<20x128xf32>
    %54 = arith.addf %48, %53 : vector<20x128xf32>
    %c0_72 = arith.constant 0 : index
    %c0_73 = arith.constant 0 : index
    %55 = vector.load %arg3[%c0_72, %c0_73] : memref<1x128xf32, #tpu.memory_space<vmem>>, vector<1x128xf32>
    %56 = vector.broadcast %55 : vector<1x128xf32> to vector<20x128xf32>
    %57 = arith.addf %54, %56 : vector<20x128xf32>
    %cst_74 = arith.constant 5.000000e-01 : f32
    %58 = vector.broadcast %cst_74 : f32 to vector<20x128xf32>
    %59 = arith.mulf %58, %57 : vector<20x128xf32>
    %cst_75 = arith.constant 0.707106769 : f32
    %60 = vector.broadcast %cst_75 : f32 to vector<20x128xf32>
    %61 = arith.mulf %57, %60 : vector<20x128xf32>
    %62 = math.erf %61 : vector<20x128xf32>
    %cst_76 = arith.constant 1.000000e+00 : f32
    %63 = vector.broadcast %cst_76 : f32 to vector<20x128xf32>
    %64 = arith.addf %63, %62 : vector<20x128xf32>
    %65 = arith.mulf %59, %64 : vector<20x128xf32>
    %c0_77 = arith.constant 0 : index
    %c0_78 = arith.constant 0 : index
    %c0_79 = arith.constant 0 : index
    %66 = vector.load %arg4[%c0_77, %c0_78, %c0_79] : memref<1x20x128xf32, #tpu.memory_space<vmem>>, vector<1x20x128xf32>
    %67 = vector.shape_cast %66 : vector<1x20x128xf32> to vector<20x128xf32>
    %68 = vector.shape_cast %65 : vector<20x128xf32> to vector<1x20x128xf32>
    tpu.vector_store %arg4[%c0_77, %c0_78, %c0_79], %68 {strides = array<i32>} : memref<1x20x128xf32, #tpu.memory_space<vmem>>, vector<1x20x128xf32>,
    return
  }
  func.func @transform_0(%arg0: i32) -> (i32, i32, i32, i32, i32) {
    %c0_i32 = arith.constant 0 : i32
    %c0_i32_0 = arith.constant 0 : i32
    %c0_i32_1 = arith.constant 0 : i32
    %c0_i32_2 = arith.constant 0 : i32
    %c0_i32_3 = arith.constant 0 : i32
    return %arg0, %c0_i32, %c0_i32_0, %c0_i32_1, %c0_i32_2 : i32, i32, i32, i32, i32
  }
  func.func @transform_1(%arg0: i32) -> (i32, i32, i32) {
    %c0_i32 = arith.constant 0 : i32
    %c0_i32_0 = arith.constant 0 : i32
    %c0_i32_1 = arith.constant 0 : i32
    %c0_i32_2 = arith.constant 0 : i32
    return %c0_i32, %c0_i32_0, %c0_i32_1 : i32, i32, i32
  }
  func.func @transform_2(%arg0: i32) -> (i32, i32) {
    %c0_i32 = arith.constant 0 : i32
    %c0_i32_0 = arith.constant 0 : i32
    %c0_i32_1 = arith.constant 0 : i32
    return %c0_i32, %c0_i32_0 : i32, i32
  }
  func.func @transform_3(%arg0: i32) -> (i32, i32, i32) {
    %c0_i32 = arith.constant 0 : i32
    %c0_i32_0 = arith.constant 0 : i32
    %c0_i32_1 = arith.constant 0 : i32
    return %arg0, %c0_i32, %c0_i32_0 : i32, i32, i32
  }
}

module attributes {stable_mosaic.version = 11 : i64} {
  func.func @_conv_bn_act_kernel(%arg0: i32, %arg1: memref<1x2x2x16x128xf32, #tpu.memory_space<vmem>>, %arg2: memref<9x128x128xf32, #tpu.memory_space<vmem>>, %arg3: memref<1x128xf32, #tpu.memory_space<vmem>>, %arg4: memref<1x6x128xf32, #tpu.memory_space<vmem>>) attributes {dimension_semantics = [#tpu.dimension_semantics<parallel>], iteration_bounds = array<i64: 2>, scalar_prefetch = 0 : i64, scratch_operands = 0 : i64, tpu.core_type = #tpu.core_type<tc>, window_params = [{transform_indices = @transform_0, window_bounds = array<i64: 1, 2, 2, 16, 128>}, {pipeline_mode = #tpu.pipeline_mode<synchronous>, transform_indices = @transform_1, window_bounds = array<i64: 9, 128, 128>}, {pipeline_mode = #tpu.pipeline_mode<synchronous>, transform_indices = @transform_2, window_bounds = array<i64: 1, 128>}, {transform_indices = @transform_3, window_bounds = array<i64: 1, 6, 128>}]} {
    %cst = arith.constant 0.000000e+00 : f32
    %0 = vector.broadcast %cst : f32 to vector<6x128xf32>
    %c0 = arith.constant 0 : index
    %c0_0 = arith.constant 0 : index
    %c0_1 = arith.constant 0 : index
    %c0_2 = arith.constant 0 : index
    %c0_3 = arith.constant 0 : index
    %1 = vector.load %arg1[%c0, %c0_0, %c0_1, %c0_2, %c0_3] : memref<1x2x2x16x128xf32, #tpu.memory_space<vmem>>, vector<1x1x1x6x128xf32>
    %2 = vector.shape_cast %1 : vector<1x1x1x6x128xf32> to vector<6x128xf32>
    %c0_4 = arith.constant 0 : index
    %c0_5 = arith.constant 0 : index
    %c0_6 = arith.constant 0 : index
    %3 = vector.load %arg2[%c0_4, %c0_5, %c0_6] : memref<9x128x128xf32, #tpu.memory_space<vmem>>, vector<1x128x128xf32>
    %4 = vector.shape_cast %3 : vector<1x128x128xf32> to vector<128x128xf32>
    %cst_7 = arith.constant dense<0.000000e+00> : vector<6x128xf32>
    %5 = tpu.matmul %2, %4, %cst_7 {dimension_numbers = #tpu.dot_dimension_numbers<[1], [0], [0], [1], [0, 0, 1, 1], [], []>} : vector<6x128xf32>, vector<128x128xf32>, vector<6x128xf32> -> vector<6x128xf32>
    %6 = arith.addf %0, %5 : vector<6x128xf32>
    %c0_8 = arith.constant 0 : index
    %c0_9 = arith.constant 0 : index
    %c1 = arith.constant 1 : index
    %c0_10 = arith.constant 0 : index
    %c0_11 = arith.constant 0 : index
    %7 = vector.load %arg1[%c0_8, %c0_9, %c1, %c0_10, %c0_11] : memref<1x2x2x16x128xf32, #tpu.memory_space<vmem>>, vector<1x1x1x6x128xf32>
    %8 = vector.shape_cast %7 : vector<1x1x1x6x128xf32> to vector<6x128xf32>
    %c1_12 = arith.constant 1 : index
    %c0_13 = arith.constant 0 : index
    %c0_14 = arith.constant 0 : index
    %9 = vector.load %arg2[%c1_12, %c0_13, %c0_14] : memref<9x128x128xf32, #tpu.memory_space<vmem>>, vector<1x128x128xf32>
    %10 = vector.shape_cast %9 : vector<1x128x128xf32> to vector<128x128xf32>
    %cst_15 = arith.constant dense<0.000000e+00> : vector<6x128xf32>
    %11 = tpu.matmul %8, %10, %cst_15 {dimension_numbers = #tpu.dot_dimension_numbers<[1], [0], [0], [1], [0, 0, 1, 1], [], []>} : vector<6x128xf32>, vector<128x128xf32>, vector<6x128xf32> -> vector<6x128xf32>
    %12 = arith.addf %6, %11 : vector<6x128xf32>
    %c0_16 = arith.constant 0 : index
    %c0_17 = arith.constant 0 : index
    %c0_18 = arith.constant 0 : index
    %c1_19 = arith.constant 1 : index
    %c0_20 = arith.constant 0 : index
    %13 = vector.load %arg1[%c0_16, %c0_17, %c0_18, %c1_19, %c0_20] : memref<1x2x2x16x128xf32, #tpu.memory_space<vmem>>, vector<1x1x1x6x128xf32>
    %14 = vector.shape_cast %13 : vector<1x1x1x6x128xf32> to vector<6x128xf32>
    %c2 = arith.constant 2 : index
    %c0_21 = arith.constant 0 : index
    %c0_22 = arith.constant 0 : index
    %15 = vector.load %arg2[%c2, %c0_21, %c0_22] : memref<9x128x128xf32, #tpu.memory_space<vmem>>, vector<1x128x128xf32>
    %16 = vector.shape_cast %15 : vector<1x128x128xf32> to vector<128x128xf32>
    %cst_23 = arith.constant dense<0.000000e+00> : vector<6x128xf32>
    %17 = tpu.matmul %14, %16, %cst_23 {dimension_numbers = #tpu.dot_dimension_numbers<[1], [0], [0], [1], [0, 0, 1, 1], [], []>} : vector<6x128xf32>, vector<128x128xf32>, vector<6x128xf32> -> vector<6x128xf32>
    %18 = arith.addf %12, %17 : vector<6x128xf32>
    %c0_24 = arith.constant 0 : index
    %c1_25 = arith.constant 1 : index
    %c0_26 = arith.constant 0 : index
    %c0_27 = arith.constant 0 : index
    %c0_28 = arith.constant 0 : index
    %19 = vector.load %arg1[%c0_24, %c1_25, %c0_26, %c0_27, %c0_28] : memref<1x2x2x16x128xf32, #tpu.memory_space<vmem>>, vector<1x1x1x6x128xf32>
    %20 = vector.shape_cast %19 : vector<1x1x1x6x128xf32> to vector<6x128xf32>
    %c3 = arith.constant 3 : index
    %c0_29 = arith.constant 0 : index
    %c0_30 = arith.constant 0 : index
    %21 = vector.load %arg2[%c3, %c0_29, %c0_30] : memref<9x128x128xf32, #tpu.memory_space<vmem>>, vector<1x128x128xf32>
    %22 = vector.shape_cast %21 : vector<1x128x128xf32> to vector<128x128xf32>
    %cst_31 = arith.constant dense<0.000000e+00> : vector<6x128xf32>
    %23 = tpu.matmul %20, %22, %cst_31 {dimension_numbers = #tpu.dot_dimension_numbers<[1], [0], [0], [1], [0, 0, 1, 1], [], []>} : vector<6x128xf32>, vector<128x128xf32>, vector<6x128xf32> -> vector<6x128xf32>
    %24 = arith.addf %18, %23 : vector<6x128xf32>
    %c0_32 = arith.constant 0 : index
    %c1_33 = arith.constant 1 : index
    %c1_34 = arith.constant 1 : index
    %c0_35 = arith.constant 0 : index
    %c0_36 = arith.constant 0 : index
    %25 = vector.load %arg1[%c0_32, %c1_33, %c1_34, %c0_35, %c0_36] : memref<1x2x2x16x128xf32, #tpu.memory_space<vmem>>, vector<1x1x1x6x128xf32>
    %26 = vector.shape_cast %25 : vector<1x1x1x6x128xf32> to vector<6x128xf32>
    %c4 = arith.constant 4 : index
    %c0_37 = arith.constant 0 : index
    %c0_38 = arith.constant 0 : index
    %27 = vector.load %arg2[%c4, %c0_37, %c0_38] : memref<9x128x128xf32, #tpu.memory_space<vmem>>, vector<1x128x128xf32>
    %28 = vector.shape_cast %27 : vector<1x128x128xf32> to vector<128x128xf32>
    %cst_39 = arith.constant dense<0.000000e+00> : vector<6x128xf32>
    %29 = tpu.matmul %26, %28, %cst_39 {dimension_numbers = #tpu.dot_dimension_numbers<[1], [0], [0], [1], [0, 0, 1, 1], [], []>} : vector<6x128xf32>, vector<128x128xf32>, vector<6x128xf32> -> vector<6x128xf32>
    %30 = arith.addf %24, %29 : vector<6x128xf32>
    %c0_40 = arith.constant 0 : index
    %c1_41 = arith.constant 1 : index
    %c0_42 = arith.constant 0 : index
    %c1_43 = arith.constant 1 : index
    %c0_44 = arith.constant 0 : index
    %31 = vector.load %arg1[%c0_40, %c1_41, %c0_42, %c1_43, %c0_44] : memref<1x2x2x16x128xf32, #tpu.memory_space<vmem>>, vector<1x1x1x6x128xf32>
    %32 = vector.shape_cast %31 : vector<1x1x1x6x128xf32> to vector<6x128xf32>
    %c5 = arith.constant 5 : index
    %c0_45 = arith.constant 0 : index
    %c0_46 = arith.constant 0 : index
    %33 = vector.load %arg2[%c5, %c0_45, %c0_46] : memref<9x128x128xf32, #tpu.memory_space<vmem>>, vector<1x128x128xf32>
    %34 = vector.shape_cast %33 : vector<1x128x128xf32> to vector<128x128xf32>
    %cst_47 = arith.constant dense<0.000000e+00> : vector<6x128xf32>
    %35 = tpu.matmul %32, %34, %cst_47 {dimension_numbers = #tpu.dot_dimension_numbers<[1], [0], [0], [1], [0, 0, 1, 1], [], []>} : vector<6x128xf32>, vector<128x128xf32>, vector<6x128xf32> -> vector<6x128xf32>
    %36 = arith.addf %30, %35 : vector<6x128xf32>
    %c0_48 = arith.constant 0 : index
    %c0_49 = arith.constant 0 : index
    %c0_50 = arith.constant 0 : index
    %c3_51 = arith.constant 3 : index
    %c0_52 = arith.constant 0 : index
    %37 = vector.load %arg1[%c0_48, %c0_49, %c0_50, %c3_51, %c0_52] : memref<1x2x2x16x128xf32, #tpu.memory_space<vmem>>, vector<1x1x1x6x128xf32>
    %38 = vector.shape_cast %37 : vector<1x1x1x6x128xf32> to vector<6x128xf32>
    %c6 = arith.constant 6 : index
    %c0_53 = arith.constant 0 : index
    %c0_54 = arith.constant 0 : index
    %39 = vector.load %arg2[%c6, %c0_53, %c0_54] : memref<9x128x128xf32, #tpu.memory_space<vmem>>, vector<1x128x128xf32>
    %40 = vector.shape_cast %39 : vector<1x128x128xf32> to vector<128x128xf32>
    %cst_55 = arith.constant dense<0.000000e+00> : vector<6x128xf32>
    %41 = tpu.matmul %38, %40, %cst_55 {dimension_numbers = #tpu.dot_dimension_numbers<[1], [0], [0], [1], [0, 0, 1, 1], [], []>} : vector<6x128xf32>, vector<128x128xf32>, vector<6x128xf32> -> vector<6x128xf32>
    %42 = arith.addf %36, %41 : vector<6x128xf32>
    %c0_56 = arith.constant 0 : index
    %c0_57 = arith.constant 0 : index
    %c1_58 = arith.constant 1 : index
    %c3_59 = arith.constant 3 : index
    %c0_60 = arith.constant 0 : index
    %43 = vector.load %arg1[%c0_56, %c0_57, %c1_58, %c3_59, %c0_60] : memref<1x2x2x16x128xf32, #tpu.memory_space<vmem>>, vector<1x1x1x6x128xf32>
    %44 = vector.shape_cast %43 : vector<1x1x1x6x128xf32> to vector<6x128xf32>
    %c7 = arith.constant 7 : index
    %c0_61 = arith.constant 0 : index
    %c0_62 = arith.constant 0 : index
    %45 = vector.load %arg2[%c7, %c0_61, %c0_62] : memref<9x128x128xf32, #tpu.memory_space<vmem>>, vector<1x128x128xf32>
    %46 = vector.shape_cast %45 : vector<1x128x128xf32> to vector<128x128xf32>
    %cst_63 = arith.constant dense<0.000000e+00> : vector<6x128xf32>
    %47 = tpu.matmul %44, %46, %cst_63 {dimension_numbers = #tpu.dot_dimension_numbers<[1], [0], [0], [1], [0, 0, 1, 1], [], []>} : vector<6x128xf32>, vector<128x128xf32>, vector<6x128xf32> -> vector<6x128xf32>
    %48 = arith.addf %42, %47 : vector<6x128xf32>
    %c0_64 = arith.constant 0 : index
    %c0_65 = arith.constant 0 : index
    %c0_66 = arith.constant 0 : index
    %c4_67 = arith.constant 4 : index
    %c0_68 = arith.constant 0 : index
    %49 = vector.load %arg1[%c0_64, %c0_65, %c0_66, %c4_67, %c0_68] : memref<1x2x2x16x128xf32, #tpu.memory_space<vmem>>, vector<1x1x1x6x128xf32>
    %50 = vector.shape_cast %49 : vector<1x1x1x6x128xf32> to vector<6x128xf32>
    %c8 = arith.constant 8 : index
    %c0_69 = arith.constant 0 : index
    %c0_70 = arith.constant 0 : index
    %51 = vector.load %arg2[%c8, %c0_69, %c0_70] : memref<9x128x128xf32, #tpu.memory_space<vmem>>, vector<1x128x128xf32>
    %52 = vector.shape_cast %51 : vector<1x128x128xf32> to vector<128x128xf32>
    %cst_71 = arith.constant dense<0.000000e+00> : vector<6x128xf32>
    %53 = tpu.matmul %50, %52, %cst_71 {dimension_numbers = #tpu.dot_dimension_numbers<[1], [0], [0], [1], [0, 0, 1, 1], [], []>} : vector<6x128xf32>, vector<128x128xf32>, vector<6x128xf32> -> vector<6x128xf32>
    %54 = arith.addf %48, %53 : vector<6x128xf32>
    %c0_72 = arith.constant 0 : index
    %c0_73 = arith.constant 0 : index
    %55 = vector.load %arg3[%c0_72, %c0_73] : memref<1x128xf32, #tpu.memory_space<vmem>>, vector<1x128xf32>
    %56 = vector.broadcast %55 : vector<1x128xf32> to vector<6x128xf32>
    %57 = arith.addf %54, %56 : vector<6x128xf32>
    %c0_74 = arith.constant 0 : index
    %c0_75 = arith.constant 0 : index
    %c0_76 = arith.constant 0 : index
    %58 = vector.load %arg4[%c0_74, %c0_75, %c0_76] : memref<1x6x128xf32, #tpu.memory_space<vmem>>, vector<1x6x128xf32>
    %59 = vector.shape_cast %58 : vector<1x6x128xf32> to vector<6x128xf32>
    %60 = vector.shape_cast %57 : vector<6x128xf32> to vector<1x6x128xf32>
    tpu.vector_store %arg4[%c0_74, %c0_75, %c0_76], %60 {strides = array<i32>} : memref<1x6x128xf32, #tpu.memory_space<vmem>>, vector<1x6x128xf32>,
    return
  }
  func.func @transform_0(%arg0: i32) -> (i32, i32, i32, i32, i32) {
    %c0_i32 = arith.constant 0 : i32
    %c0_i32_0 = arith.constant 0 : i32
    %c0_i32_1 = arith.constant 0 : i32
    %c0_i32_2 = arith.constant 0 : i32
    %c0_i32_3 = arith.constant 0 : i32
    return %arg0, %c0_i32, %c0_i32_0, %c0_i32_1, %c0_i32_2 : i32, i32, i32, i32, i32
  }
  func.func @transform_1(%arg0: i32) -> (i32, i32, i32) {
    %c0_i32 = arith.constant 0 : i32
    %c0_i32_0 = arith.constant 0 : i32
    %c0_i32_1 = arith.constant 0 : i32
    %c0_i32_2 = arith.constant 0 : i32
    return %c0_i32, %c0_i32_0, %c0_i32_1 : i32, i32, i32
  }
  func.func @transform_2(%arg0: i32) -> (i32, i32) {
    %c0_i32 = arith.constant 0 : i32
    %c0_i32_0 = arith.constant 0 : i32
    %c0_i32_1 = arith.constant 0 : i32
    return %c0_i32, %c0_i32_0 : i32, i32
  }
  func.func @transform_3(%arg0: i32) -> (i32, i32, i32) {
    %c0_i32 = arith.constant 0 : i32
    %c0_i32_0 = arith.constant 0 : i32
    %c0_i32_1 = arith.constant 0 : i32
    return %arg0, %c0_i32, %c0_i32_0 : i32, i32, i32
  }
}

</mosaic_0001>

<llo_original>
// kernel: _lambda_.4
$region0: #{_lambda_.4}
  #allocation0 [shape = 'u32[]', space=smem, size = 0x4, offset = 0x4, fixed_abs, tag = 'smem constant byte address 0x4 - core index']
  #allocation1 [shape = 'u32[72,128]{1,0:T(1,128)}', space=vmem, size = 0x9000, scoped, tag = 'internal scratch']
  %s0 = inlined_call_operand.vmem [shape: f32[2,2,2,296,8], index: 0, kind: input, shape index: {}]
  %s1 = inlined_call_operand.vmem [shape: f32[9,8,128], index: 1, kind: input, shape index: {}]
  %s2 = inlined_call_operand.vmem [shape: f32[1,128], index: 2, kind: input, shape index: {}]
  %s3 = inlined_call_operand.vmem [shape: f32[2,272,128], index: 3, kind: output, shape index: {}]
  %s4 = sld [smem:[#allocation0]]
  $region45: #{_lambda_.4} parent=0
    _
  %s6 = ssub.s32 1, %s4
  %s7 = scalar_select 0, %s6, %s4
  loop: start=0, step=1, limit=4
  $region2: #{_lambda_.4} parent=0 // loop_pre_header
    _
  $region3: #{_lambda_.4} parent=0 // loop_header
    %s9 = sphi 0, %s13
    %p10 = scmp.ge.s32.totalorder %s9, 4
    %s19 = sphi 0, %s21
    %s22 = sphi 0, %s19
    %s23 = sphi 0, %s22
    %s39 = sphi 0, %s23
    %s43 = sphi 0, %s43
    %s45 = sphi 0, %s43
    %s46 = sphi 0, %s45
    %s60 = sphi 0, %s46
    %s64 = sphi 0, %s64
    %s66 = sphi 0, %s64
    %s67 = sphi 0, %s66
    %s81 = sphi 0, %s67
    %s87 = sphi 0, %s89
    %s90 = sphi 0, %s87
    %s91 = sphi 0, %s90
    %s107 = sphi 0, %s91
  $region4: #{_lambda_.4} parent=0 // loop_header_branch
    %12 = sbr.rel (%p10) target = $region8
  $region5: #{_lambda_.4} parent=0 // loop_body
    %s14 = ssub.s32 %s9, 1
    %s15 = ssub.s32 %s9, 2
    %s16 = sadd.s32 %s9, 1
    %s17 = ssub.s32 %s9, %s16
    %p18 = scmp.eq.s32.totalorder %s17, 0
    %s20 = sadd.s32 %s19, 1
    %s21 = scalar_select %p18, %s19, %s20
    %p24 = pneg %p18
    %p25 = scmp.eq.s32.totalorder %s9, 1
    %p26 = por %p24, %p25
    %p27 = scmp.ne.s32.totalorder %s19, %s22
    %p28 = scmp.eq.s32.totalorder %s9, 0
    %p29 = por %p27, %p28
    %p30 = scmp.ne.s32.totalorder %s19, %s22
    %p31 = scmp.eq.s32.totalorder %s14, 1
    %p32 = por %p30, %p31
    %p33 = scmp.ne.s32.totalorder %s22, %s23
    %p34 = scmp.eq.s32.totalorder %s14, 0
    %p35 = por %p33, %p34
    %p36 = scmp.ne.s32.totalorder %s22, %s23
    %p37 = scmp.eq.s32.totalorder %s15, 1
    %p38 = por %p36, %p37
    %p40 = scmp.ne.s32.totalorder %s23, %s39
    %p41 = scmp.eq.s32.totalorder %s15, 0
    %p42 = por %p40, %p41
    %s44 = sadd.s32 %s43, 1
    %p47 = scmp.eq.s32.totalorder %s9, 1
    %p48 = scmp.ne.s32.totalorder %s43, %s45
    %p49 = scmp.eq.s32.totalorder %s9, 0
    %p50 = por %p48, %p49
    %p51 = scmp.ne.s32.totalorder %s43, %s45
    %p52 = scmp.eq.s32.totalorder %s14, 1
    %p53 = por %p51, %p52
    %p54 = scmp.ne.s32.totalorder %s45, %s46
    %p55 = scmp.eq.s32.totalorder %s14, 0
    %p56 = por %p54, %p55
    %p57 = scmp.ne.s32.totalorder %s45, %s46
    %p58 = scmp.eq.s32.totalorder %s15, 1
    %p59 = por %p57, %p58
    %p61 = scmp.ne.s32.totalorder %s46, %s60
    %p62 = scmp.eq.s32.totalorder %s15, 0
    %p63 = por %p61, %p62
    %s65 = sadd.s32 %s64, 1
    %p68 = scmp.eq.s32.totalorder %s9, 1
    %p69 = scmp.ne.s32.totalorder %s64, %s66
    %p70 = scmp.eq.s32.totalorder %s9, 0
    %p71 = por %p69, %p70
    %p72 = scmp.ne.s32.totalorder %s64, %s66
    %p73 = scmp.eq.s32.totalorder %s14, 1
    %p74 = por %p72, %p73
    %p75 = scmp.ne.s32.totalorder %s66, %s67
    %p76 = scmp.eq.s32.totalorder %s14, 0
    %p77 = por %p75, %p76
    %p78 = scmp.ne.s32.totalorder %s66, %s67
    %p79 = scmp.eq.s32.totalorder %s15, 1
    %p80 = por %p78, %p79
    %p82 = scmp.ne.s32.totalorder %s67, %s81
    %p83 = scmp.eq.s32.totalorder %s15, 0
    %p84 = por %p82, %p83
    %s85 = ssub.s32 %s9, %s16
    %p86 = scmp.eq.s32.totalorder %s85, 0
    %s88 = sadd.s32 %s87, 1
    %s89 = scalar_select %p86, %s87, %s88
    %p92 = pneg %p86
    %p93 = scmp.eq.s32.totalorder %s9, 1
    %p94 = por %p92, %p93
    %p95 = scmp.ne.s32.totalorder %s87, %s90
    %p96 = scmp.eq.s32.totalorder %s9, 0
    %p97 = por %p95, %p96
    %p98 = scmp.ne.s32.totalorder %s87, %s90
    %p99 = scmp.eq.s32.totalorder %s14, 1
    %p100 = por %p98, %p99
    %p101 = scmp.ne.s32.totalorder %s90, %s91
    %p102 = scmp.eq.s32.totalorder %s14, 0
    %p103 = por %p101, %p102
    %p104 = scmp.ne.s32.totalorder %s90, %s91
    %p105 = scmp.eq.s32.totalorder %s15, 1
    %p106 = por %p104, %p105
    %p108 = scmp.ne.s32.totalorder %s91, %s107
    %p109 = scmp.eq.s32.totalorder %s15, 0
    %p110 = por %p108, %p109
    %p111 = scmp.le.s32.totalorder 1, %s9
    %p112 = scmp.lt.s32.totalorder %s9, 3
    %p113 = pnand %p111, %p112
    %p114 = pneg %p113
    // Predicated region
    $region9: #{_lambda_.4} parent=5 // pred_check
      _
    $region10: #{_lambda_.4} parent=5 // pred_check_branch
      %116 = sbr.rel (%p113) target = $region12
    $region11: #{_lambda_.4} parent=5 // pred_region
      %s117 = ssub.s32 %s9, 1
      // Predicated region
      $region13: #{_lambda_.4} parent=11 // pred_check
        %p118 = pneg %p56
      $region14: #{_lambda_.4} parent=11 // pred_check_branch
        %120 = sbr.rel (%p118) target = $region16
      $region15: #{_lambda_.4} parent=11 // pred_region
        _
      $region16: #{_lambda_.4} parent=11 // pred_fallthru
        _
      // Predicated region
      $region17: #{_lambda_.4} parent=11 // pred_check
        %p121 = pneg %p77
      $region18: #{_lambda_.4} parent=11 // pred_check_branch
        %123 = sbr.rel (%p121) target = $region20
      $region19: #{_lambda_.4} parent=11 // pred_region
        _
      $region20: #{_lambda_.4} parent=11 // pred_fallthru
        _
    $region12: #{_lambda_.4} parent=5 // pred_fallthru
      _
    %p124 = scmp.lt.s32.totalorder %s9, 2
    // Predicated region
    $region21: #{_lambda_.4} parent=5 // pred_check
      %p125 = pneg %p124
    $region22: #{_lambda_.4} parent=5 // pred_check_branch
      %127 = sbr.rel (%p125) target = $region24
    $region23: #{_lambda_.4} parent=5 // pred_region
      // Predicated region
      $region25: #{_lambda_.4} parent=23 // pred_check
        %p128 = pneg %p29
      $region26: #{_lambda_.4} parent=23 // pred_check_branch
        %130 = sbr.rel (%p128) target = $region28
      $region27: #{_lambda_.4} parent=23 // pred_region
        %p131 = scmp.lt.s32.totalorder %s9, 1
        %s132 = scalar_select %p131, %s9, 1
        %s133 = smul.addr %s132, 148
        %s134 = smul.addr %s133, 8
        %s135 = scalar_lea.vmem %s0, %s134
      $region28: #{_lambda_.4} parent=23 // pred_fallthru
        _
    $region24: #{_lambda_.4} parent=5 // pred_fallthru
      _
    %p136 = scmp.le.s32.totalorder 1, %s9
    %p137 = scmp.lt.s32.totalorder %s9, 3
    %p138 = pnand %p136, %p137
    %p139 = pneg %p138
    // Predicated region
    $region29: #{_lambda_.4} parent=5 // pred_check
      _
    $region30: #{_lambda_.4} parent=5 // pred_check_branch
      %141 = sbr.rel (%p138) target = $region32
    $region31: #{_lambda_.4} parent=5 // pred_region
      %s142 = ssub.s32 %s9, 1
      %p143 = scmp.lt.s32.totalorder %s14, 1
      %s144 = scalar_select %p143, %s14, 1
      %s145 = smul.addr %s144, 148
      %s146 = smul.addr %s145, 8
      %s147 = scalar_lea.vmem %s0, %s146
      %p148 = pneg %p35
      %p149 = pneg %p32
      %p150 = pneg %p56
      %p151 = pneg %p53
      %p152 = pneg %p77
      %p153 = pneg %p74
      %p154 = pneg %p103
      %p155 = pneg %p100
      %p156 = scmp.lt.s32.totalorder %s14, 1
      %s157 = scalar_select %p156, %s14, 1
      %s158 = smul.addr %s157, 34
      %s159 = smul.addr %s158, 8
      %s160 = scalar_lea.vmem %s3, %s159
      %p161 = scmp.lt.s32.totalorder %s14, 1
      %s162 = scalar_select %p161, %s14, 1
      %s163 = smul.addr %s162, 148
      %s164 = smul.addr %s163, 8
      %s165 = scalar_lea.vmem %s0, %s164
      %p166 = scmp.lt.s32.totalorder %s14, 1
      %s167 = scalar_select %p166, %s14, 1
      %s168 = smul.addr %s167, 34
      %s169 = smul.addr %s168, 8
      %s170 = scalar_lea.vmem %s3, %s169
      %v171 = vld [vmem:[%s165] sm:$0xff]
      %v172 = vld [vmem:[%s165 + $0x8] sm:$0xff]
      %v173 = vld [vmem:[%s165 + $0x10] sm:$0xff]
      %v174 = vld [vmem:[%s165 + $0x18] sm:$0xff]
      %v175 = vld [vmem:[%s165 + $0x20] sm:$0xff]
      %v176 = vld [vmem:[%s165 + $0x28] sm:$0xff]
      %v177 = vld [vmem:[%s165 + $0x30] sm:$0xff]
      %v178 = vld [vmem:[%s165 + $0x38] sm:$0xff]
      %v179 = vld [vmem:[%s165 + $0x40] sm:$0xff]
      %v180 = vld [vmem:[%s165 + $0x48] sm:$0xff]
      %v181 = vld [vmem:[%s165 + $0x50] sm:$0xff]
      %v182 = vld [vmem:[%s165 + $0x58] sm:$0xff]
      %v183 = vld [vmem:[%s165 + $0x60] sm:$0xff]
      %v184 = vld [vmem:[%s165 + $0x68] sm:$0xff]
      %v185 = vld [vmem:[%s165 + $0x70] sm:$0xff]
      %v186 = vld [vmem:[%s165 + $0x78] sm:$0xff]
      %v187 = vld [vmem:[%s165 + $0x80] sm:$0xff]
      %v188 = vld [vmem:[%s165 + $0x88] sm:$0xff]
      %v189 = vld [vmem:[%s165 + $0x90] sm:$0xff]
      %v190 = vld [vmem:[%s165 + $0x98] sm:$0xff]
      %v191 = vld [vmem:[%s165 + $0xa0] sm:$0xff]
      %v192 = vld [vmem:[%s165 + $0xa8] sm:$0xff]
      %v193 = vld [vmem:[%s165 + $0xb0] sm:$0xff]
      %v194 = vld [vmem:[%s165 + $0xb8] sm:$0xff]
      %v195 = vld [vmem:[%s165 + $0xc0] sm:$0xff]
      %v196 = vld [vmem:[%s165 + $0xc8] sm:$0xff]
      %v197 = vld [vmem:[%s165 + $0xd0] sm:$0xff]
      %v198 = vld [vmem:[%s165 + $0xd8] sm:$0xff]
      %v199 = vld [vmem:[%s165 + $0xe0] sm:$0xff]
      %v200 = vld [vmem:[%s165 + $0xe8] sm:$0xff]
      %v201 = vld [vmem:[%s165 + $0xf0] sm:$0xff]
      %v202 = vld [vmem:[%s165 + $0xf8] sm:$0xff]
      %v203 = vld [vmem:[%s165 + $0x100] sm:$0xff]
      %v204 = vld [vmem:[%s165 + $0x108] sm:$0xff]
      %v205 = vld [vmem:[%s1] sm:$0xff]
      %s206 = scalar_lea.vmem %s165, 296
      %v207 = vld [vmem:[%s206] sm:$0xff]
      %v208 = vld [vmem:[%s206 + $0x8] sm:$0xff]
      %v209 = vld [vmem:[%s206 + $0x10] sm:$0xff]
      %v210 = vld [vmem:[%s206 + $0x18] sm:$0xff]
      %v211 = vld [vmem:[%s206 + $0x20] sm:$0xff]
      %v212 = vld [vmem:[%s206 + $0x28] sm:$0xff]
      %v213 = vld [vmem:[%s206 + $0x30] sm:$0xff]
      %v214 = vld [vmem:[%s206 + $0x38] sm:$0xff]
      %v215 = vld [vmem:[%s206 + $0x40] sm:$0xff]
      %v216 = vld [vmem:[%s206 + $0x48] sm:$0xff]
      %v217 = vld [vmem:[%s206 + $0x50] sm:$0xff]
      %v218 = vld [vmem:[%s206 + $0x58] sm:$0xff]
      %v219 = vld [vmem:[%s206 + $0x60] sm:$0xff]
      %v220 = vld [vmem:[%s206 + $0x68] sm:$0xff]
      %v221 = vld [vmem:[%s206 + $0x70] sm:$0xff]
      %v222 = vld [vmem:[%s206 + $0x78] sm:$0xff]
      %v223 = vld [vmem:[%s206 + $0x80] sm:$0xff]
      %v224 = vld [vmem:[%s206 + $0x88] sm:$0xff]
      %v225 = vld [vmem:[%s206 + $0x90] sm:$0xff]
      %v226 = vld [vmem:[%s206 + $0x98] sm:$0xff]
      %v227 = vld [vmem:[%s206 + $0xa0] sm:$0xff]
      %v228 = vld [vmem:[%s206 + $0xa8] sm:$0xff]
      %v229 = vld [vmem:[%s206 + $0xb0] sm:$0xff]
      %v230 = vld [vmem:[%s206 + $0xb8] sm:$0xff]
      %v231 = vld [vmem:[%s206 + $0xc0] sm:$0xff]
      %v232 = vld [vmem:[%s206 + $0xc8] sm:$0xff]
      %v233 = vld [vmem:[%s206 + $0xd0] sm:$0xff]
      %v234 = vld [vmem:[%s206 + $0xd8] sm:$0xff]
      %v235 = vld [vmem:[%s206 + $0xe0] sm:$0xff]
      %v236 = vld [vmem:[%s206 + $0xe8] sm:$0xff]
      %v237 = vld [vmem:[%s206 + $0xf0] sm:$0xff]
      %v238 = vld [vmem:[%s206 + $0xf8] sm:$0xff]
      %v239 = vld [vmem:[%s206 + $0x100] sm:$0xff]
      %v240 = vld [vmem:[%s206 + $0x108] sm:$0xff]
      %s241 = scalar_lea.vmem %s1, 8
      %v242 = vld [vmem:[%s241] sm:$0xff]
      %vm243 = vcmask 64512
      %v245 = vsel %vm243, %v207, 0
      %v248 = vsel %vm243, %v208, 0
      %v251 = vsel %vm243, %v209, 0
      %v254 = vsel %vm243, %v210, 0
      %v257 = vsel %vm243, %v211, 0
      %v260 = vsel %vm243, %v212, 0
      %v263 = vsel %vm243, %v213, 0
      %v266 = vsel %vm243, %v214, 0
      %v269 = vsel %vm243, %v215, 0
      %v272 = vsel %vm243, %v216, 0
      %v275 = vsel %vm243, %v217, 0
      %v278 = vsel %vm243, %v218, 0
      %v281 = vsel %vm243, %v219, 0
      %v284 = vsel %vm243, %v220, 0
      %v287 = vsel %vm243, %v221, 0
      %v290 = vsel %vm243, %v222, 0
      %v293 = vsel %vm243, %v223, 0
      %v296 = vsel %vm243, %v224, 0
      %v299 = vsel %vm243, %v225, 0
      %v302 = vsel %vm243, %v226, 0
      %v305 = vsel %vm243, %v227, 0
      %v308 = vsel %vm243, %v228, 0
      %v311 = vsel %vm243, %v229, 0
      %v314 = vsel %vm243, %v230, 0
      %v317 = vsel %vm243, %v231, 0
      %v320 = vsel %vm243, %v232, 0
      %v323 = vsel %vm243, %v233, 0
      %v326 = vsel %vm243, %v234, 0
      %v329 = vsel %vm243, %v235, 0
      %v332 = vsel %vm243, %v236, 0
      %v335 = vsel %vm243, %v237, 0
      %v338 = vsel %vm243, %v238, 0
      %v341 = vsel %vm243, %v239, 0
      %v344 = vsel %vm243, %v240, 0
      %346 = vmatpush.msra.mxu0 0.0
      %347 = vmatpush.msra.mxu0 0.0
      %348 = vmatpush.msra.mxu0 0.0
      %349 = vmatpush.msra.mxu0 0.0
      %350 = vmatpush.msra.mxu0 0.0
      %351 = vmatpush.msra.mxu0 0.0
      %352 = vmatpush.msra.mxu0 0.0
      %353 = vmatpush.msra.mxu0 0.0
      %354 = vmatpush.msra.mxu0 0.0
      %355 = vmatpush.msra.mxu0 0.0
      %356 = vmatpush.msra.mxu0 0.0
      %357 = vmatpush.msra.mxu0 0.0
      %358 = vmatpush.msra.mxu0 0.0
      %359 = vmatpush.msra.mxu0 0.0
      %360 = vmatpush.msra.mxu0 0.0
      %361 = vmatpush.msra.mxu0 %v242
      %362 = vmatmul.f32.gmra.mxu0 %v245
      %v363 = vpop.f32.mrf.mxu0
      %v364 = vadd.f32 0.0, %v363
      %365 = vmatmul.f32.gmra.mxu0 %v248
      %v366 = vpop.f32.mrf.mxu0
      %v367 = vadd.f32 0.0, %v366
      %368 = vmatmul.f32.gmra.mxu0 %v251
      %v369 = vpop.f32.mrf.mxu0
      %v370 = vadd.f32 0.0, %v369
      %371 = vmatmul.f32.gmra.mxu0 %v254
      %v372 = vpop.f32.mrf.mxu0
      %v373 = vadd.f32 0.0, %v372
      %374 = vmatmul.f32.gmra.mxu0 %v257
      %v375 = vpop.f32.mrf.mxu0
      %v376 = vadd.f32 0.0, %v375
      %377 = vmatmul.f32.gmra.mxu0 %v260
      %v378 = vpop.f32.mrf.mxu0
      %v379 = vadd.f32 0.0, %v378
      %380 = vmatmul.f32.gmra.mxu0 %v263
      %v381 = vpop.f32.mrf.mxu0
      %v382 = vadd.f32 0.0, %v381
      %383 = vmatmul.f32.gmra.mxu0 %v266
      %v384 = vpop.f32.mrf.mxu0
      %v385 = vadd.f32 0.0, %v384
      %386 = vmatmul.f32.gmra.mxu0 %v269
      %v387 = vpop.f32.mrf.mxu0
      %v388 = vadd.f32 0.0, %v387
      %389 = vmatmul.f32.gmra.mxu0 %v272
      %v390 = vpop.f32.mrf.mxu0
      %v391 = vadd.f32 0.0, %v390
      %392 = vmatmul.f32.gmra.mxu0 %v275
      %v393 = vpop.f32.mrf.mxu0
      %v394 = vadd.f32 0.0, %v393
      %395 = vmatmul.f32.gmra.mxu0 %v278
      %v396 = vpop.f32.mrf.mxu0
      %v397 = vadd.f32 0.0, %v396
      %398 = vmatmul.f32.gmra.mxu0 %v281
      %v399 = vpop.f32.mrf.mxu0
      %v400 = vadd.f32 0.0, %v399
      %401 = vmatmul.f32.gmra.mxu0 %v284
      %v402 = vpop.f32.mrf.mxu0
      %v403 = vadd.f32 0.0, %v402
      %404 = vmatmul.f32.gmra.mxu0 %v287
      %v405 = vpop.f32.mrf.mxu0
      %v406 = vadd.f32 0.0, %v405
      %407 = vmatmul.f32.gmra.mxu0 %v290
      %v408 = vpop.f32.mrf.mxu0
      %v409 = vadd.f32 0.0, %v408
      %410 = vmatmul.f32.gmra.mxu0 %v293
      %v411 = vpop.f32.mrf.mxu0
      %v412 = vadd.f32 0.0, %v411
      %413 = vmatmul.f32.gmra.mxu0 %v296
      %v414 = vpop.f32.mrf.mxu0
      %v415 = vadd.f32 0.0, %v414
      %416 = vmatmul.f32.gmra.mxu0 %v299
      %v417 = vpop.f32.mrf.mxu0
      %v418 = vadd.f32 0.0, %v417
      %419 = vmatmul.f32.gmra.mxu0 %v302
      %v420 = vpop.f32.mrf.mxu0
      %v421 = vadd.f32 0.0, %v420
      %422 = vmatmul.f32.gmra.mxu0 %v305
      %v423 = vpop.f32.mrf.mxu0
      %v424 = vadd.f32 0.0, %v423
      %425 = vmatmul.f32.gmra.mxu0 %v308
      %v426 = vpop.f32.mrf.mxu0
      %v427 = vadd.f32 0.0, %v426
      %428 = vmatmul.f32.gmra.mxu0 %v311
      %v429 = vpop.f32.mrf.mxu0
      %v430 = vadd.f32 0.0, %v429
      %431 = vmatmul.f32.gmra.mxu0 %v314
      %v432 = vpop.f32.mrf.mxu0
      %v433 = vadd.f32 0.0, %v432
      %434 = vmatmul.f32.gmra.mxu0 %v317
      %v435 = vpop.f32.mrf.mxu0
      %v436 = vadd.f32 0.0, %v435
      %437 = vmatmul.f32.gmra.mxu0 %v320
      %v438 = vpop.f32.mrf.mxu0
      %v439 = vadd.f32 0.0, %v438
      %440 = vmatmul.f32.gmra.mxu0 %v323
      %v441 = vpop.f32.mrf.mxu0
      %v442 = vadd.f32 0.0, %v441
      %443 = vmatmul.f32.gmra.mxu0 %v326
      %v444 = vpop.f32.mrf.mxu0
      %v445 = vadd.f32 0.0, %v444
      %446 = vmatmul.f32.gmra.mxu0 %v329
      %v447 = vpop.f32.mrf.mxu0
      %v448 = vadd.f32 0.0, %v447
      %449 = vmatmul.f32.gmra.mxu0 %v332
      %v450 = vpop.f32.mrf.mxu0
      %v451 = vadd.f32 0.0, %v450
      %452 = vmatmul.f32.gmra.mxu0 %v335
      %v453 = vpop.f32.mrf.mxu0
      %v454 = vadd.f32 0.0, %v453
      %455 = vmatmul.f32.gmra.mxu0 %v338
      %v456 = vpop.f32.mrf.mxu0
      %v457 = vadd.f32 0.0, %v456
      %458 = vmatmul.f32.gmra.mxu0 %v341
      %v459 = vpop.f32.mrf.mxu0
      %v460 = vadd.f32 0.0, %v459
      %461 = vmatmul.f32.gmra.mxu0 %v344
      %v462 = vpop.f32.mrf.mxu0
      %v463 = vadd.f32 0.0, %v462
      %464 = vdwg.mxu0
      %v466 = vsel %vm243, %v171, 0
      %v469 = vsel %vm243, %v172, 0
      %v472 = vsel %vm243, %v173, 0
      %v475 = vsel %vm243, %v174, 0
      %v478 = vsel %vm243, %v175, 0
      %v481 = vsel %vm243, %v176, 0
      %v484 = vsel %vm243, %v177, 0
      %v487 = vsel %vm243, %v178, 0
      %v490 = vsel %vm243, %v179, 0
      %v493 = vsel %vm243, %v180, 0
      %v496 = vsel %vm243, %v181, 0
      %v499 = vsel %vm243, %v182, 0
      %v502 = vsel %vm243, %v183, 0
      %v505 = vsel %vm243, %v184, 0
      %v508 = vsel %vm243, %v185, 0
      %v511 = vsel %vm243, %v186, 0
      %v514 = vsel %vm243, %v187, 0
      %v517 = vsel %vm243, %v188, 0
      %v520 = vsel %vm243, %v189, 0
      %v523 = vsel %vm243, %v190, 0
      %v526 = vsel %vm243, %v191, 0
      %v529 = vsel %vm243, %v192, 0
      %v532 = vsel %vm243, %v193, 0
      %v535 = vsel %vm243, %v194, 0
      %v538 = vsel %vm243, %v195, 0
      %v541 = vsel %vm243, %v196, 0
      %v544 = vsel %vm243, %v197, 0
      %v547 = vsel %vm243, %v198, 0
      %v550 = vsel %vm243, %v199, 0
      %v553 = vsel %vm243, %v200, 0
      %v556 = vsel %vm243, %v201, 0
      %v559 = vsel %vm243, %v202, 0
      %v562 = vsel %vm243, %v203, 0
      %v565 = vsel %vm243, %v204, 0
      %567 = vmatpush.msra.mxu0 0.0
      %568 = vmatpush.msra.mxu0 0.0
      %569 = vmatpush.msra.mxu0 0.0
      %570 = vmatpush.msra.mxu0 0.0
      %571 = vmatpush.msra.mxu0 0.0
      %572 = vmatpush.msra.mxu0 0.0
      %573 = vmatpush.msra.mxu0 0.0
      %574 = vmatpush.msra.mxu0 0.0
      %575 = vmatpush.msra.mxu0 0.0
      %576 = vmatpush.msra.mxu0 0.0
      %577 = vmatpush.msra.mxu0 0.0
      %578 = vmatpush.msra.mxu0 0.0
      %579 = vmatpush.msra.mxu0 0.0
      %580 = vmatpush.msra.mxu0 0.0
      %581 = vmatpush.msra.mxu0 0.0
      %582 = vmatpush.msra.mxu0 %v205
      %583 = vmatmul.f32.gmra.mxu0 %v466
      %v584 = vpop.f32.mrf.mxu0
      %v585 = vadd.f32 %v364, %v584
      %586 = vmatmul.f32.gmra.mxu0 %v469
      %v587 = vpop.f32.mrf.mxu0
      %v588 = vadd.f32 %v367, %v587
      %589 = vmatmul.f32.gmra.mxu0 %v472
      %v590 = vpop.f32.mrf.mxu0
      %v591 = vadd.f32 %v370, %v590
      %592 = vmatmul.f32.gmra.mxu0 %v475
      %v593 = vpop.f32.mrf.mxu0
      %v594 = vadd.f32 %v373, %v593
      %595 = vmatmul.f32.gmra.mxu0 %v478
      %v596 = vpop.f32.mrf.mxu0
      %v597 = vadd.f32 %v376, %v596
      %598 = vmatmul.f32.gmra.mxu0 %v481
      %v599 = vpop.f32.mrf.mxu0
      %v600 = vadd.f32 %v379, %v599
      %601 = vmatmul.f32.gmra.mxu0 %v484
      %v602 = vpop.f32.mrf.mxu0
      %v603 = vadd.f32 %v382, %v602
      %604 = vmatmul.f32.gmra.mxu0 %v487
      %v605 = vpop.f32.mrf.mxu0
      %v606 = vadd.f32 %v385, %v605
      %607 = vmatmul.f32.gmra.mxu0 %v490
      %v608 = vpop.f32.mrf.mxu0
      %v609 = vadd.f32 %v388, %v608
      %610 = vmatmul.f32.gmra.mxu0 %v493
      %v611 = vpop.f32.mrf.mxu0
      %v612 = vadd.f32 %v391, %v611
      %613 = vmatmul.f32.gmra.mxu0 %v496
      %v614 = vpop.f32.mrf.mxu0
      %v615 = vadd.f32 %v394, %v614
      %616 = vmatmul.f32.gmra.mxu0 %v499
      %v617 = vpop.f32.mrf.mxu0
      %v618 = vadd.f32 %v397, %v617
      %619 = vmatmul.f32.gmra.mxu0 %v502
      %v620 = vpop.f32.mrf.mxu0
      %v621 = vadd.f32 %v400, %v620
      %622 = vmatmul.f32.gmra.mxu0 %v505
      %v623 = vpop.f32.mrf.mxu0
      %v624 = vadd.f32 %v403, %v623
      %625 = vmatmul.f32.gmra.mxu0 %v508
      %v626 = vpop.f32.mrf.mxu0
      %v627 = vadd.f32 %v406, %v626
      %628 = vmatmul.f32.gmra.mxu0 %v511
      %v629 = vpop.f32.mrf.mxu0
      %v630 = vadd.f32 %v409, %v629
      %631 = vmatmul.f32.gmra.mxu0 %v514
      %v632 = vpop.f32.mrf.mxu0
      %v633 = vadd.f32 %v412, %v632
      %634 = vmatmul.f32.gmra.mxu0 %v517
      %v635 = vpop.f32.mrf.mxu0
      %v636 = vadd.f32 %v415, %v635
      %637 = vmatmul.f32.gmra.mxu0 %v520
      %v638 = vpop.f32.mrf.mxu0
      %v639 = vadd.f32 %v418, %v638
      %640 = vmatmul.f32.gmra.mxu0 %v523
      %v641 = vpop.f32.mrf.mxu0
      %v642 = vadd.f32 %v421, %v641
      %643 = vmatmul.f32.gmra.mxu0 %v526
      %v644 = vpop.f32.mrf.mxu0
      %v645 = vadd.f32 %v424, %v644
      %646 = vmatmul.f32.gmra.mxu0 %v529
      %v647 = vpop.f32.mrf.mxu0
      %v648 = vadd.f32 %v427, %v647
      %649 = vmatmul.f32.gmra.mxu0 %v532
      %v650 = vpop.f32.mrf.mxu0
      %v651 = vadd.f32 %v430, %v650
      %652 = vmatmul.f32.gmra.mxu0 %v535
      %v653 = vpop.f32.mrf.mxu0
      %v654 = vadd.f32 %v433, %v653
      %655 = vmatmul.f32.gmra.mxu0 %v538
      %v656 = vpop.f32.mrf.mxu0
      %v657 = vadd.f32 %v436, %v656
      %658 = vmatmul.f32.gmra.mxu0 %v541
      %v659 = vpop.f32.mrf.mxu0
      %v660 = vadd.f32 %v439, %v659
      %661 = vmatmul.f32.gmra.mxu0 %v544
      %v662 = vpop.f32.mrf.mxu0
      %v663 = vadd.f32 %v442, %v662
      %664 = vmatmul.f32.gmra.mxu0 %v547
      %v665 = vpop.f32.mrf.mxu0
      %v666 = vadd.f32 %v445, %v665
      %667 = vmatmul.f32.gmra.mxu0 %v550
      %v668 = vpop.f32.mrf.mxu0
      %v669 = vadd.f32 %v448, %v668
      %670 = vmatmul.f32.gmra.mxu0 %v553
      %v671 = vpop.f32.mrf.mxu0
      %v672 = vadd.f32 %v451, %v671
      %673 = vmatmul.f32.gmra.mxu0 %v556
      %v674 = vpop.f32.mrf.mxu0
      %v675 = vadd.f32 %v454, %v674
      %676 = vmatmul.f32.gmra.mxu0 %v559
      %v677 = vpop.f32.mrf.mxu0
      %v678 = vadd.f32 %v457, %v677
      %679 = vmatmul.f32.gmra.mxu0 %v562
      %v680 = vpop.f32.mrf.mxu0
      %v681 = vadd.f32 %v460, %v680
      %682 = vmatmul.f32.gmra.mxu0 %v565
      %v683 = vpop.f32.mrf.mxu0
      %v684 = vadd.f32 %v463, %v683
      %685 = vdwg.mxu0
      %v686 = vld [vmem:[%s165 + $0x1] sm:$0xff]
      %v687 = vld [vmem:[%s165 + $0x9] sm:$0xff]
      %v688 = vld [vmem:[%s165 + $0x11] sm:$0xff]
      %v689 = vld [vmem:[%s165 + $0x19] sm:$0xff]
      %v690 = vld [vmem:[%s165 + $0x21] sm:$0xff]
      %v691 = vld [vmem:[%s165 + $0x29] sm:$0xff]
      %v692 = vld [vmem:[%s165 + $0x31] sm:$0xff]
      %v693 = vld [vmem:[%s165 + $0x39] sm:$0xff]
      %v694 = vld [vmem:[%s165 + $0x41] sm:$0xff]
      %v695 = vld [vmem:[%s165 + $0x49] sm:$0xff]
      %v696 = vld [vmem:[%s165 + $0x51] sm:$0xff]
      %v697 = vld [vmem:[%s165 + $0x59] sm:$0xff]
      %v698 = vld [vmem:[%s165 + $0x61] sm:$0xff]
      %v699 = vld [vmem:[%s165 + $0x69] sm:$0xff]
      %v700 = vld [vmem:[%s165 + $0x71] sm:$0xff]
      %v701 = vld [vmem:[%s165 + $0x79] sm:$0xff]
      %v702 = vld [vmem:[%s165 + $0x81] sm:$0xff]
      %v703 = vld [vmem:[%s165 + $0x89] sm:$0xff]
      %v704 = vld [vmem:[%s165 + $0x91] sm:$0xff]
      %v705 = vld [vmem:[%s165 + $0x99] sm:$0xff]
      %v706 = vld [vmem:[%s165 + $0xa1] sm:$0xff]
      %v707 = vld [vmem:[%s165 + $0xa9] sm:$0xff]
      %v708 = vld [vmem:[%s165 + $0xb1] sm:$0xff]
      %v709 = vld [vmem:[%s165 + $0xb9] sm:$0xff]
      %v710 = vld [vmem:[%s165 + $0xc1] sm:$0xff]
      %v711 = vld [vmem:[%s165 + $0xc9] sm:$0xff]
      %v712 = vld [vmem:[%s165 + $0xd1] sm:$0xff]
      %v713 = vld [vmem:[%s165 + $0xd9] sm:$0xff]
      %v714 = vld [vmem:[%s165 + $0xe1] sm:$0xff]
      %v715 = vld [vmem:[%s165 + $0xe9] sm:$0xff]
      %v716 = vld [vmem:[%s165 + $0xf1] sm:$0xff]
      %v717 = vld [vmem:[%s165 + $0xf9] sm:$0xff]
      %v718 = vld [vmem:[%s165 + $0x101] sm:$0xff]
      %v719 = vld [vmem:[%s165 + $0x109] sm:$0xff]
      %s720 = scalar_lea.vmem %s1, 16
      %v721 = vld [vmem:[%s720] sm:$0xff]
      %v723 = vsel %vm243, %v686, 0
      %v726 = vsel %vm243, %v687, 0
      %v729 = vsel %vm243, %v688, 0
      %v732 = vsel %vm243, %v689, 0
      %v735 = vsel %vm243, %v690, 0
      %v738 = vsel %vm243, %v691, 0
      %v741 = vsel %vm243, %v692, 0
      %v744 = vsel %vm243, %v693, 0
      %v747 = vsel %vm243, %v694, 0
      %v750 = vsel %vm243, %v695, 0
      %v753 = vsel %vm243, %v696, 0
      %v756 = vsel %vm243, %v697, 0
      %v759 = vsel %vm243, %v698, 0
      %v762 = vsel %vm243, %v699, 0
      %v765 = vsel %vm243, %v700, 0
      %v768 = vsel %vm243, %v701, 0
      %v771 = vsel %vm243, %v702, 0
      %v774 = vsel %vm243, %v703, 0
      %v777 = vsel %vm243, %v704, 0
      %v780 = vsel %vm243, %v705, 0
      %v783 = vsel %vm243, %v706, 0
      %v786 = vsel %vm243, %v707, 0
      %v789 = vsel %vm243, %v708, 0
      %v792 = vsel %vm243, %v709, 0
      %v795 = vsel %vm243, %v710, 0
      %v798 = vsel %vm243, %v711, 0
      %v801 = vsel %vm243, %v712, 0
      %v804 = vsel %vm243, %v713, 0
      %v807 = vsel %vm243, %v714, 0
      %v810 = vsel %vm243, %v715, 0
      %v813 = vsel %vm243, %v716, 0
      %v816 = vsel %vm243, %v717, 0
      %v819 = vsel %vm243, %v718, 0
      %v822 = vsel %vm243, %v719, 0
      %824 = vmatpush.msra.mxu0 0.0
      %825 = vmatpush.msra.mxu0 0.0
      %826 = vmatpush.msra.mxu0 0.0
      %827 = vmatpush.msra.mxu0 0.0
      %828 = vmatpush.msra.mxu0 0.0
      %829 = vmatpush.msra.mxu0 0.0
      %830 = vmatpush.msra.mxu0 0.0
      %831 = vmatpush.msra.mxu0 0.0
      %832 = vmatpush.msra.mxu0 0.0
      %833 = vmatpush.msra.mxu0 0.0
      %834 = vmatpush.msra.mxu0 0.0
      %835 = vmatpush.msra.mxu0 0.0
      %836 = vmatpush.msra.mxu0 0.0
      %837 = vmatpush.msra.mxu0 0.0
      %838 = vmatpush.msra.mxu0 0.0
      %839 = vmatpush.msra.mxu0 %v721
      %840 = vmatmul.f32.gmra.mxu0 %v723
      %v841 = vpop.f32.mrf.mxu0
      %v842 = vadd.f32 0.0, %v841
      %843 = vmatmul.f32.gmra.mxu0 %v726
      %v844 = vpop.f32.mrf.mxu0
      %v845 = vadd.f32 0.0, %v844
      %846 = vmatmul.f32.gmra.mxu0 %v729
      %v847 = vpop.f32.mrf.mxu0
      %v848 = vadd.f32 0.0, %v847
      %849 = vmatmul.f32.gmra.mxu0 %v732
      %v850 = vpop.f32.mrf.mxu0
      %v851 = vadd.f32 0.0, %v850
      %852 = vmatmul.f32.gmra.mxu0 %v735
      %v853 = vpop.f32.mrf.mxu0
      %v854 = vadd.f32 0.0, %v853
      %855 = vmatmul.f32.gmra.mxu0 %v738
      %v856 = vpop.f32.mrf.mxu0
      %v857 = vadd.f32 0.0, %v856
      %858 = vmatmul.f32.gmra.mxu0 %v741
      %v859 = vpop.f32.mrf.mxu0
      %v860 = vadd.f32 0.0, %v859
      %861 = vmatmul.f32.gmra.mxu0 %v744
      %v862 = vpop.f32.mrf.mxu0
      %v863 = vadd.f32 0.0, %v862
      %864 = vmatmul.f32.gmra.mxu0 %v747
      %v865 = vpop.f32.mrf.mxu0
      %v866 = vadd.f32 0.0, %v865
      %867 = vmatmul.f32.gmra.mxu0 %v750
      %v868 = vpop.f32.mrf.mxu0
      %v869 = vadd.f32 0.0, %v868
      %870 = vmatmul.f32.gmra.mxu0 %v753
      %v871 = vpop.f32.mrf.mxu0
      %v872 = vadd.f32 0.0, %v871
      %873 = vmatmul.f32.gmra.mxu0 %v756
      %v874 = vpop.f32.mrf.mxu0
      %v875 = vadd.f32 0.0, %v874
      %876 = vmatmul.f32.gmra.mxu0 %v759
      %v877 = vpop.f32.mrf.mxu0
      %v878 = vadd.f32 0.0, %v877
      %879 = vmatmul.f32.gmra.mxu0 %v762
      %v880 = vpop.f32.mrf.mxu0
      %v881 = vadd.f32 0.0, %v880
      %882 = vmatmul.f32.gmra.mxu0 %v765
      %v883 = vpop.f32.mrf.mxu0
      %v884 = vadd.f32 0.0, %v883
      %885 = vmatmul.f32.gmra.mxu0 %v768
      %v886 = vpop.f32.mrf.mxu0
      %v887 = vadd.f32 0.0, %v886
      %888 = vmatmul.f32.gmra.mxu0 %v771
      %v889 = vpop.f32.mrf.mxu0
      %v890 = vadd.f32 0.0, %v889
      %891 = vmatmul.f32.gmra.mxu0 %v774
      %v892 = vpop.f32.mrf.mxu0
      %v893 = vadd.f32 0.0, %v892
      %894 = vmatmul.f32.gmra.mxu0 %v777
      %v895 = vpop.f32.mrf.mxu0
      %v896 = vadd.f32 0.0, %v895
      %897 = vmatmul.f32.gmra.mxu0 %v780
      %v898 = vpop.f32.mrf.mxu0
      %v899 = vadd.f32 0.0, %v898
      %900 = vmatmul.f32.gmra.mxu0 %v783
      %v901 = vpop.f32.mrf.mxu0
      %v902 = vadd.f32 0.0, %v901
      %903 = vmatmul.f32.gmra.mxu0 %v786
      %v904 = vpop.f32.mrf.mxu0
      %v905 = vadd.f32 0.0, %v904
      %906 = vmatmul.f32.gmra.mxu0 %v789
      %v907 = vpop.f32.mrf.mxu0
      %v908 = vadd.f32 0.0, %v907
      %909 = vmatmul.f32.gmra.mxu0 %v792
      %v910 = vpop.f32.mrf.mxu0
      %v911 = vadd.f32 0.0, %v910
      %912 = vmatmul.f32.gmra.mxu0 %v795
      %v913 = vpop.f32.mrf.mxu0
      %v914 = vadd.f32 0.0, %v913
      %915 = vmatmul.f32.gmra.mxu0 %v798
      %v916 = vpop.f32.mrf.mxu0
      %v917 = vadd.f32 0.0, %v916
      %918 = vmatmul.f32.gmra.mxu0 %v801
      %v919 = vpop.f32.mrf.mxu0
      %v920 = vadd.f32 0.0, %v919
      %921 = vmatmul.f32.gmra.mxu0 %v804
      %v922 = vpop.f32.mrf.mxu0
      %v923 = vadd.f32 0.0, %v922
      %924 = vmatmul.f32.gmra.mxu0 %v807
      %v925 = vpop.f32.mrf.mxu0
      %v926 = vadd.f32 0.0, %v925
      %927 = vmatmul.f32.gmra.mxu0 %v810
      %v928 = vpop.f32.mrf.mxu0
      %v929 = vadd.f32 0.0, %v928
      %930 = vmatmul.f32.gmra.mxu0 %v813
      %v931 = vpop.f32.mrf.mxu0
      %v932 = vadd.f32 0.0, %v931
      %933 = vmatmul.f32.gmra.mxu0 %v816
      %v934 = vpop.f32.mrf.mxu0
      %v935 = vadd.f32 0.0, %v934
      %936 = vmatmul.f32.gmra.mxu0 %v819
      %v937 = vpop.f32.mrf.mxu0
      %v938 = vadd.f32 0.0, %v937
      %939 = vmatmul.f32.gmra.mxu0 %v822
      %v940 = vpop.f32.mrf.mxu0
      %v941 = vadd.f32 0.0, %v940
      %942 = vdwg.mxu0
      %v943 = vadd.f32 %v585, %v842
      %v944 = vadd.f32 %v588, %v845
      %v945 = vadd.f32 %v591, %v848
      %v946 = vadd.f32 %v594, %v851
      %v947 = vadd.f32 %v597, %v854
      %v948 = vadd.f32 %v600, %v857
      %v949 = vadd.f32 %v603, %v860
      %v950 = vadd.f32 %v606, %v863
      %v951 = vadd.f32 %v609, %v866
      %v952 = vadd.f32 %v612, %v869
      %v953 = vadd.f32 %v615, %v872
      %v954 = vadd.f32 %v618, %v875
      %v955 = vadd.f32 %v621, %v878
      %v956 = vadd.f32 %v624, %v881
      %v957 = vadd.f32 %v627, %v884
      %v958 = vadd.f32 %v630, %v887
      %v959 = vadd.f32 %v633, %v890
      %v960 = vadd.f32 %v636, %v893
      %v961 = vadd.f32 %v639, %v896
      %v962 = vadd.f32 %v642, %v899
      %v963 = vadd.f32 %v645, %v902
      %v964 = vadd.f32 %v648, %v905
      %v965 = vadd.f32 %v651, %v908
      %v966 = vadd.f32 %v654, %v911
      %v967 = vadd.f32 %v657, %v914
      %v968 = vadd.f32 %v660, %v917
      %v969 = vadd.f32 %v663, %v920
      %v970 = vadd.f32 %v666, %v923
      %v971 = vadd.f32 %v669, %v926
      %v972 = vadd.f32 %v672, %v929
      %v973 = vadd.f32 %v675, %v932
      %v974 = vadd.f32 %v678, %v935
      %v975 = vadd.f32 %v681, %v938
      %v976 = vadd.f32 %v684, %v941
      %s977 = scalar_lea.vmem %s165, 592
      %v978 = vld [vmem:[%s977] sm:$0xff]
      %v979 = vld [vmem:[%s977 + $0x8] sm:$0xff]
      %v980 = vld [vmem:[%s977 + $0x10] sm:$0xff]
      %v981 = vld [vmem:[%s977 + $0x18] sm:$0xff]
      %v982 = vld [vmem:[%s977 + $0x20] sm:$0xff]
      %v983 = vld [vmem:[%s977 + $0x28] sm:$0xff]
      %v984 = vld [vmem:[%s977 + $0x30] sm:$0xff]
      %v985 = vld [vmem:[%s977 + $0x38] sm:$0xff]
      %v986 = vld [vmem:[%s977 + $0x40] sm:$0xff]
      %v987 = vld [vmem:[%s977 + $0x48] sm:$0xff]
      %v988 = vld [vmem:[%s977 + $0x50] sm:$0xff]
      %v989 = vld [vmem:[%s977 + $0x58] sm:$0xff]
      %v990 = vld [vmem:[%s977 + $0x60] sm:$0xff]
      %v991 = vld [vmem:[%s977 + $0x68] sm:$0xff]
      %v992 = vld [vmem:[%s977 + $0x70] sm:$0xff]
      %v993 = vld [vmem:[%s977 + $0x78] sm:$0xff]
      %v994 = vld [vmem:[%s977 + $0x80] sm:$0xff]
      %v995 = vld [vmem:[%s977 + $0x88] sm:$0xff]
      %v996 = vld [vmem:[%s977 + $0x90] sm:$0xff]
      %v997 = vld [vmem:[%s977 + $0x98] sm:$0xff]
      %v998 = vld [vmem:[%s977 + $0xa0] sm:$0xff]
      %v999 = vld [vmem:[%s977 + $0xa8] sm:$0xff]
      %v1000 = vld [vmem:[%s977 + $0xb0] sm:$0xff]
      %v1001 = vld [vmem:[%s977 + $0xb8] sm:$0xff]
      %v1002 = vld [vmem:[%s977 + $0xc0] sm:$0xff]
      %v1003 = vld [vmem:[%s977 + $0xc8] sm:$0xff]
      %v1004 = vld [vmem:[%s977 + $0xd0] sm:$0xff]
      %v1005 = vld [vmem:[%s977 + $0xd8] sm:$0xff]
      %v1006 = vld [vmem:[%s977 + $0xe0] sm:$0xff]
      %v1007 = vld [vmem:[%s977 + $0xe8] sm:$0xff]
      %v1008 = vld [vmem:[%s977 + $0xf0] sm:$0xff]
      %v1009 = vld [vmem:[%s977 + $0xf8] sm:$0xff]
      %v1010 = vld [vmem:[%s977 + $0x100] sm:$0xff]
      %v1011 = vld [vmem:[%s977 + $0x108] sm:$0xff]
      %s1012 = scalar_lea.vmem %s1, 24
      %v1013 = vld [vmem:[%s1012] sm:$0xff]
      %v1015 = vsel %vm243, %v978, 0
      %v1018 = vsel %vm243, %v979, 0
      %v1021 = vsel %vm243, %v980, 0
      %v1024 = vsel %vm243, %v981, 0
      %v1027 = vsel %vm243, %v982, 0
      %v1030 = vsel %vm243, %v983, 0
      %v1033 = vsel %vm243, %v984, 0
      %v1036 = vsel %vm243, %v985, 0
      %v1039 = vsel %vm243, %v986, 0
      %v1042 = vsel %vm243, %v987, 0
      %v1045 = vsel %vm243, %v988, 0
      %v1048 = vsel %vm243, %v989, 0
      %v1051 = vsel %vm243, %v990, 0
      %v1054 = vsel %vm243, %v991, 0
      %v1057 = vsel %vm243, %v992, 0
      %v1060 = vsel %vm243, %v993, 0
      %v1063 = vsel %vm243, %v994, 0
      %v1066 = vsel %vm243, %v995, 0
      %v1069 = vsel %vm243, %v996, 0
      %v1072 = vsel %vm243, %v997, 0
      %v1075 = vsel %vm243, %v998, 0
      %v1078 = vsel %vm243, %v999, 0
      %v1081 = vsel %vm243, %v1000, 0
      %v1084 = vsel %vm243, %v1001, 0
      %v1087 = vsel %vm243, %v1002, 0
      %v1090 = vsel %vm243, %v1003, 0
      %v1093 = vsel %vm243, %v1004, 0
      %v1096 = vsel %vm243, %v1005, 0
      %v1099 = vsel %vm243, %v1006, 0
      %v1102 = vsel %vm243, %v1007, 0
      %v1105 = vsel %vm243, %v1008, 0
      %v1108 = vsel %vm243, %v1009, 0
      %v1111 = vsel %vm243, %v1010, 0
      %v1114 = vsel %vm243, %v1011, 0
      %1116 = vmatpush.msra.mxu0 0.0
      %1117 = vmatpush.msra.mxu0 0.0
      %1118 = vmatpush.msra.mxu0 0.0
      %1119 = vmatpush.msra.mxu0 0.0
      %1120 = vmatpush.msra.mxu0 0.0
      %1121 = vmatpush.msra.mxu0 0.0
      %1122 = vmatpush.msra.mxu0 0.0
      %1123 = vmatpush.msra.mxu0 0.0
      %1124 = vmatpush.msra.mxu0 0.0
      %1125 = vmatpush.msra.mxu0 0.0
      %1126 = vmatpush.msra.mxu0 0.0
      %1127 = vmatpush.msra.mxu0 0.0
      %1128 = vmatpush.msra.mxu0 0.0
      %1129 = vmatpush.msra.mxu0 0.0
      %1130 = vmatpush.msra.mxu0 0.0
      %1131 = vmatpush.msra.mxu0 %v1013
      %1132 = vmatmul.f32.gmra.mxu0 %v1015
      %v1133 = vpop.f32.mrf.mxu0
      %v1134 = vadd.f32 0.0, %v1133
      %1135 = vmatmul.f32.gmra.mxu0 %v1018
      %v1136 = vpop.f32.mrf.mxu0
      %v1137 = vadd.f32 0.0, %v1136
      %1138 = vmatmul.f32.gmra.mxu0 %v1021
      %v1139 = vpop.f32.mrf.mxu0
      %v1140 = vadd.f32 0.0, %v1139
      %1141 = vmatmul.f32.gmra.mxu0 %v1024
      %v1142 = vpop.f32.mrf.mxu0
      %v1143 = vadd.f32 0.0, %v1142
      %1144 = vmatmul.f32.gmra.mxu0 %v1027
      %v1145 = vpop.f32.mrf.mxu0
      %v1146 = vadd.f32 0.0, %v1145
      %1147 = vmatmul.f32.gmra.mxu0 %v1030
      %v1148 = vpop.f32.mrf.mxu0
      %v1149 = vadd.f32 0.0, %v1148
      %1150 = vmatmul.f32.gmra.mxu0 %v1033
      %v1151 = vpop.f32.mrf.mxu0
      %v1152 = vadd.f32 0.0, %v1151
      %1153 = vmatmul.f32.gmra.mxu0 %v1036
      %v1154 = vpop.f32.mrf.mxu0
      %v1155 = vadd.f32 0.0, %v1154
      %1156 = vmatmul.f32.gmra.mxu0 %v1039
      %v1157 = vpop.f32.mrf.mxu0
      %v1158 = vadd.f32 0.0, %v1157
      %1159 = vmatmul.f32.gmra.mxu0 %v1042
      %v1160 = vpop.f32.mrf.mxu0
      %v1161 = vadd.f32 0.0, %v1160
      %1162 = vmatmul.f32.gmra.mxu0 %v1045
      %v1163 = vpop.f32.mrf.mxu0
      %v1164 = vadd.f32 0.0, %v1163
      %1165 = vmatmul.f32.gmra.mxu0 %v1048
      %v1166 = vpop.f32.mrf.mxu0
      %v1167 = vadd.f32 0.0, %v1166
      %1168 = vmatmul.f32.gmra.mxu0 %v1051
      %v1169 = vpop.f32.mrf.mxu0
      %v1170 = vadd.f32 0.0, %v1169
      %1171 = vmatmul.f32.gmra.mxu0 %v1054
      %v1172 = vpop.f32.mrf.mxu0
      %v1173 = vadd.f32 0.0, %v1172
      %1174 = vmatmul.f32.gmra.mxu0 %v1057
      %v1175 = vpop.f32.mrf.mxu0
      %v1176 = vadd.f32 0.0, %v1175
      %1177 = vmatmul.f32.gmra.mxu0 %v1060
      %v1178 = vpop.f32.mrf.mxu0
      %v1179 = vadd.f32 0.0, %v1178
      %1180 = vmatmul.f32.gmra.mxu0 %v1063
      %v1181 = vpop.f32.mrf.mxu0
      %v1182 = vadd.f32 0.0, %v1181
      %1183 = vmatmul.f32.gmra.mxu0 %v1066
      %v1184 = vpop.f32.mrf.mxu0
      %v1185 = vadd.f32 0.0, %v1184
      %1186 = vmatmul.f32.gmra.mxu0 %v1069
      %v1187 = vpop.f32.mrf.mxu0
      %v1188 = vadd.f32 0.0, %v1187
      %1189 = vmatmul.f32.gmra.mxu0 %v1072
      %v1190 = vpop.f32.mrf.mxu0
      %v1191 = vadd.f32 0.0, %v1190
      %1192 = vmatmul.f32.gmra.mxu0 %v1075
      %v1193 = vpop.f32.mrf.mxu0
      %v1194 = vadd.f32 0.0, %v1193
      %1195 = vmatmul.f32.gmra.mxu0 %v1078
      %v1196 = vpop.f32.mrf.mxu0
      %v1197 = vadd.f32 0.0, %v1196
      %1198 = vmatmul.f32.gmra.mxu0 %v1081
      %v1199 = vpop.f32.mrf.mxu0
      %v1200 = vadd.f32 0.0, %v1199
      %1201 = vmatmul.f32.gmra.mxu0 %v1084
      %v1202 = vpop.f32.mrf.mxu0
      %v1203 = vadd.f32 0.0, %v1202
      %1204 = vmatmul.f32.gmra.mxu0 %v1087
      %v1205 = vpop.f32.mrf.mxu0
      %v1206 = vadd.f32 0.0, %v1205
      %1207 = vmatmul.f32.gmra.mxu0 %v1090
      %v1208 = vpop.f32.mrf.mxu0
      %v1209 = vadd.f32 0.0, %v1208
      %1210 = vmatmul.f32.gmra.mxu0 %v1093
      %v1211 = vpop.f32.mrf.mxu0
      %v1212 = vadd.f32 0.0, %v1211
      %1213 = vmatmul.f32.gmra.mxu0 %v1096
      %v1214 = vpop.f32.mrf.mxu0
      %v1215 = vadd.f32 0.0, %v1214
      %1216 = vmatmul.f32.gmra.mxu0 %v1099
      %v1217 = vpop.f32.mrf.mxu0
      %v1218 = vadd.f32 0.0, %v1217
      %1219 = vmatmul.f32.gmra.mxu0 %v1102
      %v1220 = vpop.f32.mrf.mxu0
      %v1221 = vadd.f32 0.0, %v1220
      %1222 = vmatmul.f32.gmra.mxu0 %v1105
      %v1223 = vpop.f32.mrf.mxu0
      %v1224 = vadd.f32 0.0, %v1223
      %1225 = vmatmul.f32.gmra.mxu0 %v1108
      %v1226 = vpop.f32.mrf.mxu0
      %v1227 = vadd.f32 0.0, %v1226
      %1228 = vmatmul.f32.gmra.mxu0 %v1111
      %v1229 = vpop.f32.mrf.mxu0
      %v1230 = vadd.f32 0.0, %v1229
      %1231 = vmatmul.f32.gmra.mxu0 %v1114
      %v1232 = vpop.f32.mrf.mxu0
      %v1233 = vadd.f32 0.0, %v1232
      %1234 = vdwg.mxu0
      %v1235 = vadd.f32 %v943, %v1134
      %v1236 = vadd.f32 %v944, %v1137
      %v1237 = vadd.f32 %v945, %v1140
      %v1238 = vadd.f32 %v946, %v1143
      %v1239 = vadd.f32 %v947, %v1146
      %v1240 = vadd.f32 %v948, %v1149
      %v1241 = vadd.f32 %v949, %v1152
      %v1242 = vadd.f32 %v950, %v1155
      %v1243 = vadd.f32 %v951, %v1158
      %v1244 = vadd.f32 %v952, %v1161
      %v1245 = vadd.f32 %v953, %v1164
      %v1246 = vadd.f32 %v954, %v1167
      %v1247 = vadd.f32 %v955, %v1170
      %v1248 = vadd.f32 %v956, %v1173
      %v1249 = vadd.f32 %v957, %v1176
      %v1250 = vadd.f32 %v958, %v1179
      %v1251 = vadd.f32 %v959, %v1182
      %v1252 = vadd.f32 %v960, %v1185
      %v1253 = vadd.f32 %v961, %v1188
      %v1254 = vadd.f32 %v962, %v1191
      %v1255 = vadd.f32 %v963, %v1194
      %v1256 = vadd.f32 %v964, %v1197
      %v1257 = vadd.f32 %v965, %v1200
      %v1258 = vadd.f32 %v966, %v1203
      %v1259 = vadd.f32 %v967, %v1206
      %v1260 = vadd.f32 %v968, %v1209
      %v1261 = vadd.f32 %v969, %v1212
      %v1262 = vadd.f32 %v970, %v1215
      %v1263 = vadd.f32 %v971, %v1218
      %v1264 = vadd.f32 %v972, %v1221
      %v1265 = vadd.f32 %v973, %v1224
      %v1266 = vadd.f32 %v974, %v1227
      %v1267 = vadd.f32 %v975, %v1230
      %v1268 = vadd.f32 %v976, %v1233
      %s1269 = scalar_lea.vmem %s165, 888
      %v1270 = vld [vmem:[%s1269] sm:$0xff]
      %v1271 = vld [vmem:[%s1269 + $0x8] sm:$0xff]
      %v1272 = vld [vmem:[%s1269 + $0x10] sm:$0xff]
      %v1273 = vld [vmem:[%s1269 + $0x18] sm:$0xff]
      %v1274 = vld [vmem:[%s1269 + $0x20] sm:$0xff]
      %v1275 = vld [vmem:[%s1269 + $0x28] sm:$0xff]
      %v1276 = vld [vmem:[%s1269 + $0x30] sm:$0xff]
      %v1277 = vld [vmem:[%s1269 + $0x38] sm:$0xff]
      %v1278 = vld [vmem:[%s1269 + $0x40] sm:$0xff]
      %v1279 = vld [vmem:[%s1269 + $0x48] sm:$0xff]
      %v1280 = vld [vmem:[%s1269 + $0x50] sm:$0xff]
      %v1281 = vld [vmem:[%s1269 + $0x58] sm:$0xff]
      %v1282 = vld [vmem:[%s1269 + $0x60] sm:$0xff]
      %v1283 = vld [vmem:[%s1269 + $0x68] sm:$0xff]
      %v1284 = vld [vmem:[%s1269 + $0x70] sm:$0xff]
      %v1285 = vld [vmem:[%s1269 + $0x78] sm:$0xff]
      %v1286 = vld [vmem:[%s1269 + $0x80] sm:$0xff]
      %v1287 = vld [vmem:[%s1269 + $0x88] sm:$0xff]
      %v1288 = vld [vmem:[%s1269 + $0x90] sm:$0xff]
      %v1289 = vld [vmem:[%s1269 + $0x98] sm:$0xff]
      %v1290 = vld [vmem:[%s1269 + $0xa0] sm:$0xff]
      %v1291 = vld [vmem:[%s1269 + $0xa8] sm:$0xff]
      %v1292 = vld [vmem:[%s1269 + $0xb0] sm:$0xff]
      %v1293 = vld [vmem:[%s1269 + $0xb8] sm:$0xff]
      %v1294 = vld [vmem:[%s1269 + $0xc0] sm:$0xff]
      %v1295 = vld [vmem:[%s1269 + $0xc8] sm:$0xff]
      %v1296 = vld [vmem:[%s1269 + $0xd0] sm:$0xff]
      %v1297 = vld [vmem:[%s1269 + $0xd8] sm:$0xff]
      %v1298 = vld [vmem:[%s1269 + $0xe0] sm:$0xff]
      %v1299 = vld [vmem:[%s1269 + $0xe8] sm:$0xff]
      %v1300 = vld [vmem:[%s1269 + $0xf0] sm:$0xff]
      %v1301 = vld [vmem:[%s1269 + $0xf8] sm:$0xff]
      %v1302 = vld [vmem:[%s1269 + $0x100] sm:$0xff]
      %v1303 = vld [vmem:[%s1269 + $0x108] sm:$0xff]
      %s1304 = scalar_lea.vmem %s1, 32
      %v1305 = vld [vmem:[%s1304] sm:$0xff]
      %v1307 = vsel %vm243, %v1270, 0
      %v1310 = vsel %vm243, %v1271, 0
      %v1313 = vsel %vm243, %v1272, 0
      %v1316 = vsel %vm243, %v1273, 0
      %v1319 = vsel %vm243, %v1274, 0
      %v1322 = vsel %vm243, %v1275, 0
      %v1325 = vsel %vm243, %v1276, 0
      %v1328 = vsel %vm243, %v1277, 0
      %v1331 = vsel %vm243, %v1278, 0
      %v1334 = vsel %vm243, %v1279, 0
      %v1337 = vsel %vm243, %v1280, 0
      %v1340 = vsel %vm243, %v1281, 0
      %v1343 = vsel %vm243, %v1282, 0
      %v1346 = vsel %vm243, %v1283, 0
      %v1349 = vsel %vm243, %v1284, 0
      %v1352 = vsel %vm243, %v1285, 0
      %v1355 = vsel %vm243, %v1286, 0
      %v1358 = vsel %vm243, %v1287, 0
      %v1361 = vsel %vm243, %v1288, 0
      %v1364 = vsel %vm243, %v1289, 0
      %v1367 = vsel %vm243, %v1290, 0
      %v1370 = vsel %vm243, %v1291, 0
      %v1373 = vsel %vm243, %v1292, 0
      %v1376 = vsel %vm243, %v1293, 0
      %v1379 = vsel %vm243, %v1294, 0
      %v1382 = vsel %vm243, %v1295, 0
      %v1385 = vsel %vm243, %v1296, 0
      %v1388 = vsel %vm243, %v1297, 0
      %v1391 = vsel %vm243, %v1298, 0
      %v1394 = vsel %vm243, %v1299, 0
      %v1397 = vsel %vm243, %v1300, 0
      %v1400 = vsel %vm243, %v1301, 0
      %v1403 = vsel %vm243, %v1302, 0
      %v1406 = vsel %vm243, %v1303, 0
      %1408 = vmatpush.msra.mxu0 0.0
      %1409 = vmatpush.msra.mxu0 0.0
      %1410 = vmatpush.msra.mxu0 0.0
      %1411 = vmatpush.msra.mxu0 0.0
      %1412 = vmatpush.msra.mxu0 0.0
      %1413 = vmatpush.msra.mxu0 0.0
      %1414 = vmatpush.msra.mxu0 0.0
      %1415 = vmatpush.msra.mxu0 0.0
      %1416 = vmatpush.msra.mxu0 0.0
      %1417 = vmatpush.msra.mxu0 0.0
      %1418 = vmatpush.msra.mxu0 0.0
      %1419 = vmatpush.msra.mxu0 0.0
      %1420 = vmatpush.msra.mxu0 0.0
      %1421 = vmatpush.msra.mxu0 0.0
      %1422 = vmatpush.msra.mxu0 0.0
      %1423 = vmatpush.msra.mxu0 %v1305
      %1424 = vmatmul.f32.gmra.mxu0 %v1307
      %v1425 = vpop.f32.mrf.mxu0
      %v1426 = vadd.f32 0.0, %v1425
      %1427 = vmatmul.f32.gmra.mxu0 %v1310
      %v1428 = vpop.f32.mrf.mxu0
      %v1429 = vadd.f32 0.0, %v1428
      %1430 = vmatmul.f32.gmra.mxu0 %v1313
      %v1431 = vpop.f32.mrf.mxu0
      %v1432 = vadd.f32 0.0, %v1431
      %1433 = vmatmul.f32.gmra.mxu0 %v1316
      %v1434 = vpop.f32.mrf.mxu0
      %v1435 = vadd.f32 0.0, %v1434
      %1436 = vmatmul.f32.gmra.mxu0 %v1319
      %v1437 = vpop.f32.mrf.mxu0
      %v1438 = vadd.f32 0.0, %v1437
      %1439 = vmatmul.f32.gmra.mxu0 %v1322
      %v1440 = vpop.f32.mrf.mxu0
      %v1441 = vadd.f32 0.0, %v1440
      %1442 = vmatmul.f32.gmra.mxu0 %v1325
      %v1443 = vpop.f32.mrf.mxu0
      %v1444 = vadd.f32 0.0, %v1443
      %1445 = vmatmul.f32.gmra.mxu0 %v1328
      %v1446 = vpop.f32.mrf.mxu0
      %v1447 = vadd.f32 0.0, %v1446
      %1448 = vmatmul.f32.gmra.mxu0 %v1331
      %v1449 = vpop.f32.mrf.mxu0
      %v1450 = vadd.f32 0.0, %v1449
      %1451 = vmatmul.f32.gmra.mxu0 %v1334
      %v1452 = vpop.f32.mrf.mxu0
      %v1453 = vadd.f32 0.0, %v1452
      %1454 = vmatmul.f32.gmra.mxu0 %v1337
      %v1455 = vpop.f32.mrf.mxu0
      %v1456 = vadd.f32 0.0, %v1455
      %1457 = vmatmul.f32.gmra.mxu0 %v1340
      %v1458 = vpop.f32.mrf.mxu0
      %v1459 = vadd.f32 0.0, %v1458
      %1460 = vmatmul.f32.gmra.mxu0 %v1343
      %v1461 = vpop.f32.mrf.mxu0
      %v1462 = vadd.f32 0.0, %v1461
      %1463 = vmatmul.f32.gmra.mxu0 %v1346
      %v1464 = vpop.f32.mrf.mxu0
      %v1465 = vadd.f32 0.0, %v1464
      %1466 = vmatmul.f32.gmra.mxu0 %v1349
      %v1467 = vpop.f32.mrf.mxu0
      %v1468 = vadd.f32 0.0, %v1467
      %1469 = vmatmul.f32.gmra.mxu0 %v1352
      %v1470 = vpop.f32.mrf.mxu0
      %v1471 = vadd.f32 0.0, %v1470
      %1472 = vmatmul.f32.gmra.mxu0 %v1355
      %v1473 = vpop.f32.mrf.mxu0
      %v1474 = vadd.f32 0.0, %v1473
      %1475 = vmatmul.f32.gmra.mxu0 %v1358
      %v1476 = vpop.f32.mrf.mxu0
      %v1477 = vadd.f32 0.0, %v1476
      %1478 = vmatmul.f32.gmra.mxu0 %v1361
      %v1479 = vpop.f32.mrf.mxu0
      %v1480 = vadd.f32 0.0, %v1479
      %1481 = vmatmul.f32.gmra.mxu0 %v1364
      %v1482 = vpop.f32.mrf.mxu0
      %v1483 = vadd.f32 0.0, %v1482
      %1484 = vmatmul.f32.gmra.mxu0 %v1367
      %v1485 = vpop.f32.mrf.mxu0
      %v1486 = vadd.f32 0.0, %v1485
      %1487 = vmatmul.f32.gmra.mxu0 %v1370
      %v1488 = vpop.f32.mrf.mxu0
      %v1489 = vadd.f32 0.0, %v1488
      %1490 = vmatmul.f32.gmra.mxu0 %v1373
      %v1491 = vpop.f32.mrf.mxu0
      %v1492 = vadd.f32 0.0, %v1491
      %1493 = vmatmul.f32.gmra.mxu0 %v1376
      %v1494 = vpop.f32.mrf.mxu0
      %v1495 = vadd.f32 0.0, %v1494
      %1496 = vmatmul.f32.gmra.mxu0 %v1379
      %v1497 = vpop.f32.mrf.mxu0
      %v1498 = vadd.f32 0.0, %v1497
      %1499 = vmatmul.f32.gmra.mxu0 %v1382
      %v1500 = vpop.f32.mrf.mxu0
      %v1501 = vadd.f32 0.0, %v1500
      %1502 = vmatmul.f32.gmra.mxu0 %v1385
      %v1503 = vpop.f32.mrf.mxu0
      %v1504 = vadd.f32 0.0, %v1503
      %1505 = vmatmul.f32.gmra.mxu0 %v1388
      %v1506 = vpop.f32.mrf.mxu0
      %v1507 = vadd.f32 0.0, %v1506
      %1508 = vmatmul.f32.gmra.mxu0 %v1391
      %v1509 = vpop.f32.mrf.mxu0
      %v1510 = vadd.f32 0.0, %v1509
      %1511 = vmatmul.f32.gmra.mxu0 %v1394
      %v1512 = vpop.f32.mrf.mxu0
      %v1513 = vadd.f32 0.0, %v1512
      %1514 = vmatmul.f32.gmra.mxu0 %v1397
      %v1515 = vpop.f32.mrf.mxu0
      %v1516 = vadd.f32 0.0, %v1515
      %1517 = vmatmul.f32.gmra.mxu0 %v1400
      %v1518 = vpop.f32.mrf.mxu0
      %v1519 = vadd.f32 0.0, %v1518
      %1520 = vmatmul.f32.gmra.mxu0 %v1403
      %v1521 = vpop.f32.mrf.mxu0
      %v1522 = vadd.f32 0.0, %v1521
      %1523 = vmatmul.f32.gmra.mxu0 %v1406
      %v1524 = vpop.f32.mrf.mxu0
      %v1525 = vadd.f32 0.0, %v1524
      %1526 = vdwg.mxu0
      %v1527 = vadd.f32 %v1235, %v1426
      %v1528 = vadd.f32 %v1236, %v1429
      %v1529 = vadd.f32 %v1237, %v1432
      %v1530 = vadd.f32 %v1238, %v1435
      %v1531 = vadd.f32 %v1239, %v1438
      %v1532 = vadd.f32 %v1240, %v1441
      %v1533 = vadd.f32 %v1241, %v1444
      %v1534 = vadd.f32 %v1242, %v1447
      %v1535 = vadd.f32 %v1243, %v1450
      %v1536 = vadd.f32 %v1244, %v1453
      %v1537 = vadd.f32 %v1245, %v1456
      %v1538 = vadd.f32 %v1246, %v1459
      %v1539 = vadd.f32 %v1247, %v1462
      %v1540 = vadd.f32 %v1248, %v1465
      %v1541 = vadd.f32 %v1249, %v1468
      %v1542 = vadd.f32 %v1250, %v1471
      %v1543 = vadd.f32 %v1251, %v1474
      %v1544 = vadd.f32 %v1252, %v1477
      %v1545 = vadd.f32 %v1253, %v1480
      %v1546 = vadd.f32 %v1254, %v1483
      %v1547 = vadd.f32 %v1255, %v1486
      %v1548 = vadd.f32 %v1256, %v1489
      %v1549 = vadd.f32 %v1257, %v1492
      %v1550 = vadd.f32 %v1258, %v1495
      %v1551 = vadd.f32 %v1259, %v1498
      %v1552 = vadd.f32 %v1260, %v1501
      %v1553 = vadd.f32 %v1261, %v1504
      %v1554 = vadd.f32 %v1262, %v1507
      %v1555 = vadd.f32 %v1263, %v1510
      %v1556 = vadd.f32 %v1264, %v1513
      %v1557 = vadd.f32 %v1265, %v1516
      %v1558 = vadd.f32 %v1266, %v1519
      %v1559 = vadd.f32 %v1267, %v1522
      %v1560 = vadd.f32 %v1268, %v1525
      %v1561 = vld [vmem:[%s977 + $0x1] sm:$0xff]
      %v1562 = vld [vmem:[%s977 + $0x9] sm:$0xff]
      %v1563 = vld [vmem:[%s977 + $0x11] sm:$0xff]
      %v1564 = vld [vmem:[%s977 + $0x19] sm:$0xff]
      %v1565 = vld [vmem:[%s977 + $0x21] sm:$0xff]
      %v1566 = vld [vmem:[%s977 + $0x29] sm:$0xff]
      %v1567 = vld [vmem:[%s977 + $0x31] sm:$0xff]
      %v1568 = vld [vmem:[%s977 + $0x39] sm:$0xff]
      %v1569 = vld [vmem:[%s977 + $0x41] sm:$0xff]
      %v1570 = vld [vmem:[%s977 + $0x49] sm:$0xff]
      %v1571 = vld [vmem:[%s977 + $0x51] sm:$0xff]
      %v1572 = vld [vmem:[%s977 + $0x59] sm:$0xff]
      %v1573 = vld [vmem:[%s977 + $0x61] sm:$0xff]
      %v1574 = vld [vmem:[%s977 + $0x69] sm:$0xff]
      %v1575 = vld [vmem:[%s977 + $0x71] sm:$0xff]
      %v1576 = vld [vmem:[%s977 + $0x79] sm:$0xff]
      %v1577 = vld [vmem:[%s977 + $0x81] sm:$0xff]
      %v1578 = vld [vmem:[%s977 + $0x89] sm:$0xff]
      %v1579 = vld [vmem:[%s977 + $0x91] sm:$0xff]
      %v1580 = vld [vmem:[%s977 + $0x99] sm:$0xff]
      %v1581 = vld [vmem:[%s977 + $0xa1] sm:$0xff]
      %v1582 = vld [vmem:[%s977 + $0xa9] sm:$0xff]
      %v1583 = vld [vmem:[%s977 + $0xb1] sm:$0xff]
      %v1584 = vld [vmem:[%s977 + $0xb9] sm:$0xff]
      %v1585 = vld [vmem:[%s977 + $0xc1] sm:$0xff]
      %v1586 = vld [vmem:[%s977 + $0xc9] sm:$0xff]
      %v1587 = vld [vmem:[%s977 + $0xd1] sm:$0xff]
      %v1588 = vld [vmem:[%s977 + $0xd9] sm:$0xff]
      %v1589 = vld [vmem:[%s977 + $0xe1] sm:$0xff]
      %v1590 = vld [vmem:[%s977 + $0xe9] sm:$0xff]
      %v1591 = vld [vmem:[%s977 + $0xf1] sm:$0xff]
      %v1592 = vld [vmem:[%s977 + $0xf9] sm:$0xff]
      %v1593 = vld [vmem:[%s977 + $0x101] sm:$0xff]
      %v1594 = vld [vmem:[%s977 + $0x109] sm:$0xff]
      %s1595 = scalar_lea.vmem %s1, 40
      %v1596 = vld [vmem:[%s1595] sm:$0xff]
      %v1598 = vsel %vm243, %v1561, 0
      %v1601 = vsel %vm243, %v1562, 0
      %v1604 = vsel %vm243, %v1563, 0
      %v1607 = vsel %vm243, %v1564, 0
      %v1610 = vsel %vm243, %v1565, 0
      %v1613 = vsel %vm243, %v1566, 0
      %v1616 = vsel %vm243, %v1567, 0
      %v1619 = vsel %vm243, %v1568, 0
      %v1622 = vsel %vm243, %v1569, 0
      %v1625 = vsel %vm243, %v1570, 0
      %v1628 = vsel %vm243, %v1571, 0
      %v1631 = vsel %vm243, %v1572, 0
      %v1634 = vsel %vm243, %v1573, 0
      %v1637 = vsel %vm243, %v1574, 0
      %v1640 = vsel %vm243, %v1575, 0
      %v1643 = vsel %vm243, %v1576, 0
      %v1646 = vsel %vm243, %v1577, 0
      %v1649 = vsel %vm243, %v1578, 0
      %v1652 = vsel %vm243, %v1579, 0
      %v1655 = vsel %vm243, %v1580, 0
      %v1658 = vsel %vm243, %v1581, 0
      %v1661 = vsel %vm243, %v1582, 0
      %v1664 = vsel %vm243, %v1583, 0
      %v1667 = vsel %vm243, %v1584, 0
      %v1670 = vsel %vm243, %v1585, 0
      %v1673 = vsel %vm243, %v1586, 0
      %v1676 = vsel %vm243, %v1587, 0
      %v1679 = vsel %vm243, %v1588, 0
      %v1682 = vsel %vm243, %v1589, 0
      %v1685 = vsel %vm243, %v1590, 0
      %v1688 = vsel %vm243, %v1591, 0
      %v1691 = vsel %vm243, %v1592, 0
      %v1694 = vsel %vm243, %v1593, 0
      %v1697 = vsel %vm243, %v1594, 0
      %1699 = vmatpush.msra.mxu0 0.0
      %1700 = vmatpush.msra.mxu0 0.0
      %1701 = vmatpush.msra.mxu0 0.0
      %1702 = vmatpush.msra.mxu0 0.0
      %1703 = vmatpush.msra.mxu0 0.0
      %1704 = vmatpush.msra.mxu0 0.0
      %1705 = vmatpush.msra.mxu0 0.0
      %1706 = vmatpush.msra.mxu0 0.0
      %1707 = vmatpush.msra.mxu0 0.0
      %1708 = vmatpush.msra.mxu0 0.0
      %1709 = vmatpush.msra.mxu0 0.0
      %1710 = vmatpush.msra.mxu0 0.0
      %1711 = vmatpush.msra.mxu0 0.0
      %1712 = vmatpush.msra.mxu0 0.0
      %1713 = vmatpush.msra.mxu0 0.0
      %1714 = vmatpush.msra.mxu0 %v1596
      %1715 = vmatmul.f32.gmra.mxu0 %v1598
      %v1716 = vpop.f32.mrf.mxu0
      %v1717 = vadd.f32 0.0, %v1716
      %1718 = vmatmul.f32.gmra.mxu0 %v1601
      %v1719 = vpop.f32.mrf.mxu0
      %v1720 = vadd.f32 0.0, %v1719
      %1721 = vmatmul.f32.gmra.mxu0 %v1604
      %v1722 = vpop.f32.mrf.mxu0
      %v1723 = vadd.f32 0.0, %v1722
      %1724 = vmatmul.f32.gmra.mxu0 %v1607
      %v1725 = vpop.f32.mrf.mxu0
      %v1726 = vadd.f32 0.0, %v1725
      %1727 = vmatmul.f32.gmra.mxu0 %v1610
      %v1728 = vpop.f32.mrf.mxu0
      %v1729 = vadd.f32 0.0, %v1728
      %1730 = vmatmul.f32.gmra.mxu0 %v1613
      %v1731 = vpop.f32.mrf.mxu0
      %v1732 = vadd.f32 0.0, %v1731
      %1733 = vmatmul.f32.gmra.mxu0 %v1616
      %v1734 = vpop.f32.mrf.mxu0
      %v1735 = vadd.f32 0.0, %v1734
      %1736 = vmatmul.f32.gmra.mxu0 %v1619
      %v1737 = vpop.f32.mrf.mxu0
      %v1738 = vadd.f32 0.0, %v1737
      %1739 = vmatmul.f32.gmra.mxu0 %v1622
      %v1740 = vpop.f32.mrf.mxu0
      %v1741 = vadd.f32 0.0, %v1740
      %1742 = vmatmul.f32.gmra.mxu0 %v1625
      %v1743 = vpop.f32.mrf.mxu0
      %v1744 = vadd.f32 0.0, %v1743
      %1745 = vmatmul.f32.gmra.mxu0 %v1628
      %v1746 = vpop.f32.mrf.mxu0
      %v1747 = vadd.f32 0.0, %v1746
      %1748 = vmatmul.f32.gmra.mxu0 %v1631
      %v1749 = vpop.f32.mrf.mxu0
      %v1750 = vadd.f32 0.0, %v1749
      %1751 = vmatmul.f32.gmra.mxu0 %v1634
      %v1752 = vpop.f32.mrf.mxu0
      %v1753 = vadd.f32 0.0, %v1752
      %1754 = vmatmul.f32.gmra.mxu0 %v1637
      %v1755 = vpop.f32.mrf.mxu0
      %v1756 = vadd.f32 0.0, %v1755
      %1757 = vmatmul.f32.gmra.mxu0 %v1640
      %v1758 = vpop.f32.mrf.mxu0
      %v1759 = vadd.f32 0.0, %v1758
      %1760 = vmatmul.f32.gmra.mxu0 %v1643
      %v1761 = vpop.f32.mrf.mxu0
      %v1762 = vadd.f32 0.0, %v1761
      %1763 = vmatmul.f32.gmra.mxu0 %v1646
      %v1764 = vpop.f32.mrf.mxu0
      %v1765 = vadd.f32 0.0, %v1764
      %1766 = vmatmul.f32.gmra.mxu0 %v1649
      %v1767 = vpop.f32.mrf.mxu0
      %v1768 = vadd.f32 0.0, %v1767
      %1769 = vmatmul.f32.gmra.mxu0 %v1652
      %v1770 = vpop.f32.mrf.mxu0
      %v1771 = vadd.f32 0.0, %v1770
      %1772 = vmatmul.f32.gmra.mxu0 %v1655
      %v1773 = vpop.f32.mrf.mxu0
      %v1774 = vadd.f32 0.0, %v1773
      %1775 = vmatmul.f32.gmra.mxu0 %v1658
      %v1776 = vpop.f32.mrf.mxu0
      %v1777 = vadd.f32 0.0, %v1776
      %1778 = vmatmul.f32.gmra.mxu0 %v1661
      %v1779 = vpop.f32.mrf.mxu0
      %v1780 = vadd.f32 0.0, %v1779
      %1781 = vmatmul.f32.gmra.mxu0 %v1664
      %v1782 = vpop.f32.mrf.mxu0
      %v1783 = vadd.f32 0.0, %v1782
      %1784 = vmatmul.f32.gmra.mxu0 %v1667
      %v1785 = vpop.f32.mrf.mxu0
      %v1786 = vadd.f32 0.0, %v1785
      %1787 = vmatmul.f32.gmra.mxu0 %v1670
      %v1788 = vpop.f32.mrf.mxu0
      %v1789 = vadd.f32 0.0, %v1788
      %1790 = vmatmul.f32.gmra.mxu0 %v1673
      %v1791 = vpop.f32.mrf.mxu0
      %v1792 = vadd.f32 0.0, %v1791
      %1793 = vmatmul.f32.gmra.mxu0 %v1676
      %v1794 = vpop.f32.mrf.mxu0
      %v1795 = vadd.f32 0.0, %v1794
      %1796 = vmatmul.f32.gmra.mxu0 %v1679
      %v1797 = vpop.f32.mrf.mxu0
      %v1798 = vadd.f32 0.0, %v1797
      %1799 = vmatmul.f32.gmra.mxu0 %v1682
      %v1800 = vpop.f32.mrf.mxu0
      %v1801 = vadd.f32 0.0, %v1800
      %1802 = vmatmul.f32.gmra.mxu0 %v1685
      %v1803 = vpop.f32.mrf.mxu0
      %v1804 = vadd.f32 0.0, %v1803
      %1805 = vmatmul.f32.gmra.mxu0 %v1688
      %v1806 = vpop.f32.mrf.mxu0
      %v1807 = vadd.f32 0.0, %v1806
      %1808 = vmatmul.f32.gmra.mxu0 %v1691
      %v1809 = vpop.f32.mrf.mxu0
      %v1810 = vadd.f32 0.0, %v1809
      %1811 = vmatmul.f32.gmra.mxu0 %v1694
      %v1812 = vpop.f32.mrf.mxu0
      %v1813 = vadd.f32 0.0, %v1812
      %1814 = vmatmul.f32.gmra.mxu0 %v1697
      %v1815 = vpop.f32.mrf.mxu0
      %v1816 = vadd.f32 0.0, %v1815
      %1817 = vdwg.mxu0
      %v1818 = vadd.f32 %v1527, %v1717
      %v1819 = vadd.f32 %v1528, %v1720
      %v1820 = vadd.f32 %v1529, %v1723
      %v1821 = vadd.f32 %v1530, %v1726
      %v1822 = vadd.f32 %v1531, %v1729
      %v1823 = vadd.f32 %v1532, %v1732
      %v1824 = vadd.f32 %v1533, %v1735
      %v1825 = vadd.f32 %v1534, %v1738
      %v1826 = vadd.f32 %v1535, %v1741
      %v1827 = vadd.f32 %v1536, %v1744
      %v1828 = vadd.f32 %v1537, %v1747
      %v1829 = vadd.f32 %v1538, %v1750
      %v1830 = vadd.f32 %v1539, %v1753
      %v1831 = vadd.f32 %v1540, %v1756
      %v1832 = vadd.f32 %v1541, %v1759
      %v1833 = vadd.f32 %v1542, %v1762
      %v1834 = vadd.f32 %v1543, %v1765
      %v1835 = vadd.f32 %v1544, %v1768
      %v1836 = vadd.f32 %v1545, %v1771
      %v1837 = vadd.f32 %v1546, %v1774
      %v1838 = vadd.f32 %v1547, %v1777
      %v1839 = vadd.f32 %v1548, %v1780
      %v1840 = vadd.f32 %v1549, %v1783
      %v1841 = vadd.f32 %v1550, %v1786
      %v1842 = vadd.f32 %v1551, %v1789
      %v1843 = vadd.f32 %v1552, %v1792
      %v1844 = vadd.f32 %v1553, %v1795
      %v1845 = vadd.f32 %v1554, %v1798
      %v1846 = vadd.f32 %v1555, %v1801
      %v1847 = vadd.f32 %v1556, %v1804
      %v1848 = vadd.f32 %v1557, %v1807
      %v1849 = vadd.f32 %v1558, %v1810
      %v1850 = vadd.f32 %v1559, %v1813
      %v1851 = vadd.f32 %v1560, %v1816
      %v1852 = vld [vmem:[%s165 + $0x11] sm:$0xff]
      %v1853 = vld [vmem:[%s165 + $0x19] sm:$0xff]
      %v1854 = vld [vmem:[%s165 + $0x21] sm:$0xff]
      %v1855 = vld [vmem:[%s165 + $0x29] sm:$0xff]
      %v1856 = vld [vmem:[%s165 + $0x31] sm:$0xff]
      %v1857 = vld [vmem:[%s165 + $0x39] sm:$0xff]
      %v1858 = vld [vmem:[%s165 + $0x41] sm:$0xff]
      %v1859 = vld [vmem:[%s165 + $0x49] sm:$0xff]
      %v1860 = vld [vmem:[%s165 + $0x51] sm:$0xff]
      %v1861 = vld [vmem:[%s165 + $0x59] sm:$0xff]
      %v1862 = vld [vmem:[%s165 + $0x61] sm:$0xff]
      %v1863 = vld [vmem:[%s165 + $0x69] sm:$0xff]
      %v1864 = vld [vmem:[%s165 + $0x71] sm:$0xff]
      %v1865 = vld [vmem:[%s165 + $0x79] sm:$0xff]
      %v1866 = vld [vmem:[%s165 + $0x81] sm:$0xff]
      %v1867 = vld [vmem:[%s165 + $0x89] sm:$0xff]
      %v1868 = vld [vmem:[%s165 + $0x91] sm:$0xff]
      %v1869 = vld [vmem:[%s165 + $0x99] sm:$0xff]
      %v1870 = vld [vmem:[%s165 + $0xa1] sm:$0xff]
      %v1871 = vld [vmem:[%s165 + $0xa9] sm:$0xff]
      %v1872 = vld [vmem:[%s165 + $0xb1] sm:$0xff]
      %v1873 = vld [vmem:[%s165 + $0xb9] sm:$0xff]
      %v1874 = vld [vmem:[%s165 + $0xc1] sm:$0xff]
      %v1875 = vld [vmem:[%s165 + $0xc9] sm:$0xff]
      %v1876 = vld [vmem:[%s165 + $0xd1] sm:$0xff]
      %v1877 = vld [vmem:[%s165 + $0xd9] sm:$0xff]
      %v1878 = vld [vmem:[%s165 + $0xe1] sm:$0xff]
      %v1879 = vld [vmem:[%s165 + $0xe9] sm:$0xff]
      %v1880 = vld [vmem:[%s165 + $0xf1] sm:$0xff]
      %v1881 = vld [vmem:[%s165 + $0xf9] sm:$0xff]
      %v1882 = vld [vmem:[%s165 + $0x101] sm:$0xff]
      %v1883 = vld [vmem:[%s165 + $0x109] sm:$0xff]
      %v1884 = vld [vmem:[%s165 + $0x111] sm:$0xff]
      %v1885 = vld [vmem:[%s165 + $0x119] sm:$0xff]
      %s1886 = scalar_lea.vmem %s1, 48
      %v1887 = vld [vmem:[%s1886] sm:$0xff]
      %v1889 = vsel %vm243, %v1852, 0
      %v1892 = vsel %vm243, %v1853, 0
      %v1895 = vsel %vm243, %v1854, 0
      %v1898 = vsel %vm243, %v1855, 0
      %v1901 = vsel %vm243, %v1856, 0
      %v1904 = vsel %vm243, %v1857, 0
      %v1907 = vsel %vm243, %v1858, 0
      %v1910 = vsel %vm243, %v1859, 0
      %v1913 = vsel %vm243, %v1860, 0
      %v1916 = vsel %vm243, %v1861, 0
      %v1919 = vsel %vm243, %v1862, 0
      %v1922 = vsel %vm243, %v1863, 0
      %v1925 = vsel %vm243, %v1864, 0
      %v1928 = vsel %vm243, %v1865, 0
      %v1931 = vsel %vm243, %v1866, 0
      %v1934 = vsel %vm243, %v1867, 0
      %v1937 = vsel %vm243, %v1868, 0
      %v1940 = vsel %vm243, %v1869, 0
      %v1943 = vsel %vm243, %v1870, 0
      %v1946 = vsel %vm243, %v1871, 0
      %v1949 = vsel %vm243, %v1872, 0
      %v1952 = vsel %vm243, %v1873, 0
      %v1955 = vsel %vm243, %v1874, 0
      %v1958 = vsel %vm243, %v1875, 0
      %v1961 = vsel %vm243, %v1876, 0
      %v1964 = vsel %vm243, %v1877, 0
      %v1967 = vsel %vm243, %v1878, 0
      %v1970 = vsel %vm243, %v1879, 0
      %v1973 = vsel %vm243, %v1880, 0
      %v1976 = vsel %vm243, %v1881, 0
      %v1979 = vsel %vm243, %v1882, 0
      %v1982 = vsel %vm243, %v1883, 0
      %v1985 = vsel %vm243, %v1884, 0
      %v1988 = vsel %vm243, %v1885, 0
      %1990 = vmatpush.msra.mxu0 0.0
      %1991 = vmatpush.msra.mxu0 0.0
      %1992 = vmatpush.msra.mxu0 0.0
      %1993 = vmatpush.msra.mxu0 0.0
      %1994 = vmatpush.msra.mxu0 0.0
      %1995 = vmatpush.msra.mxu0 0.0
      %1996 = vmatpush.msra.mxu0 0.0
      %1997 = vmatpush.msra.mxu0 0.0
      %1998 = vmatpush.msra.mxu0 0.0
      %1999 = vmatpush.msra.mxu0 0.0
      %2000 = vmatpush.msra.mxu0 0.0
      %2001 = vmatpush.msra.mxu0 0.0
      %2002 = vmatpush.msra.mxu0 0.0
      %2003 = vmatpush.msra.mxu0 0.0
      %2004 = vmatpush.msra.mxu0 0.0
      %2005 = vmatpush.msra.mxu0 %v1887
      %2006 = vmatmul.f32.gmra.mxu0 %v1889
      %v2007 = vpop.f32.mrf.mxu0
      %v2008 = vadd.f32 0.0, %v2007
      %2009 = vmatmul.f32.gmra.mxu0 %v1892
      %v2010 = vpop.f32.mrf.mxu0
      %v2011 = vadd.f32 0.0, %v2010
      %2012 = vmatmul.f32.gmra.mxu0 %v1895
      %v2013 = vpop.f32.mrf.mxu0
      %v2014 = vadd.f32 0.0, %v2013
      %2015 = vmatmul.f32.gmra.mxu0 %v1898
      %v2016 = vpop.f32.mrf.mxu0
      %v2017 = vadd.f32 0.0, %v2016
      %2018 = vmatmul.f32.gmra.mxu0 %v1901
      %v2019 = vpop.f32.mrf.mxu0
      %v2020 = vadd.f32 0.0, %v2019
      %2021 = vmatmul.f32.gmra.mxu0 %v1904
      %v2022 = vpop.f32.mrf.mxu0
      %v2023 = vadd.f32 0.0, %v2022
      %2024 = vmatmul.f32.gmra.mxu0 %v1907
      %v2025 = vpop.f32.mrf.mxu0
      %v2026 = vadd.f32 0.0, %v2025
      %2027 = vmatmul.f32.gmra.mxu0 %v1910
      %v2028 = vpop.f32.mrf.mxu0
      %v2029 = vadd.f32 0.0, %v2028
      %2030 = vmatmul.f32.gmra.mxu0 %v1913
      %v2031 = vpop.f32.mrf.mxu0
      %v2032 = vadd.f32 0.0, %v2031
      %2033 = vmatmul.f32.gmra.mxu0 %v1916
      %v2034 = vpop.f32.mrf.mxu0
      %v2035 = vadd.f32 0.0, %v2034
      %2036 = vmatmul.f32.gmra.mxu0 %v1919
      %v2037 = vpop.f32.mrf.mxu0
      %v2038 = vadd.f32 0.0, %v2037
      %2039 = vmatmul.f32.gmra.mxu0 %v1922
      %v2040 = vpop.f32.mrf.mxu0
      %v2041 = vadd.f32 0.0, %v2040
      %2042 = vmatmul.f32.gmra.mxu0 %v1925
      %v2043 = vpop.f32.mrf.mxu0
      %v2044 = vadd.f32 0.0, %v2043
      %2045 = vmatmul.f32.gmra.mxu0 %v1928
      %v2046 = vpop.f32.mrf.mxu0
      %v2047 = vadd.f32 0.0, %v2046
      %2048 = vmatmul.f32.gmra.mxu0 %v1931
      %v2049 = vpop.f32.mrf.mxu0
      %v2050 = vadd.f32 0.0, %v2049
      %2051 = vmatmul.f32.gmra.mxu0 %v1934
      %v2052 = vpop.f32.mrf.mxu0
      %v2053 = vadd.f32 0.0, %v2052
      %2054 = vmatmul.f32.gmra.mxu0 %v1937
      %v2055 = vpop.f32.mrf.mxu0
      %v2056 = vadd.f32 0.0, %v2055
      %2057 = vmatmul.f32.gmra.mxu0 %v1940
      %v2058 = vpop.f32.mrf.mxu0
      %v2059 = vadd.f32 0.0, %v2058
      %2060 = vmatmul.f32.gmra.mxu0 %v1943
      %v2061 = vpop.f32.mrf.mxu0
      %v2062 = vadd.f32 0.0, %v2061
      %2063 = vmatmul.f32.gmra.mxu0 %v1946
      %v2064 = vpop.f32.mrf.mxu0
      %v2065 = vadd.f32 0.0, %v2064
      %2066 = vmatmul.f32.gmra.mxu0 %v1949
      %v2067 = vpop.f32.mrf.mxu0
      %v2068 = vadd.f32 0.0, %v2067
      %2069 = vmatmul.f32.gmra.mxu0 %v1952
      %v2070 = vpop.f32.mrf.mxu0
      %v2071 = vadd.f32 0.0, %v2070
      %2072 = vmatmul.f32.gmra.mxu0 %v1955
      %v2073 = vpop.f32.mrf.mxu0
      %v2074 = vadd.f32 0.0, %v2073
      %2075 = vmatmul.f32.gmra.mxu0 %v1958
      %v2076 = vpop.f32.mrf.mxu0
      %v2077 = vadd.f32 0.0, %v2076
      %2078 = vmatmul.f32.gmra.mxu0 %v1961
      %v2079 = vpop.f32.mrf.mxu0
      %v2080 = vadd.f32 0.0, %v2079
      %2081 = vmatmul.f32.gmra.mxu0 %v1964
      %v2082 = vpop.f32.mrf.mxu0
      %v2083 = vadd.f32 0.0, %v2082
      %2084 = vmatmul.f32.gmra.mxu0 %v1967
      %v2085 = vpop.f32.mrf.mxu0
      %v2086 = vadd.f32 0.0, %v2085
      %2087 = vmatmul.f32.gmra.mxu0 %v1970
      %v2088 = vpop.f32.mrf.mxu0
      %v2089 = vadd.f32 0.0, %v2088
      %2090 = vmatmul.f32.gmra.mxu0 %v1973
      %v2091 = vpop.f32.mrf.mxu0
      %v2092 = vadd.f32 0.0, %v2091
      %2093 = vmatmul.f32.gmra.mxu0 %v1976
      %v2094 = vpop.f32.mrf.mxu0
      %v2095 = vadd.f32 0.0, %v2094
      %2096 = vmatmul.f32.gmra.mxu0 %v1979
      %v2097 = vpop.f32.mrf.mxu0
      %v2098 = vadd.f32 0.0, %v2097
      %2099 = vmatmul.f32.gmra.mxu0 %v1982
      %v2100 = vpop.f32.mrf.mxu0
      %v2101 = vadd.f32 0.0, %v2100
      %2102 = vmatmul.f32.gmra.mxu0 %v1985
      %v2103 = vpop.f32.mrf.mxu0
      %v2104 = vadd.f32 0.0, %v2103
      %2105 = vmatmul.f32.gmra.mxu0 %v1988
      %v2106 = vpop.f32.mrf.mxu0
      %v2107 = vadd.f32 0.0, %v2106
      %2108 = vdwg.mxu0
      %v2109 = vadd.f32 %v1818, %v2008
      %v2110 = vadd.f32 %v1819, %v2011
      %v2111 = vadd.f32 %v1820, %v2014
      %v2112 = vadd.f32 %v1821, %v2017
      %v2113 = vadd.f32 %v1822, %v2020
      %v2114 = vadd.f32 %v1823, %v2023
      %v2115 = vadd.f32 %v1824, %v2026
      %v2116 = vadd.f32 %v1825, %v2029
      %v2117 = vadd.f32 %v1826, %v2032
      %v2118 = vadd.f32 %v1827, %v2035
      %v2119 = vadd.f32 %v1828, %v2038
      %v2120 = vadd.f32 %v1829, %v2041
      %v2121 = vadd.f32 %v1830, %v2044
      %v2122 = vadd.f32 %v1831, %v2047
      %v2123 = vadd.f32 %v1832, %v2050
      %v2124 = vadd.f32 %v1833, %v2053
      %v2125 = vadd.f32 %v1834, %v2056
      %v2126 = vadd.f32 %v1835, %v2059
      %v2127 = vadd.f32 %v1836, %v2062
      %v2128 = vadd.f32 %v1837, %v2065
      %v2129 = vadd.f32 %v1838, %v2068
      %v2130 = vadd.f32 %v1839, %v2071
      %v2131 = vadd.f32 %v1840, %v2074
      %v2132 = vadd.f32 %v1841, %v2077
      %v2133 = vadd.f32 %v1842, %v2080
      %v2134 = vadd.f32 %v1843, %v2083
      %v2135 = vadd.f32 %v1844, %v2086
      %v2136 = vadd.f32 %v1845, %v2089
      %v2137 = vadd.f32 %v1846, %v2092
      %v2138 = vadd.f32 %v1847, %v2095
      %v2139 = vadd.f32 %v1848, %v2098
      %v2140 = vadd.f32 %v1849, %v2101
      %v2141 = vadd.f32 %v1850, %v2104
      %v2142 = vadd.f32 %v1851, %v2107
      %v2143 = vld [vmem:[%s206 + $0x11] sm:$0xff]
      %v2144 = vld [vmem:[%s206 + $0x19] sm:$0xff]
      %v2145 = vld [vmem:[%s206 + $0x21] sm:$0xff]
      %v2146 = vld [vmem:[%s206 + $0x29] sm:$0xff]
      %v2147 = vld [vmem:[%s206 + $0x31] sm:$0xff]
      %v2148 = vld [vmem:[%s206 + $0x39] sm:$0xff]
      %v2149 = vld [vmem:[%s206 + $0x41] sm:$0xff]
      %v2150 = vld [vmem:[%s206 + $0x49] sm:$0xff]
      %v2151 = vld [vmem:[%s206 + $0x51] sm:$0xff]
      %v2152 = vld [vmem:[%s206 + $0x59] sm:$0xff]
      %v2153 = vld [vmem:[%s206 + $0x61] sm:$0xff]
      %v2154 = vld [vmem:[%s206 + $0x69] sm:$0xff]
      %v2155 = vld [vmem:[%s206 + $0x71] sm:$0xff]
      %v2156 = vld [vmem:[%s206 + $0x79] sm:$0xff]
      %v2157 = vld [vmem:[%s206 + $0x81] sm:$0xff]
      %v2158 = vld [vmem:[%s206 + $0x89] sm:$0xff]
      %v2159 = vld [vmem:[%s206 + $0x91] sm:$0xff]
      %v2160 = vld [vmem:[%s206 + $0x99] sm:$0xff]
      %v2161 = vld [vmem:[%s206 + $0xa1] sm:$0xff]
      %v2162 = vld [vmem:[%s206 + $0xa9] sm:$0xff]
      %v2163 = vld [vmem:[%s206 + $0xb1] sm:$0xff]
      %v2164 = vld [vmem:[%s206 + $0xb9] sm:$0xff]
      %v2165 = vld [vmem:[%s206 + $0xc1] sm:$0xff]
      %v2166 = vld [vmem:[%s206 + $0xc9] sm:$0xff]
      %v2167 = vld [vmem:[%s206 + $0xd1] sm:$0xff]
      %v2168 = vld [vmem:[%s206 + $0xd9] sm:$0xff]
      %v2169 = vld [vmem:[%s206 + $0xe1] sm:$0xff]
      %v2170 = vld [vmem:[%s206 + $0xe9] sm:$0xff]
      %v2171 = vld [vmem:[%s206 + $0xf1] sm:$0xff]
      %v2172 = vld [vmem:[%s206 + $0xf9] sm:$0xff]
      %v2173 = vld [vmem:[%s206 + $0x101] sm:$0xff]
      %v2174 = vld [vmem:[%s206 + $0x109] sm:$0xff]
      %v2175 = vld [vmem:[%s206 + $0x111] sm:$0xff]
      %v2176 = vld [vmem:[%s206 + $0x119] sm:$0xff]
      %s2177 = scalar_lea.vmem %s1, 56
      %v2178 = vld [vmem:[%s2177] sm:$0xff]
      %v2180 = vsel %vm243, %v2143, 0
      %v2183 = vsel %vm243, %v2144, 0
      %v2186 = vsel %vm243, %v2145, 0
      %v2189 = vsel %vm243, %v2146, 0
      %v2192 = vsel %vm243, %v2147, 0
      %v2195 = vsel %vm243, %v2148, 0
      %v2198 = vsel %vm243, %v2149, 0
      %v2201 = vsel %vm243, %v2150, 0
      %v2204 = vsel %vm243, %v2151, 0
      %v2207 = vsel %vm243, %v2152, 0
      %v2210 = vsel %vm243, %v2153, 0
      %v2213 = vsel %vm243, %v2154, 0
      %v2216 = vsel %vm243, %v2155, 0
      %v2219 = vsel %vm243, %v2156, 0
      %v2222 = vsel %vm243, %v2157, 0
      %v2225 = vsel %vm243, %v2158, 0
      %v2228 = vsel %vm243, %v2159, 0
      %v2231 = vsel %vm243, %v2160, 0
      %v2234 = vsel %vm243, %v2161, 0
      %v2237 = vsel %vm243, %v2162, 0
      %v2240 = vsel %vm243, %v2163, 0
      %v2243 = vsel %vm243, %v2164, 0
      %v2246 = vsel %vm243, %v2165, 0
      %v2249 = vsel %vm243, %v2166, 0
      %v2252 = vsel %vm243, %v2167, 0
      %v2255 = vsel %vm243, %v2168, 0
      %v2258 = vsel %vm243, %v2169, 0
      %v2261 = vsel %vm243, %v2170, 0
      %v2264 = vsel %vm243, %v2171, 0
      %v2267 = vsel %vm243, %v2172, 0
      %v2270 = vsel %vm243, %v2173, 0
      %v2273 = vsel %vm243, %v2174, 0
      %v2276 = vsel %vm243, %v2175, 0
      %v2279 = vsel %vm243, %v2176, 0
      %2281 = vmatpush.msra.mxu0 0.0
      %2282 = vmatpush.msra.mxu0 0.0
      %2283 = vmatpush.msra.mxu0 0.0
      %2284 = vmatpush.msra.mxu0 0.0
      %2285 = vmatpush.msra.mxu0 0.0
      %2286 = vmatpush.msra.mxu0 0.0
      %2287 = vmatpush.msra.mxu0 0.0
      %2288 = vmatpush.msra.mxu0 0.0
      %2289 = vmatpush.msra.mxu0 0.0
      %2290 = vmatpush.msra.mxu0 0.0
      %2291 = vmatpush.msra.mxu0 0.0
      %2292 = vmatpush.msra.mxu0 0.0
      %2293 = vmatpush.msra.mxu0 0.0
      %2294 = vmatpush.msra.mxu0 0.0
      %2295 = vmatpush.msra.mxu0 0.0
      %2296 = vmatpush.msra.mxu0 %v2178
      %2297 = vmatmul.f32.gmra.mxu0 %v2180
      %v2298 = vpop.f32.mrf.mxu0
      %v2299 = vadd.f32 0.0, %v2298
      %2300 = vmatmul.f32.gmra.mxu0 %v2183
      %v2301 = vpop.f32.mrf.mxu0
      %v2302 = vadd.f32 0.0, %v2301
      %2303 = vmatmul.f32.gmra.mxu0 %v2186
      %v2304 = vpop.f32.mrf.mxu0
      %v2305 = vadd.f32 0.0, %v2304
      %2306 = vmatmul.f32.gmra.mxu0 %v2189
      %v2307 = vpop.f32.mrf.mxu0
      %v2308 = vadd.f32 0.0, %v2307
      %2309 = vmatmul.f32.gmra.mxu0 %v2192
      %v2310 = vpop.f32.mrf.mxu0
      %v2311 = vadd.f32 0.0, %v2310
      %2312 = vmatmul.f32.gmra.mxu0 %v2195
      %v2313 = vpop.f32.mrf.mxu0
      %v2314 = vadd.f32 0.0, %v2313
      %2315 = vmatmul.f32.gmra.mxu0 %v2198
      %v2316 = vpop.f32.mrf.mxu0
      %v2317 = vadd.f32 0.0, %v2316
      %2318 = vmatmul.f32.gmra.mxu0 %v2201
      %v2319 = vpop.f32.mrf.mxu0
      %v2320 = vadd.f32 0.0, %v2319
      %2321 = vmatmul.f32.gmra.mxu0 %v2204
      %v2322 = vpop.f32.mrf.mxu0
      %v2323 = vadd.f32 0.0, %v2322
      %2324 = vmatmul.f32.gmra.mxu0 %v2207
      %v2325 = vpop.f32.mrf.mxu0
      %v2326 = vadd.f32 0.0, %v2325
      %2327 = vmatmul.f32.gmra.mxu0 %v2210
      %v2328 = vpop.f32.mrf.mxu0
      %v2329 = vadd.f32 0.0, %v2328
      %2330 = vmatmul.f32.gmra.mxu0 %v2213
      %v2331 = vpop.f32.mrf.mxu0
      %v2332 = vadd.f32 0.0, %v2331
      %2333 = vmatmul.f32.gmra.mxu0 %v2216
      %v2334 = vpop.f32.mrf.mxu0
      %v2335 = vadd.f32 0.0, %v2334
      %2336 = vmatmul.f32.gmra.mxu0 %v2219
      %v2337 = vpop.f32.mrf.mxu0
      %v2338 = vadd.f32 0.0, %v2337
      %2339 = vmatmul.f32.gmra.mxu0 %v2222
      %v2340 = vpop.f32.mrf.mxu0
      %v2341 = vadd.f32 0.0, %v2340
      %2342 = vmatmul.f32.gmra.mxu0 %v2225
      %v2343 = vpop.f32.mrf.mxu0
      %v2344 = vadd.f32 0.0, %v2343
      %2345 = vmatmul.f32.gmra.mxu0 %v2228
      %v2346 = vpop.f32.mrf.mxu0
      %v2347 = vadd.f32 0.0, %v2346
      %2348 = vmatmul.f32.gmra.mxu0 %v2231
      %v2349 = vpop.f32.mrf.mxu0
      %v2350 = vadd.f32 0.0, %v2349
      %2351 = vmatmul.f32.gmra.mxu0 %v2234
      %v2352 = vpop.f32.mrf.mxu0
      %v2353 = vadd.f32 0.0, %v2352
      %2354 = vmatmul.f32.gmra.mxu0 %v2237
      %v2355 = vpop.f32.mrf.mxu0
      %v2356 = vadd.f32 0.0, %v2355
      %2357 = vmatmul.f32.gmra.mxu0 %v2240
      %v2358 = vpop.f32.mrf.mxu0
      %v2359 = vadd.f32 0.0, %v2358
      %2360 = vmatmul.f32.gmra.mxu0 %v2243
      %v2361 = vpop.f32.mrf.mxu0
      %v2362 = vadd.f32 0.0, %v2361
      %2363 = vmatmul.f32.gmra.mxu0 %v2246
      %v2364 = vpop.f32.mrf.mxu0
      %v2365 = vadd.f32 0.0, %v2364
      %2366 = vmatmul.f32.gmra.mxu0 %v2249
      %v2367 = vpop.f32.mrf.mxu0
      %v2368 = vadd.f32 0.0, %v2367
      %2369 = vmatmul.f32.gmra.mxu0 %v2252
      %v2370 = vpop.f32.mrf.mxu0
      %v2371 = vadd.f32 0.0, %v2370
      %2372 = vmatmul.f32.gmra.mxu0 %v2255
      %v2373 = vpop.f32.mrf.mxu0
      %v2374 = vadd.f32 0.0, %v2373
      %2375 = vmatmul.f32.gmra.mxu0 %v2258
      %v2376 = vpop.f32.mrf.mxu0
      %v2377 = vadd.f32 0.0, %v2376
      %2378 = vmatmul.f32.gmra.mxu0 %v2261
      %v2379 = vpop.f32.mrf.mxu0
      %v2380 = vadd.f32 0.0, %v2379
      %2381 = vmatmul.f32.gmra.mxu0 %v2264
      %v2382 = vpop.f32.mrf.mxu0
      %v2383 = vadd.f32 0.0, %v2382
      %2384 = vmatmul.f32.gmra.mxu0 %v2267
      %v2385 = vpop.f32.mrf.mxu0
      %v2386 = vadd.f32 0.0, %v2385
      %2387 = vmatmul.f32.gmra.mxu0 %v2270
      %v2388 = vpop.f32.mrf.mxu0
      %v2389 = vadd.f32 0.0, %v2388
      %2390 = vmatmul.f32.gmra.mxu0 %v2273
      %v2391 = vpop.f32.mrf.mxu0
      %v2392 = vadd.f32 0.0, %v2391
      %2393 = vmatmul.f32.gmra.mxu0 %v2276
      %v2394 = vpop.f32.mrf.mxu0
      %v2395 = vadd.f32 0.0, %v2394
      %2396 = vmatmul.f32.gmra.mxu0 %v2279
      %v2397 = vpop.f32.mrf.mxu0
      %v2398 = vadd.f32 0.0, %v2397
      %2399 = vdwg.mxu0
      %v2400 = vadd.f32 %v2109, %v2299
      %v2401 = vadd.f32 %v2110, %v2302
      %v2402 = vadd.f32 %v2111, %v2305
      %v2403 = vadd.f32 %v2112, %v2308
      %v2404 = vadd.f32 %v2113, %v2311
      %v2405 = vadd.f32 %v2114, %v2314
      %v2406 = vadd.f32 %v2115, %v2317
      %v2407 = vadd.f32 %v2116, %v2320
      %v2408 = vadd.f32 %v2117, %v2323
      %v2409 = vadd.f32 %v2118, %v2326
      %v2410 = vadd.f32 %v2119, %v2329
      %v2411 = vadd.f32 %v2120, %v2332
      %v2412 = vadd.f32 %v2121, %v2335
      %v2413 = vadd.f32 %v2122, %v2338
      %v2414 = vadd.f32 %v2123, %v2341
      %v2415 = vadd.f32 %v2124, %v2344
      %v2416 = vadd.f32 %v2125, %v2347
      %v2417 = vadd.f32 %v2126, %v2350
      %v2418 = vadd.f32 %v2127, %v2353
      %v2419 = vadd.f32 %v2128, %v2356
      %v2420 = vadd.f32 %v2129, %v2359
      %v2421 = vadd.f32 %v2130, %v2362
      %v2422 = vadd.f32 %v2131, %v2365
      %v2423 = vadd.f32 %v2132, %v2368
      %v2424 = vadd.f32 %v2133, %v2371
      %v2425 = vadd.f32 %v2134, %v2374
      %v2426 = vadd.f32 %v2135, %v2377
      %v2427 = vadd.f32 %v2136, %v2380
      %v2428 = vadd.f32 %v2137, %v2383
      %v2429 = vadd.f32 %v2138, %v2386
      %v2430 = vadd.f32 %v2139, %v2389
      %v2431 = vadd.f32 %v2140, %v2392
      %v2432 = vadd.f32 %v2141, %v2395
      %v2433 = vadd.f32 %v2142, %v2398
      %v2434 = vld [vmem:[%s165 + $0x12] sm:$0xff]
      %v2435 = vld [vmem:[%s165 + $0x1a] sm:$0xff]
      %v2436 = vld [vmem:[%s165 + $0x22] sm:$0xff]
      %v2437 = vld [vmem:[%s165 + $0x2a] sm:$0xff]
      %v2438 = vld [vmem:[%s165 + $0x32] sm:$0xff]
      %v2439 = vld [vmem:[%s165 + $0x3a] sm:$0xff]
      %v2440 = vld [vmem:[%s165 + $0x42] sm:$0xff]
      %v2441 = vld [vmem:[%s165 + $0x4a] sm:$0xff]
      %v2442 = vld [vmem:[%s165 + $0x52] sm:$0xff]
      %v2443 = vld [vmem:[%s165 + $0x5a] sm:$0xff]
      %v2444 = vld [vmem:[%s165 + $0x62] sm:$0xff]
      %v2445 = vld [vmem:[%s165 + $0x6a] sm:$0xff]
      %v2446 = vld [vmem:[%s165 + $0x72] sm:$0xff]
      %v2447 = vld [vmem:[%s165 + $0x7a] sm:$0xff]
      %v2448 = vld [vmem:[%s165 + $0x82] sm:$0xff]
      %v2449 = vld [vmem:[%s165 + $0x8a] sm:$0xff]
      %v2450 = vld [vmem:[%s165 + $0x92] sm:$0xff]
      %v2451 = vld [vmem:[%s165 + $0x9a] sm:$0xff]
      %v2452 = vld [vmem:[%s165 + $0xa2] sm:$0xff]
      %v2453 = vld [vmem:[%s165 + $0xaa] sm:$0xff]
      %v2454 = vld [vmem:[%s165 + $0xb2] sm:$0xff]
      %v2455 = vld [vmem:[%s165 + $0xba] sm:$0xff]
      %v2456 = vld [vmem:[%s165 + $0xc2] sm:$0xff]
      %v2457 = vld [vmem:[%s165 + $0xca] sm:$0xff]
      %v2458 = vld [vmem:[%s165 + $0xd2] sm:$0xff]
      %v2459 = vld [vmem:[%s165 + $0xda] sm:$0xff]
      %v2460 = vld [vmem:[%s165 + $0xe2] sm:$0xff]
      %v2461 = vld [vmem:[%s165 + $0xea] sm:$0xff]
      %v2462 = vld [vmem:[%s165 + $0xf2] sm:$0xff]
      %v2463 = vld [vmem:[%s165 + $0xfa] sm:$0xff]
      %v2464 = vld [vmem:[%s165 + $0x102] sm:$0xff]
      %v2465 = vld [vmem:[%s165 + $0x10a] sm:$0xff]
      %v2466 = vld [vmem:[%s165 + $0x112] sm:$0xff]
      %v2467 = vld [vmem:[%s165 + $0x11a] sm:$0xff]
      %s2468 = scalar_lea.vmem %s1, 64
      %v2469 = vld [vmem:[%s2468] sm:$0xff]
      %v2471 = vsel %vm243, %v2434, 0
      %v2474 = vsel %vm243, %v2435, 0
      %v2477 = vsel %vm243, %v2436, 0
      %v2480 = vsel %vm243, %v2437, 0
      %v2483 = vsel %vm243, %v2438, 0
      %v2486 = vsel %vm243, %v2439, 0
      %v2489 = vsel %vm243, %v2440, 0
      %v2492 = vsel %vm243, %v2441, 0
      %v2495 = vsel %vm243, %v2442, 0
      %v2498 = vsel %vm243, %v2443, 0
      %v2501 = vsel %vm243, %v2444, 0
      %v2504 = vsel %vm243, %v2445, 0
      %v2507 = vsel %vm243, %v2446, 0
      %v2510 = vsel %vm243, %v2447, 0
      %v2513 = vsel %vm243, %v2448, 0
      %v2516 = vsel %vm243, %v2449, 0
      %v2519 = vsel %vm243, %v2450, 0
      %v2522 = vsel %vm243, %v2451, 0
      %v2525 = vsel %vm243, %v2452, 0
      %v2528 = vsel %vm243, %v2453, 0
      %v2531 = vsel %vm243, %v2454, 0
      %v2534 = vsel %vm243, %v2455, 0
      %v2537 = vsel %vm243, %v2456, 0
      %v2540 = vsel %vm243, %v2457, 0
      %v2543 = vsel %vm243, %v2458, 0
      %v2546 = vsel %vm243, %v2459, 0
      %v2549 = vsel %vm243, %v2460, 0
      %v2552 = vsel %vm243, %v2461, 0
      %v2555 = vsel %vm243, %v2462, 0
      %v2558 = vsel %vm243, %v2463, 0
      %v2561 = vsel %vm243, %v2464, 0
      %v2564 = vsel %vm243, %v2465, 0
      %v2567 = vsel %vm243, %v2466, 0
      %v2570 = vsel %vm243, %v2467, 0
      %2572 = vmatpush.msra.mxu0 0.0
      %2573 = vmatpush.msra.mxu0 0.0
      %2574 = vmatpush.msra.mxu0 0.0
      %2575 = vmatpush.msra.mxu0 0.0
      %2576 = vmatpush.msra.mxu0 0.0
      %2577 = vmatpush.msra.mxu0 0.0
      %2578 = vmatpush.msra.mxu0 0.0
      %2579 = vmatpush.msra.mxu0 0.0
      %2580 = vmatpush.msra.mxu0 0.0
      %2581 = vmatpush.msra.mxu0 0.0
      %2582 = vmatpush.msra.mxu0 0.0
      %2583 = vmatpush.msra.mxu0 0.0
      %2584 = vmatpush.msra.mxu0 0.0
      %2585 = vmatpush.msra.mxu0 0.0
      %2586 = vmatpush.msra.mxu0 0.0
      %2587 = vmatpush.msra.mxu0 %v2469
      %2588 = vmatmul.f32.gmra.mxu0 %v2471
      %v2589 = vpop.f32.mrf.mxu0
      %v2590 = vadd.f32 0.0, %v2589
      %2591 = vmatmul.f32.gmra.mxu0 %v2474
      %v2592 = vpop.f32.mrf.mxu0
      %v2593 = vadd.f32 0.0, %v2592
      %2594 = vmatmul.f32.gmra.mxu0 %v2477
      %v2595 = vpop.f32.mrf.mxu0
      %v2596 = vadd.f32 0.0, %v2595
      %2597 = vmatmul.f32.gmra.mxu0 %v2480
      %v2598 = vpop.f32.mrf.mxu0
      %v2599 = vadd.f32 0.0, %v2598
      %2600 = vmatmul.f32.gmra.mxu0 %v2483
      %v2601 = vpop.f32.mrf.mxu0
      %v2602 = vadd.f32 0.0, %v2601
      %2603 = vmatmul.f32.gmra.mxu0 %v2486
      %v2604 = vpop.f32.mrf.mxu0
      %v2605 = vadd.f32 0.0, %v2604
      %2606 = vmatmul.f32.gmra.mxu0 %v2489
      %v2607 = vpop.f32.mrf.mxu0
      %v2608 = vadd.f32 0.0, %v2607
      %2609 = vmatmul.f32.gmra.mxu0 %v2492
      %v2610 = vpop.f32.mrf.mxu0
      %v2611 = vadd.f32 0.0, %v2610
      %2612 = vmatmul.f32.gmra.mxu0 %v2495
      %v2613 = vpop.f32.mrf.mxu0
      %v2614 = vadd.f32 0.0, %v2613
      %2615 = vmatmul.f32.gmra.mxu0 %v2498
      %v2616 = vpop.f32.mrf.mxu0
      %v2617 = vadd.f32 0.0, %v2616
      %2618 = vmatmul.f32.gmra.mxu0 %v2501
      %v2619 = vpop.f32.mrf.mxu0
      %v2620 = vadd.f32 0.0, %v2619
      %2621 = vmatmul.f32.gmra.mxu0 %v2504
      %v2622 = vpop.f32.mrf.mxu0
      %v2623 = vadd.f32 0.0, %v2622
      %2624 = vmatmul.f32.gmra.mxu0 %v2507
      %v2625 = vpop.f32.mrf.mxu0
      %v2626 = vadd.f32 0.0, %v2625
      %2627 = vmatmul.f32.gmra.mxu0 %v2510
      %v2628 = vpop.f32.mrf.mxu0
      %v2629 = vadd.f32 0.0, %v2628
      %2630 = vmatmul.f32.gmra.mxu0 %v2513
      %v2631 = vpop.f32.mrf.mxu0
      %v2632 = vadd.f32 0.0, %v2631
      %2633 = vmatmul.f32.gmra.mxu0 %v2516
      %v2634 = vpop.f32.mrf.mxu0
      %v2635 = vadd.f32 0.0, %v2634
      %2636 = vmatmul.f32.gmra.mxu0 %v2519
      %v2637 = vpop.f32.mrf.mxu0
      %v2638 = vadd.f32 0.0, %v2637
      %2639 = vmatmul.f32.gmra.mxu0 %v2522
      %v2640 = vpop.f32.mrf.mxu0
      %v2641 = vadd.f32 0.0, %v2640
      %2642 = vmatmul.f32.gmra.mxu0 %v2525
      %v2643 = vpop.f32.mrf.mxu0
      %v2644 = vadd.f32 0.0, %v2643
      %2645 = vmatmul.f32.gmra.mxu0 %v2528
      %v2646 = vpop.f32.mrf.mxu0
      %v2647 = vadd.f32 0.0, %v2646
      %2648 = vmatmul.f32.gmra.mxu0 %v2531
      %v2649 = vpop.f32.mrf.mxu0
      %v2650 = vadd.f32 0.0, %v2649
      %2651 = vmatmul.f32.gmra.mxu0 %v2534
      %v2652 = vpop.f32.mrf.mxu0
      %v2653 = vadd.f32 0.0, %v2652
      %2654 = vmatmul.f32.gmra.mxu0 %v2537
      %v2655 = vpop.f32.mrf.mxu0
      %v2656 = vadd.f32 0.0, %v2655
      %2657 = vmatmul.f32.gmra.mxu0 %v2540
      %v2658 = vpop.f32.mrf.mxu0
      %v2659 = vadd.f32 0.0, %v2658
      %2660 = vmatmul.f32.gmra.mxu0 %v2543
      %v2661 = vpop.f32.mrf.mxu0
      %v2662 = vadd.f32 0.0, %v2661
      %2663 = vmatmul.f32.gmra.mxu0 %v2546
      %v2664 = vpop.f32.mrf.mxu0
      %v2665 = vadd.f32 0.0, %v2664
      %2666 = vmatmul.f32.gmra.mxu0 %v2549
      %v2667 = vpop.f32.mrf.mxu0
      %v2668 = vadd.f32 0.0, %v2667
      %2669 = vmatmul.f32.gmra.mxu0 %v2552
      %v2670 = vpop.f32.mrf.mxu0
      %v2671 = vadd.f32 0.0, %v2670
      %2672 = vmatmul.f32.gmra.mxu0 %v2555
      %v2673 = vpop.f32.mrf.mxu0
      %v2674 = vadd.f32 0.0, %v2673
      %2675 = vmatmul.f32.gmra.mxu0 %v2558
      %v2676 = vpop.f32.mrf.mxu0
      %v2677 = vadd.f32 0.0, %v2676
      %2678 = vmatmul.f32.gmra.mxu0 %v2561
      %v2679 = vpop.f32.mrf.mxu0
      %v2680 = vadd.f32 0.0, %v2679
      %2681 = vmatmul.f32.gmra.mxu0 %v2564
      %v2682 = vpop.f32.mrf.mxu0
      %v2683 = vadd.f32 0.0, %v2682
      %2684 = vmatmul.f32.gmra.mxu0 %v2567
      %v2685 = vpop.f32.mrf.mxu0
      %v2686 = vadd.f32 0.0, %v2685
      %2687 = vmatmul.f32.gmra.mxu0 %v2570
      %v2688 = vpop.f32.mrf.mxu0
      %v2689 = vadd.f32 0.0, %v2688
      %2690 = vdwg.mxu0
      %v2691 = vadd.f32 %v2400, %v2590
      %v2692 = vadd.f32 %v2401, %v2593
      %v2693 = vadd.f32 %v2402, %v2596
      %v2694 = vadd.f32 %v2403, %v2599
      %v2695 = vadd.f32 %v2404, %v2602
      %v2696 = vadd.f32 %v2405, %v2605
      %v2697 = vadd.f32 %v2406, %v2608
      %v2698 = vadd.f32 %v2407, %v2611
      %v2699 = vadd.f32 %v2408, %v2614
      %v2700 = vadd.f32 %v2409, %v2617
      %v2701 = vadd.f32 %v2410, %v2620
      %v2702 = vadd.f32 %v2411, %v2623
      %v2703 = vadd.f32 %v2412, %v2626
      %v2704 = vadd.f32 %v2413, %v2629
      %v2705 = vadd.f32 %v2414, %v2632
      %v2706 = vadd.f32 %v2415, %v2635
      %v2707 = vadd.f32 %v2416, %v2638
      %v2708 = vadd.f32 %v2417, %v2641
      %v2709 = vadd.f32 %v2418, %v2644
      %v2710 = vadd.f32 %v2419, %v2647
      %v2711 = vadd.f32 %v2420, %v2650
      %v2712 = vadd.f32 %v2421, %v2653
      %v2713 = vadd.f32 %v2422, %v2656
      %v2714 = vadd.f32 %v2423, %v2659
      %v2715 = vadd.f32 %v2424, %v2662
      %v2716 = vadd.f32 %v2425, %v2665
      %v2717 = vadd.f32 %v2426, %v2668
      %v2718 = vadd.f32 %v2427, %v2671
      %v2719 = vadd.f32 %v2428, %v2674
      %v2720 = vadd.f32 %v2429, %v2677
      %v2721 = vadd.f32 %v2430, %v2680
      %v2722 = vadd.f32 %v2431, %v2683
      %v2723 = vadd.f32 %v2432, %v2686
      %v2724 = vadd.f32 %v2433, %v2689
      %v2725 = vld [vmem:[%s2] sm:$0x1]
      %v2727 = vperm.slane %v2725, 0
      %v2729 = vadd.f32 %v2691, %v2727
      %v2730 = vadd.f32 %v2692, %v2727
      %v2731 = vadd.f32 %v2693, %v2727
      %v2732 = vadd.f32 %v2694, %v2727
      %v2733 = vadd.f32 %v2695, %v2727
      %v2734 = vadd.f32 %v2696, %v2727
      %v2735 = vadd.f32 %v2697, %v2727
      %v2736 = vadd.f32 %v2698, %v2727
      %v2737 = vadd.f32 %v2699, %v2727
      %v2738 = vadd.f32 %v2700, %v2727
      %v2739 = vadd.f32 %v2701, %v2727
      %v2740 = vadd.f32 %v2702, %v2727
      %v2741 = vadd.f32 %v2703, %v2727
      %v2742 = vadd.f32 %v2704, %v2727
      %v2743 = vadd.f32 %v2705, %v2727
      %v2744 = vadd.f32 %v2706, %v2727
      %v2745 = vadd.f32 %v2707, %v2727
      %v2746 = vadd.f32 %v2708, %v2727
      %v2747 = vadd.f32 %v2709, %v2727
      %v2748 = vadd.f32 %v2710, %v2727
      %v2749 = vadd.f32 %v2711, %v2727
      %v2750 = vadd.f32 %v2712, %v2727
      %v2751 = vadd.f32 %v2713, %v2727
      %v2752 = vadd.f32 %v2714, %v2727
      %v2753 = vadd.f32 %v2715, %v2727
      %v2754 = vadd.f32 %v2716, %v2727
      %v2755 = vadd.f32 %v2717, %v2727
      %v2756 = vadd.f32 %v2718, %v2727
      %v2757 = vadd.f32 %v2719, %v2727
      %v2758 = vadd.f32 %v2720, %v2727
      %v2759 = vadd.f32 %v2721, %v2727
      %v2760 = vadd.f32 %v2722, %v2727
      %v2761 = vadd.f32 %v2723, %v2727
      %v2762 = vadd.f32 %v2724, %v2727
      %v2763 = vmul.f32 %v2729, 0.5
      %v2764 = vmul.f32 %v2730, 0.5
      %v2765 = vmul.f32 %v2731, 0.5
      %v2766 = vmul.f32 %v2732, 0.5
      %v2767 = vmul.f32 %v2733, 0.5
      %v2768 = vmul.f32 %v2734, 0.5
      %v2769 = vmul.f32 %v2735, 0.5
      %v2770 = vmul.f32 %v2736, 0.5
      %v2771 = vmul.f32 %v2737, 0.5
      %v2772 = vmul.f32 %v2738, 0.5
      %v2773 = vmul.f32 %v2739, 0.5
      %v2774 = vmul.f32 %v2740, 0.5
      %v2775 = vmul.f32 %v2741, 0.5
      %v2776 = vmul.f32 %v2742, 0.5
      %v2777 = vmul.f32 %v2743, 0.5
      %v2778 = vmul.f32 %v2744, 0.5
      %v2779 = vmul.f32 %v2745, 0.5
      %v2780 = vmul.f32 %v2746, 0.5
      %v2781 = vmul.f32 %v2747, 0.5
      %v2782 = vmul.f32 %v2748, 0.5
      %v2783 = vmul.f32 %v2749, 0.5
      %v2784 = vmul.f32 %v2750, 0.5
      %v2785 = vmul.f32 %v2751, 0.5
      %v2786 = vmul.f32 %v2752, 0.5
      %v2787 = vmul.f32 %v2753, 0.5
      %v2788 = vmul.f32 %v2754, 0.5
      %v2789 = vmul.f32 %v2755, 0.5
      %v2790 = vmul.f32 %v2756, 0.5
      %v2791 = vmul.f32 %v2757, 0.5
      %v2792 = vmul.f32 %v2758, 0.5
      %v2793 = vmul.f32 %v2759, 0.5
      %v2794 = vmul.f32 %v2760, 0.5
      %v2795 = vmul.f32 %v2761, 0.5
      %v2796 = vmul.f32 %v2762, 0.5
      %v2797 = vmul.f32 %v2729, 0.70710677
      %v2798 = vmul.f32 %v2730, 0.70710677
      %v2799 = vmul.f32 %v2731, 0.70710677
      %v2800 = vmul.f32 %v2732, 0.70710677
      %v2801 = vmul.f32 %v2733, 0.70710677
      %v2802 = vmul.f32 %v2734, 0.70710677
      %v2803 = vmul.f32 %v2735, 0.70710677
      %v2804 = vmul.f32 %v2736, 0.70710677
      %v2805 = vmul.f32 %v2737, 0.70710677
      %v2806 = vmul.f32 %v2738, 0.70710677
      %v2807 = vmul.f32 %v2739, 0.70710677
      %v2808 = vmul.f32 %v2740, 0.70710677
      %v2809 = vmul.f32 %v2741, 0.70710677
      %v2810 = vmul.f32 %v2742, 0.70710677
      %v2811 = vmul.f32 %v2743, 0.70710677
      %v2812 = vmul.f32 %v2744, 0.70710677
      %v2813 = vmul.f32 %v2745, 0.70710677
      %v2814 = vmul.f32 %v2746, 0.70710677
      %v2815 = vmul.f32 %v2747, 0.70710677
      %v2816 = vmul.f32 %v2748, 0.70710677
      %v2817 = vmul.f32 %v2749, 0.70710677
      %v2818 = vmul.f32 %v2750, 0.70710677
      %v2819 = vmul.f32 %v2751, 0.70710677
      %v2820 = vmul.f32 %v2752, 0.70710677
      %v2821 = vmul.f32 %v2753, 0.70710677
      %v2822 = vmul.f32 %v2754, 0.70710677
      %v2823 = vmul.f32 %v2755, 0.70710677
      %v2824 = vmul.f32 %v2756, 0.70710677
      %v2825 = vmul.f32 %v2757, 0.70710677
      %v2826 = vmul.f32 %v2758, 0.70710677
      %v2827 = vmul.f32 %v2759, 0.70710677
      %v2828 = vmul.f32 %v2760, 0.70710677
      %v2829 = vmul.f32 %v2761, 0.70710677
      %v2830 = vmul.f32 %v2762, 0.70710677
      %v2831 = vmul.f32 %v2797, %v2797
      %v2832 = vmin.f32 16.0, %v2831
      %v2833 = vmul.f32 %v2832, 2.1237322e-06
      %v2834 = vadd.f32 %v2833, 0.00028619796
      %v2835 = vmul.f32 %v2832, %v2834
      %v2836 = vadd.f32 %v2835, 0.0036580483
      %v2837 = vmul.f32 %v2832, %v2836
      %v2838 = vadd.f32 %v2837, 0.05243302
      %v2839 = vmul.f32 %v2832, %v2838
      %v2840 = vadd.f32 %v2839, 0.18741608
      %v2841 = vmul.f32 %v2832, %v2840
      %v2842 = vadd.f32 %v2841, 1.1283791
      %v2843 = vmul.f32 %v2797, %v2842
      %v2844 = vmul.f32 %v2832, 3.8918573e-05
      %v2845 = vadd.f32 %v2844, 0.001143296
      %v2846 = vmul.f32 %v2832, %v2845
      %v2847 = vadd.f32 %v2846, 0.014752088
      %v2848 = vmul.f32 %v2832, %v2847
      %v2849 = vadd.f32 %v2848, 0.112945676
      %v2850 = vmul.f32 %v2832, %v2849
      %v2851 = vadd.f32 %v2850, 0.4994258
      %v2852 = vmul.f32 %v2832, %v2851
      %v2853 = vadd.f32 %v2852, 1.0
      %v2854 = vrcp.pop %v2853
      %v2855 = vmul.f32 %v2853, %v2854
      %v2856 = vsub.f32 1.0, %v2855
      %v2857 = vmul.f32 %v2854, %v2856
      %v2858 = vadd.f32 %v2854, %v2857
      %vm2859 = vweird.f32 %v2853
      %vm2860 = vweird.f32 %v2854
      %vm2861 = vmor %vm2859, %vm2860
      %v2862 = vsel %vm2861, %v2854, %v2858
      %v2863 = vand.u32 2147483647, %v2853
      %vm2864 = vcmp.eq.f32.partialorder %v2863, 8.507059e+37
      %v2865 = vand.u32 %v2853, 2147483648
      %v2866 = vor.u32 1.1754944e-38, %v2865
      %v2867 = vsel %vm2864, %v2866, %v2862
      %v2868 = vmul.f32 %v2843, %v2867
      %v2869 = vmin.f32 %v2868, 1.0
      %v2870 = vmax.f32 %v2869, -1.0
      %v2871 = vmul.f32 %v2798, %v2798
      %v2872 = vmin.f32 16.0, %v2871
      %v2873 = vmul.f32 %v2872, 2.1237322e-06
      %v2874 = vadd.f32 %v2873, 0.00028619796
      %v2875 = vmul.f32 %v2872, %v2874
      %v2876 = vadd.f32 %v2875, 0.0036580483
      %v2877 = vmul.f32 %v2872, %v2876
      %v2878 = vadd.f32 %v2877, 0.05243302
      %v2879 = vmul.f32 %v2872, %v2878
      %v2880 = vadd.f32 %v2879, 0.18741608
      %v2881 = vmul.f32 %v2872, %v2880
      %v2882 = vadd.f32 %v2881, 1.1283791
      %v2883 = vmul.f32 %v2798, %v2882
      %v2884 = vmul.f32 %v2872, 3.8918573e-05
      %v2885 = vadd.f32 %v2884, 0.001143296
      %v2886 = vmul.f32 %v2872, %v2885
      %v2887 = vadd.f32 %v2886, 0.014752088
      %v2888 = vmul.f32 %v2872, %v2887
      %v2889 = vadd.f32 %v2888, 0.112945676
      %v2890 = vmul.f32 %v2872, %v2889
      %v2891 = vadd.f32 %v2890, 0.4994258
      %v2892 = vmul.f32 %v2872, %v2891
      %v2893 = vadd.f32 %v2892, 1.0
      %v2894 = vrcp.pop %v2893
      %v2895 = vmul.f32 %v2893, %v2894
      %v2896 = vsub.f32 1.0, %v2895
      %v2897 = vmul.f32 %v2894, %v2896
      %v2898 = vadd.f32 %v2894, %v2897
      %vm2899 = vweird.f32 %v2893
      %vm2900 = vweird.f32 %v2894
      %vm2901 = vmor %vm2899, %vm2900
      %v2902 = vsel %vm2901, %v2894, %v2898
      %v2903 = vand.u32 2147483647, %v2893
      %vm2904 = vcmp.eq.f32.partialorder %v2903, 8.507059e+37
      %v2905 = vand.u32 %v2893, 2147483648
      %v2906 = vor.u32 1.1754944e-38, %v2905
      %v2907 = vsel %vm2904, %v2906, %v2902
      %v2908 = vmul.f32 %v2883, %v2907
      %v2909 = vmin.f32 %v2908, 1.0
      %v2910 = vmax.f32 %v2909, -1.0
      %v2911 = vmul.f32 %v2799, %v2799
      %v2912 = vmin.f32 16.0, %v2911
      %v2913 = vmul.f32 %v2912, 2.1237322e-06
      %v2914 = vadd.f32 %v2913, 0.00028619796
      %v2915 = vmul.f32 %v2912, %v2914
      %v2916 = vadd.f32 %v2915, 0.0036580483
      %v2917 = vmul.f32 %v2912, %v2916
      %v2918 = vadd.f32 %v2917, 0.05243302
      %v2919 = vmul.f32 %v2912, %v2918
      %v2920 = vadd.f32 %v2919, 0.18741608
      %v2921 = vmul.f32 %v2912, %v2920
      %v2922 = vadd.f32 %v2921, 1.1283791
      %v2923 = vmul.f32 %v2799, %v2922
      %v2924 = vmul.f32 %v2912, 3.8918573e-05
      %v2925 = vadd.f32 %v2924, 0.001143296
      %v2926 = vmul.f32 %v2912, %v2925
      %v2927 = vadd.f32 %v2926, 0.014752088
      %v2928 = vmul.f32 %v2912, %v2927
      %v2929 = vadd.f32 %v2928, 0.112945676
      %v2930 = vmul.f32 %v2912, %v2929
      %v2931 = vadd.f32 %v2930, 0.4994258
      %v2932 = vmul.f32 %v2912, %v2931
      %v2933 = vadd.f32 %v2932, 1.0
      %v2934 = vrcp.pop %v2933
      %v2935 = vmul.f32 %v2933, %v2934
      %v2936 = vsub.f32 1.0, %v2935
      %v2937 = vmul.f32 %v2934, %v2936
      %v2938 = vadd.f32 %v2934, %v2937
      %vm2939 = vweird.f32 %v2933
      %vm2940 = vweird.f32 %v2934
      %vm2941 = vmor %vm2939, %vm2940
      %v2942 = vsel %vm2941, %v2934, %v2938
      %v2943 = vand.u32 2147483647, %v2933
      %vm2944 = vcmp.eq.f32.partialorder %v2943, 8.507059e+37
      %v2945 = vand.u32 %v2933, 2147483648
      %v2946 = vor.u32 1.1754944e-38, %v2945
      %v2947 = vsel %vm2944, %v2946, %v2942
      %v2948 = vmul.f32 %v2923, %v2947
      %v2949 = vmin.f32 %v2948, 1.0
      %v2950 = vmax.f32 %v2949, -1.0
      %v2951 = vmul.f32 %v2800, %v2800
      %v2952 = vmin.f32 16.0, %v2951
      %v2953 = vmul.f32 %v2952, 2.1237322e-06
      %v2954 = vadd.f32 %v2953, 0.00028619796
      %v2955 = vmul.f32 %v2952, %v2954
      %v2956 = vadd.f32 %v2955, 0.0036580483
      %v2957 = vmul.f32 %v2952, %v2956
      %v2958 = vadd.f32 %v2957, 0.05243302
      %v2959 = vmul.f32 %v2952, %v2958
      %v2960 = vadd.f32 %v2959, 0.18741608
      %v2961 = vmul.f32 %v2952, %v2960
      %v2962 = vadd.f32 %v2961, 1.1283791
      %v2963 = vmul.f32 %v2800, %v2962
      %v2964 = vmul.f32 %v2952, 3.8918573e-05
      %v2965 = vadd.f32 %v2964, 0.001143296
      %v2966 = vmul.f32 %v2952, %v2965
      %v2967 = vadd.f32 %v2966, 0.014752088
      %v2968 = vmul.f32 %v2952, %v2967
      %v2969 = vadd.f32 %v2968, 0.112945676
      %v2970 = vmul.f32 %v2952, %v2969
      %v2971 = vadd.f32 %v2970, 0.4994258
      %v2972 = vmul.f32 %v2952, %v2971
      %v2973 = vadd.f32 %v2972, 1.0
      %v2974 = vrcp.pop %v2973
      %v2975 = vmul.f32 %v2973, %v2974
      %v2976 = vsub.f32 1.0, %v2975
      %v2977 = vmul.f32 %v2974, %v2976
      %v2978 = vadd.f32 %v2974, %v2977
      %vm2979 = vweird.f32 %v2973
      %vm2980 = vweird.f32 %v2974
      %vm2981 = vmor %vm2979, %vm2980
      %v2982 = vsel %vm2981, %v2974, %v2978
      %v2983 = vand.u32 2147483647, %v2973
      %vm2984 = vcmp.eq.f32.partialorder %v2983, 8.507059e+37
      %v2985 = vand.u32 %v2973, 2147483648
      %v2986 = vor.u32 1.1754944e-38, %v2985
      %v2987 = vsel %vm2984, %v2986, %v2982
      %v2988 = vmul.f32 %v2963, %v2987
      %v2989 = vmin.f32 %v2988, 1.0
      %v2990 = vmax.f32 %v2989, -1.0
      %v2991 = vmul.f32 %v2801, %v2801
      %v2992 = vmin.f32 16.0, %v2991
      %v2993 = vmul.f32 %v2992, 2.1237322e-06
      %v2994 = vadd.f32 %v2993, 0.00028619796
      %v2995 = vmul.f32 %v2992, %v2994
      %v2996 = vadd.f32 %v2995, 0.0036580483
      %v2997 = vmul.f32 %v2992, %v2996
      %v2998 = vadd.f32 %v2997, 0.05243302
      %v2999 = vmul.f32 %v2992, %v2998
      %v3000 = vadd.f32 %v2999, 0.18741608
      %v3001 = vmul.f32 %v2992, %v3000
      %v3002 = vadd.f32 %v3001, 1.1283791
      %v3003 = vmul.f32 %v2801, %v3002
      %v3004 = vmul.f32 %v2992, 3.8918573e-05
      %v3005 = vadd.f32 %v3004, 0.001143296
      %v3006 = vmul.f32 %v2992, %v3005
      %v3007 = vadd.f32 %v3006, 0.014752088
      %v3008 = vmul.f32 %v2992, %v3007
      %v3009 = vadd.f32 %v3008, 0.112945676
      %v3010 = vmul.f32 %v2992, %v3009
      %v3011 = vadd.f32 %v3010, 0.4994258
      %v3012 = vmul.f32 %v2992, %v3011
      %v3013 = vadd.f32 %v3012, 1.0
      %v3014 = vrcp.pop %v3013
      %v3015 = vmul.f32 %v3013, %v3014
      %v3016 = vsub.f32 1.0, %v3015
      %v3017 = vmul.f32 %v3014, %v3016
      %v3018 = vadd.f32 %v3014, %v3017
      %vm3019 = vweird.f32 %v3013
      %vm3020 = vweird.f32 %v3014
      %vm3021 = vmor %vm3019, %vm3020
      %v3022 = vsel %vm3021, %v3014, %v3018
      %v3023 = vand.u32 2147483647, %v3013
      %vm3024 = vcmp.eq.f32.partialorder %v3023, 8.507059e+37
      %v3025 = vand.u32 %v3013, 2147483648
      %v3026 = vor.u32 1.1754944e-38, %v3025
      %v3027 = vsel %vm3024, %v3026, %v3022
      %v3028 = vmul.f32 %v3003, %v3027
      %v3029 = vmin.f32 %v3028, 1.0
      %v3030 = vmax.f32 %v3029, -1.0
      %v3031 = vmul.f32 %v2802, %v2802
      %v3032 = vmin.f32 16.0, %v3031
      %v3033 = vmul.f32 %v3032, 2.1237322e-06
      %v3034 = vadd.f32 %v3033, 0.00028619796
      %v3035 = vmul.f32 %v3032, %v3034
      %v3036 = vadd.f32 %v3035, 0.0036580483
      %v3037 = vmul.f32 %v3032, %v3036
      %v3038 = vadd.f32 %v3037, 0.05243302
      %v3039 = vmul.f32 %v3032, %v3038
      %v3040 = vadd.f32 %v3039, 0.18741608
      %v3041 = vmul.f32 %v3032, %v3040
      %v3042 = vadd.f32 %v3041, 1.1283791
      %v3043 = vmul.f32 %v2802, %v3042
      %v3044 = vmul.f32 %v3032, 3.8918573e-05
      %v3045 = vadd.f32 %v3044, 0.001143296
      %v3046 = vmul.f32 %v3032, %v3045
      %v3047 = vadd.f32 %v3046, 0.014752088
      %v3048 = vmul.f32 %v3032, %v3047
      %v3049 = vadd.f32 %v3048, 0.112945676
      %v3050 = vmul.f32 %v3032, %v3049
      %v3051 = vadd.f32 %v3050, 0.4994258
      %v3052 = vmul.f32 %v3032, %v3051
      %v3053 = vadd.f32 %v3052, 1.0
      %v3054 = vrcp.pop %v3053
      %v3055 = vmul.f32 %v3053, %v3054
      %v3056 = vsub.f32 1.0, %v3055
      %v3057 = vmul.f32 %v3054, %v3056
      %v3058 = vadd.f32 %v3054, %v3057
      %vm3059 = vweird.f32 %v3053
      %vm3060 = vweird.f32 %v3054
      %vm3061 = vmor %vm3059, %vm3060
      %v3062 = vsel %vm3061, %v3054, %v3058
      %v3063 = vand.u32 2147483647, %v3053
      %vm3064 = vcmp.eq.f32.partialorder %v3063, 8.507059e+37
      %v3065 = vand.u32 %v3053, 2147483648
      %v3066 = vor.u32 1.1754944e-38, %v3065
      %v3067 = vsel %vm3064, %v3066, %v3062
      %v3068 = vmul.f32 %v3043, %v3067
      %v3069 = vmin.f32 %v3068, 1.0
      %v3070 = vmax.f32 %v3069, -1.0
      %v3071 = vmul.f32 %v2803, %v2803
      %v3072 = vmin.f32 16.0, %v3071
      %v3073 = vmul.f32 %v3072, 2.1237322e-06
      %v3074 = vadd.f32 %v3073, 0.00028619796
      %v3075 = vmul.f32 %v3072, %v3074
      %v3076 = vadd.f32 %v3075, 0.0036580483
      %v3077 = vmul.f32 %v3072, %v3076
      %v3078 = vadd.f32 %v3077, 0.05243302
      %v3079 = vmul.f32 %v3072, %v3078
      %v3080 = vadd.f32 %v3079, 0.18741608
      %v3081 = vmul.f32 %v3072, %v3080
      %v3082 = vadd.f32 %v3081, 1.1283791
      %v3083 = vmul.f32 %v2803, %v3082
      %v3084 = vmul.f32 %v3072, 3.8918573e-05
      %v3085 = vadd.f32 %v3084, 0.001143296
      %v3086 = vmul.f32 %v3072, %v3085
      %v3087 = vadd.f32 %v3086, 0.014752088
      %v3088 = vmul.f32 %v3072, %v3087
      %v3089 = vadd.f32 %v3088, 0.112945676
      %v3090 = vmul.f32 %v3072, %v3089
      %v3091 = vadd.f32 %v3090, 0.4994258
      %v3092 = vmul.f32 %v3072, %v3091
      %v3093 = vadd.f32 %v3092, 1.0
      %v3094 = vrcp.pop %v3093
      %v3095 = vmul.f32 %v3093, %v3094
      %v3096 = vsub.f32 1.0, %v3095
      %v3097 = vmul.f32 %v3094, %v3096
      %v3098 = vadd.f32 %v3094, %v3097
      %vm3099 = vweird.f32 %v3093
      %vm3100 = vweird.f32 %v3094
      %vm3101 = vmor %vm3099, %vm3100
      %v3102 = vsel %vm3101, %v3094, %v3098
      %v3103 = vand.u32 2147483647, %v3093
      %vm3104 = vcmp.eq.f32.partialorder %v3103, 8.507059e+37
      %v3105 = vand.u32 %v3093, 2147483648
      %v3106 = vor.u32 1.1754944e-38, %v3105
      %v3107 = vsel %vm3104, %v3106, %v3102
      %v3108 = vmul.f32 %v3083, %v3107
      %v3109 = vmin.f32 %v3108, 1.0
      %v3110 = vmax.f32 %v3109, -1.0
      %v3111 = vmul.f32 %v2804, %v2804
      %v3112 = vmin.f32 16.0, %v3111
      %v3113 = vmul.f32 %v3112, 2.1237322e-06
      %v3114 = vadd.f32 %v3113, 0.00028619796
      %v3115 = vmul.f32 %v3112, %v3114
      %v3116 = vadd.f32 %v3115, 0.0036580483
      %v3117 = vmul.f32 %v3112, %v3116
      %v3118 = vadd.f32 %v3117, 0.05243302
      %v3119 = vmul.f32 %v3112, %v3118
      %v3120 = vadd.f32 %v3119, 0.18741608
      %v3121 = vmul.f32 %v3112, %v3120
      %v3122 = vadd.f32 %v3121, 1.1283791
      %v3123 = vmul.f32 %v2804, %v3122
      %v3124 = vmul.f32 %v3112, 3.8918573e-05
      %v3125 = vadd.f32 %v3124, 0.001143296
      %v3126 = vmul.f32 %v3112, %v3125
      %v3127 = vadd.f32 %v3126, 0.014752088
      %v3128 = vmul.f32 %v3112, %v3127
      %v3129 = vadd.f32 %v3128, 0.112945676
      %v3130 = vmul.f32 %v3112, %v3129
      %v3131 = vadd.f32 %v3130, 0.4994258
      %v3132 = vmul.f32 %v3112, %v3131
      %v3133 = vadd.f32 %v3132, 1.0
      %v3134 = vrcp.pop %v3133
      %v3135 = vmul.f32 %v3133, %v3134
      %v3136 = vsub.f32 1.0, %v3135
      %v3137 = vmul.f32 %v3134, %v3136
      %v3138 = vadd.f32 %v3134, %v3137
      %vm3139 = vweird.f32 %v3133
      %vm3140 = vweird.f32 %v3134
      %vm3141 = vmor %vm3139, %vm3140
      %v3142 = vsel %vm3141, %v3134, %v3138
      %v3143 = vand.u32 2147483647, %v3133
      %vm3144 = vcmp.eq.f32.partialorder %v3143, 8.507059e+37
      %v3145 = vand.u32 %v3133, 2147483648
      %v3146 = vor.u32 1.1754944e-38, %v3145
      %v3147 = vsel %vm3144, %v3146, %v3142
      %v3148 = vmul.f32 %v3123, %v3147
      %v3149 = vmin.f32 %v3148, 1.0
      %v3150 = vmax.f32 %v3149, -1.0
      %v3151 = vmul.f32 %v2805, %v2805
      %v3152 = vmin.f32 16.0, %v3151
      %v3153 = vmul.f32 %v3152, 2.1237322e-06
      %v3154 = vadd.f32 %v3153, 0.00028619796
      %v3155 = vmul.f32 %v3152, %v3154
      %v3156 = vadd.f32 %v3155, 0.0036580483
      %v3157 = vmul.f32 %v3152, %v3156
      %v3158 = vadd.f32 %v3157, 0.05243302
      %v3159 = vmul.f32 %v3152, %v3158
      %v3160 = vadd.f32 %v3159, 0.18741608
      %v3161 = vmul.f32 %v3152, %v3160
      %v3162 = vadd.f32 %v3161, 1.1283791
      %v3163 = vmul.f32 %v2805, %v3162
      %v3164 = vmul.f32 %v3152, 3.8918573e-05
      %v3165 = vadd.f32 %v3164, 0.001143296
      %v3166 = vmul.f32 %v3152, %v3165
      %v3167 = vadd.f32 %v3166, 0.014752088
      %v3168 = vmul.f32 %v3152, %v3167
      %v3169 = vadd.f32 %v3168, 0.112945676
      %v3170 = vmul.f32 %v3152, %v3169
      %v3171 = vadd.f32 %v3170, 0.4994258
      %v3172 = vmul.f32 %v3152, %v3171
      %v3173 = vadd.f32 %v3172, 1.0
      %v3174 = vrcp.pop %v3173
      %v3175 = vmul.f32 %v3173, %v3174
      %v3176 = vsub.f32 1.0, %v3175
      %v3177 = vmul.f32 %v3174, %v3176
      %v3178 = vadd.f32 %v3174, %v3177
      %vm3179 = vweird.f32 %v3173
      %vm3180 = vweird.f32 %v3174
      %vm3181 = vmor %vm3179, %vm3180
      %v3182 = vsel %vm3181, %v3174, %v3178
      %v3183 = vand.u32 2147483647, %v3173
      %vm3184 = vcmp.eq.f32.partialorder %v3183, 8.507059e+37
      %v3185 = vand.u32 %v3173, 2147483648
      %v3186 = vor.u32 1.1754944e-38, %v3185
      %v3187 = vsel %vm3184, %v3186, %v3182
      %v3188 = vmul.f32 %v3163, %v3187
      %v3189 = vmin.f32 %v3188, 1.0
      %v3190 = vmax.f32 %v3189, -1.0
      %v3191 = vmul.f32 %v2806, %v2806
      %v3192 = vmin.f32 16.0, %v3191
      %v3193 = vmul.f32 %v3192, 2.1237322e-06
      %v3194 = vadd.f32 %v3193, 0.00028619796
      %v3195 = vmul.f32 %v3192, %v3194
      %v3196 = vadd.f32 %v3195, 0.0036580483
      %v3197 = vmul.f32 %v3192, %v3196
      %v3198 = vadd.f32 %v3197, 0.05243302
      %v3199 = vmul.f32 %v3192, %v3198
      %v3200 = vadd.f32 %v3199, 0.18741608
      %v3201 = vmul.f32 %v3192, %v3200
      %v3202 = vadd.f32 %v3201, 1.1283791
      %v3203 = vmul.f32 %v2806, %v3202
      %v3204 = vmul.f32 %v3192, 3.8918573e-05
      %v3205 = vadd.f32 %v3204, 0.001143296
      %v3206 = vmul.f32 %v3192, %v3205
      %v3207 = vadd.f32 %v3206, 0.014752088
      %v3208 = vmul.f32 %v3192, %v3207
      %v3209 = vadd.f32 %v3208, 0.112945676
      %v3210 = vmul.f32 %v3192, %v3209
      %v3211 = vadd.f32 %v3210, 0.4994258
      %v3212 = vmul.f32 %v3192, %v3211
      %v3213 = vadd.f32 %v3212, 1.0
      %v3214 = vrcp.pop %v3213
      %v3215 = vmul.f32 %v3213, %v3214
      %v3216 = vsub.f32 1.0, %v3215
      %v3217 = vmul.f32 %v3214, %v3216
      %v3218 = vadd.f32 %v3214, %v3217
      %vm3219 = vweird.f32 %v3213
      %vm3220 = vweird.f32 %v3214
      %vm3221 = vmor %vm3219, %vm3220
      %v3222 = vsel %vm3221, %v3214, %v3218
      %v3223 = vand.u32 2147483647, %v3213
      %vm3224 = vcmp.eq.f32.partialorder %v3223, 8.507059e+37
      %v3225 = vand.u32 %v3213, 2147483648
      %v3226 = vor.u32 1.1754944e-38, %v3225
      %v3227 = vsel %vm3224, %v3226, %v3222
      %v3228 = vmul.f32 %v3203, %v3227
      %v3229 = vmin.f32 %v3228, 1.0
      %v3230 = vmax.f32 %v3229, -1.0
      %v3231 = vmul.f32 %v2807, %v2807
      %v3232 = vmin.f32 16.0, %v3231
      %v3233 = vmul.f32 %v3232, 2.1237322e-06
      %v3234 = vadd.f32 %v3233, 0.00028619796
      %v3235 = vmul.f32 %v3232, %v3234
      %v3236 = vadd.f32 %v3235, 0.0036580483
      %v3237 = vmul.f32 %v3232, %v3236
      %v3238 = vadd.f32 %v3237, 0.05243302
      %v3239 = vmul.f32 %v3232, %v3238
      %v3240 = vadd.f32 %v3239, 0.18741608
      %v3241 = vmul.f32 %v3232, %v3240
      %v3242 = vadd.f32 %v3241, 1.1283791
      %v3243 = vmul.f32 %v2807, %v3242
      %v3244 = vmul.f32 %v3232, 3.8918573e-05
      %v3245 = vadd.f32 %v3244, 0.001143296
      %v3246 = vmul.f32 %v3232, %v3245
      %v3247 = vadd.f32 %v3246, 0.014752088
      %v3248 = vmul.f32 %v3232, %v3247
      %v3249 = vadd.f32 %v3248, 0.112945676
      %v3250 = vmul.f32 %v3232, %v3249
      %v3251 = vadd.f32 %v3250, 0.4994258
      %v3252 = vmul.f32 %v3232, %v3251
      %v3253 = vadd.f32 %v3252, 1.0
      %v3254 = vrcp.pop %v3253
      %v3255 = vmul.f32 %v3253, %v3254
      %v3256 = vsub.f32 1.0, %v3255
      %v3257 = vmul.f32 %v3254, %v3256
      %v3258 = vadd.f32 %v3254, %v3257
      %vm3259 = vweird.f32 %v3253
      %vm3260 = vweird.f32 %v3254
      %vm3261 = vmor %vm3259, %vm3260
      %v3262 = vsel %vm3261, %v3254, %v3258
      %v3263 = vand.u32 2147483647, %v3253
      %vm3264 = vcmp.eq.f32.partialorder %v3263, 8.507059e+37
      %v3265 = vand.u32 %v3253, 2147483648
      %v3266 = vor.u32 1.1754944e-38, %v3265
      %v3267 = vsel %vm3264, %v3266, %v3262
      %v3268 = vmul.f32 %v3243, %v3267
      %v3269 = vmin.f32 %v3268, 1.0
      %v3270 = vmax.f32 %v3269, -1.0
      %v3271 = vmul.f32 %v2808, %v2808
      %v3272 = vmin.f32 16.0, %v3271
      %v3273 = vmul.f32 %v3272, 2.1237322e-06
      %v3274 = vadd.f32 %v3273, 0.00028619796
      %v3275 = vmul.f32 %v3272, %v3274
      %v3276 = vadd.f32 %v3275, 0.0036580483
      %v3277 = vmul.f32 %v3272, %v3276
      %v3278 = vadd.f32 %v3277, 0.05243302
      %v3279 = vmul.f32 %v3272, %v3278
      %v3280 = vadd.f32 %v3279, 0.18741608
      %v3281 = vmul.f32 %v3272, %v3280
      %v3282 = vadd.f32 %v3281, 1.1283791
      %v3283 = vmul.f32 %v2808, %v3282
      %v3284 = vmul.f32 %v3272, 3.8918573e-05
      %v3285 = vadd.f32 %v3284, 0.001143296
      %v3286 = vmul.f32 %v3272, %v3285
      %v3287 = vadd.f32 %v3286, 0.014752088
      %v3288 = vmul.f32 %v3272, %v3287
      %v3289 = vadd.f32 %v3288, 0.112945676
      %v3290 = vmul.f32 %v3272, %v3289
      %v3291 = vadd.f32 %v3290, 0.4994258
      %v3292 = vmul.f32 %v3272, %v3291
      %v3293 = vadd.f32 %v3292, 1.0
      %v3294 = vrcp.pop %v3293
      %v3295 = vmul.f32 %v3293, %v3294
      %v3296 = vsub.f32 1.0, %v3295
      %v3297 = vmul.f32 %v3294, %v3296
      %v3298 = vadd.f32 %v3294, %v3297
      %vm3299 = vweird.f32 %v3293
      %vm3300 = vweird.f32 %v3294
      %vm3301 = vmor %vm3299, %vm3300
      %v3302 = vsel %vm3301, %v3294, %v3298
      %v3303 = vand.u32 2147483647, %v3293
      %vm3304 = vcmp.eq.f32.partialorder %v3303, 8.507059e+37
      %v3305 = vand.u32 %v3293, 2147483648
      %v3306 = vor.u32 1.1754944e-38, %v3305
      %v3307 = vsel %vm3304, %v3306, %v3302
      %v3308 = vmul.f32 %v3283, %v3307
      %v3309 = vmin.f32 %v3308, 1.0
      %v3310 = vmax.f32 %v3309, -1.0
      %v3311 = vmul.f32 %v2809, %v2809
      %v3312 = vmin.f32 16.0, %v3311
      %v3313 = vmul.f32 %v3312, 2.1237322e-06
      %v3314 = vadd.f32 %v3313, 0.00028619796
      %v3315 = vmul.f32 %v3312, %v3314
      %v3316 = vadd.f32 %v3315, 0.0036580483
      %v3317 = vmul.f32 %v3312, %v3316
      %v3318 = vadd.f32 %v3317, 0.05243302
      %v3319 = vmul.f32 %v3312, %v3318
      %v3320 = vadd.f32 %v3319, 0.18741608
      %v3321 = vmul.f32 %v3312, %v3320
      %v3322 = vadd.f32 %v3321, 1.1283791
      %v3323 = vmul.f32 %v2809, %v3322
      %v3324 = vmul.f32 %v3312, 3.8918573e-05
      %v3325 = vadd.f32 %v3324, 0.001143296
      %v3326 = vmul.f32 %v3312, %v3325
      %v3327 = vadd.f32 %v3326, 0.014752088
      %v3328 = vmul.f32 %v3312, %v3327
      %v3329 = vadd.f32 %v3328, 0.112945676
      %v3330 = vmul.f32 %v3312, %v3329
      %v3331 = vadd.f32 %v3330, 0.4994258
      %v3332 = vmul.f32 %v3312, %v3331
      %v3333 = vadd.f32 %v3332, 1.0
      %v3334 = vrcp.pop %v3333
      %v3335 = vmul.f32 %v3333, %v3334
      %v3336 = vsub.f32 1.0, %v3335
      %v3337 = vmul.f32 %v3334, %v3336
      %v3338 = vadd.f32 %v3334, %v3337
      %vm3339 = vweird.f32 %v3333
      %vm3340 = vweird.f32 %v3334
      %vm3341 = vmor %vm3339, %vm3340
      %v3342 = vsel %vm3341, %v3334, %v3338
      %v3343 = vand.u32 2147483647, %v3333
      %vm3344 = vcmp.eq.f32.partialorder %v3343, 8.507059e+37
      %v3345 = vand.u32 %v3333, 2147483648
      %v3346 = vor.u32 1.1754944e-38, %v3345
      %v3347 = vsel %vm3344, %v3346, %v3342
      %v3348 = vmul.f32 %v3323, %v3347
      %v3349 = vmin.f32 %v3348, 1.0
      %v3350 = vmax.f32 %v3349, -1.0
      %v3351 = vmul.f32 %v2810, %v2810
      %v3352 = vmin.f32 16.0, %v3351
      %v3353 = vmul.f32 %v3352, 2.1237322e-06
      %v3354 = vadd.f32 %v3353, 0.00028619796
      %v3355 = vmul.f32 %v3352, %v3354
      %v3356 = vadd.f32 %v3355, 0.0036580483
      %v3357 = vmul.f32 %v3352, %v3356
      %v3358 = vadd.f32 %v3357, 0.05243302
      %v3359 = vmul.f32 %v3352, %v3358
      %v3360 = vadd.f32 %v3359, 0.18741608
      %v3361 = vmul.f32 %v3352, %v3360
      %v3362 = vadd.f32 %v3361, 1.1283791
      %v3363 = vmul.f32 %v2810, %v3362
      %v3364 = vmul.f32 %v3352, 3.8918573e-05
      %v3365 = vadd.f32 %v3364, 0.001143296
      %v3366 = vmul.f32 %v3352, %v3365
      %v3367 = vadd.f32 %v3366, 0.014752088
      %v3368 = vmul.f32 %v3352, %v3367
      %v3369 = vadd.f32 %v3368, 0.112945676
      %v3370 = vmul.f32 %v3352, %v3369
      %v3371 = vadd.f32 %v3370, 0.4994258
      %v3372 = vmul.f32 %v3352, %v3371
      %v3373 = vadd.f32 %v3372, 1.0
      %v3374 = vrcp.pop %v3373
      %v3375 = vmul.f32 %v3373, %v3374
      %v3376 = vsub.f32 1.0, %v3375
      %v3377 = vmul.f32 %v3374, %v3376
      %v3378 = vadd.f32 %v3374, %v3377
      %vm3379 = vweird.f32 %v3373
      %vm3380 = vweird.f32 %v3374
      %vm3381 = vmor %vm3379, %vm3380
      %v3382 = vsel %vm3381, %v3374, %v3378
      %v3383 = vand.u32 2147483647, %v3373
      %vm3384 = vcmp.eq.f32.partialorder %v3383, 8.507059e+37
      %v3385 = vand.u32 %v3373, 2147483648
      %v3386 = vor.u32 1.1754944e-38, %v3385
      %v3387 = vsel %vm3384, %v3386, %v3382
      %v3388 = vmul.f32 %v3363, %v3387
      %v3389 = vmin.f32 %v3388, 1.0
      %v3390 = vmax.f32 %v3389, -1.0
      %v3391 = vmul.f32 %v2811, %v2811
      %v3392 = vmin.f32 16.0, %v3391
      %v3393 = vmul.f32 %v3392, 2.1237322e-06
      %v3394 = vadd.f32 %v3393, 0.00028619796
      %v3395 = vmul.f32 %v3392, %v3394
      %v3396 = vadd.f32 %v3395, 0.0036580483
      %v3397 = vmul.f32 %v3392, %v3396
      %v3398 = vadd.f32 %v3397, 0.05243302
      %v3399 = vmul.f32 %v3392, %v3398
      %v3400 = vadd.f32 %v3399, 0.18741608
      %v3401 = vmul.f32 %v3392, %v3400
      %v3402 = vadd.f32 %v3401, 1.1283791
      %v3403 = vmul.f32 %v2811, %v3402
      %v3404 = vmul.f32 %v3392, 3.8918573e-05
      %v3405 = vadd.f32 %v3404, 0.001143296
      %v3406 = vmul.f32 %v3392, %v3405
      %v3407 = vadd.f32 %v3406, 0.014752088
      %v3408 = vmul.f32 %v3392, %v3407
      %v3409 = vadd.f32 %v3408, 0.112945676
      %v3410 = vmul.f32 %v3392, %v3409
      %v3411 = vadd.f32 %v3410, 0.4994258
      %v3412 = vmul.f32 %v3392, %v3411
      %v3413 = vadd.f32 %v3412, 1.0
      %v3414 = vrcp.pop %v3413
      %v3415 = vmul.f32 %v3413, %v3414
      %v3416 = vsub.f32 1.0, %v3415
      %v3417 = vmul.f32 %v3414, %v3416
      %v3418 = vadd.f32 %v3414, %v3417
      %vm3419 = vweird.f32 %v3413
      %vm3420 = vweird.f32 %v3414
      %vm3421 = vmor %vm3419, %vm3420
      %v3422 = vsel %vm3421, %v3414, %v3418
      %v3423 = vand.u32 2147483647, %v3413
      %vm3424 = vcmp.eq.f32.partialorder %v3423, 8.507059e+37
      %v3425 = vand.u32 %v3413, 2147483648
      %v3426 = vor.u32 1.1754944e-38, %v3425
      %v3427 = vsel %vm3424, %v3426, %v3422
      %v3428 = vmul.f32 %v3403, %v3427
      %v3429 = vmin.f32 %v3428, 1.0
      %v3430 = vmax.f32 %v3429, -1.0
      %v3431 = vmul.f32 %v2812, %v2812
      %v3432 = vmin.f32 16.0, %v3431
      %v3433 = vmul.f32 %v3432, 2.1237322e-06
      %v3434 = vadd.f32 %v3433, 0.00028619796
      %v3435 = vmul.f32 %v3432, %v3434
      %v3436 = vadd.f32 %v3435, 0.0036580483
      %v3437 = vmul.f32 %v3432, %v3436
      %v3438 = vadd.f32 %v3437, 0.05243302
      %v3439 = vmul.f32 %v3432, %v3438
      %v3440 = vadd.f32 %v3439, 0.18741608
      %v3441 = vmul.f32 %v3432, %v3440
      %v3442 = vadd.f32 %v3441, 1.1283791
      %v3443 = vmul.f32 %v2812, %v3442
      %v3444 = vmul.f32 %v3432, 3.8918573e-05
      %v3445 = vadd.f32 %v3444, 0.001143296
      %v3446 = vmul.f32 %v3432, %v3445
      %v3447 = vadd.f32 %v3446, 0.014752088
      %v3448 = vmul.f32 %v3432, %v3447
      %v3449 = vadd.f32 %v3448, 0.112945676
      %v3450 = vmul.f32 %v3432, %v3449
      %v3451 = vadd.f32 %v3450, 0.4994258
      %v3452 = vmul.f32 %v3432, %v3451
      %v3453 = vadd.f32 %v3452, 1.0
      %v3454 = vrcp.pop %v3453
      %v3455 = vmul.f32 %v3453, %v3454
      %v3456 = vsub.f32 1.0, %v3455
      %v3457 = vmul.f32 %v3454, %v3456
      %v3458 = vadd.f32 %v3454, %v3457
      %vm3459 = vweird.f32 %v3453
      %vm3460 = vweird.f32 %v3454
      %vm3461 = vmor %vm3459, %vm3460
      %v3462 = vsel %vm3461, %v3454, %v3458
      %v3463 = vand.u32 2147483647, %v3453
      %vm3464 = vcmp.eq.f32.partialorder %v3463, 8.507059e+37
      %v3465 = vand.u32 %v3453, 2147483648
      %v3466 = vor.u32 1.1754944e-38, %v3465
      %v3467 = vsel %vm3464, %v3466, %v3462
      %v3468 = vmul.f32 %v3443, %v3467
      %v3469 = vmin.f32 %v3468, 1.0
      %v3470 = vmax.f32 %v3469, -1.0
      %v3471 = vmul.f32 %v2813, %v2813
      %v3472 = vmin.f32 16.0, %v3471
      %v3473 = vmul.f32 %v3472, 2.1237322e-06
      %v3474 = vadd.f32 %v3473, 0.00028619796
      %v3475 = vmul.f32 %v3472, %v3474
      %v3476 = vadd.f32 %v3475, 0.0036580483
      %v3477 = vmul.f32 %v3472, %v3476
      %v3478 = vadd.f32 %v3477, 0.05243302
      %v3479 = vmul.f32 %v3472, %v3478
      %v3480 = vadd.f32 %v3479, 0.18741608
      %v3481 = vmul.f32 %v3472, %v3480
      %v3482 = vadd.f32 %v3481, 1.1283791
      %v3483 = vmul.f32 %v2813, %v3482
      %v3484 = vmul.f32 %v3472, 3.8918573e-05
      %v3485 = vadd.f32 %v3484, 0.001143296
      %v3486 = vmul.f32 %v3472, %v3485
      %v3487 = vadd.f32 %v3486, 0.014752088
      %v3488 = vmul.f32 %v3472, %v3487
      %v3489 = vadd.f32 %v3488, 0.112945676
      %v3490 = vmul.f32 %v3472, %v3489
      %v3491 = vadd.f32 %v3490, 0.4994258
      %v3492 = vmul.f32 %v3472, %v3491
      %v3493 = vadd.f32 %v3492, 1.0
      %v3494 = vrcp.pop %v3493
      %v3495 = vmul.f32 %v3493, %v3494
      %v3496 = vsub.f32 1.0, %v3495
      %v3497 = vmul.f32 %v3494, %v3496
      %v3498 = vadd.f32 %v3494, %v3497
      %vm3499 = vweird.f32 %v3493
      %vm3500 = vweird.f32 %v3494
      %vm3501 = vmor %vm3499, %vm3500
      %v3502 = vsel %vm3501, %v3494, %v3498
      %v3503 = vand.u32 2147483647, %v3493
      %vm3504 = vcmp.eq.f32.partialorder %v3503, 8.507059e+37
      %v3505 = vand.u32 %v3493, 2147483648
      %v3506 = vor.u32 1.1754944e-38, %v3505
      %v3507 = vsel %vm3504, %v3506, %v3502
      %v3508 = vmul.f32 %v3483, %v3507
      %v3509 = vmin.f32 %v3508, 1.0
      %v3510 = vmax.f32 %v3509, -1.0
      %v3511 = vmul.f32 %v2814, %v2814
      %v3512 = vmin.f32 16.0, %v3511
      %v3513 = vmul.f32 %v3512, 2.1237322e-06
      %v3514 = vadd.f32 %v3513, 0.00028619796
      %v3515 = vmul.f32 %v3512, %v3514
      %v3516 = vadd.f32 %v3515, 0.0036580483
      %v3517 = vmul.f32 %v3512, %v3516
      %v3518 = vadd.f32 %v3517, 0.05243302
      %v3519 = vmul.f32 %v3512, %v3518
      %v3520 = vadd.f32 %v3519, 0.18741608
      %v3521 = vmul.f32 %v3512, %v3520
      %v3522 = vadd.f32 %v3521, 1.1283791
      %v3523 = vmul.f32 %v2814, %v3522
      %v3524 = vmul.f32 %v3512, 3.8918573e-05
      %v3525 = vadd.f32 %v3524, 0.001143296
      %v3526 = vmul.f32 %v3512, %v3525
      %v3527 = vadd.f32 %v3526, 0.014752088
      %v3528 = vmul.f32 %v3512, %v3527
      %v3529 = vadd.f32 %v3528, 0.112945676
      %v3530 = vmul.f32 %v3512, %v3529
      %v3531 = vadd.f32 %v3530, 0.4994258
      %v3532 = vmul.f32 %v3512, %v3531
      %v3533 = vadd.f32 %v3532, 1.0
      %v3534 = vrcp.pop %v3533
      %v3535 = vmul.f32 %v3533, %v3534
      %v3536 = vsub.f32 1.0, %v3535
      %v3537 = vmul.f32 %v3534, %v3536
      %v3538 = vadd.f32 %v3534, %v3537
      %vm3539 = vweird.f32 %v3533
      %vm3540 = vweird.f32 %v3534
      %vm3541 = vmor %vm3539, %vm3540
      %v3542 = vsel %vm3541, %v3534, %v3538
      %v3543 = vand.u32 2147483647, %v3533
      %vm3544 = vcmp.eq.f32.partialorder %v3543, 8.507059e+37
      %v3545 = vand.u32 %v3533, 2147483648
      %v3546 = vor.u32 1.1754944e-38, %v3545
      %v3547 = vsel %vm3544, %v3546, %v3542
      %v3548 = vmul.f32 %v3523, %v3547
      %v3549 = vmin.f32 %v3548, 1.0
      %v3550 = vmax.f32 %v3549, -1.0
      %v3551 = vmul.f32 %v2815, %v2815
      %v3552 = vmin.f32 16.0, %v3551
      %v3553 = vmul.f32 %v3552, 2.1237322e-06
      %v3554 = vadd.f32 %v3553, 0.00028619796
      %v3555 = vmul.f32 %v3552, %v3554
      %v3556 = vadd.f32 %v3555, 0.0036580483
      %v3557 = vmul.f32 %v3552, %v3556
      %v3558 = vadd.f32 %v3557, 0.05243302
      %v3559 = vmul.f32 %v3552, %v3558
      %v3560 = vadd.f32 %v3559, 0.18741608
      %v3561 = vmul.f32 %v3552, %v3560
      %v3562 = vadd.f32 %v3561, 1.1283791
      %v3563 = vmul.f32 %v2815, %v3562
      %v3564 = vmul.f32 %v3552, 3.8918573e-05
      %v3565 = vadd.f32 %v3564, 0.001143296
      %v3566 = vmul.f32 %v3552, %v3565
      %v3567 = vadd.f32 %v3566, 0.014752088
      %v3568 = vmul.f32 %v3552, %v3567
      %v3569 = vadd.f32 %v3568, 0.112945676
      %v3570 = vmul.f32 %v3552, %v3569
      %v3571 = vadd.f32 %v3570, 0.4994258
      %v3572 = vmul.f32 %v3552, %v3571
      %v3573 = vadd.f32 %v3572, 1.0
      %v3574 = vrcp.pop %v3573
      %v3575 = vmul.f32 %v3573, %v3574
      %v3576 = vsub.f32 1.0, %v3575
      %v3577 = vmul.f32 %v3574, %v3576
      %v3578 = vadd.f32 %v3574, %v3577
      %vm3579 = vweird.f32 %v3573
      %vm3580 = vweird.f32 %v3574
      %vm3581 = vmor %vm3579, %vm3580
      %v3582 = vsel %vm3581, %v3574, %v3578
      %v3583 = vand.u32 2147483647, %v3573
      %vm3584 = vcmp.eq.f32.partialorder %v3583, 8.507059e+37
      %v3585 = vand.u32 %v3573, 2147483648
      %v3586 = vor.u32 1.1754944e-38, %v3585
      %v3587 = vsel %vm3584, %v3586, %v3582
      %v3588 = vmul.f32 %v3563, %v3587
      %v3589 = vmin.f32 %v3588, 1.0
      %v3590 = vmax.f32 %v3589, -1.0
      %v3591 = vmul.f32 %v2816, %v2816
      %v3592 = vmin.f32 16.0, %v3591
      %v3593 = vmul.f32 %v3592, 2.1237322e-06
      %v3594 = vadd.f32 %v3593, 0.00028619796
      %v3595 = vmul.f32 %v3592, %v3594
      %v3596 = vadd.f32 %v3595, 0.0036580483
      %v3597 = vmul.f32 %v3592, %v3596
      %v3598 = vadd.f32 %v3597, 0.05243302
      %v3599 = vmul.f32 %v3592, %v3598
      %v3600 = vadd.f32 %v3599, 0.18741608
      %v3601 = vmul.f32 %v3592, %v3600
      %v3602 = vadd.f32 %v3601, 1.1283791
      %v3603 = vmul.f32 %v2816, %v3602
      %v3604 = vmul.f32 %v3592, 3.8918573e-05
      %v3605 = vadd.f32 %v3604, 0.001143296
      %v3606 = vmul.f32 %v3592, %v3605
      %v3607 = vadd.f32 %v3606, 0.014752088
      %v3608 = vmul.f32 %v3592, %v3607
      %v3609 = vadd.f32 %v3608, 0.112945676
      %v3610 = vmul.f32 %v3592, %v3609
      %v3611 = vadd.f32 %v3610, 0.4994258
      %v3612 = vmul.f32 %v3592, %v3611
      %v3613 = vadd.f32 %v3612, 1.0
      %v3614 = vrcp.pop %v3613
      %v3615 = vmul.f32 %v3613, %v3614
      %v3616 = vsub.f32 1.0, %v3615
      %v3617 = vmul.f32 %v3614, %v3616
      %v3618 = vadd.f32 %v3614, %v3617
      %vm3619 = vweird.f32 %v3613
      %vm3620 = vweird.f32 %v3614
      %vm3621 = vmor %vm3619, %vm3620
      %v3622 = vsel %vm3621, %v3614, %v3618
      %v3623 = vand.u32 2147483647, %v3613
      %vm3624 = vcmp.eq.f32.partialorder %v3623, 8.507059e+37
      %v3625 = vand.u32 %v3613, 2147483648
      %v3626 = vor.u32 1.1754944e-38, %v3625
      %v3627 = vsel %vm3624, %v3626, %v3622
      %v3628 = vmul.f32 %v3603, %v3627
      %v3629 = vmin.f32 %v3628, 1.0
      %v3630 = vmax.f32 %v3629, -1.0
      %v3631 = vmul.f32 %v2817, %v2817
      %v3632 = vmin.f32 16.0, %v3631
      %v3633 = vmul.f32 %v3632, 2.1237322e-06
      %v3634 = vadd.f32 %v3633, 0.00028619796
      %v3635 = vmul.f32 %v3632, %v3634
      %v3636 = vadd.f32 %v3635, 0.0036580483
      %v3637 = vmul.f32 %v3632, %v3636
      %v3638 = vadd.f32 %v3637, 0.05243302
      %v3639 = vmul.f32 %v3632, %v3638
      %v3640 = vadd.f32 %v3639, 0.18741608
      %v3641 = vmul.f32 %v3632, %v3640
      %v3642 = vadd.f32 %v3641, 1.1283791
      %v3643 = vmul.f32 %v2817, %v3642
      %v3644 = vmul.f32 %v3632, 3.8918573e-05
      %v3645 = vadd.f32 %v3644, 0.001143296
      %v3646 = vmul.f32 %v3632, %v3645
      %v3647 = vadd.f32 %v3646, 0.014752088
      %v3648 = vmul.f32 %v3632, %v3647
      %v3649 = vadd.f32 %v3648, 0.112945676
      %v3650 = vmul.f32 %v3632, %v3649
      %v3651 = vadd.f32 %v3650, 0.4994258
      %v3652 = vmul.f32 %v3632, %v3651
      %v3653 = vadd.f32 %v3652, 1.0
      %v3654 = vrcp.pop %v3653
      %v3655 = vmul.f32 %v3653, %v3654
      %v3656 = vsub.f32 1.0, %v3655
      %v3657 = vmul.f32 %v3654, %v3656
      %v3658 = vadd.f32 %v3654, %v3657
      %vm3659 = vweird.f32 %v3653
      %vm3660 = vweird.f32 %v3654
      %vm3661 = vmor %vm3659, %vm3660
      %v3662 = vsel %vm3661, %v3654, %v3658
      %v3663 = vand.u32 2147483647, %v3653
      %vm3664 = vcmp.eq.f32.partialorder %v3663, 8.507059e+37
      %v3665 = vand.u32 %v3653, 2147483648
      %v3666 = vor.u32 1.1754944e-38, %v3665
      %v3667 = vsel %vm3664, %v3666, %v3662
      %v3668 = vmul.f32 %v3643, %v3667
      %v3669 = vmin.f32 %v3668, 1.0
      %v3670 = vmax.f32 %v3669, -1.0
      %v3671 = vmul.f32 %v2818, %v2818
      %v3672 = vmin.f32 16.0, %v3671
      %v3673 = vmul.f32 %v3672, 2.1237322e-06
      %v3674 = vadd.f32 %v3673, 0.00028619796
      %v3675 = vmul.f32 %v3672, %v3674
      %v3676 = vadd.f32 %v3675, 0.0036580483
      %v3677 = vmul.f32 %v3672, %v3676
      %v3678 = vadd.f32 %v3677, 0.05243302
      %v3679 = vmul.f32 %v3672, %v3678
      %v3680 = vadd.f32 %v3679, 0.18741608
      %v3681 = vmul.f32 %v3672, %v3680
      %v3682 = vadd.f32 %v3681, 1.1283791
      %v3683 = vmul.f32 %v2818, %v3682
      %v3684 = vmul.f32 %v3672, 3.8918573e-05
      %v3685 = vadd.f32 %v3684, 0.001143296
      %v3686 = vmul.f32 %v3672, %v3685
      %v3687 = vadd.f32 %v3686, 0.014752088
      %v3688 = vmul.f32 %v3672, %v3687
      %v3689 = vadd.f32 %v3688, 0.112945676
      %v3690 = vmul.f32 %v3672, %v3689
      %v3691 = vadd.f32 %v3690, 0.4994258
      %v3692 = vmul.f32 %v3672, %v3691
      %v3693 = vadd.f32 %v3692, 1.0
      %v3694 = vrcp.pop %v3693
      %v3695 = vmul.f32 %v3693, %v3694
      %v3696 = vsub.f32 1.0, %v3695
      %v3697 = vmul.f32 %v3694, %v3696
      %v3698 = vadd.f32 %v3694, %v3697
      %vm3699 = vweird.f32 %v3693
      %vm3700 = vweird.f32 %v3694
      %vm3701 = vmor %vm3699, %vm3700
      %v3702 = vsel %vm3701, %v3694, %v3698
      %v3703 = vand.u32 2147483647, %v3693
      %vm3704 = vcmp.eq.f32.partialorder %v3703, 8.507059e+37
      %v3705 = vand.u32 %v3693, 2147483648
      %v3706 = vor.u32 1.1754944e-38, %v3705
      %v3707 = vsel %vm3704, %v3706, %v3702
      %v3708 = vmul.f32 %v3683, %v3707
      %v3709 = vmin.f32 %v3708, 1.0
      %v3710 = vmax.f32 %v3709, -1.0
      %v3711 = vmul.f32 %v2819, %v2819
      %v3712 = vmin.f32 16.0, %v3711
      %v3713 = vmul.f32 %v3712, 2.1237322e-06
      %v3714 = vadd.f32 %v3713, 0.00028619796
      %v3715 = vmul.f32 %v3712, %v3714
      %v3716 = vadd.f32 %v3715, 0.0036580483
      %v3717 = vmul.f32 %v3712, %v3716
      %v3718 = vadd.f32 %v3717, 0.05243302
      %v3719 = vmul.f32 %v3712, %v3718
      %v3720 = vadd.f32 %v3719, 0.18741608
      %v3721 = vmul.f32 %v3712, %v3720
      %v3722 = vadd.f32 %v3721, 1.1283791
      %v3723 = vmul.f32 %v2819, %v3722
      %v3724 = vmul.f32 %v3712, 3.8918573e-05
      %v3725 = vadd.f32 %v3724, 0.001143296
      %v3726 = vmul.f32 %v3712, %v3725
      %v3727 = vadd.f32 %v3726, 0.014752088
      %v3728 = vmul.f32 %v3712, %v3727
      %v3729 = vadd.f32 %v3728, 0.112945676
      %v3730 = vmul.f32 %v3712, %v3729
      %v3731 = vadd.f32 %v3730, 0.4994258
      %v3732 = vmul.f32 %v3712, %v3731
      %v3733 = vadd.f32 %v3732, 1.0
      %v3734 = vrcp.pop %v3733
      %v3735 = vmul.f32 %v3733, %v3734
      %v3736 = vsub.f32 1.0, %v3735
      %v3737 = vmul.f32 %v3734, %v3736
      %v3738 = vadd.f32 %v3734, %v3737
      %vm3739 = vweird.f32 %v3733
      %vm3740 = vweird.f32 %v3734
      %vm3741 = vmor %vm3739, %vm3740
      %v3742 = vsel %vm3741, %v3734, %v3738
      %v3743 = vand.u32 2147483647, %v3733
      %vm3744 = vcmp.eq.f32.partialorder %v3743, 8.507059e+37
      %v3745 = vand.u32 %v3733, 2147483648
      %v3746 = vor.u32 1.1754944e-38, %v3745
      %v3747 = vsel %vm3744, %v3746, %v3742
      %v3748 = vmul.f32 %v3723, %v3747
      %v3749 = vmin.f32 %v3748, 1.0
      %v3750 = vmax.f32 %v3749, -1.0
      %v3751 = vmul.f32 %v2820, %v2820
      %v3752 = vmin.f32 16.0, %v3751
      %v3753 = vmul.f32 %v3752, 2.1237322e-06
      %v3754 = vadd.f32 %v3753, 0.00028619796
      %v3755 = vmul.f32 %v3752, %v3754
      %v3756 = vadd.f32 %v3755, 0.0036580483
      %v3757 = vmul.f32 %v3752, %v3756
      %v3758 = vadd.f32 %v3757, 0.05243302
      %v3759 = vmul.f32 %v3752, %v3758
      %v3760 = vadd.f32 %v3759, 0.18741608
      %v3761 = vmul.f32 %v3752, %v3760
      %v3762 = vadd.f32 %v3761, 1.1283791
      %v3763 = vmul.f32 %v2820, %v3762
      %v3764 = vmul.f32 %v3752, 3.8918573e-05
      %v3765 = vadd.f32 %v3764, 0.001143296
      %v3766 = vmul.f32 %v3752, %v3765
      %v3767 = vadd.f32 %v3766, 0.014752088
      %v3768 = vmul.f32 %v3752, %v3767
      %v3769 = vadd.f32 %v3768, 0.112945676
      %v3770 = vmul.f32 %v3752, %v3769
      %v3771 = vadd.f32 %v3770, 0.4994258
      %v3772 = vmul.f32 %v3752, %v3771
      %v3773 = vadd.f32 %v3772, 1.0
      %v3774 = vrcp.pop %v3773
      %v3775 = vmul.f32 %v3773, %v3774
      %v3776 = vsub.f32 1.0, %v3775
      %v3777 = vmul.f32 %v3774, %v3776
      %v3778 = vadd.f32 %v3774, %v3777
      %vm3779 = vweird.f32 %v3773
      %vm3780 = vweird.f32 %v3774
      %vm3781 = vmor %vm3779, %vm3780
      %v3782 = vsel %vm3781, %v3774, %v3778
      %v3783 = vand.u32 2147483647, %v3773
      %vm3784 = vcmp.eq.f32.partialorder %v3783, 8.507059e+37
      %v3785 = vand.u32 %v3773, 2147483648
      %v3786 = vor.u32 1.1754944e-38, %v3785
      %v3787 = vsel %vm3784, %v3786, %v3782
      %v3788 = vmul.f32 %v3763, %v3787
      %v3789 = vmin.f32 %v3788, 1.0
      %v3790 = vmax.f32 %v3789, -1.0
      %v3791 = vmul.f32 %v2821, %v2821
      %v3792 = vmin.f32 16.0, %v3791
      %v3793 = vmul.f32 %v3792, 2.1237322e-06
      %v3794 = vadd.f32 %v3793, 0.00028619796
      %v3795 = vmul.f32 %v3792, %v3794
      %v3796 = vadd.f32 %v3795, 0.0036580483
      %v3797 = vmul.f32 %v3792, %v3796
      %v3798 = vadd.f32 %v3797, 0.05243302
      %v3799 = vmul.f32 %v3792, %v3798
      %v3800 = vadd.f32 %v3799, 0.18741608
      %v3801 = vmul.f32 %v3792, %v3800
      %v3802 = vadd.f32 %v3801, 1.1283791
      %v3803 = vmul.f32 %v2821, %v3802
      %v3804 = vmul.f32 %v3792, 3.8918573e-05
      %v3805 = vadd.f32 %v3804, 0.001143296
      %v3806 = vmul.f32 %v3792, %v3805
      %v3807 = vadd.f32 %v3806, 0.014752088
      %v3808 = vmul.f32 %v3792, %v3807
      %v3809 = vadd.f32 %v3808, 0.112945676
      %v3810 = vmul.f32 %v3792, %v3809
      %v3811 = vadd.f32 %v3810, 0.4994258
      %v3812 = vmul.f32 %v3792, %v3811
      %v3813 = vadd.f32 %v3812, 1.0
      %v3814 = vrcp.pop %v3813
      %v3815 = vmul.f32 %v3813, %v3814
      %v3816 = vsub.f32 1.0, %v3815
      %v3817 = vmul.f32 %v3814, %v3816
      %v3818 = vadd.f32 %v3814, %v3817
      %vm3819 = vweird.f32 %v3813
      %vm3820 = vweird.f32 %v3814
      %vm3821 = vmor %vm3819, %vm3820
      %v3822 = vsel %vm3821, %v3814, %v3818
      %v3823 = vand.u32 2147483647, %v3813
      %vm3824 = vcmp.eq.f32.partialorder %v3823, 8.507059e+37
      %v3825 = vand.u32 %v3813, 2147483648
      %v3826 = vor.u32 1.1754944e-38, %v3825
      %v3827 = vsel %vm3824, %v3826, %v3822
      %v3828 = vmul.f32 %v3803, %v3827
      %v3829 = vmin.f32 %v3828, 1.0
      %v3830 = vmax.f32 %v3829, -1.0
      %v3831 = vmul.f32 %v2822, %v2822
      %v3832 = vmin.f32 16.0, %v3831
      %v3833 = vmul.f32 %v3832, 2.1237322e-06
      %v3834 = vadd.f32 %v3833, 0.00028619796
      %v3835 = vmul.f32 %v3832, %v3834
      %v3836 = vadd.f32 %v3835, 0.0036580483
      %v3837 = vmul.f32 %v3832, %v3836
      %v3838 = vadd.f32 %v3837, 0.05243302
      %v3839 = vmul.f32 %v3832, %v3838
      %v3840 = vadd.f32 %v3839, 0.18741608
      %v3841 = vmul.f32 %v3832, %v3840
      %v3842 = vadd.f32 %v3841, 1.1283791
      %v3843 = vmul.f32 %v2822, %v3842
      %v3844 = vmul.f32 %v3832, 3.8918573e-05
      %v3845 = vadd.f32 %v3844, 0.001143296
      %v3846 = vmul.f32 %v3832, %v3845
      %v3847 = vadd.f32 %v3846, 0.014752088
      %v3848 = vmul.f32 %v3832, %v3847
      %v3849 = vadd.f32 %v3848, 0.112945676
      %v3850 = vmul.f32 %v3832, %v3849
      %v3851 = vadd.f32 %v3850, 0.4994258
      %v3852 = vmul.f32 %v3832, %v3851
      %v3853 = vadd.f32 %v3852, 1.0
      %v3854 = vrcp.pop %v3853
      %v3855 = vmul.f32 %v3853, %v3854
      %v3856 = vsub.f32 1.0, %v3855
      %v3857 = vmul.f32 %v3854, %v3856
      %v3858 = vadd.f32 %v3854, %v3857
      %vm3859 = vweird.f32 %v3853
      %vm3860 = vweird.f32 %v3854
      %vm3861 = vmor %vm3859, %vm3860
      %v3862 = vsel %vm3861, %v3854, %v3858
      %v3863 = vand.u32 2147483647, %v3853
      %vm3864 = vcmp.eq.f32.partialorder %v3863, 8.507059e+37
      %v3865 = vand.u32 %v3853, 2147483648
      %v3866 = vor.u32 1.1754944e-38, %v3865
      %v3867 = vsel %vm3864, %v3866, %v3862
      %v3868 = vmul.f32 %v3843, %v3867
      %v3869 = vmin.f32 %v3868, 1.0
      %v3870 = vmax.f32 %v3869, -1.0
      %v3871 = vmul.f32 %v2823, %v2823
      %v3872 = vmin.f32 16.0, %v3871
      %v3873 = vmul.f32 %v3872, 2.1237322e-06
      %v3874 = vadd.f32 %v3873, 0.00028619796
      %v3875 = vmul.f32 %v3872, %v3874
      %v3876 = vadd.f32 %v3875, 0.0036580483
      %v3877 = vmul.f32 %v3872, %v3876
      %v3878 = vadd.f32 %v3877, 0.05243302
      %v3879 = vmul.f32 %v3872, %v3878
      %v3880 = vadd.f32 %v3879, 0.18741608
      %v3881 = vmul.f32 %v3872, %v3880
      %v3882 = vadd.f32 %v3881, 1.1283791
      %v3883 = vmul.f32 %v2823, %v3882
      %v3884 = vmul.f32 %v3872, 3.8918573e-05
      %v3885 = vadd.f32 %v3884, 0.001143296
      %v3886 = vmul.f32 %v3872, %v3885
      %v3887 = vadd.f32 %v3886, 0.014752088
      %v3888 = vmul.f32 %v3872, %v3887
      %v3889 = vadd.f32 %v3888, 0.112945676
      %v3890 = vmul.f32 %v3872, %v3889
      %v3891 = vadd.f32 %v3890, 0.4994258
      %v3892 = vmul.f32 %v3872, %v3891
      %v3893 = vadd.f32 %v3892, 1.0
      %v3894 = vrcp.pop %v3893
      %v3895 = vmul.f32 %v3893, %v3894
      %v3896 = vsub.f32 1.0, %v3895
      %v3897 = vmul.f32 %v3894, %v3896
      %v3898 = vadd.f32 %v3894, %v3897
      %vm3899 = vweird.f32 %v3893
      %vm3900 = vweird.f32 %v3894
      %vm3901 = vmor %vm3899, %vm3900
      %v3902 = vsel %vm3901, %v3894, %v3898
      %v3903 = vand.u32 2147483647, %v3893
      %vm3904 = vcmp.eq.f32.partialorder %v3903, 8.507059e+37
      %v3905 = vand.u32 %v3893, 2147483648
      %v3906 = vor.u32 1.1754944e-38, %v3905
      %v3907 = vsel %vm3904, %v3906, %v3902
      %v3908 = vmul.f32 %v3883, %v3907
      %v3909 = vmin.f32 %v3908, 1.0
      %v3910 = vmax.f32 %v3909, -1.0
      %v3911 = vmul.f32 %v2824, %v2824
      %v3912 = vmin.f32 16.0, %v3911
      %v3913 = vmul.f32 %v3912, 2.1237322e-06
      %v3914 = vadd.f32 %v3913, 0.00028619796
      %v3915 = vmul.f32 %v3912, %v3914
      %v3916 = vadd.f32 %v3915, 0.0036580483
      %v3917 = vmul.f32 %v3912, %v3916
      %v3918 = vadd.f32 %v3917, 0.05243302
      %v3919 = vmul.f32 %v3912, %v3918
      %v3920 = vadd.f32 %v3919, 0.18741608
      %v3921 = vmul.f32 %v3912, %v3920
      %v3922 = vadd.f32 %v3921, 1.1283791
      %v3923 = vmul.f32 %v2824, %v3922
      %v3924 = vmul.f32 %v3912, 3.8918573e-05
      %v3925 = vadd.f32 %v3924, 0.001143296
      %v3926 = vmul.f32 %v3912, %v3925
      %v3927 = vadd.f32 %v3926, 0.014752088
      %v3928 = vmul.f32 %v3912, %v3927
      %v3929 = vadd.f32 %v3928, 0.112945676
      %v3930 = vmul.f32 %v3912, %v3929
      %v3931 = vadd.f32 %v3930, 0.4994258
      %v3932 = vmul.f32 %v3912, %v3931
      %v3933 = vadd.f32 %v3932, 1.0
      %v3934 = vrcp.pop %v3933
      %v3935 = vmul.f32 %v3933, %v3934
      %v3936 = vsub.f32 1.0, %v3935
      %v3937 = vmul.f32 %v3934, %v3936
      %v3938 = vadd.f32 %v3934, %v3937
      %vm3939 = vweird.f32 %v3933
      %vm3940 = vweird.f32 %v3934
      %vm3941 = vmor %vm3939, %vm3940
      %v3942 = vsel %vm3941, %v3934, %v3938
      %v3943 = vand.u32 2147483647, %v3933
      %vm3944 = vcmp.eq.f32.partialorder %v3943, 8.507059e+37
      %v3945 = vand.u32 %v3933, 2147483648
      %v3946 = vor.u32 1.1754944e-38, %v3945
      %v3947 = vsel %vm3944, %v3946, %v3942
      %v3948 = vmul.f32 %v3923, %v3947
      %v3949 = vmin.f32 %v3948, 1.0
      %v3950 = vmax.f32 %v3949, -1.0
      %v3951 = vmul.f32 %v2825, %v2825
      %v3952 = vmin.f32 16.0, %v3951
      %v3953 = vmul.f32 %v3952, 2.1237322e-06
      %v3954 = vadd.f32 %v3953, 0.00028619796
      %v3955 = vmul.f32 %v3952, %v3954
      %v3956 = vadd.f32 %v3955, 0.0036580483
      %v3957 = vmul.f32 %v3952, %v3956
      %v3958 = vadd.f32 %v3957, 0.05243302
      %v3959 = vmul.f32 %v3952, %v3958
      %v3960 = vadd.f32 %v3959, 0.18741608
      %v3961 = vmul.f32 %v3952, %v3960
      %v3962 = vadd.f32 %v3961, 1.1283791
      %v3963 = vmul.f32 %v2825, %v3962
      %v3964 = vmul.f32 %v3952, 3.8918573e-05
      %v3965 = vadd.f32 %v3964, 0.001143296
      %v3966 = vmul.f32 %v3952, %v3965
      %v3967 = vadd.f32 %v3966, 0.014752088
      %v3968 = vmul.f32 %v3952, %v3967
      %v3969 = vadd.f32 %v3968, 0.112945676
      %v3970 = vmul.f32 %v3952, %v3969
      %v3971 = vadd.f32 %v3970, 0.4994258
      %v3972 = vmul.f32 %v3952, %v3971
      %v3973 = vadd.f32 %v3972, 1.0
      %v3974 = vrcp.pop %v3973
      %v3975 = vmul.f32 %v3973, %v3974
      %v3976 = vsub.f32 1.0, %v3975
      %v3977 = vmul.f32 %v3974, %v3976
      %v3978 = vadd.f32 %v3974, %v3977
      %vm3979 = vweird.f32 %v3973
      %vm3980 = vweird.f32 %v3974
      %vm3981 = vmor %vm3979, %vm3980
      %v3982 = vsel %vm3981, %v3974, %v3978
      %v3983 = vand.u32 2147483647, %v3973
      %vm3984 = vcmp.eq.f32.partialorder %v3983, 8.507059e+37
      %v3985 = vand.u32 %v3973, 2147483648
      %v3986 = vor.u32 1.1754944e-38, %v3985
      %v3987 = vsel %vm3984, %v3986, %v3982
      %v3988 = vmul.f32 %v3963, %v3987
      %v3989 = vmin.f32 %v3988, 1.0
      %v3990 = vmax.f32 %v3989, -1.0
      %v3991 = vmul.f32 %v2826, %v2826
      %v3992 = vmin.f32 16.0, %v3991
      %v3993 = vmul.f32 %v3992, 2.1237322e-06
      %v3994 = vadd.f32 %v3993, 0.00028619796
      %v3995 = vmul.f32 %v3992, %v3994
      %v3996 = vadd.f32 %v3995, 0.0036580483
      %v3997 = vmul.f32 %v3992, %v3996
      %v3998 = vadd.f32 %v3997, 0.05243302
      %v3999 = vmul.f32 %v3992, %v3998
      %v4000 = vadd.f32 %v3999, 0.18741608
      %v4001 = vmul.f32 %v3992, %v4000
      %v4002 = vadd.f32 %v4001, 1.1283791
      %v4003 = vmul.f32 %v2826, %v4002
      %v4004 = vmul.f32 %v3992, 3.8918573e-05
      %v4005 = vadd.f32 %v4004, 0.001143296
      %v4006 = vmul.f32 %v3992, %v4005
      %v4007 = vadd.f32 %v4006, 0.014752088
      %v4008 = vmul.f32 %v3992, %v4007
      %v4009 = vadd.f32 %v4008, 0.112945676
      %v4010 = vmul.f32 %v3992, %v4009
      %v4011 = vadd.f32 %v4010, 0.4994258
      %v4012 = vmul.f32 %v3992, %v4011
      %v4013 = vadd.f32 %v4012, 1.0
      %v4014 = vrcp.pop %v4013
      %v4015 = vmul.f32 %v4013, %v4014
      %v4016 = vsub.f32 1.0, %v4015
      %v4017 = vmul.f32 %v4014, %v4016
      %v4018 = vadd.f32 %v4014, %v4017
      %vm4019 = vweird.f32 %v4013
      %vm4020 = vweird.f32 %v4014
      %vm4021 = vmor %vm4019, %vm4020
      %v4022 = vsel %vm4021, %v4014, %v4018
      %v4023 = vand.u32 2147483647, %v4013
      %vm4024 = vcmp.eq.f32.partialorder %v4023, 8.507059e+37
      %v4025 = vand.u32 %v4013, 2147483648
      %v4026 = vor.u32 1.1754944e-38, %v4025
      %v4027 = vsel %vm4024, %v4026, %v4022
      %v4028 = vmul.f32 %v4003, %v4027
      %v4029 = vmin.f32 %v4028, 1.0
      %v4030 = vmax.f32 %v4029, -1.0
      %v4031 = vmul.f32 %v2827, %v2827
      %v4032 = vmin.f32 16.0, %v4031
      %v4033 = vmul.f32 %v4032, 2.1237322e-06
      %v4034 = vadd.f32 %v4033, 0.00028619796
      %v4035 = vmul.f32 %v4032, %v4034
      %v4036 = vadd.f32 %v4035, 0.0036580483
      %v4037 = vmul.f32 %v4032, %v4036
      %v4038 = vadd.f32 %v4037, 0.05243302
      %v4039 = vmul.f32 %v4032, %v4038
      %v4040 = vadd.f32 %v4039, 0.18741608
      %v4041 = vmul.f32 %v4032, %v4040
      %v4042 = vadd.f32 %v4041, 1.1283791
      %v4043 = vmul.f32 %v2827, %v4042
      %v4044 = vmul.f32 %v4032, 3.8918573e-05
      %v4045 = vadd.f32 %v4044, 0.001143296
      %v4046 = vmul.f32 %v4032, %v4045
      %v4047 = vadd.f32 %v4046, 0.014752088
      %v4048 = vmul.f32 %v4032, %v4047
      %v4049 = vadd.f32 %v4048, 0.112945676
      %v4050 = vmul.f32 %v4032, %v4049
      %v4051 = vadd.f32 %v4050, 0.4994258
      %v4052 = vmul.f32 %v4032, %v4051
      %v4053 = vadd.f32 %v4052, 1.0
      %v4054 = vrcp.pop %v4053
      %v4055 = vmul.f32 %v4053, %v4054
      %v4056 = vsub.f32 1.0, %v4055
      %v4057 = vmul.f32 %v4054, %v4056
      %v4058 = vadd.f32 %v4054, %v4057
      %vm4059 = vweird.f32 %v4053
      %vm4060 = vweird.f32 %v4054
      %vm4061 = vmor %vm4059, %vm4060
      %v4062 = vsel %vm4061, %v4054, %v4058
      %v4063 = vand.u32 2147483647, %v4053
      %vm4064 = vcmp.eq.f32.partialorder %v4063, 8.507059e+37
      %v4065 = vand.u32 %v4053, 2147483648
      %v4066 = vor.u32 1.1754944e-38, %v4065
      %v4067 = vsel %vm4064, %v4066, %v4062
      %v4068 = vmul.f32 %v4043, %v4067
      %v4069 = vmin.f32 %v4068, 1.0
      %v4070 = vmax.f32 %v4069, -1.0
      %v4071 = vmul.f32 %v2828, %v2828
      %v4072 = vmin.f32 16.0, %v4071
      %v4073 = vmul.f32 %v4072, 2.1237322e-06
      %v4074 = vadd.f32 %v4073, 0.00028619796
      %v4075 = vmul.f32 %v4072, %v4074
      %v4076 = vadd.f32 %v4075, 0.0036580483
      %v4077 = vmul.f32 %v4072, %v4076
      %v4078 = vadd.f32 %v4077, 0.05243302
      %v4079 = vmul.f32 %v4072, %v4078
      %v4080 = vadd.f32 %v4079, 0.18741608
      %v4081 = vmul.f32 %v4072, %v4080
      %v4082 = vadd.f32 %v4081, 1.1283791
      %v4083 = vmul.f32 %v2828, %v4082
      %v4084 = vmul.f32 %v4072, 3.8918573e-05
      %v4085 = vadd.f32 %v4084, 0.001143296
      %v4086 = vmul.f32 %v4072, %v4085
      %v4087 = vadd.f32 %v4086, 0.014752088
      %v4088 = vmul.f32 %v4072, %v4087
      %v4089 = vadd.f32 %v4088, 0.112945676
      %v4090 = vmul.f32 %v4072, %v4089
      %v4091 = vadd.f32 %v4090, 0.4994258
      %v4092 = vmul.f32 %v4072, %v4091
      %v4093 = vadd.f32 %v4092, 1.0
      %v4094 = vrcp.pop %v4093
      %v4095 = vmul.f32 %v4093, %v4094
      %v4096 = vsub.f32 1.0, %v4095
      %v4097 = vmul.f32 %v4094, %v4096
      %v4098 = vadd.f32 %v4094, %v4097
      %vm4099 = vweird.f32 %v4093
      %vm4100 = vweird.f32 %v4094
      %vm4101 = vmor %vm4099, %vm4100
      %v4102 = vsel %vm4101, %v4094, %v4098
      %v4103 = vand.u32 2147483647, %v4093
      %vm4104 = vcmp.eq.f32.partialorder %v4103, 8.507059e+37
      %v4105 = vand.u32 %v4093, 2147483648
      %v4106 = vor.u32 1.1754944e-38, %v4105
      %v4107 = vsel %vm4104, %v4106, %v4102
      %v4108 = vmul.f32 %v4083, %v4107
      %v4109 = vmin.f32 %v4108, 1.0
      %v4110 = vmax.f32 %v4109, -1.0
      %v4111 = vmul.f32 %v2829, %v2829
      %v4112 = vmin.f32 16.0, %v4111
      %v4113 = vmul.f32 %v4112, 2.1237322e-06
      %v4114 = vadd.f32 %v4113, 0.00028619796
      %v4115 = vmul.f32 %v4112, %v4114
      %v4116 = vadd.f32 %v4115, 0.0036580483
      %v4117 = vmul.f32 %v4112, %v4116
      %v4118 = vadd.f32 %v4117, 0.05243302
      %v4119 = vmul.f32 %v4112, %v4118
      %v4120 = vadd.f32 %v4119, 0.18741608
      %v4121 = vmul.f32 %v4112, %v4120
      %v4122 = vadd.f32 %v4121, 1.1283791
      %v4123 = vmul.f32 %v2829, %v4122
      %v4124 = vmul.f32 %v4112, 3.8918573e-05
      %v4125 = vadd.f32 %v4124, 0.001143296
      %v4126 = vmul.f32 %v4112, %v4125
      %v4127 = vadd.f32 %v4126, 0.014752088
      %v4128 = vmul.f32 %v4112, %v4127
      %v4129 = vadd.f32 %v4128, 0.112945676
      %v4130 = vmul.f32 %v4112, %v4129
      %v4131 = vadd.f32 %v4130, 0.4994258
      %v4132 = vmul.f32 %v4112, %v4131
      %v4133 = vadd.f32 %v4132, 1.0
      %v4134 = vrcp.pop %v4133
      %v4135 = vmul.f32 %v4133, %v4134
      %v4136 = vsub.f32 1.0, %v4135
      %v4137 = vmul.f32 %v4134, %v4136
      %v4138 = vadd.f32 %v4134, %v4137
      %vm4139 = vweird.f32 %v4133
      %vm4140 = vweird.f32 %v4134
      %vm4141 = vmor %vm4139, %vm4140
      %v4142 = vsel %vm4141, %v4134, %v4138
      %v4143 = vand.u32 2147483647, %v4133
      %vm4144 = vcmp.eq.f32.partialorder %v4143, 8.507059e+37
      %v4145 = vand.u32 %v4133, 2147483648
      %v4146 = vor.u32 1.1754944e-38, %v4145
      %v4147 = vsel %vm4144, %v4146, %v4142
      %v4148 = vmul.f32 %v4123, %v4147
      %v4149 = vmin.f32 %v4148, 1.0
      %v4150 = vmax.f32 %v4149, -1.0
      %v4151 = vmul.f32 %v2830, %v2830
      %v4152 = vmin.f32 16.0, %v4151
      %v4153 = vmul.f32 %v4152, 2.1237322e-06
      %v4154 = vadd.f32 %v4153, 0.00028619796
      %v4155 = vmul.f32 %v4152, %v4154
      %v4156 = vadd.f32 %v4155, 0.0036580483
      %v4157 = vmul.f32 %v4152, %v4156
      %v4158 = vadd.f32 %v4157, 0.05243302
      %v4159 = vmul.f32 %v4152, %v4158
      %v4160 = vadd.f32 %v4159, 0.18741608
      %v4161 = vmul.f32 %v4152, %v4160
      %v4162 = vadd.f32 %v4161, 1.1283791
      %v4163 = vmul.f32 %v2830, %v4162
      %v4164 = vmul.f32 %v4152, 3.8918573e-05
      %v4165 = vadd.f32 %v4164, 0.001143296
      %v4166 = vmul.f32 %v4152, %v4165
      %v4167 = vadd.f32 %v4166, 0.014752088
      %v4168 = vmul.f32 %v4152, %v4167
      %v4169 = vadd.f32 %v4168, 0.112945676
      %v4170 = vmul.f32 %v4152, %v4169
      %v4171 = vadd.f32 %v4170, 0.4994258
      %v4172 = vmul.f32 %v4152, %v4171
      %v4173 = vadd.f32 %v4172, 1.0
      %v4174 = vrcp.pop %v4173
      %v4175 = vmul.f32 %v4173, %v4174
      %v4176 = vsub.f32 1.0, %v4175
      %v4177 = vmul.f32 %v4174, %v4176
      %v4178 = vadd.f32 %v4174, %v4177
      %vm4179 = vweird.f32 %v4173
      %vm4180 = vweird.f32 %v4174
      %vm4181 = vmor %vm4179, %vm4180
      %v4182 = vsel %vm4181, %v4174, %v4178
      %v4183 = vand.u32 2147483647, %v4173
      %vm4184 = vcmp.eq.f32.partialorder %v4183, 8.507059e+37
      %v4185 = vand.u32 %v4173, 2147483648
      %v4186 = vor.u32 1.1754944e-38, %v4185
      %v4187 = vsel %vm4184, %v4186, %v4182
      %v4188 = vmul.f32 %v4163, %v4187
      %v4189 = vmin.f32 %v4188, 1.0
      %v4190 = vmax.f32 %v4189, -1.0
      %v4191 = vadd.f32 %v2870, 1.0
      %v4192 = vadd.f32 %v2910, 1.0
      %v4193 = vadd.f32 %v2950, 1.0
      %v4194 = vadd.f32 %v2990, 1.0
      %v4195 = vadd.f32 %v3030, 1.0
      %v4196 = vadd.f32 %v3070, 1.0
      %v4197 = vadd.f32 %v3110, 1.0
      %v4198 = vadd.f32 %v3150, 1.0
      %v4199 = vadd.f32 %v3190, 1.0
      %v4200 = vadd.f32 %v3230, 1.0
      %v4201 = vadd.f32 %v3270, 1.0
      %v4202 = vadd.f32 %v3310, 1.0
      %v4203 = vadd.f32 %v3350, 1.0
      %v4204 = vadd.f32 %v3390, 1.0
      %v4205 = vadd.f32 %v3430, 1.0
      %v4206 = vadd.f32 %v3470, 1.0
      %v4207 = vadd.f32 %v3510, 1.0
      %v4208 = vadd.f32 %v3550, 1.0
      %v4209 = vadd.f32 %v3590, 1.0
      %v4210 = vadd.f32 %v3630, 1.0
      %v4211 = vadd.f32 %v3670, 1.0
      %v4212 = vadd.f32 %v3710, 1.0
      %v4213 = vadd.f32 %v3750, 1.0
      %v4214 = vadd.f32 %v3790, 1.0
      %v4215 = vadd.f32 %v3830, 1.0
      %v4216 = vadd.f32 %v3870, 1.0
      %v4217 = vadd.f32 %v3910, 1.0
      %v4218 = vadd.f32 %v3950, 1.0
      %v4219 = vadd.f32 %v3990, 1.0
      %v4220 = vadd.f32 %v4030, 1.0
      %v4221 = vadd.f32 %v4070, 1.0
      %v4222 = vadd.f32 %v4110, 1.0
      %v4223 = vadd.f32 %v4150, 1.0
      %v4224 = vadd.f32 %v4190, 1.0
      %v4225 = vmul.f32 %v2763, %v4191
      %v4226 = vmul.f32 %v2764, %v4192
      %v4227 = vmul.f32 %v2765, %v4193
      %v4228 = vmul.f32 %v2766, %v4194
      %v4229 = vmul.f32 %v2767, %v4195
      %v4230 = vmul.f32 %v2768, %v4196
      %v4231 = vmul.f32 %v2769, %v4197
      %v4232 = vmul.f32 %v2770, %v4198
      %v4233 = vmul.f32 %v2771, %v4199
      %v4234 = vmul.f32 %v2772, %v4200
      %v4235 = vmul.f32 %v2773, %v4201
      %v4236 = vmul.f32 %v2774, %v4202
      %v4237 = vmul.f32 %v2775, %v4203
      %v4238 = vmul.f32 %v2776, %v4204
      %v4239 = vmul.f32 %v2777, %v4205
      %v4240 = vmul.f32 %v2778, %v4206
      %v4241 = vmul.f32 %v2779, %v4207
      %v4242 = vmul.f32 %v2780, %v4208
      %v4243 = vmul.f32 %v2781, %v4209
      %v4244 = vmul.f32 %v2782, %v4210
      %v4245 = vmul.f32 %v2783, %v4211
      %v4246 = vmul.f32 %v2784, %v4212
      %v4247 = vmul.f32 %v2785, %v4213
      %v4248 = vmul.f32 %v2786, %v4214
      %v4249 = vmul.f32 %v2787, %v4215
      %v4250 = vmul.f32 %v2788, %v4216
      %v4251 = vmul.f32 %v2789, %v4217
      %v4252 = vmul.f32 %v2790, %v4218
      %v4253 = vmul.f32 %v2791, %v4219
      %v4254 = vmul.f32 %v2792, %v4220
      %v4255 = vmul.f32 %v2793, %v4221
      %v4256 = vmul.f32 %v2794, %v4222
      %v4257 = vmul.f32 %v2795, %v4223
      %v4258 = vmul.f32 %v2796, %v4224
      %4259 = vst [vmem:[%s170] sm:$0xff] %v4225
      %4260 = vst [vmem:[%s170 + $0x8] sm:$0xff] %v4226
      %4261 = vst [vmem:[%s170 + $0x10] sm:$0xff] %v4227
      %4262 = vst [vmem:[%s170 + $0x18] sm:$0xff] %v4228
      %4263 = vst [vmem:[%s170 + $0x20] sm:$0xff] %v4229
      %4264 = vst [vmem:[%s170 + $0x28] sm:$0xff] %v4230
      %4265 = vst [vmem:[%s170 + $0x30] sm:$0xff] %v4231
      %4266 = vst [vmem:[%s170 + $0x38] sm:$0xff] %v4232
      %4267 = vst [vmem:[%s170 + $0x40] sm:$0xff] %v4233
      %4268 = vst [vmem:[%s170 + $0x48] sm:$0xff] %v4234
      %4269 = vst [vmem:[%s170 + $0x50] sm:$0xff] %v4235
      %4270 = vst [vmem:[%s170 + $0x58] sm:$0xff] %v4236
      %4271 = vst [vmem:[%s170 + $0x60] sm:$0xff] %v4237
      %4272 = vst [vmem:[%s170 + $0x68] sm:$0xff] %v4238
      %4273 = vst [vmem:[%s170 + $0x70] sm:$0xff] %v4239
      %4274 = vst [vmem:[%s170 + $0x78] sm:$0xff] %v4240
      %4275 = vst [vmem:[%s170 + $0x80] sm:$0xff] %v4241
      %4276 = vst [vmem:[%s170 + $0x88] sm:$0xff] %v4242
      %4277 = vst [vmem:[%s170 + $0x90] sm:$0xff] %v4243
      %4278 = vst [vmem:[%s170 + $0x98] sm:$0xff] %v4244
      %4279 = vst [vmem:[%s170 + $0xa0] sm:$0xff] %v4245
      %4280 = vst [vmem:[%s170 + $0xa8] sm:$0xff] %v4246
      %4281 = vst [vmem:[%s170 + $0xb0] sm:$0xff] %v4247
      %4282 = vst [vmem:[%s170 + $0xb8] sm:$0xff] %v4248
      %4283 = vst [vmem:[%s170 + $0xc0] sm:$0xff] %v4249
      %4284 = vst [vmem:[%s170 + $0xc8] sm:$0xff] %v4250
      %4285 = vst [vmem:[%s170 + $0xd0] sm:$0xff] %v4251
      %4286 = vst [vmem:[%s170 + $0xd8] sm:$0xff] %v4252
      %4287 = vst [vmem:[%s170 + $0xe0] sm:$0xff] %v4253
      %4288 = vst [vmem:[%s170 + $0xe8] sm:$0xff] %v4254
      %4289 = vst [vmem:[%s170 + $0xf0] sm:$0xff] %v4255
      %4290 = vst [vmem:[%s170 + $0xf8] sm:$0xff] %v4256
      %4291 = vst [vmem:[%s170 + $0x100] sm:$0xff] %v4257
      %4292 = vst [vmem:[%s170 + $0x108] sm:$0xff] %v4258
      %p4293 = scmp.lt.s32.totalorder %s14, 1
      %s4294 = scalar_select %p4293, %s14, 1
      %s4295 = smul.addr %s4294, 34
      %s4296 = smul.addr %s4295, 8
      %s4297 = scalar_lea.vmem %s3, %s4296
      // Predicated region
      $region33: #{_lambda_.4} parent=31 // pred_check
        %p4298 = pneg %p100
      $region34: #{_lambda_.4} parent=31 // pred_check_branch
        %4300 = sbr.rel (%p4298) target = $region36
      $region35: #{_lambda_.4} parent=31 // pred_region
        _
      $region36: #{_lambda_.4} parent=31 // pred_fallthru
        _
    $region32: #{_lambda_.4} parent=5 // pred_fallthru
      _
    %p4301 = scmp.le.s32.totalorder 2, %s9
    // Predicated region
    $region37: #{_lambda_.4} parent=5 // pred_check
      %p4302 = pneg %p4301
    $region38: #{_lambda_.4} parent=5 // pred_check_branch
      %4304 = sbr.rel (%p4302) target = $region40
    $region39: #{_lambda_.4} parent=5 // pred_region
      %s4305 = ssub.s32 %s9, 2
      // Predicated region
      $region41: #{_lambda_.4} parent=39 // pred_check
        %p4306 = pneg %p106
      $region42: #{_lambda_.4} parent=39 // pred_check_branch
        %4308 = sbr.rel (%p4306) target = $region44
      $region43: #{_lambda_.4} parent=39 // pred_region
        %p4309 = scmp.lt.s32.totalorder %s15, 1
        %s4310 = scalar_select %p4309, %s15, 1
        %s4311 = smul.addr %s4310, 34
        %s4312 = smul.addr %s4311, 8
        %s4313 = scalar_lea.vmem %s3, %s4312
      $region44: #{_lambda_.4} parent=39 // pred_fallthru
        _
    $region40: #{_lambda_.4} parent=5 // pred_fallthru
      _
  $region6: #{_lambda_.4} parent=0 // loop_footer
    %s13 = sadd.s32 1, %s9
  $region7: #{_lambda_.4} parent=0 // loop_footer_branch
    %8 = sbr.rel target = $region3
  $region8: #{_lambda_.4} parent=0 // loop_exit
    _

// kernel: _lambda_.5
$region0: #{_lambda_.5}
  #allocation0 [shape = 'u32[]', space=smem, size = 0x4, offset = 0x4, fixed_abs, tag = 'smem constant byte address 0x4 - core index']
  #allocation1 [shape = 'u32[72,128]{1,0:T(1,128)}', space=vmem, size = 0x9000, scoped, tag = 'internal scratch']
  %s0 = inlined_call_operand.vmem [shape: f32[2,2,2,88,128], index: 0, kind: input, shape index: {}]
  %s1 = inlined_call_operand.vmem [shape: f32[9,128,128], index: 1, kind: input, shape index: {}]
  %s2 = inlined_call_operand.vmem [shape: f32[1,128], index: 2, kind: input, shape index: {}]
  %s3 = inlined_call_operand.vmem [shape: f32[2,72,128], index: 3, kind: output, shape index: {}]
  %s4 = sld [smem:[#allocation0]]
  $region45: #{_lambda_.5} parent=0
    _
  %s6 = ssub.s32 1, %s4
  %s7 = scalar_select 0, %s6, %s4
  loop: start=0, step=1, limit=4
  $region2: #{_lambda_.5} parent=0 // loop_pre_header
    _
  $region3: #{_lambda_.5} parent=0 // loop_header
    %s9 = sphi 0, %s13
    %p10 = scmp.ge.s32.totalorder %s9, 4
    %s19 = sphi 0, %s21
    %s22 = sphi 0, %s19
    %s23 = sphi 0, %s22
    %s39 = sphi 0, %s23
    %s43 = sphi 0, %s43
    %s45 = sphi 0, %s43
    %s46 = sphi 0, %s45
    %s60 = sphi 0, %s46
    %s64 = sphi 0, %s64
    %s66 = sphi 0, %s64
    %s67 = sphi 0, %s66
    %s81 = sphi 0, %s67
    %s87 = sphi 0, %s89
    %s90 = sphi 0, %s87
    %s91 = sphi 0, %s90
    %s107 = sphi 0, %s91
  $region4: #{_lambda_.5} parent=0 // loop_header_branch
    %12 = sbr.rel (%p10) target = $region8
  $region5: #{_lambda_.5} parent=0 // loop_body
    %s14 = ssub.s32 %s9, 1
    %s15 = ssub.s32 %s9, 2
    %s16 = sadd.s32 %s9, 1
    %s17 = ssub.s32 %s9, %s16
    %p18 = scmp.eq.s32.totalorder %s17, 0
    %s20 = sadd.s32 %s19, 1
    %s21 = scalar_select %p18, %s19, %s20
    %p24 = pneg %p18
    %p25 = scmp.eq.s32.totalorder %s9, 1
    %p26 = por %p24, %p25
    %p27 = scmp.ne.s32.totalorder %s19, %s22
    %p28 = scmp.eq.s32.totalorder %s9, 0
    %p29 = por %p27, %p28
    %p30 = scmp.ne.s32.totalorder %s19, %s22
    %p31 = scmp.eq.s32.totalorder %s14, 1
    %p32 = por %p30, %p31
    %p33 = scmp.ne.s32.totalorder %s22, %s23
    %p34 = scmp.eq.s32.totalorder %s14, 0
    %p35 = por %p33, %p34
    %p36 = scmp.ne.s32.totalorder %s22, %s23
    %p37 = scmp.eq.s32.totalorder %s15, 1
    %p38 = por %p36, %p37
    %p40 = scmp.ne.s32.totalorder %s23, %s39
    %p41 = scmp.eq.s32.totalorder %s15, 0
    %p42 = por %p40, %p41
    %s44 = sadd.s32 %s43, 1
    %p47 = scmp.eq.s32.totalorder %s9, 1
    %p48 = scmp.ne.s32.totalorder %s43, %s45
    %p49 = scmp.eq.s32.totalorder %s9, 0
    %p50 = por %p48, %p49
    %p51 = scmp.ne.s32.totalorder %s43, %s45
    %p52 = scmp.eq.s32.totalorder %s14, 1
    %p53 = por %p51, %p52
    %p54 = scmp.ne.s32.totalorder %s45, %s46
    %p55 = scmp.eq.s32.totalorder %s14, 0
    %p56 = por %p54, %p55
    %p57 = scmp.ne.s32.totalorder %s45, %s46
    %p58 = scmp.eq.s32.totalorder %s15, 1
    %p59 = por %p57, %p58
    %p61 = scmp.ne.s32.totalorder %s46, %s60
    %p62 = scmp.eq.s32.totalorder %s15, 0
    %p63 = por %p61, %p62
    %s65 = sadd.s32 %s64, 1
    %p68 = scmp.eq.s32.totalorder %s9, 1
    %p69 = scmp.ne.s32.totalorder %s64, %s66
    %p70 = scmp.eq.s32.totalorder %s9, 0
    %p71 = por %p69, %p70
    %p72 = scmp.ne.s32.totalorder %s64, %s66
    %p73 = scmp.eq.s32.totalorder %s14, 1
    %p74 = por %p72, %p73
    %p75 = scmp.ne.s32.totalorder %s66, %s67
    %p76 = scmp.eq.s32.totalorder %s14, 0
    %p77 = por %p75, %p76
    %p78 = scmp.ne.s32.totalorder %s66, %s67
    %p79 = scmp.eq.s32.totalorder %s15, 1
    %p80 = por %p78, %p79
    %p82 = scmp.ne.s32.totalorder %s67, %s81
    %p83 = scmp.eq.s32.totalorder %s15, 0
    %p84 = por %p82, %p83
    %s85 = ssub.s32 %s9, %s16
    %p86 = scmp.eq.s32.totalorder %s85, 0
    %s88 = sadd.s32 %s87, 1
    %s89 = scalar_select %p86, %s87, %s88
    %p92 = pneg %p86
    %p93 = scmp.eq.s32.totalorder %s9, 1
    %p94 = por %p92, %p93
    %p95 = scmp.ne.s32.totalorder %s87, %s90
    %p96 = scmp.eq.s32.totalorder %s9, 0
    %p97 = por %p95, %p96
    %p98 = scmp.ne.s32.totalorder %s87, %s90
    %p99 = scmp.eq.s32.totalorder %s14, 1
    %p100 = por %p98, %p99
    %p101 = scmp.ne.s32.totalorder %s90, %s91
    %p102 = scmp.eq.s32.totalorder %s14, 0
    %p103 = por %p101, %p102
    %p104 = scmp.ne.s32.totalorder %s90, %s91
    %p105 = scmp.eq.s32.totalorder %s15, 1
    %p106 = por %p104, %p105
    %p108 = scmp.ne.s32.totalorder %s91, %s107
    %p109 = scmp.eq.s32.totalorder %s15, 0
    %p110 = por %p108, %p109
    %p111 = scmp.le.s32.totalorder 1, %s9
    %p112 = scmp.lt.s32.totalorder %s9, 3
    %p113 = pnand %p111, %p112
    %p114 = pneg %p113
    // Predicated region
    $region9: #{_lambda_.5} parent=5 // pred_check
      _
    $region10: #{_lambda_.5} parent=5 // pred_check_branch
      %116 = sbr.rel (%p113) target = $region12
    $region11: #{_lambda_.5} parent=5 // pred_region
      %s117 = ssub.s32 %s9, 1
      // Predicated region
      $region13: #{_lambda_.5} parent=11 // pred_check
        %p118 = pneg %p56
      $region14: #{_lambda_.5} parent=11 // pred_check_branch
        %120 = sbr.rel (%p118) target = $region16
      $region15: #{_lambda_.5} parent=11 // pred_region
        _
      $region16: #{_lambda_.5} parent=11 // pred_fallthru
        _
      // Predicated region
      $region17: #{_lambda_.5} parent=11 // pred_check
        %p121 = pneg %p77
      $region18: #{_lambda_.5} parent=11 // pred_check_branch
        %123 = sbr.rel (%p121) target = $region20
      $region19: #{_lambda_.5} parent=11 // pred_region
        _
      $region20: #{_lambda_.5} parent=11 // pred_fallthru
        _
    $region12: #{_lambda_.5} parent=5 // pred_fallthru
      _
    %p124 = scmp.lt.s32.totalorder %s9, 2
    // Predicated region
    $region21: #{_lambda_.5} parent=5 // pred_check
      %p125 = pneg %p124
    $region22: #{_lambda_.5} parent=5 // pred_check_branch
      %127 = sbr.rel (%p125) target = $region24
    $region23: #{_lambda_.5} parent=5 // pred_region
      // Predicated region
      $region25: #{_lambda_.5} parent=23 // pred_check
        %p128 = pneg %p29
      $region26: #{_lambda_.5} parent=23 // pred_check_branch
        %130 = sbr.rel (%p128) target = $region28
      $region27: #{_lambda_.5} parent=23 // pred_region
        %p131 = scmp.lt.s32.totalorder %s9, 1
        %s132 = scalar_select %p131, %s9, 1
        %s133 = smul.addr %s132, 44
        %s134 = smul.addr %s133, 8
        %s135 = scalar_lea.vmem %s0, %s134
      $region28: #{_lambda_.5} parent=23 // pred_fallthru
        _
    $region24: #{_lambda_.5} parent=5 // pred_fallthru
      _
    %p136 = scmp.le.s32.totalorder 1, %s9
    %p137 = scmp.lt.s32.totalorder %s9, 3
    %p138 = pnand %p136, %p137
    %p139 = pneg %p138
    // Predicated region
    $region29: #{_lambda_.5} parent=5 // pred_check
      _
    $region30: #{_lambda_.5} parent=5 // pred_check_branch
      %141 = sbr.rel (%p138) target = $region32
    $region31: #{_lambda_.5} parent=5 // pred_region
      %s142 = ssub.s32 %s9, 1
      %p143 = scmp.lt.s32.totalorder %s14, 1
      %s144 = scalar_select %p143, %s14, 1
      %s145 = smul.addr %s144, 44
      %s146 = smul.addr %s145, 8
      %s147 = scalar_lea.vmem %s0, %s146
      %p148 = pneg %p35
      %p149 = pneg %p32
      %p150 = pneg %p56
      %p151 = pneg %p53
      %p152 = pneg %p77
      %p153 = pneg %p74
      %p154 = pneg %p103
      %p155 = pneg %p100
      %p156 = scmp.lt.s32.totalorder %s14, 1
      %s157 = scalar_select %p156, %s14, 1
      %s158 = smul.addr %s157, 9
      %s159 = smul.addr %s158, 8
      %s160 = scalar_lea.vmem %s3, %s159
      %p161 = scmp.lt.s32.totalorder %s14, 1
      %s162 = scalar_select %p161, %s14, 1
      %s163 = smul.addr %s162, 44
      %s164 = smul.addr %s163, 8
      %s165 = scalar_lea.vmem %s0, %s164
      %p166 = scmp.lt.s32.totalorder %s14, 1
      %s167 = scalar_select %p166, %s14, 1
      %s168 = smul.addr %s167, 9
      %s169 = smul.addr %s168, 8
      %s170 = scalar_lea.vmem %s3, %s169
      %v171 = vld [vmem:[%s165] sm:$0xff]
      %v172 = vld [vmem:[%s165 + $0x8] sm:$0xff]
      %v173 = vld [vmem:[%s165 + $0x10] sm:$0xff]
      %v174 = vld [vmem:[%s165 + $0x18] sm:$0xff]
      %v175 = vld [vmem:[%s165 + $0x20] sm:$0xff]
      %v176 = vld [vmem:[%s165 + $0x28] sm:$0xff]
      %v177 = vld [vmem:[%s165 + $0x30] sm:$0xff]
      %v178 = vld [vmem:[%s165 + $0x38] sm:$0xff]
      %v179 = vld [vmem:[%s165 + $0x40] sm:$0xff]
      %v180 = vld [vmem:[%s1] sm:$0xff]
      %v181 = vld [vmem:[%s1 + $0x8] sm:$0xff]
      %v182 = vld [vmem:[%s1 + $0x10] sm:$0xff]
      %v183 = vld [vmem:[%s1 + $0x18] sm:$0xff]
      %v184 = vld [vmem:[%s1 + $0x20] sm:$0xff]
      %v185 = vld [vmem:[%s1 + $0x28] sm:$0xff]
      %v186 = vld [vmem:[%s1 + $0x30] sm:$0xff]
      %v187 = vld [vmem:[%s1 + $0x38] sm:$0xff]
      %v188 = vld [vmem:[%s1 + $0x40] sm:$0xff]
      %v189 = vld [vmem:[%s1 + $0x48] sm:$0xff]
      %v190 = vld [vmem:[%s1 + $0x50] sm:$0xff]
      %v191 = vld [vmem:[%s1 + $0x58] sm:$0xff]
      %v192 = vld [vmem:[%s1 + $0x60] sm:$0xff]
      %v193 = vld [vmem:[%s1 + $0x68] sm:$0xff]
      %v194 = vld [vmem:[%s1 + $0x70] sm:$0xff]
      %v195 = vld [vmem:[%s1 + $0x78] sm:$0xff]
      %s196 = scalar_lea.vmem %s165, 88
      %v197 = vld [vmem:[%s196] sm:$0xff]
      %v198 = vld [vmem:[%s196 + $0x8] sm:$0xff]
      %v199 = vld [vmem:[%s196 + $0x10] sm:$0xff]
      %v200 = vld [vmem:[%s196 + $0x18] sm:$0xff]
      %v201 = vld [vmem:[%s196 + $0x20] sm:$0xff]
      %v202 = vld [vmem:[%s196 + $0x28] sm:$0xff]
      %v203 = vld [vmem:[%s196 + $0x30] sm:$0xff]
      %v204 = vld [vmem:[%s196 + $0x38] sm:$0xff]
      %v205 = vld [vmem:[%s196 + $0x40] sm:$0xff]
      %s206 = scalar_lea.vmem %s1, 128
      %v207 = vld [vmem:[%s206] sm:$0xff]
      %v208 = vld [vmem:[%s206 + $0x8] sm:$0xff]
      %v209 = vld [vmem:[%s206 + $0x10] sm:$0xff]
      %v210 = vld [vmem:[%s206 + $0x18] sm:$0xff]
      %v211 = vld [vmem:[%s206 + $0x20] sm:$0xff]
      %v212 = vld [vmem:[%s206 + $0x28] sm:$0xff]
      %v213 = vld [vmem:[%s206 + $0x30] sm:$0xff]
      %v214 = vld [vmem:[%s206 + $0x38] sm:$0xff]
      %v215 = vld [vmem:[%s206 + $0x40] sm:$0xff]
      %v216 = vld [vmem:[%s206 + $0x48] sm:$0xff]
      %v217 = vld [vmem:[%s206 + $0x50] sm:$0xff]
      %v218 = vld [vmem:[%s206 + $0x58] sm:$0xff]
      %v219 = vld [vmem:[%s206 + $0x60] sm:$0xff]
      %v220 = vld [vmem:[%s206 + $0x68] sm:$0xff]
      %v221 = vld [vmem:[%s206 + $0x70] sm:$0xff]
      %v222 = vld [vmem:[%s206 + $0x78] sm:$0xff]
      %223 = vmatpush.msra.mxu0 %v222
      %224 = vmatpush.msra.mxu0 %v221
      %225 = vmatpush.msra.mxu0 %v220
      %226 = vmatpush.msra.mxu0 %v219
      %227 = vmatpush.msra.mxu0 %v218
      %228 = vmatpush.msra.mxu0 %v217
      %229 = vmatpush.msra.mxu0 %v216
      %230 = vmatpush.msra.mxu0 %v215
      %231 = vmatpush.msra.mxu0 %v214
      %232 = vmatpush.msra.mxu0 %v213
      %233 = vmatpush.msra.mxu0 %v212
      %234 = vmatpush.msra.mxu0 %v211
      %235 = vmatpush.msra.mxu0 %v210
      %236 = vmatpush.msra.mxu0 %v209
      %237 = vmatpush.msra.mxu0 %v208
      %238 = vmatpush.msra.mxu0 %v207
      %239 = vmatmul.f32.gmra.mxu0 %v197
      %v240 = vpop.f32.mrf.mxu0
      %v241 = vadd.f32 0.0, %v240
      %242 = vmatmul.f32.gmra.mxu0 %v198
      %v243 = vpop.f32.mrf.mxu0
      %v244 = vadd.f32 0.0, %v243
      %245 = vmatmul.f32.gmra.mxu0 %v199
      %v246 = vpop.f32.mrf.mxu0
      %v247 = vadd.f32 0.0, %v246
      %248 = vmatmul.f32.gmra.mxu0 %v200
      %v249 = vpop.f32.mrf.mxu0
      %v250 = vadd.f32 0.0, %v249
      %251 = vmatmul.f32.gmra.mxu0 %v201
      %v252 = vpop.f32.mrf.mxu0
      %v253 = vadd.f32 0.0, %v252
      %254 = vmatmul.f32.gmra.mxu0 %v202
      %v255 = vpop.f32.mrf.mxu0
      %v256 = vadd.f32 0.0, %v255
      %257 = vmatmul.f32.gmra.mxu0 %v203
      %v258 = vpop.f32.mrf.mxu0
      %v259 = vadd.f32 0.0, %v258
      %260 = vmatmul.f32.gmra.mxu0 %v204
      %v261 = vpop.f32.mrf.mxu0
      %v262 = vadd.f32 0.0, %v261
      %263 = vmatmul.f32.gmra.mxu0 %v205
      %v264 = vpop.f32.mrf.mxu0
      %v265 = vadd.f32 0.0, %v264
      %266 = vdwg.mxu0
      %267 = vmatpush.msra.mxu0 %v195
      %268 = vmatpush.msra.mxu0 %v194
      %269 = vmatpush.msra.mxu0 %v193
      %270 = vmatpush.msra.mxu0 %v192
      %271 = vmatpush.msra.mxu0 %v191
      %272 = vmatpush.msra.mxu0 %v190
      %273 = vmatpush.msra.mxu0 %v189
      %274 = vmatpush.msra.mxu0 %v188
      %275 = vmatpush.msra.mxu0 %v187
      %276 = vmatpush.msra.mxu0 %v186
      %277 = vmatpush.msra.mxu0 %v185
      %278 = vmatpush.msra.mxu0 %v184
      %279 = vmatpush.msra.mxu0 %v183
      %280 = vmatpush.msra.mxu0 %v182
      %281 = vmatpush.msra.mxu0 %v181
      %282 = vmatpush.msra.mxu0 %v180
      %283 = vmatmul.f32.gmra.mxu0 %v171
      %v284 = vpop.f32.mrf.mxu0
      %v285 = vadd.f32 %v241, %v284
      %286 = vmatmul.f32.gmra.mxu0 %v172
      %v287 = vpop.f32.mrf.mxu0
      %v288 = vadd.f32 %v244, %v287
      %289 = vmatmul.f32.gmra.mxu0 %v173
      %v290 = vpop.f32.mrf.mxu0
      %v291 = vadd.f32 %v247, %v290
      %292 = vmatmul.f32.gmra.mxu0 %v174
      %v293 = vpop.f32.mrf.mxu0
      %v294 = vadd.f32 %v250, %v293
      %295 = vmatmul.f32.gmra.mxu0 %v175
      %v296 = vpop.f32.mrf.mxu0
      %v297 = vadd.f32 %v253, %v296
      %298 = vmatmul.f32.gmra.mxu0 %v176
      %v299 = vpop.f32.mrf.mxu0
      %v300 = vadd.f32 %v256, %v299
      %301 = vmatmul.f32.gmra.mxu0 %v177
      %v302 = vpop.f32.mrf.mxu0
      %v303 = vadd.f32 %v259, %v302
      %304 = vmatmul.f32.gmra.mxu0 %v178
      %v305 = vpop.f32.mrf.mxu0
      %v306 = vadd.f32 %v262, %v305
      %307 = vmatmul.f32.gmra.mxu0 %v179
      %v308 = vpop.f32.mrf.mxu0
      %v309 = vadd.f32 %v265, %v308
      %310 = vdwg.mxu0
      %v311 = vld [vmem:[%s165 + $0x1] sm:$0xff]
      %v312 = vld [vmem:[%s165 + $0x9] sm:$0xff]
      %v313 = vld [vmem:[%s165 + $0x11] sm:$0xff]
      %v314 = vld [vmem:[%s165 + $0x19] sm:$0xff]
      %v315 = vld [vmem:[%s165 + $0x21] sm:$0xff]
      %v316 = vld [vmem:[%s165 + $0x29] sm:$0xff]
      %v317 = vld [vmem:[%s165 + $0x31] sm:$0xff]
      %v318 = vld [vmem:[%s165 + $0x39] sm:$0xff]
      %v319 = vld [vmem:[%s165 + $0x41] sm:$0xff]
      %s320 = scalar_lea.vmem %s1, 256
      %v321 = vld [vmem:[%s320] sm:$0xff]
      %v322 = vld [vmem:[%s320 + $0x8] sm:$0xff]
      %v323 = vld [vmem:[%s320 + $0x10] sm:$0xff]
      %v324 = vld [vmem:[%s320 + $0x18] sm:$0xff]
      %v325 = vld [vmem:[%s320 + $0x20] sm:$0xff]
      %v326 = vld [vmem:[%s320 + $0x28] sm:$0xff]
      %v327 = vld [vmem:[%s320 + $0x30] sm:$0xff]
      %v328 = vld [vmem:[%s320 + $0x38] sm:$0xff]
      %v329 = vld [vmem:[%s320 + $0x40] sm:$0xff]
      %v330 = vld [vmem:[%s320 + $0x48] sm:$0xff]
      %v331 = vld [vmem:[%s320 + $0x50] sm:$0xff]
      %v332 = vld [vmem:[%s320 + $0x58] sm:$0xff]
      %v333 = vld [vmem:[%s320 + $0x60] sm:$0xff]
      %v334 = vld [vmem:[%s320 + $0x68] sm:$0xff]
      %v335 = vld [vmem:[%s320 + $0x70] sm:$0xff]
      %v336 = vld [vmem:[%s320 + $0x78] sm:$0xff]
      %337 = vmatpush.msra.mxu0 %v336
      %338 = vmatpush.msra.mxu0 %v335
      %339 = vmatpush.msra.mxu0 %v334
      %340 = vmatpush.msra.mxu0 %v333
      %341 = vmatpush.msra.mxu0 %v332
      %342 = vmatpush.msra.mxu0 %v331
      %343 = vmatpush.msra.mxu0 %v330
      %344 = vmatpush.msra.mxu0 %v329
      %345 = vmatpush.msra.mxu0 %v328
      %346 = vmatpush.msra.mxu0 %v327
      %347 = vmatpush.msra.mxu0 %v326
      %348 = vmatpush.msra.mxu0 %v325
      %349 = vmatpush.msra.mxu0 %v324
      %350 = vmatpush.msra.mxu0 %v323
      %351 = vmatpush.msra.mxu0 %v322
      %352 = vmatpush.msra.mxu0 %v321
      %353 = vmatmul.f32.gmra.mxu0 %v311
      %v354 = vpop.f32.mrf.mxu0
      %v355 = vadd.f32 0.0, %v354
      %356 = vmatmul.f32.gmra.mxu0 %v312
      %v357 = vpop.f32.mrf.mxu0
      %v358 = vadd.f32 0.0, %v357
      %359 = vmatmul.f32.gmra.mxu0 %v313
      %v360 = vpop.f32.mrf.mxu0
      %v361 = vadd.f32 0.0, %v360
      %362 = vmatmul.f32.gmra.mxu0 %v314
      %v363 = vpop.f32.mrf.mxu0
      %v364 = vadd.f32 0.0, %v363
      %365 = vmatmul.f32.gmra.mxu0 %v315
      %v366 = vpop.f32.mrf.mxu0
      %v367 = vadd.f32 0.0, %v366
      %368 = vmatmul.f32.gmra.mxu0 %v316
      %v369 = vpop.f32.mrf.mxu0
      %v370 = vadd.f32 0.0, %v369
      %371 = vmatmul.f32.gmra.mxu0 %v317
      %v372 = vpop.f32.mrf.mxu0
      %v373 = vadd.f32 0.0, %v372
      %374 = vmatmul.f32.gmra.mxu0 %v318
      %v375 = vpop.f32.mrf.mxu0
      %v376 = vadd.f32 0.0, %v375
      %377 = vmatmul.f32.gmra.mxu0 %v319
      %v378 = vpop.f32.mrf.mxu0
      %v379 = vadd.f32 0.0, %v378
      %380 = vdwg.mxu0
      %v381 = vadd.f32 %v285, %v355
      %v382 = vadd.f32 %v288, %v358
      %v383 = vadd.f32 %v291, %v361
      %v384 = vadd.f32 %v294, %v364
      %v385 = vadd.f32 %v297, %v367
      %v386 = vadd.f32 %v300, %v370
      %v387 = vadd.f32 %v303, %v373
      %v388 = vadd.f32 %v306, %v376
      %v389 = vadd.f32 %v309, %v379
      %s390 = scalar_lea.vmem %s165, 176
      %v391 = vld [vmem:[%s390] sm:$0xff]
      %v392 = vld [vmem:[%s390 + $0x8] sm:$0xff]
      %v393 = vld [vmem:[%s390 + $0x10] sm:$0xff]
      %v394 = vld [vmem:[%s390 + $0x18] sm:$0xff]
      %v395 = vld [vmem:[%s390 + $0x20] sm:$0xff]
      %v396 = vld [vmem:[%s390 + $0x28] sm:$0xff]
      %v397 = vld [vmem:[%s390 + $0x30] sm:$0xff]
      %v398 = vld [vmem:[%s390 + $0x38] sm:$0xff]
      %v399 = vld [vmem:[%s390 + $0x40] sm:$0xff]
      %s400 = scalar_lea.vmem %s1, 384
      %v401 = vld [vmem:[%s400] sm:$0xff]
      %v402 = vld [vmem:[%s400 + $0x8] sm:$0xff]
      %v403 = vld [vmem:[%s400 + $0x10] sm:$0xff]
      %v404 = vld [vmem:[%s400 + $0x18] sm:$0xff]
      %v405 = vld [vmem:[%s400 + $0x20] sm:$0xff]
      %v406 = vld [vmem:[%s400 + $0x28] sm:$0xff]
      %v407 = vld [vmem:[%s400 + $0x30] sm:$0xff]
      %v408 = vld [vmem:[%s400 + $0x38] sm:$0xff]
      %v409 = vld [vmem:[%s400 + $0x40] sm:$0xff]
      %v410 = vld [vmem:[%s400 + $0x48] sm:$0xff]
      %v411 = vld [vmem:[%s400 + $0x50] sm:$0xff]
      %v412 = vld [vmem:[%s400 + $0x58] sm:$0xff]
      %v413 = vld [vmem:[%s400 + $0x60] sm:$0xff]
      %v414 = vld [vmem:[%s400 + $0x68] sm:$0xff]
      %v415 = vld [vmem:[%s400 + $0x70] sm:$0xff]
      %v416 = vld [vmem:[%s400 + $0x78] sm:$0xff]
      %417 = vmatpush.msra.mxu0 %v416
      %418 = vmatpush.msra.mxu0 %v415
      %419 = vmatpush.msra.mxu0 %v414
      %420 = vmatpush.msra.mxu0 %v413
      %421 = vmatpush.msra.mxu0 %v412
      %422 = vmatpush.msra.mxu0 %v411
      %423 = vmatpush.msra.mxu0 %v410
      %424 = vmatpush.msra.mxu0 %v409
      %425 = vmatpush.msra.mxu0 %v408
      %426 = vmatpush.msra.mxu0 %v407
      %427 = vmatpush.msra.mxu0 %v406
      %428 = vmatpush.msra.mxu0 %v405
      %429 = vmatpush.msra.mxu0 %v404
      %430 = vmatpush.msra.mxu0 %v403
      %431 = vmatpush.msra.mxu0 %v402
      %432 = vmatpush.msra.mxu0 %v401
      %433 = vmatmul.f32.gmra.mxu0 %v391
      %v434 = vpop.f32.mrf.mxu0
      %v435 = vadd.f32 0.0, %v434
      %436 = vmatmul.f32.gmra.mxu0 %v392
      %v437 = vpop.f32.mrf.mxu0
      %v438 = vadd.f32 0.0, %v437
      %439 = vmatmul.f32.gmra.mxu0 %v393
      %v440 = vpop.f32.mrf.mxu0
      %v441 = vadd.f32 0.0, %v440
      %442 = vmatmul.f32.gmra.mxu0 %v394
      %v443 = vpop.f32.mrf.mxu0
      %v444 = vadd.f32 0.0, %v443
      %445 = vmatmul.f32.gmra.mxu0 %v395
      %v446 = vpop.f32.mrf.mxu0
      %v447 = vadd.f32 0.0, %v446
      %448 = vmatmul.f32.gmra.mxu0 %v396
      %v449 = vpop.f32.mrf.mxu0
      %v450 = vadd.f32 0.0, %v449
      %451 = vmatmul.f32.gmra.mxu0 %v397
      %v452 = vpop.f32.mrf.mxu0
      %v453 = vadd.f32 0.0, %v452
      %454 = vmatmul.f32.gmra.mxu0 %v398
      %v455 = vpop.f32.mrf.mxu0
      %v456 = vadd.f32 0.0, %v455
      %457 = vmatmul.f32.gmra.mxu0 %v399
      %v458 = vpop.f32.mrf.mxu0
      %v459 = vadd.f32 0.0, %v458
      %460 = vdwg.mxu0
      %v461 = vadd.f32 %v381, %v435
      %v462 = vadd.f32 %v382, %v438
      %v463 = vadd.f32 %v383, %v441
      %v464 = vadd.f32 %v384, %v444
      %v465 = vadd.f32 %v385, %v447
      %v466 = vadd.f32 %v386, %v450
      %v467 = vadd.f32 %v387, %v453
      %v468 = vadd.f32 %v388, %v456
      %v469 = vadd.f32 %v389, %v459
      %s470 = scalar_lea.vmem %s165, 264
      %v471 = vld [vmem:[%s470] sm:$0xff]
      %v472 = vld [vmem:[%s470 + $0x8] sm:$0xff]
      %v473 = vld [vmem:[%s470 + $0x10] sm:$0xff]
      %v474 = vld [vmem:[%s470 + $0x18] sm:$0xff]
      %v475 = vld [vmem:[%s470 + $0x20] sm:$0xff]
      %v476 = vld [vmem:[%s470 + $0x28] sm:$0xff]
      %v477 = vld [vmem:[%s470 + $0x30] sm:$0xff]
      %v478 = vld [vmem:[%s470 + $0x38] sm:$0xff]
      %v479 = vld [vmem:[%s470 + $0x40] sm:$0xff]
      %s480 = scalar_lea.vmem %s1, 512
      %v481 = vld [vmem:[%s480] sm:$0xff]
      %v482 = vld [vmem:[%s480 + $0x8] sm:$0xff]
      %v483 = vld [vmem:[%s480 + $0x10] sm:$0xff]
      %v484 = vld [vmem:[%s480 + $0x18] sm:$0xff]
      %v485 = vld [vmem:[%s480 + $0x20] sm:$0xff]
      %v486 = vld [vmem:[%s480 + $0x28] sm:$0xff]
      %v487 = vld [vmem:[%s480 + $0x30] sm:$0xff]
      %v488 = vld [vmem:[%s480 + $0x38] sm:$0xff]
      %v489 = vld [vmem:[%s480 + $0x40] sm:$0xff]
      %v490 = vld [vmem:[%s480 + $0x48] sm:$0xff]
      %v491 = vld [vmem:[%s480 + $0x50] sm:$0xff]
      %v492 = vld [vmem:[%s480 + $0x58] sm:$0xff]
      %v493 = vld [vmem:[%s480 + $0x60] sm:$0xff]
      %v494 = vld [vmem:[%s480 + $0x68] sm:$0xff]
      %v495 = vld [vmem:[%s480 + $0x70] sm:$0xff]
      %v496 = vld [vmem:[%s480 + $0x78] sm:$0xff]
      %497 = vmatpush.msra.mxu0 %v496
      %498 = vmatpush.msra.mxu0 %v495
      %499 = vmatpush.msra.mxu0 %v494
      %500 = vmatpush.msra.mxu0 %v493
      %501 = vmatpush.msra.mxu0 %v492
      %502 = vmatpush.msra.mxu0 %v491
      %503 = vmatpush.msra.mxu0 %v490
      %504 = vmatpush.msra.mxu0 %v489
      %505 = vmatpush.msra.mxu0 %v488
      %506 = vmatpush.msra.mxu0 %v487
      %507 = vmatpush.msra.mxu0 %v486
      %508 = vmatpush.msra.mxu0 %v485
      %509 = vmatpush.msra.mxu0 %v484
      %510 = vmatpush.msra.mxu0 %v483
      %511 = vmatpush.msra.mxu0 %v482
      %512 = vmatpush.msra.mxu0 %v481
      %513 = vmatmul.f32.gmra.mxu0 %v471
      %v514 = vpop.f32.mrf.mxu0
      %v515 = vadd.f32 0.0, %v514
      %516 = vmatmul.f32.gmra.mxu0 %v472
      %v517 = vpop.f32.mrf.mxu0
      %v518 = vadd.f32 0.0, %v517
      %519 = vmatmul.f32.gmra.mxu0 %v473
      %v520 = vpop.f32.mrf.mxu0
      %v521 = vadd.f32 0.0, %v520
      %522 = vmatmul.f32.gmra.mxu0 %v474
      %v523 = vpop.f32.mrf.mxu0
      %v524 = vadd.f32 0.0, %v523
      %525 = vmatmul.f32.gmra.mxu0 %v475
      %v526 = vpop.f32.mrf.mxu0
      %v527 = vadd.f32 0.0, %v526
      %528 = vmatmul.f32.gmra.mxu0 %v476
      %v529 = vpop.f32.mrf.mxu0
      %v530 = vadd.f32 0.0, %v529
      %531 = vmatmul.f32.gmra.mxu0 %v477
      %v532 = vpop.f32.mrf.mxu0
      %v533 = vadd.f32 0.0, %v532
      %534 = vmatmul.f32.gmra.mxu0 %v478
      %v535 = vpop.f32.mrf.mxu0
      %v536 = vadd.f32 0.0, %v535
      %537 = vmatmul.f32.gmra.mxu0 %v479
      %v538 = vpop.f32.mrf.mxu0
      %v539 = vadd.f32 0.0, %v538
      %540 = vdwg.mxu0
      %v541 = vadd.f32 %v461, %v515
      %v542 = vadd.f32 %v462, %v518
      %v543 = vadd.f32 %v463, %v521
      %v544 = vadd.f32 %v464, %v524
      %v545 = vadd.f32 %v465, %v527
      %v546 = vadd.f32 %v466, %v530
      %v547 = vadd.f32 %v467, %v533
      %v548 = vadd.f32 %v468, %v536
      %v549 = vadd.f32 %v469, %v539
      %v550 = vld [vmem:[%s390 + $0x1] sm:$0xff]
      %v551 = vld [vmem:[%s390 + $0x9] sm:$0xff]
      %v552 = vld [vmem:[%s390 + $0x11] sm:$0xff]
      %v553 = vld [vmem:[%s390 + $0x19] sm:$0xff]
      %v554 = vld [vmem:[%s390 + $0x21] sm:$0xff]
      %v555 = vld [vmem:[%s390 + $0x29] sm:$0xff]
      %v556 = vld [vmem:[%s390 + $0x31] sm:$0xff]
      %v557 = vld [vmem:[%s390 + $0x39] sm:$0xff]
      %v558 = vld [vmem:[%s390 + $0x41] sm:$0xff]
      %s559 = scalar_lea.vmem %s1, 640
      %v560 = vld [vmem:[%s559] sm:$0xff]
      %v561 = vld [vmem:[%s559 + $0x8] sm:$0xff]
      %v562 = vld [vmem:[%s559 + $0x10] sm:$0xff]
      %v563 = vld [vmem:[%s559 + $0x18] sm:$0xff]
      %v564 = vld [vmem:[%s559 + $0x20] sm:$0xff]
      %v565 = vld [vmem:[%s559 + $0x28] sm:$0xff]
      %v566 = vld [vmem:[%s559 + $0x30] sm:$0xff]
      %v567 = vld [vmem:[%s559 + $0x38] sm:$0xff]
      %v568 = vld [vmem:[%s559 + $0x40] sm:$0xff]
      %v569 = vld [vmem:[%s559 + $0x48] sm:$0xff]
      %v570 = vld [vmem:[%s559 + $0x50] sm:$0xff]
      %v571 = vld [vmem:[%s559 + $0x58] sm:$0xff]
      %v572 = vld [vmem:[%s559 + $0x60] sm:$0xff]
      %v573 = vld [vmem:[%s559 + $0x68] sm:$0xff]
      %v574 = vld [vmem:[%s559 + $0x70] sm:$0xff]
      %v575 = vld [vmem:[%s559 + $0x78] sm:$0xff]
      %576 = vmatpush.msra.mxu0 %v575
      %577 = vmatpush.msra.mxu0 %v574
      %578 = vmatpush.msra.mxu0 %v573
      %579 = vmatpush.msra.mxu0 %v572
      %580 = vmatpush.msra.mxu0 %v571
      %581 = vmatpush.msra.mxu0 %v570
      %582 = vmatpush.msra.mxu0 %v569
      %583 = vmatpush.msra.mxu0 %v568
      %584 = vmatpush.msra.mxu0 %v567
      %585 = vmatpush.msra.mxu0 %v566
      %586 = vmatpush.msra.mxu0 %v565
      %587 = vmatpush.msra.mxu0 %v564
      %588 = vmatpush.msra.mxu0 %v563
      %589 = vmatpush.msra.mxu0 %v562
      %590 = vmatpush.msra.mxu0 %v561
      %591 = vmatpush.msra.mxu0 %v560
      %592 = vmatmul.f32.gmra.mxu0 %v550
      %v593 = vpop.f32.mrf.mxu0
      %v594 = vadd.f32 0.0, %v593
      %595 = vmatmul.f32.gmra.mxu0 %v551
      %v596 = vpop.f32.mrf.mxu0
      %v597 = vadd.f32 0.0, %v596
      %598 = vmatmul.f32.gmra.mxu0 %v552
      %v599 = vpop.f32.mrf.mxu0
      %v600 = vadd.f32 0.0, %v599
      %601 = vmatmul.f32.gmra.mxu0 %v553
      %v602 = vpop.f32.mrf.mxu0
      %v603 = vadd.f32 0.0, %v602
      %604 = vmatmul.f32.gmra.mxu0 %v554
      %v605 = vpop.f32.mrf.mxu0
      %v606 = vadd.f32 0.0, %v605
      %607 = vmatmul.f32.gmra.mxu0 %v555
      %v608 = vpop.f32.mrf.mxu0
      %v609 = vadd.f32 0.0, %v608
      %610 = vmatmul.f32.gmra.mxu0 %v556
      %v611 = vpop.f32.mrf.mxu0
      %v612 = vadd.f32 0.0, %v611
      %613 = vmatmul.f32.gmra.mxu0 %v557
      %v614 = vpop.f32.mrf.mxu0
      %v615 = vadd.f32 0.0, %v614
      %616 = vmatmul.f32.gmra.mxu0 %v558
      %v617 = vpop.f32.mrf.mxu0
      %v618 = vadd.f32 0.0, %v617
      %619 = vdwg.mxu0
      %v620 = vadd.f32 %v541, %v594
      %v621 = vadd.f32 %v542, %v597
      %v622 = vadd.f32 %v543, %v600
      %v623 = vadd.f32 %v544, %v603
      %v624 = vadd.f32 %v545, %v606
      %v625 = vadd.f32 %v546, %v609
      %v626 = vadd.f32 %v547, %v612
      %v627 = vadd.f32 %v548, %v615
      %v628 = vadd.f32 %v549, %v618
      %v629 = vld [vmem:[%s165 + $0x9] sm:$0xff]
      %v630 = vld [vmem:[%s165 + $0x11] sm:$0xff]
      %v631 = vld [vmem:[%s165 + $0x19] sm:$0xff]
      %v632 = vld [vmem:[%s165 + $0x21] sm:$0xff]
      %v633 = vld [vmem:[%s165 + $0x29] sm:$0xff]
      %v634 = vld [vmem:[%s165 + $0x31] sm:$0xff]
      %v635 = vld [vmem:[%s165 + $0x39] sm:$0xff]
      %v636 = vld [vmem:[%s165 + $0x41] sm:$0xff]
      %v637 = vld [vmem:[%s165 + $0x49] sm:$0xff]
      %s638 = scalar_lea.vmem %s1, 768
      %v639 = vld [vmem:[%s638] sm:$0xff]
      %v640 = vld [vmem:[%s638 + $0x8] sm:$0xff]
      %v641 = vld [vmem:[%s638 + $0x10] sm:$0xff]
      %v642 = vld [vmem:[%s638 + $0x18] sm:$0xff]
      %v643 = vld [vmem:[%s638 + $0x20] sm:$0xff]
      %v644 = vld [vmem:[%s638 + $0x28] sm:$0xff]
      %v645 = vld [vmem:[%s638 + $0x30] sm:$0xff]
      %v646 = vld [vmem:[%s638 + $0x38] sm:$0xff]
      %v647 = vld [vmem:[%s638 + $0x40] sm:$0xff]
      %v648 = vld [vmem:[%s638 + $0x48] sm:$0xff]
      %v649 = vld [vmem:[%s638 + $0x50] sm:$0xff]
      %v650 = vld [vmem:[%s638 + $0x58] sm:$0xff]
      %v651 = vld [vmem:[%s638 + $0x60] sm:$0xff]
      %v652 = vld [vmem:[%s638 + $0x68] sm:$0xff]
      %v653 = vld [vmem:[%s638 + $0x70] sm:$0xff]
      %v654 = vld [vmem:[%s638 + $0x78] sm:$0xff]
      %655 = vmatpush.msra.mxu0 %v654
      %656 = vmatpush.msra.mxu0 %v653
      %657 = vmatpush.msra.mxu0 %v652
      %658 = vmatpush.msra.mxu0 %v651
      %659 = vmatpush.msra.mxu0 %v650
      %660 = vmatpush.msra.mxu0 %v649
      %661 = vmatpush.msra.mxu0 %v648
      %662 = vmatpush.msra.mxu0 %v647
      %663 = vmatpush.msra.mxu0 %v646
      %664 = vmatpush.msra.mxu0 %v645
      %665 = vmatpush.msra.mxu0 %v644
      %666 = vmatpush.msra.mxu0 %v643
      %667 = vmatpush.msra.mxu0 %v642
      %668 = vmatpush.msra.mxu0 %v641
      %669 = vmatpush.msra.mxu0 %v640
      %670 = vmatpush.msra.mxu0 %v639
      %671 = vmatmul.f32.gmra.mxu0 %v629
      %v672 = vpop.f32.mrf.mxu0
      %v673 = vadd.f32 0.0, %v672
      %674 = vmatmul.f32.gmra.mxu0 %v630
      %v675 = vpop.f32.mrf.mxu0
      %v676 = vadd.f32 0.0, %v675
      %677 = vmatmul.f32.gmra.mxu0 %v631
      %v678 = vpop.f32.mrf.mxu0
      %v679 = vadd.f32 0.0, %v678
      %680 = vmatmul.f32.gmra.mxu0 %v632
      %v681 = vpop.f32.mrf.mxu0
      %v682 = vadd.f32 0.0, %v681
      %683 = vmatmul.f32.gmra.mxu0 %v633
      %v684 = vpop.f32.mrf.mxu0
      %v685 = vadd.f32 0.0, %v684
      %686 = vmatmul.f32.gmra.mxu0 %v634
      %v687 = vpop.f32.mrf.mxu0
      %v688 = vadd.f32 0.0, %v687
      %689 = vmatmul.f32.gmra.mxu0 %v635
      %v690 = vpop.f32.mrf.mxu0
      %v691 = vadd.f32 0.0, %v690
      %692 = vmatmul.f32.gmra.mxu0 %v636
      %v693 = vpop.f32.mrf.mxu0
      %v694 = vadd.f32 0.0, %v693
      %695 = vmatmul.f32.gmra.mxu0 %v637
      %v696 = vpop.f32.mrf.mxu0
      %v697 = vadd.f32 0.0, %v696
      %698 = vdwg.mxu0
      %v699 = vadd.f32 %v620, %v673
      %v700 = vadd.f32 %v621, %v676
      %v701 = vadd.f32 %v622, %v679
      %v702 = vadd.f32 %v623, %v682
      %v703 = vadd.f32 %v624, %v685
      %v704 = vadd.f32 %v625, %v688
      %v705 = vadd.f32 %v626, %v691
      %v706 = vadd.f32 %v627, %v694
      %v707 = vadd.f32 %v628, %v697
      %v708 = vld [vmem:[%s196 + $0x9] sm:$0xff]
      %v709 = vld [vmem:[%s196 + $0x11] sm:$0xff]
      %v710 = vld [vmem:[%s196 + $0x19] sm:$0xff]
      %v711 = vld [vmem:[%s196 + $0x21] sm:$0xff]
      %v712 = vld [vmem:[%s196 + $0x29] sm:$0xff]
      %v713 = vld [vmem:[%s196 + $0x31] sm:$0xff]
      %v714 = vld [vmem:[%s196 + $0x39] sm:$0xff]
      %v715 = vld [vmem:[%s196 + $0x41] sm:$0xff]
      %v716 = vld [vmem:[%s196 + $0x49] sm:$0xff]
      %s717 = scalar_lea.vmem %s1, 896
      %v718 = vld [vmem:[%s717] sm:$0xff]
      %v719 = vld [vmem:[%s717 + $0x8] sm:$0xff]
      %v720 = vld [vmem:[%s717 + $0x10] sm:$0xff]
      %v721 = vld [vmem:[%s717 + $0x18] sm:$0xff]
      %v722 = vld [vmem:[%s717 + $0x20] sm:$0xff]
      %v723 = vld [vmem:[%s717 + $0x28] sm:$0xff]
      %v724 = vld [vmem:[%s717 + $0x30] sm:$0xff]
      %v725 = vld [vmem:[%s717 + $0x38] sm:$0xff]
      %v726 = vld [vmem:[%s717 + $0x40] sm:$0xff]
      %v727 = vld [vmem:[%s717 + $0x48] sm:$0xff]
      %v728 = vld [vmem:[%s717 + $0x50] sm:$0xff]
      %v729 = vld [vmem:[%s717 + $0x58] sm:$0xff]
      %v730 = vld [vmem:[%s717 + $0x60] sm:$0xff]
      %v731 = vld [vmem:[%s717 + $0x68] sm:$0xff]
      %v732 = vld [vmem:[%s717 + $0x70] sm:$0xff]
      %v733 = vld [vmem:[%s717 + $0x78] sm:$0xff]
      %734 = vmatpush.msra.mxu0 %v733
      %735 = vmatpush.msra.mxu0 %v732
      %736 = vmatpush.msra.mxu0 %v731
      %737 = vmatpush.msra.mxu0 %v730
      %738 = vmatpush.msra.mxu0 %v729
      %739 = vmatpush.msra.mxu0 %v728
      %740 = vmatpush.msra.mxu0 %v727
      %741 = vmatpush.msra.mxu0 %v726
      %742 = vmatpush.msra.mxu0 %v725
      %743 = vmatpush.msra.mxu0 %v724
      %744 = vmatpush.msra.mxu0 %v723
      %745 = vmatpush.msra.mxu0 %v722
      %746 = vmatpush.msra.mxu0 %v721
      %747 = vmatpush.msra.mxu0 %v720
      %748 = vmatpush.msra.mxu0 %v719
      %749 = vmatpush.msra.mxu0 %v718
      %750 = vmatmul.f32.gmra.mxu0 %v708
      %v751 = vpop.f32.mrf.mxu0
      %v752 = vadd.f32 0.0, %v751
      %753 = vmatmul.f32.gmra.mxu0 %v709
      %v754 = vpop.f32.mrf.mxu0
      %v755 = vadd.f32 0.0, %v754
      %756 = vmatmul.f32.gmra.mxu0 %v710
      %v757 = vpop.f32.mrf.mxu0
      %v758 = vadd.f32 0.0, %v757
      %759 = vmatmul.f32.gmra.mxu0 %v711
      %v760 = vpop.f32.mrf.mxu0
      %v761 = vadd.f32 0.0, %v760
      %762 = vmatmul.f32.gmra.mxu0 %v712
      %v763 = vpop.f32.mrf.mxu0
      %v764 = vadd.f32 0.0, %v763
      %765 = vmatmul.f32.gmra.mxu0 %v713
      %v766 = vpop.f32.mrf.mxu0
      %v767 = vadd.f32 0.0, %v766
      %768 = vmatmul.f32.gmra.mxu0 %v714
      %v769 = vpop.f32.mrf.mxu0
      %v770 = vadd.f32 0.0, %v769
      %771 = vmatmul.f32.gmra.mxu0 %v715
      %v772 = vpop.f32.mrf.mxu0
      %v773 = vadd.f32 0.0, %v772
      %774 = vmatmul.f32.gmra.mxu0 %v716
      %v775 = vpop.f32.mrf.mxu0
      %v776 = vadd.f32 0.0, %v775
      %777 = vdwg.mxu0
      %v778 = vadd.f32 %v699, %v752
      %v779 = vadd.f32 %v700, %v755
      %v780 = vadd.f32 %v701, %v758
      %v781 = vadd.f32 %v702, %v761
      %v782 = vadd.f32 %v703, %v764
      %v783 = vadd.f32 %v704, %v767
      %v784 = vadd.f32 %v705, %v770
      %v785 = vadd.f32 %v706, %v773
      %v786 = vadd.f32 %v707, %v776
      %v787 = vld [vmem:[%s165 + $0xa] sm:$0xff]
      %v788 = vld [vmem:[%s165 + $0x12] sm:$0xff]
      %v789 = vld [vmem:[%s165 + $0x1a] sm:$0xff]
      %v790 = vld [vmem:[%s165 + $0x22] sm:$0xff]
      %v791 = vld [vmem:[%s165 + $0x2a] sm:$0xff]
      %v792 = vld [vmem:[%s165 + $0x32] sm:$0xff]
      %v793 = vld [vmem:[%s165 + $0x3a] sm:$0xff]
      %v794 = vld [vmem:[%s165 + $0x42] sm:$0xff]
      %v795 = vld [vmem:[%s165 + $0x4a] sm:$0xff]
      %s796 = scalar_lea.vmem %s1, 1024
      %v797 = vld [vmem:[%s796] sm:$0xff]
      %v798 = vld [vmem:[%s796 + $0x8] sm:$0xff]
      %v799 = vld [vmem:[%s796 + $0x10] sm:$0xff]
      %v800 = vld [vmem:[%s796 + $0x18] sm:$0xff]
      %v801 = vld [vmem:[%s796 + $0x20] sm:$0xff]
      %v802 = vld [vmem:[%s796 + $0x28] sm:$0xff]
      %v803 = vld [vmem:[%s796 + $0x30] sm:$0xff]
      %v804 = vld [vmem:[%s796 + $0x38] sm:$0xff]
      %v805 = vld [vmem:[%s796 + $0x40] sm:$0xff]
      %v806 = vld [vmem:[%s796 + $0x48] sm:$0xff]
      %v807 = vld [vmem:[%s796 + $0x50] sm:$0xff]
      %v808 = vld [vmem:[%s796 + $0x58] sm:$0xff]
      %v809 = vld [vmem:[%s796 + $0x60] sm:$0xff]
      %v810 = vld [vmem:[%s796 + $0x68] sm:$0xff]
      %v811 = vld [vmem:[%s796 + $0x70] sm:$0xff]
      %v812 = vld [vmem:[%s796 + $0x78] sm:$0xff]
      %813 = vmatpush.msra.mxu0 %v812
      %814 = vmatpush.msra.mxu0 %v811
      %815 = vmatpush.msra.mxu0 %v810
      %816 = vmatpush.msra.mxu0 %v809
      %817 = vmatpush.msra.mxu0 %v808
      %818 = vmatpush.msra.mxu0 %v807
      %819 = vmatpush.msra.mxu0 %v806
      %820 = vmatpush.msra.mxu0 %v805
      %821 = vmatpush.msra.mxu0 %v804
      %822 = vmatpush.msra.mxu0 %v803
      %823 = vmatpush.msra.mxu0 %v802
      %824 = vmatpush.msra.mxu0 %v801
      %825 = vmatpush.msra.mxu0 %v800
      %826 = vmatpush.msra.mxu0 %v799
      %827 = vmatpush.msra.mxu0 %v798
      %828 = vmatpush.msra.mxu0 %v797
      %829 = vmatmul.f32.gmra.mxu0 %v787
      %v830 = vpop.f32.mrf.mxu0
      %v831 = vadd.f32 0.0, %v830
      %832 = vmatmul.f32.gmra.mxu0 %v788
      %v833 = vpop.f32.mrf.mxu0
      %v834 = vadd.f32 0.0, %v833
      %835 = vmatmul.f32.gmra.mxu0 %v789
      %v836 = vpop.f32.mrf.mxu0
      %v837 = vadd.f32 0.0, %v836
      %838 = vmatmul.f32.gmra.mxu0 %v790
      %v839 = vpop.f32.mrf.mxu0
      %v840 = vadd.f32 0.0, %v839
      %841 = vmatmul.f32.gmra.mxu0 %v791
      %v842 = vpop.f32.mrf.mxu0
      %v843 = vadd.f32 0.0, %v842
      %844 = vmatmul.f32.gmra.mxu0 %v792
      %v845 = vpop.f32.mrf.mxu0
      %v846 = vadd.f32 0.0, %v845
      %847 = vmatmul.f32.gmra.mxu0 %v793
      %v848 = vpop.f32.mrf.mxu0
      %v849 = vadd.f32 0.0, %v848
      %850 = vmatmul.f32.gmra.mxu0 %v794
      %v851 = vpop.f32.mrf.mxu0
      %v852 = vadd.f32 0.0, %v851
      %853 = vmatmul.f32.gmra.mxu0 %v795
      %v854 = vpop.f32.mrf.mxu0
      %v855 = vadd.f32 0.0, %v854
      %856 = vdwg.mxu0
      %v857 = vadd.f32 %v778, %v831
      %v858 = vadd.f32 %v779, %v834
      %v859 = vadd.f32 %v780, %v837
      %v860 = vadd.f32 %v781, %v840
      %v861 = vadd.f32 %v782, %v843
      %v862 = vadd.f32 %v783, %v846
      %v863 = vadd.f32 %v784, %v849
      %v864 = vadd.f32 %v785, %v852
      %v865 = vadd.f32 %v786, %v855
      %v866 = vld [vmem:[%s2] sm:$0x1]
      %v868 = vperm.slane %v866, 0
      %v870 = vadd.f32 %v857, %v868
      %v871 = vadd.f32 %v858, %v868
      %v872 = vadd.f32 %v859, %v868
      %v873 = vadd.f32 %v860, %v868
      %v874 = vadd.f32 %v861, %v868
      %v875 = vadd.f32 %v862, %v868
      %v876 = vadd.f32 %v863, %v868
      %v877 = vadd.f32 %v864, %v868
      %v878 = vadd.f32 %v865, %v868
      %v879 = vmul.f32 %v870, 0.5
      %v880 = vmul.f32 %v871, 0.5
      %v881 = vmul.f32 %v872, 0.5
      %v882 = vmul.f32 %v873, 0.5
      %v883 = vmul.f32 %v874, 0.5
      %v884 = vmul.f32 %v875, 0.5
      %v885 = vmul.f32 %v876, 0.5
      %v886 = vmul.f32 %v877, 0.5
      %v887 = vmul.f32 %v878, 0.5
      %v888 = vmul.f32 %v870, 0.70710677
      %v889 = vmul.f32 %v871, 0.70710677
      %v890 = vmul.f32 %v872, 0.70710677
      %v891 = vmul.f32 %v873, 0.70710677
      %v892 = vmul.f32 %v874, 0.70710677
      %v893 = vmul.f32 %v875, 0.70710677
      %v894 = vmul.f32 %v876, 0.70710677
      %v895 = vmul.f32 %v877, 0.70710677
      %v896 = vmul.f32 %v878, 0.70710677
      %v897 = vmul.f32 %v888, %v888
      %v898 = vmin.f32 16.0, %v897
      %v899 = vmul.f32 %v898, 2.1237322e-06
      %v900 = vadd.f32 %v899, 0.00028619796
      %v901 = vmul.f32 %v898, %v900
      %v902 = vadd.f32 %v901, 0.0036580483
      %v903 = vmul.f32 %v898, %v902
      %v904 = vadd.f32 %v903, 0.05243302
      %v905 = vmul.f32 %v898, %v904
      %v906 = vadd.f32 %v905, 0.18741608
      %v907 = vmul.f32 %v898, %v906
      %v908 = vadd.f32 %v907, 1.1283791
      %v909 = vmul.f32 %v888, %v908
      %v910 = vmul.f32 %v898, 3.8918573e-05
      %v911 = vadd.f32 %v910, 0.001143296
      %v912 = vmul.f32 %v898, %v911
      %v913 = vadd.f32 %v912, 0.014752088
      %v914 = vmul.f32 %v898, %v913
      %v915 = vadd.f32 %v914, 0.112945676
      %v916 = vmul.f32 %v898, %v915
      %v917 = vadd.f32 %v916, 0.4994258
      %v918 = vmul.f32 %v898, %v917
      %v919 = vadd.f32 %v918, 1.0
      %v920 = vrcp.pop %v919
      %v921 = vmul.f32 %v919, %v920
      %v922 = vsub.f32 1.0, %v921
      %v923 = vmul.f32 %v920, %v922
      %v924 = vadd.f32 %v920, %v923
      %vm925 = vweird.f32 %v919
      %vm926 = vweird.f32 %v920
      %vm927 = vmor %vm925, %vm926
      %v928 = vsel %vm927, %v920, %v924
      %v929 = vand.u32 2147483647, %v919
      %vm930 = vcmp.eq.f32.partialorder %v929, 8.507059e+37
      %v931 = vand.u32 %v919, 2147483648
      %v932 = vor.u32 1.1754944e-38, %v931
      %v933 = vsel %vm930, %v932, %v928
      %v934 = vmul.f32 %v909, %v933
      %v935 = vmin.f32 %v934, 1.0
      %v936 = vmax.f32 %v935, -1.0
      %v937 = vmul.f32 %v889, %v889
      %v938 = vmin.f32 16.0, %v937
      %v939 = vmul.f32 %v938, 2.1237322e-06
      %v940 = vadd.f32 %v939, 0.00028619796
      %v941 = vmul.f32 %v938, %v940
      %v942 = vadd.f32 %v941, 0.0036580483
      %v943 = vmul.f32 %v938, %v942
      %v944 = vadd.f32 %v943, 0.05243302
      %v945 = vmul.f32 %v938, %v944
      %v946 = vadd.f32 %v945, 0.18741608
      %v947 = vmul.f32 %v938, %v946
      %v948 = vadd.f32 %v947, 1.1283791
      %v949 = vmul.f32 %v889, %v948
      %v950 = vmul.f32 %v938, 3.8918573e-05
      %v951 = vadd.f32 %v950, 0.001143296
      %v952 = vmul.f32 %v938, %v951
      %v953 = vadd.f32 %v952, 0.014752088
      %v954 = vmul.f32 %v938, %v953
      %v955 = vadd.f32 %v954, 0.112945676
      %v956 = vmul.f32 %v938, %v955
      %v957 = vadd.f32 %v956, 0.4994258
      %v958 = vmul.f32 %v938, %v957
      %v959 = vadd.f32 %v958, 1.0
      %v960 = vrcp.pop %v959
      %v961 = vmul.f32 %v959, %v960
      %v962 = vsub.f32 1.0, %v961
      %v963 = vmul.f32 %v960, %v962
      %v964 = vadd.f32 %v960, %v963
      %vm965 = vweird.f32 %v959
      %vm966 = vweird.f32 %v960
      %vm967 = vmor %vm965, %vm966
      %v968 = vsel %vm967, %v960, %v964
      %v969 = vand.u32 2147483647, %v959
      %vm970 = vcmp.eq.f32.partialorder %v969, 8.507059e+37
      %v971 = vand.u32 %v959, 2147483648
      %v972 = vor.u32 1.1754944e-38, %v971
      %v973 = vsel %vm970, %v972, %v968
      %v974 = vmul.f32 %v949, %v973
      %v975 = vmin.f32 %v974, 1.0
      %v976 = vmax.f32 %v975, -1.0
      %v977 = vmul.f32 %v890, %v890
      %v978 = vmin.f32 16.0, %v977
      %v979 = vmul.f32 %v978, 2.1237322e-06
      %v980 = vadd.f32 %v979, 0.00028619796
      %v981 = vmul.f32 %v978, %v980
      %v982 = vadd.f32 %v981, 0.0036580483
      %v983 = vmul.f32 %v978, %v982
      %v984 = vadd.f32 %v983, 0.05243302
      %v985 = vmul.f32 %v978, %v984
      %v986 = vadd.f32 %v985, 0.18741608
      %v987 = vmul.f32 %v978, %v986
      %v988 = vadd.f32 %v987, 1.1283791
      %v989 = vmul.f32 %v890, %v988
      %v990 = vmul.f32 %v978, 3.8918573e-05
      %v991 = vadd.f32 %v990, 0.001143296
      %v992 = vmul.f32 %v978, %v991
      %v993 = vadd.f32 %v992, 0.014752088
      %v994 = vmul.f32 %v978, %v993
      %v995 = vadd.f32 %v994, 0.112945676
      %v996 = vmul.f32 %v978, %v995
      %v997 = vadd.f32 %v996, 0.4994258
      %v998 = vmul.f32 %v978, %v997
      %v999 = vadd.f32 %v998, 1.0
      %v1000 = vrcp.pop %v999
      %v1001 = vmul.f32 %v999, %v1000
      %v1002 = vsub.f32 1.0, %v1001
      %v1003 = vmul.f32 %v1000, %v1002
      %v1004 = vadd.f32 %v1000, %v1003
      %vm1005 = vweird.f32 %v999
      %vm1006 = vweird.f32 %v1000
      %vm1007 = vmor %vm1005, %vm1006
      %v1008 = vsel %vm1007, %v1000, %v1004
      %v1009 = vand.u32 2147483647, %v999
      %vm1010 = vcmp.eq.f32.partialorder %v1009, 8.507059e+37
      %v1011 = vand.u32 %v999, 2147483648
      %v1012 = vor.u32 1.1754944e-38, %v1011
      %v1013 = vsel %vm1010, %v1012, %v1008
      %v1014 = vmul.f32 %v989, %v1013
      %v1015 = vmin.f32 %v1014, 1.0
      %v1016 = vmax.f32 %v1015, -1.0
      %v1017 = vmul.f32 %v891, %v891
      %v1018 = vmin.f32 16.0, %v1017
      %v1019 = vmul.f32 %v1018, 2.1237322e-06
      %v1020 = vadd.f32 %v1019, 0.00028619796
      %v1021 = vmul.f32 %v1018, %v1020
      %v1022 = vadd.f32 %v1021, 0.0036580483
      %v1023 = vmul.f32 %v1018, %v1022
      %v1024 = vadd.f32 %v1023, 0.05243302
      %v1025 = vmul.f32 %v1018, %v1024
      %v1026 = vadd.f32 %v1025, 0.18741608
      %v1027 = vmul.f32 %v1018, %v1026
      %v1028 = vadd.f32 %v1027, 1.1283791
      %v1029 = vmul.f32 %v891, %v1028
      %v1030 = vmul.f32 %v1018, 3.8918573e-05
      %v1031 = vadd.f32 %v1030, 0.001143296
      %v1032 = vmul.f32 %v1018, %v1031
      %v1033 = vadd.f32 %v1032, 0.014752088
      %v1034 = vmul.f32 %v1018, %v1033
      %v1035 = vadd.f32 %v1034, 0.112945676
      %v1036 = vmul.f32 %v1018, %v1035
      %v1037 = vadd.f32 %v1036, 0.4994258
      %v1038 = vmul.f32 %v1018, %v1037
      %v1039 = vadd.f32 %v1038, 1.0
      %v1040 = vrcp.pop %v1039
      %v1041 = vmul.f32 %v1039, %v1040
      %v1042 = vsub.f32 1.0, %v1041
      %v1043 = vmul.f32 %v1040, %v1042
      %v1044 = vadd.f32 %v1040, %v1043
      %vm1045 = vweird.f32 %v1039
      %vm1046 = vweird.f32 %v1040
      %vm1047 = vmor %vm1045, %vm1046
      %v1048 = vsel %vm1047, %v1040, %v1044
      %v1049 = vand.u32 2147483647, %v1039
      %vm1050 = vcmp.eq.f32.partialorder %v1049, 8.507059e+37
      %v1051 = vand.u32 %v1039, 2147483648
      %v1052 = vor.u32 1.1754944e-38, %v1051
      %v1053 = vsel %vm1050, %v1052, %v1048
      %v1054 = vmul.f32 %v1029, %v1053
      %v1055 = vmin.f32 %v1054, 1.0
      %v1056 = vmax.f32 %v1055, -1.0
      %v1057 = vmul.f32 %v892, %v892
      %v1058 = vmin.f32 16.0, %v1057
      %v1059 = vmul.f32 %v1058, 2.1237322e-06
      %v1060 = vadd.f32 %v1059, 0.00028619796
      %v1061 = vmul.f32 %v1058, %v1060
      %v1062 = vadd.f32 %v1061, 0.0036580483
      %v1063 = vmul.f32 %v1058, %v1062
      %v1064 = vadd.f32 %v1063, 0.05243302
      %v1065 = vmul.f32 %v1058, %v1064
      %v1066 = vadd.f32 %v1065, 0.18741608
      %v1067 = vmul.f32 %v1058, %v1066
      %v1068 = vadd.f32 %v1067, 1.1283791
      %v1069 = vmul.f32 %v892, %v1068
      %v1070 = vmul.f32 %v1058, 3.8918573e-05
      %v1071 = vadd.f32 %v1070, 0.001143296
      %v1072 = vmul.f32 %v1058, %v1071
      %v1073 = vadd.f32 %v1072, 0.014752088
      %v1074 = vmul.f32 %v1058, %v1073
      %v1075 = vadd.f32 %v1074, 0.112945676
      %v1076 = vmul.f32 %v1058, %v1075
      %v1077 = vadd.f32 %v1076, 0.4994258
      %v1078 = vmul.f32 %v1058, %v1077
      %v1079 = vadd.f32 %v1078, 1.0
      %v1080 = vrcp.pop %v1079
      %v1081 = vmul.f32 %v1079, %v1080
      %v1082 = vsub.f32 1.0, %v1081
      %v1083 = vmul.f32 %v1080, %v1082
      %v1084 = vadd.f32 %v1080, %v1083
      %vm1085 = vweird.f32 %v1079
      %vm1086 = vweird.f32 %v1080
      %vm1087 = vmor %vm1085, %vm1086
      %v1088 = vsel %vm1087, %v1080, %v1084
      %v1089 = vand.u32 2147483647, %v1079
      %vm1090 = vcmp.eq.f32.partialorder %v1089, 8.507059e+37
      %v1091 = vand.u32 %v1079, 2147483648
      %v1092 = vor.u32 1.1754944e-38, %v1091
      %v1093 = vsel %vm1090, %v1092, %v1088
      %v1094 = vmul.f32 %v1069, %v1093
      %v1095 = vmin.f32 %v1094, 1.0
      %v1096 = vmax.f32 %v1095, -1.0
      %v1097 = vmul.f32 %v893, %v893
      %v1098 = vmin.f32 16.0, %v1097
      %v1099 = vmul.f32 %v1098, 2.1237322e-06
      %v1100 = vadd.f32 %v1099, 0.00028619796
      %v1101 = vmul.f32 %v1098, %v1100
      %v1102 = vadd.f32 %v1101, 0.0036580483
      %v1103 = vmul.f32 %v1098, %v1102
      %v1104 = vadd.f32 %v1103, 0.05243302
      %v1105 = vmul.f32 %v1098, %v1104
      %v1106 = vadd.f32 %v1105, 0.18741608
      %v1107 = vmul.f32 %v1098, %v1106
      %v1108 = vadd.f32 %v1107, 1.1283791
      %v1109 = vmul.f32 %v893, %v1108
      %v1110 = vmul.f32 %v1098, 3.8918573e-05
      %v1111 = vadd.f32 %v1110, 0.001143296
      %v1112 = vmul.f32 %v1098, %v1111
      %v1113 = vadd.f32 %v1112, 0.014752088
      %v1114 = vmul.f32 %v1098, %v1113
      %v1115 = vadd.f32 %v1114, 0.112945676
      %v1116 = vmul.f32 %v1098, %v1115
      %v1117 = vadd.f32 %v1116, 0.4994258
      %v1118 = vmul.f32 %v1098, %v1117
      %v1119 = vadd.f32 %v1118, 1.0
      %v1120 = vrcp.pop %v1119
      %v1121 = vmul.f32 %v1119, %v1120
      %v1122 = vsub.f32 1.0, %v1121
      %v1123 = vmul.f32 %v1120, %v1122
      %v1124 = vadd.f32 %v1120, %v1123
      %vm1125 = vweird.f32 %v1119
      %vm1126 = vweird.f32 %v1120
      %vm1127 = vmor %vm1125, %vm1126
      %v1128 = vsel %vm1127, %v1120, %v1124
      %v1129 = vand.u32 2147483647, %v1119
      %vm1130 = vcmp.eq.f32.partialorder %v1129, 8.507059e+37
      %v1131 = vand.u32 %v1119, 2147483648
      %v1132 = vor.u32 1.1754944e-38, %v1131
      %v1133 = vsel %vm1130, %v1132, %v1128
      %v1134 = vmul.f32 %v1109, %v1133
      %v1135 = vmin.f32 %v1134, 1.0
      %v1136 = vmax.f32 %v1135, -1.0
      %v1137 = vmul.f32 %v894, %v894
      %v1138 = vmin.f32 16.0, %v1137
      %v1139 = vmul.f32 %v1138, 2.1237322e-06
      %v1140 = vadd.f32 %v1139, 0.00028619796
      %v1141 = vmul.f32 %v1138, %v1140
      %v1142 = vadd.f32 %v1141, 0.0036580483
      %v1143 = vmul.f32 %v1138, %v1142
      %v1144 = vadd.f32 %v1143, 0.05243302
      %v1145 = vmul.f32 %v1138, %v1144
      %v1146 = vadd.f32 %v1145, 0.18741608
      %v1147 = vmul.f32 %v1138, %v1146
      %v1148 = vadd.f32 %v1147, 1.1283791
      %v1149 = vmul.f32 %v894, %v1148
      %v1150 = vmul.f32 %v1138, 3.8918573e-05
      %v1151 = vadd.f32 %v1150, 0.001143296
      %v1152 = vmul.f32 %v1138, %v1151
      %v1153 = vadd.f32 %v1152, 0.014752088
      %v1154 = vmul.f32 %v1138, %v1153
      %v1155 = vadd.f32 %v1154, 0.112945676
      %v1156 = vmul.f32 %v1138, %v1155
      %v1157 = vadd.f32 %v1156, 0.4994258
      %v1158 = vmul.f32 %v1138, %v1157
      %v1159 = vadd.f32 %v1158, 1.0
      %v1160 = vrcp.pop %v1159
      %v1161 = vmul.f32 %v1159, %v1160
      %v1162 = vsub.f32 1.0, %v1161
      %v1163 = vmul.f32 %v1160, %v1162
      %v1164 = vadd.f32 %v1160, %v1163
      %vm1165 = vweird.f32 %v1159
      %vm1166 = vweird.f32 %v1160
      %vm1167 = vmor %vm1165, %vm1166
      %v1168 = vsel %vm1167, %v1160, %v1164
      %v1169 = vand.u32 2147483647, %v1159
      %vm1170 = vcmp.eq.f32.partialorder %v1169, 8.507059e+37
      %v1171 = vand.u32 %v1159, 2147483648
      %v1172 = vor.u32 1.1754944e-38, %v1171
      %v1173 = vsel %vm1170, %v1172, %v1168
      %v1174 = vmul.f32 %v1149, %v1173
      %v1175 = vmin.f32 %v1174, 1.0
      %v1176 = vmax.f32 %v1175, -1.0
      %v1177 = vmul.f32 %v895, %v895
      %v1178 = vmin.f32 16.0, %v1177
      %v1179 = vmul.f32 %v1178, 2.1237322e-06
      %v1180 = vadd.f32 %v1179, 0.00028619796
      %v1181 = vmul.f32 %v1178, %v1180
      %v1182 = vadd.f32 %v1181, 0.0036580483
      %v1183 = vmul.f32 %v1178, %v1182
      %v1184 = vadd.f32 %v1183, 0.05243302
      %v1185 = vmul.f32 %v1178, %v1184
      %v1186 = vadd.f32 %v1185, 0.18741608
      %v1187 = vmul.f32 %v1178, %v1186
      %v1188 = vadd.f32 %v1187, 1.1283791
      %v1189 = vmul.f32 %v895, %v1188
      %v1190 = vmul.f32 %v1178, 3.8918573e-05
      %v1191 = vadd.f32 %v1190, 0.001143296
      %v1192 = vmul.f32 %v1178, %v1191
      %v1193 = vadd.f32 %v1192, 0.014752088
      %v1194 = vmul.f32 %v1178, %v1193
      %v1195 = vadd.f32 %v1194, 0.112945676
      %v1196 = vmul.f32 %v1178, %v1195
      %v1197 = vadd.f32 %v1196, 0.4994258
      %v1198 = vmul.f32 %v1178, %v1197
      %v1199 = vadd.f32 %v1198, 1.0
      %v1200 = vrcp.pop %v1199
      %v1201 = vmul.f32 %v1199, %v1200
      %v1202 = vsub.f32 1.0, %v1201
      %v1203 = vmul.f32 %v1200, %v1202
      %v1204 = vadd.f32 %v1200, %v1203
      %vm1205 = vweird.f32 %v1199
      %vm1206 = vweird.f32 %v1200
      %vm1207 = vmor %vm1205, %vm1206
      %v1208 = vsel %vm1207, %v1200, %v1204
      %v1209 = vand.u32 2147483647, %v1199
      %vm1210 = vcmp.eq.f32.partialorder %v1209, 8.507059e+37
      %v1211 = vand.u32 %v1199, 2147483648
      %v1212 = vor.u32 1.1754944e-38, %v1211
      %v1213 = vsel %vm1210, %v1212, %v1208
      %v1214 = vmul.f32 %v1189, %v1213
      %v1215 = vmin.f32 %v1214, 1.0
      %v1216 = vmax.f32 %v1215, -1.0
      %v1217 = vmul.f32 %v896, %v896
      %v1218 = vmin.f32 16.0, %v1217
      %v1219 = vmul.f32 %v1218, 2.1237322e-06
      %v1220 = vadd.f32 %v1219, 0.00028619796
      %v1221 = vmul.f32 %v1218, %v1220
      %v1222 = vadd.f32 %v1221, 0.0036580483
      %v1223 = vmul.f32 %v1218, %v1222
      %v1224 = vadd.f32 %v1223, 0.05243302
      %v1225 = vmul.f32 %v1218, %v1224
      %v1226 = vadd.f32 %v1225, 0.18741608
      %v1227 = vmul.f32 %v1218, %v1226
      %v1228 = vadd.f32 %v1227, 1.1283791
      %v1229 = vmul.f32 %v896, %v1228
      %v1230 = vmul.f32 %v1218, 3.8918573e-05
      %v1231 = vadd.f32 %v1230, 0.001143296
      %v1232 = vmul.f32 %v1218, %v1231
      %v1233 = vadd.f32 %v1232, 0.014752088
      %v1234 = vmul.f32 %v1218, %v1233
      %v1235 = vadd.f32 %v1234, 0.112945676
      %v1236 = vmul.f32 %v1218, %v1235
      %v1237 = vadd.f32 %v1236, 0.4994258
      %v1238 = vmul.f32 %v1218, %v1237
      %v1239 = vadd.f32 %v1238, 1.0
      %v1240 = vrcp.pop %v1239
      %v1241 = vmul.f32 %v1239, %v1240
      %v1242 = vsub.f32 1.0, %v1241
      %v1243 = vmul.f32 %v1240, %v1242
      %v1244 = vadd.f32 %v1240, %v1243
      %vm1245 = vweird.f32 %v1239
      %vm1246 = vweird.f32 %v1240
      %vm1247 = vmor %vm1245, %vm1246
      %v1248 = vsel %vm1247, %v1240, %v1244
      %v1249 = vand.u32 2147483647, %v1239
      %vm1250 = vcmp.eq.f32.partialorder %v1249, 8.507059e+37
      %v1251 = vand.u32 %v1239, 2147483648
      %v1252 = vor.u32 1.1754944e-38, %v1251
      %v1253 = vsel %vm1250, %v1252, %v1248
      %v1254 = vmul.f32 %v1229, %v1253
      %v1255 = vmin.f32 %v1254, 1.0
      %v1256 = vmax.f32 %v1255, -1.0
      %v1257 = vadd.f32 %v936, 1.0
      %v1258 = vadd.f32 %v976, 1.0
      %v1259 = vadd.f32 %v1016, 1.0
      %v1260 = vadd.f32 %v1056, 1.0
      %v1261 = vadd.f32 %v1096, 1.0
      %v1262 = vadd.f32 %v1136, 1.0
      %v1263 = vadd.f32 %v1176, 1.0
      %v1264 = vadd.f32 %v1216, 1.0
      %v1265 = vadd.f32 %v1256, 1.0
      %v1266 = vmul.f32 %v879, %v1257
      %v1267 = vmul.f32 %v880, %v1258
      %v1268 = vmul.f32 %v881, %v1259
      %v1269 = vmul.f32 %v882, %v1260
      %v1270 = vmul.f32 %v883, %v1261
      %v1271 = vmul.f32 %v884, %v1262
      %v1272 = vmul.f32 %v885, %v1263
      %v1273 = vmul.f32 %v886, %v1264
      %v1274 = vmul.f32 %v887, %v1265
      %1275 = vst [vmem:[%s170] sm:$0xff] %v1266
      %1276 = vst [vmem:[%s170 + $0x8] sm:$0xff] %v1267
      %1277 = vst [vmem:[%s170 + $0x10] sm:$0xff] %v1268
      %1278 = vst [vmem:[%s170 + $0x18] sm:$0xff] %v1269
      %1279 = vst [vmem:[%s170 + $0x20] sm:$0xff] %v1270
      %1280 = vst [vmem:[%s170 + $0x28] sm:$0xff] %v1271
      %1281 = vst [vmem:[%s170 + $0x30] sm:$0xff] %v1272
      %1282 = vst [vmem:[%s170 + $0x38] sm:$0xff] %v1273
      %1283 = vst [vmem:[%s170 + $0x40] sm:$0xff] %v1274
      %p1284 = scmp.lt.s32.totalorder %s14, 1
      %s1285 = scalar_select %p1284, %s14, 1
      %s1286 = smul.addr %s1285, 9
      %s1287 = smul.addr %s1286, 8
      %s1288 = scalar_lea.vmem %s3, %s1287
      // Predicated region
      $region33: #{_lambda_.5} parent=31 // pred_check
        %p1289 = pneg %p100
      $region34: #{_lambda_.5} parent=31 // pred_check_branch
        %1291 = sbr.rel (%p1289) target = $region36
      $region35: #{_lambda_.5} parent=31 // pred_region
        _
      $region36: #{_lambda_.5} parent=31 // pred_fallthru
        _
    $region32: #{_lambda_.5} parent=5 // pred_fallthru
      _
    %p1292 = scmp.le.s32.totalorder 2, %s9
    // Predicated region
    $region37: #{_lambda_.5} parent=5 // pred_check
      %p1293 = pneg %p1292
    $region38: #{_lambda_.5} parent=5 // pred_check_branch
      %1295 = sbr.rel (%p1293) target = $region40
    $region39: #{_lambda_.5} parent=5 // pred_region
      %s1296 = ssub.s32 %s9, 2
      // Predicated region
      $region41: #{_lambda_.5} parent=39 // pred_check
        %p1297 = pneg %p106
      $region42: #{_lambda_.5} parent=39 // pred_check_branch
        %1299 = sbr.rel (%p1297) target = $region44
      $region43: #{_lambda_.5} parent=39 // pred_region
        %p1300 = scmp.lt.s32.totalorder %s15, 1
        %s1301 = scalar_select %p1300, %s15, 1
        %s1302 = smul.addr %s1301, 9
        %s1303 = smul.addr %s1302, 8
        %s1304 = scalar_lea.vmem %s3, %s1303
      $region44: #{_lambda_.5} parent=39 // pred_fallthru
        _
    $region40: #{_lambda_.5} parent=5 // pred_fallthru
      _
  $region6: #{_lambda_.5} parent=0 // loop_footer
    %s13 = sadd.s32 1, %s9
  $region7: #{_lambda_.5} parent=0 // loop_footer_branch
    %8 = sbr.rel target = $region3
  $region8: #{_lambda_.5} parent=0 // loop_exit
    _

// kernel: _lambda_.6
$region0: #{_lambda_.6}
  #allocation0 [shape = 'u32[]', space=smem, size = 0x4, offset = 0x4, fixed_abs, tag = 'smem constant byte address 0x4 - core index']
  #allocation1 [shape = 'u32[72,128]{1,0:T(1,128)}', space=vmem, size = 0x9000, scoped, tag = 'internal scratch']
  %s0 = inlined_call_operand.vmem [shape: f32[2,2,2,32,128], index: 0, kind: input, shape index: {}]
  %s1 = inlined_call_operand.vmem [shape: f32[9,128,128], index: 1, kind: input, shape index: {}]
  %s2 = inlined_call_operand.vmem [shape: f32[1,128], index: 2, kind: input, shape index: {}]
  %s3 = inlined_call_operand.vmem [shape: f32[2,20,128], index: 3, kind: output, shape index: {}]
  %s4 = sld [smem:[#allocation0]]
  $region45: #{_lambda_.6} parent=0
    _
  %s6 = ssub.s32 1, %s4
  %s7 = scalar_select 0, %s6, %s4
  loop: start=0, step=1, limit=4
  $region2: #{_lambda_.6} parent=0 // loop_pre_header
    _
  $region3: #{_lambda_.6} parent=0 // loop_header
    %s9 = sphi 0, %s13
    %p10 = scmp.ge.s32.totalorder %s9, 4
    %s19 = sphi 0, %s21
    %s22 = sphi 0, %s19
    %s23 = sphi 0, %s22
    %s39 = sphi 0, %s23
    %s43 = sphi 0, %s43
    %s45 = sphi 0, %s43
    %s46 = sphi 0, %s45
    %s60 = sphi 0, %s46
    %s64 = sphi 0, %s64
    %s66 = sphi 0, %s64
    %s67 = sphi 0, %s66
    %s81 = sphi 0, %s67
    %s87 = sphi 0, %s89
    %s90 = sphi 0, %s87
    %s91 = sphi 0, %s90
    %s107 = sphi 0, %s91
  $region4: #{_lambda_.6} parent=0 // loop_header_branch
    %12 = sbr.rel (%p10) target = $region8
  $region5: #{_lambda_.6} parent=0 // loop_body
    %s14 = ssub.s32 %s9, 1
    %s15 = ssub.s32 %s9, 2
    %s16 = sadd.s32 %s9, 1
    %s17 = ssub.s32 %s9, %s16
    %p18 = scmp.eq.s32.totalorder %s17, 0
    %s20 = sadd.s32 %s19, 1
    %s21 = scalar_select %p18, %s19, %s20
    %p24 = pneg %p18
    %p25 = scmp.eq.s32.totalorder %s9, 1
    %p26 = por %p24, %p25
    %p27 = scmp.ne.s32.totalorder %s19, %s22
    %p28 = scmp.eq.s32.totalorder %s9, 0
    %p29 = por %p27, %p28
    %p30 = scmp.ne.s32.totalorder %s19, %s22
    %p31 = scmp.eq.s32.totalorder %s14, 1
    %p32 = por %p30, %p31
    %p33 = scmp.ne.s32.totalorder %s22, %s23
    %p34 = scmp.eq.s32.totalorder %s14, 0
    %p35 = por %p33, %p34
    %p36 = scmp.ne.s32.totalorder %s22, %s23
    %p37 = scmp.eq.s32.totalorder %s15, 1
    %p38 = por %p36, %p37
    %p40 = scmp.ne.s32.totalorder %s23, %s39
    %p41 = scmp.eq.s32.totalorder %s15, 0
    %p42 = por %p40, %p41
    %s44 = sadd.s32 %s43, 1
    %p47 = scmp.eq.s32.totalorder %s9, 1
    %p48 = scmp.ne.s32.totalorder %s43, %s45
    %p49 = scmp.eq.s32.totalorder %s9, 0
    %p50 = por %p48, %p49
    %p51 = scmp.ne.s32.totalorder %s43, %s45
    %p52 = scmp.eq.s32.totalorder %s14, 1
    %p53 = por %p51, %p52
    %p54 = scmp.ne.s32.totalorder %s45, %s46
    %p55 = scmp.eq.s32.totalorder %s14, 0
    %p56 = por %p54, %p55
    %p57 = scmp.ne.s32.totalorder %s45, %s46
    %p58 = scmp.eq.s32.totalorder %s15, 1
    %p59 = por %p57, %p58
    %p61 = scmp.ne.s32.totalorder %s46, %s60
    %p62 = scmp.eq.s32.totalorder %s15, 0
    %p63 = por %p61, %p62
    %s65 = sadd.s32 %s64, 1
    %p68 = scmp.eq.s32.totalorder %s9, 1
    %p69 = scmp.ne.s32.totalorder %s64, %s66
    %p70 = scmp.eq.s32.totalorder %s9, 0
    %p71 = por %p69, %p70
    %p72 = scmp.ne.s32.totalorder %s64, %s66
    %p73 = scmp.eq.s32.totalorder %s14, 1
    %p74 = por %p72, %p73
    %p75 = scmp.ne.s32.totalorder %s66, %s67
    %p76 = scmp.eq.s32.totalorder %s14, 0
    %p77 = por %p75, %p76
    %p78 = scmp.ne.s32.totalorder %s66, %s67
    %p79 = scmp.eq.s32.totalorder %s15, 1
    %p80 = por %p78, %p79
    %p82 = scmp.ne.s32.totalorder %s67, %s81
    %p83 = scmp.eq.s32.totalorder %s15, 0
    %p84 = por %p82, %p83
    %s85 = ssub.s32 %s9, %s16
    %p86 = scmp.eq.s32.totalorder %s85, 0
    %s88 = sadd.s32 %s87, 1
    %s89 = scalar_select %p86, %s87, %s88
    %p92 = pneg %p86
    %p93 = scmp.eq.s32.totalorder %s9, 1
    %p94 = por %p92, %p93
    %p95 = scmp.ne.s32.totalorder %s87, %s90
    %p96 = scmp.eq.s32.totalorder %s9, 0
    %p97 = por %p95, %p96
    %p98 = scmp.ne.s32.totalorder %s87, %s90
    %p99 = scmp.eq.s32.totalorder %s14, 1
    %p100 = por %p98, %p99
    %p101 = scmp.ne.s32.totalorder %s90, %s91
    %p102 = scmp.eq.s32.totalorder %s14, 0
    %p103 = por %p101, %p102
    %p104 = scmp.ne.s32.totalorder %s90, %s91
    %p105 = scmp.eq.s32.totalorder %s15, 1
    %p106 = por %p104, %p105
    %p108 = scmp.ne.s32.totalorder %s91, %s107
    %p109 = scmp.eq.s32.totalorder %s15, 0
    %p110 = por %p108, %p109
    %p111 = scmp.le.s32.totalorder 1, %s9
    %p112 = scmp.lt.s32.totalorder %s9, 3
    %p113 = pnand %p111, %p112
    %p114 = pneg %p113
    // Predicated region
    $region9: #{_lambda_.6} parent=5 // pred_check
      _
    $region10: #{_lambda_.6} parent=5 // pred_check_branch
      %116 = sbr.rel (%p113) target = $region12
    $region11: #{_lambda_.6} parent=5 // pred_region
      %s117 = ssub.s32 %s9, 1
      // Predicated region
      $region13: #{_lambda_.6} parent=11 // pred_check
        %p118 = pneg %p56
      $region14: #{_lambda_.6} parent=11 // pred_check_branch
        %120 = sbr.rel (%p118) target = $region16
      $region15: #{_lambda_.6} parent=11 // pred_region
        _
      $region16: #{_lambda_.6} parent=11 // pred_fallthru
        _
      // Predicated region
      $region17: #{_lambda_.6} parent=11 // pred_check
        %p121 = pneg %p77
      $region18: #{_lambda_.6} parent=11 // pred_check_branch
        %123 = sbr.rel (%p121) target = $region20
      $region19: #{_lambda_.6} parent=11 // pred_region
        _
      $region20: #{_lambda_.6} parent=11 // pred_fallthru
        _
    $region12: #{_lambda_.6} parent=5 // pred_fallthru
      _
    %p124 = scmp.lt.s32.totalorder %s9, 2
    // Predicated region
    $region21: #{_lambda_.6} parent=5 // pred_check
      %p125 = pneg %p124
    $region22: #{_lambda_.6} parent=5 // pred_check_branch
      %127 = sbr.rel (%p125) target = $region24
    $region23: #{_lambda_.6} parent=5 // pred_region
      // Predicated region
      $region25: #{_lambda_.6} parent=23 // pred_check
        %p128 = pneg %p29
      $region26: #{_lambda_.6} parent=23 // pred_check_branch
        %130 = sbr.rel (%p128) target = $region28
      $region27: #{_lambda_.6} parent=23 // pred_region
        %p131 = scmp.lt.s32.totalorder %s9, 1
        %s132 = scalar_select %p131, %s9, 1
        %s133 = smul.addr %s132, 16
        %s134 = smul.addr %s133, 8
        %s135 = scalar_lea.vmem %s0, %s134
      $region28: #{_lambda_.6} parent=23 // pred_fallthru
        _
    $region24: #{_lambda_.6} parent=5 // pred_fallthru
      _
    %p136 = scmp.le.s32.totalorder 1, %s9
    %p137 = scmp.lt.s32.totalorder %s9, 3
    %p138 = pnand %p136, %p137
    %p139 = pneg %p138
    // Predicated region
    $region29: #{_lambda_.6} parent=5 // pred_check
      _
    $region30: #{_lambda_.6} parent=5 // pred_check_branch
      %141 = sbr.rel (%p138) target = $region32
    $region31: #{_lambda_.6} parent=5 // pred_region
      %s142 = ssub.s32 %s9, 1
      %p143 = scmp.lt.s32.totalorder %s14, 1
      %s144 = scalar_select %p143, %s14, 1
      %s145 = smul.addr %s144, 16
      %s146 = smul.addr %s145, 8
      %s147 = scalar_lea.vmem %s0, %s146
      %p148 = pneg %p35
      %p149 = pneg %p32
      %p150 = pneg %p56
      %p151 = pneg %p53
      %p152 = pneg %p77
      %p153 = pneg %p74
      %p154 = pneg %p103
      %p155 = pneg %p100
      %p156 = scmp.lt.s32.totalorder %s14, 1
      %s157 = scalar_select %p156, %s14, 1
      %s158 = smul.addr %s157, 3
      %s159 = smul.addr %s158, 8
      %s160 = scalar_lea.vmem %s3, %s159
      %p161 = scmp.lt.s32.totalorder %s14, 1
      %s162 = scalar_select %p161, %s14, 1
      %s163 = smul.addr %s162, 16
      %s164 = smul.addr %s163, 8
      %s165 = scalar_lea.vmem %s0, %s164
      %p166 = scmp.lt.s32.totalorder %s14, 1
      %s167 = scalar_select %p166, %s14, 1
      %s168 = smul.addr %s167, 3
      %s169 = smul.addr %s168, 8
      %s170 = scalar_lea.vmem %s3, %s169
      %v171 = vld [vmem:[%s165] sm:$0xff]
      %v172 = vld [vmem:[%s165 + $0x8] sm:$0xff]
      %v173 = vld [vmem:[%s165 + $0x10] sm:$0xf]
      %v174 = vld [vmem:[%s1] sm:$0xff]
      %v175 = vld [vmem:[%s1 + $0x8] sm:$0xff]
      %v176 = vld [vmem:[%s1 + $0x10] sm:$0xff]
      %v177 = vld [vmem:[%s1 + $0x18] sm:$0xff]
      %v178 = vld [vmem:[%s1 + $0x20] sm:$0xff]
      %v179 = vld [vmem:[%s1 + $0x28] sm:$0xff]
      %v180 = vld [vmem:[%s1 + $0x30] sm:$0xff]
      %v181 = vld [vmem:[%s1 + $0x38] sm:$0xff]
      %v182 = vld [vmem:[%s1 + $0x40] sm:$0xff]
      %v183 = vld [vmem:[%s1 + $0x48] sm:$0xff]
      %v184 = vld [vmem:[%s1 + $0x50] sm:$0xff]
      %v185 = vld [vmem:[%s1 + $0x58] sm:$0xff]
      %v186 = vld [vmem:[%s1 + $0x60] sm:$0xff]
      %v187 = vld [vmem:[%s1 + $0x68] sm:$0xff]
      %v188 = vld [vmem:[%s1 + $0x70] sm:$0xff]
      %v189 = vld [vmem:[%s1 + $0x78] sm:$0xff]
      %s190 = scalar_lea.vmem %s165, 32
      %v191 = vld [vmem:[%s190] sm:$0xff]
      %v192 = vld [vmem:[%s190 + $0x8] sm:$0xff]
      %v193 = vld [vmem:[%s190 + $0x10] sm:$0xf]
      %s194 = scalar_lea.vmem %s1, 128
      %v195 = vld [vmem:[%s194] sm:$0xff]
      %v196 = vld [vmem:[%s194 + $0x8] sm:$0xff]
      %v197 = vld [vmem:[%s194 + $0x10] sm:$0xff]
      %v198 = vld [vmem:[%s194 + $0x18] sm:$0xff]
      %v199 = vld [vmem:[%s194 + $0x20] sm:$0xff]
      %v200 = vld [vmem:[%s194 + $0x28] sm:$0xff]
      %v201 = vld [vmem:[%s194 + $0x30] sm:$0xff]
      %v202 = vld [vmem:[%s194 + $0x38] sm:$0xff]
      %v203 = vld [vmem:[%s194 + $0x40] sm:$0xff]
      %v204 = vld [vmem:[%s194 + $0x48] sm:$0xff]
      %v205 = vld [vmem:[%s194 + $0x50] sm:$0xff]
      %v206 = vld [vmem:[%s194 + $0x58] sm:$0xff]
      %v207 = vld [vmem:[%s194 + $0x60] sm:$0xff]
      %v208 = vld [vmem:[%s194 + $0x68] sm:$0xff]
      %v209 = vld [vmem:[%s194 + $0x70] sm:$0xff]
      %v210 = vld [vmem:[%s194 + $0x78] sm:$0xff]
      %211 = vmatpush.msra.mxu0 %v210
      %212 = vmatpush.msra.mxu0 %v209
      %213 = vmatpush.msra.mxu0 %v208
      %214 = vmatpush.msra.mxu0 %v207
      %215 = vmatpush.msra.mxu0 %v206
      %216 = vmatpush.msra.mxu0 %v205
      %217 = vmatpush.msra.mxu0 %v204
      %218 = vmatpush.msra.mxu0 %v203
      %219 = vmatpush.msra.mxu0 %v202
      %220 = vmatpush.msra.mxu0 %v201
      %221 = vmatpush.msra.mxu0 %v200
      %222 = vmatpush.msra.mxu0 %v199
      %223 = vmatpush.msra.mxu0 %v198
      %224 = vmatpush.msra.mxu0 %v197
      %225 = vmatpush.msra.mxu0 %v196
      %226 = vmatpush.msra.mxu0 %v195
      %227 = vmatmul.f32.gmra.mxu0 %v191
      %v228 = vpop.f32.mrf.mxu0
      %v229 = vadd.f32 0.0, %v228
      %230 = vmatmul.f32.gmra.mxu0 %v192
      %v231 = vpop.f32.mrf.mxu0
      %v232 = vadd.f32 0.0, %v231
      %233 = vmatmul.f32.gmra.mxu0 %v193
      %v234 = vpop.f32.mrf.mxu0
      %v235 = vadd.f32 0.0, %v234
      %236 = vdwg.mxu0
      %237 = vmatpush.msra.mxu0 %v189
      %238 = vmatpush.msra.mxu0 %v188
      %239 = vmatpush.msra.mxu0 %v187
      %240 = vmatpush.msra.mxu0 %v186
      %241 = vmatpush.msra.mxu0 %v185
      %242 = vmatpush.msra.mxu0 %v184
      %243 = vmatpush.msra.mxu0 %v183
      %244 = vmatpush.msra.mxu0 %v182
      %245 = vmatpush.msra.mxu0 %v181
      %246 = vmatpush.msra.mxu0 %v180
      %247 = vmatpush.msra.mxu0 %v179
      %248 = vmatpush.msra.mxu0 %v178
      %249 = vmatpush.msra.mxu0 %v177
      %250 = vmatpush.msra.mxu0 %v176
      %251 = vmatpush.msra.mxu0 %v175
      %252 = vmatpush.msra.mxu0 %v174
      %253 = vmatmul.f32.gmra.mxu0 %v171
      %v254 = vpop.f32.mrf.mxu0
      %v255 = vadd.f32 %v229, %v254
      %256 = vmatmul.f32.gmra.mxu0 %v172
      %v257 = vpop.f32.mrf.mxu0
      %v258 = vadd.f32 %v232, %v257
      %259 = vmatmul.f32.gmra.mxu0 %v173
      %v260 = vpop.f32.mrf.mxu0
      %v261 = vadd.f32 %v235, %v260
      %262 = vdwg.mxu0
      %v263 = vld [vmem:[%s165 + $0x1] sm:$0xff]
      %v264 = vld [vmem:[%s165 + $0x9] sm:$0xff]
      %v265 = vld [vmem:[%s165 + $0x11] sm:$0xf]
      %s266 = scalar_lea.vmem %s1, 256
      %v267 = vld [vmem:[%s266] sm:$0xff]
      %v268 = vld [vmem:[%s266 + $0x8] sm:$0xff]
      %v269 = vld [vmem:[%s266 + $0x10] sm:$0xff]
      %v270 = vld [vmem:[%s266 + $0x18] sm:$0xff]
      %v271 = vld [vmem:[%s266 + $0x20] sm:$0xff]
      %v272 = vld [vmem:[%s266 + $0x28] sm:$0xff]
      %v273 = vld [vmem:[%s266 + $0x30] sm:$0xff]
      %v274 = vld [vmem:[%s266 + $0x38] sm:$0xff]
      %v275 = vld [vmem:[%s266 + $0x40] sm:$0xff]
      %v276 = vld [vmem:[%s266 + $0x48] sm:$0xff]
      %v277 = vld [vmem:[%s266 + $0x50] sm:$0xff]
      %v278 = vld [vmem:[%s266 + $0x58] sm:$0xff]
      %v279 = vld [vmem:[%s266 + $0x60] sm:$0xff]
      %v280 = vld [vmem:[%s266 + $0x68] sm:$0xff]
      %v281 = vld [vmem:[%s266 + $0x70] sm:$0xff]
      %v282 = vld [vmem:[%s266 + $0x78] sm:$0xff]
      %283 = vmatpush.msra.mxu0 %v282
      %284 = vmatpush.msra.mxu0 %v281
      %285 = vmatpush.msra.mxu0 %v280
      %286 = vmatpush.msra.mxu0 %v279
      %287 = vmatpush.msra.mxu0 %v278
      %288 = vmatpush.msra.mxu0 %v277
      %289 = vmatpush.msra.mxu0 %v276
      %290 = vmatpush.msra.mxu0 %v275
      %291 = vmatpush.msra.mxu0 %v274
      %292 = vmatpush.msra.mxu0 %v273
      %293 = vmatpush.msra.mxu0 %v272
      %294 = vmatpush.msra.mxu0 %v271
      %295 = vmatpush.msra.mxu0 %v270
      %296 = vmatpush.msra.mxu0 %v269
      %297 = vmatpush.msra.mxu0 %v268
      %298 = vmatpush.msra.mxu0 %v267
      %299 = vmatmul.f32.gmra.mxu0 %v263
      %v300 = vpop.f32.mrf.mxu0
      %v301 = vadd.f32 0.0, %v300
      %302 = vmatmul.f32.gmra.mxu0 %v264
      %v303 = vpop.f32.mrf.mxu0
      %v304 = vadd.f32 0.0, %v303
      %305 = vmatmul.f32.gmra.mxu0 %v265
      %v306 = vpop.f32.mrf.mxu0
      %v307 = vadd.f32 0.0, %v306
      %308 = vdwg.mxu0
      %v309 = vadd.f32 %v255, %v301
      %v310 = vadd.f32 %v258, %v304
      %v311 = vadd.f32 %v261, %v307
      %s312 = scalar_lea.vmem %s165, 64
      %v313 = vld [vmem:[%s312] sm:$0xff]
      %v314 = vld [vmem:[%s312 + $0x8] sm:$0xff]
      %v315 = vld [vmem:[%s312 + $0x10] sm:$0xf]
      %s316 = scalar_lea.vmem %s1, 384
      %v317 = vld [vmem:[%s316] sm:$0xff]
      %v318 = vld [vmem:[%s316 + $0x8] sm:$0xff]
      %v319 = vld [vmem:[%s316 + $0x10] sm:$0xff]
      %v320 = vld [vmem:[%s316 + $0x18] sm:$0xff]
      %v321 = vld [vmem:[%s316 + $0x20] sm:$0xff]
      %v322 = vld [vmem:[%s316 + $0x28] sm:$0xff]
      %v323 = vld [vmem:[%s316 + $0x30] sm:$0xff]
      %v324 = vld [vmem:[%s316 + $0x38] sm:$0xff]
      %v325 = vld [vmem:[%s316 + $0x40] sm:$0xff]
      %v326 = vld [vmem:[%s316 + $0x48] sm:$0xff]
      %v327 = vld [vmem:[%s316 + $0x50] sm:$0xff]
      %v328 = vld [vmem:[%s316 + $0x58] sm:$0xff]
      %v329 = vld [vmem:[%s316 + $0x60] sm:$0xff]
      %v330 = vld [vmem:[%s316 + $0x68] sm:$0xff]
      %v331 = vld [vmem:[%s316 + $0x70] sm:$0xff]
      %v332 = vld [vmem:[%s316 + $0x78] sm:$0xff]
      %333 = vmatpush.msra.mxu0 %v332
      %334 = vmatpush.msra.mxu0 %v331
      %335 = vmatpush.msra.mxu0 %v330
      %336 = vmatpush.msra.mxu0 %v329
      %337 = vmatpush.msra.mxu0 %v328
      %338 = vmatpush.msra.mxu0 %v327
      %339 = vmatpush.msra.mxu0 %v326
      %340 = vmatpush.msra.mxu0 %v325
      %341 = vmatpush.msra.mxu0 %v324
      %342 = vmatpush.msra.mxu0 %v323
      %343 = vmatpush.msra.mxu0 %v322
      %344 = vmatpush.msra.mxu0 %v321
      %345 = vmatpush.msra.mxu0 %v320
      %346 = vmatpush.msra.mxu0 %v319
      %347 = vmatpush.msra.mxu0 %v318
      %348 = vmatpush.msra.mxu0 %v317
      %349 = vmatmul.f32.gmra.mxu0 %v313
      %v350 = vpop.f32.mrf.mxu0
      %v351 = vadd.f32 0.0, %v350
      %352 = vmatmul.f32.gmra.mxu0 %v314
      %v353 = vpop.f32.mrf.mxu0
      %v354 = vadd.f32 0.0, %v353
      %355 = vmatmul.f32.gmra.mxu0 %v315
      %v356 = vpop.f32.mrf.mxu0
      %v357 = vadd.f32 0.0, %v356
      %358 = vdwg.mxu0
      %v359 = vadd.f32 %v309, %v351
      %v360 = vadd.f32 %v310, %v354
      %v361 = vadd.f32 %v311, %v357
      %s362 = scalar_lea.vmem %s165, 96
      %v363 = vld [vmem:[%s362] sm:$0xff]
      %v364 = vld [vmem:[%s362 + $0x8] sm:$0xff]
      %v365 = vld [vmem:[%s362 + $0x10] sm:$0xf]
      %s366 = scalar_lea.vmem %s1, 512
      %v367 = vld [vmem:[%s366] sm:$0xff]
      %v368 = vld [vmem:[%s366 + $0x8] sm:$0xff]
      %v369 = vld [vmem:[%s366 + $0x10] sm:$0xff]
      %v370 = vld [vmem:[%s366 + $0x18] sm:$0xff]
      %v371 = vld [vmem:[%s366 + $0x20] sm:$0xff]
      %v372 = vld [vmem:[%s366 + $0x28] sm:$0xff]
      %v373 = vld [vmem:[%s366 + $0x30] sm:$0xff]
      %v374 = vld [vmem:[%s366 + $0x38] sm:$0xff]
      %v375 = vld [vmem:[%s366 + $0x40] sm:$0xff]
      %v376 = vld [vmem:[%s366 + $0x48] sm:$0xff]
      %v377 = vld [vmem:[%s366 + $0x50] sm:$0xff]
      %v378 = vld [vmem:[%s366 + $0x58] sm:$0xff]
      %v379 = vld [vmem:[%s366 + $0x60] sm:$0xff]
      %v380 = vld [vmem:[%s366 + $0x68] sm:$0xff]
      %v381 = vld [vmem:[%s366 + $0x70] sm:$0xff]
      %v382 = vld [vmem:[%s366 + $0x78] sm:$0xff]
      %383 = vmatpush.msra.mxu0 %v382
      %384 = vmatpush.msra.mxu0 %v381
      %385 = vmatpush.msra.mxu0 %v380
      %386 = vmatpush.msra.mxu0 %v379
      %387 = vmatpush.msra.mxu0 %v378
      %388 = vmatpush.msra.mxu0 %v377
      %389 = vmatpush.msra.mxu0 %v376
      %390 = vmatpush.msra.mxu0 %v375
      %391 = vmatpush.msra.mxu0 %v374
      %392 = vmatpush.msra.mxu0 %v373
      %393 = vmatpush.msra.mxu0 %v372
      %394 = vmatpush.msra.mxu0 %v371
      %395 = vmatpush.msra.mxu0 %v370
      %396 = vmatpush.msra.mxu0 %v369
      %397 = vmatpush.msra.mxu0 %v368
      %398 = vmatpush.msra.mxu0 %v367
      %399 = vmatmul.f32.gmra.mxu0 %v363
      %v400 = vpop.f32.mrf.mxu0
      %v401 = vadd.f32 0.0, %v400
      %402 = vmatmul.f32.gmra.mxu0 %v364
      %v403 = vpop.f32.mrf.mxu0
      %v404 = vadd.f32 0.0, %v403
      %405 = vmatmul.f32.gmra.mxu0 %v365
      %v406 = vpop.f32.mrf.mxu0
      %v407 = vadd.f32 0.0, %v406
      %408 = vdwg.mxu0
      %v409 = vadd.f32 %v359, %v401
      %v410 = vadd.f32 %v360, %v404
      %v411 = vadd.f32 %v361, %v407
      %v412 = vld [vmem:[%s312 + $0x1] sm:$0xff]
      %v413 = vld [vmem:[%s312 + $0x9] sm:$0xff]
      %v414 = vld [vmem:[%s312 + $0x11] sm:$0xf]
      %s415 = scalar_lea.vmem %s1, 640
      %v416 = vld [vmem:[%s415] sm:$0xff]
      %v417 = vld [vmem:[%s415 + $0x8] sm:$0xff]
      %v418 = vld [vmem:[%s415 + $0x10] sm:$0xff]
      %v419 = vld [vmem:[%s415 + $0x18] sm:$0xff]
      %v420 = vld [vmem:[%s415 + $0x20] sm:$0xff]
      %v421 = vld [vmem:[%s415 + $0x28] sm:$0xff]
      %v422 = vld [vmem:[%s415 + $0x30] sm:$0xff]
      %v423 = vld [vmem:[%s415 + $0x38] sm:$0xff]
      %v424 = vld [vmem:[%s415 + $0x40] sm:$0xff]
      %v425 = vld [vmem:[%s415 + $0x48] sm:$0xff]
      %v426 = vld [vmem:[%s415 + $0x50] sm:$0xff]
      %v427 = vld [vmem:[%s415 + $0x58] sm:$0xff]
      %v428 = vld [vmem:[%s415 + $0x60] sm:$0xff]
      %v429 = vld [vmem:[%s415 + $0x68] sm:$0xff]
      %v430 = vld [vmem:[%s415 + $0x70] sm:$0xff]
      %v431 = vld [vmem:[%s415 + $0x78] sm:$0xff]
      %432 = vmatpush.msra.mxu0 %v431
      %433 = vmatpush.msra.mxu0 %v430
      %434 = vmatpush.msra.mxu0 %v429
      %435 = vmatpush.msra.mxu0 %v428
      %436 = vmatpush.msra.mxu0 %v427
      %437 = vmatpush.msra.mxu0 %v426
      %438 = vmatpush.msra.mxu0 %v425
      %439 = vmatpush.msra.mxu0 %v424
      %440 = vmatpush.msra.mxu0 %v423
      %441 = vmatpush.msra.mxu0 %v422
      %442 = vmatpush.msra.mxu0 %v421
      %443 = vmatpush.msra.mxu0 %v420
      %444 = vmatpush.msra.mxu0 %v419
      %445 = vmatpush.msra.mxu0 %v418
      %446 = vmatpush.msra.mxu0 %v417
      %447 = vmatpush.msra.mxu0 %v416
      %448 = vmatmul.f32.gmra.mxu0 %v412
      %v449 = vpop.f32.mrf.mxu0
      %v450 = vadd.f32 0.0, %v449
      %451 = vmatmul.f32.gmra.mxu0 %v413
      %v452 = vpop.f32.mrf.mxu0
      %v453 = vadd.f32 0.0, %v452
      %454 = vmatmul.f32.gmra.mxu0 %v414
      %v455 = vpop.f32.mrf.mxu0
      %v456 = vadd.f32 0.0, %v455
      %457 = vdwg.mxu0
      %v458 = vadd.f32 %v409, %v450
      %v459 = vadd.f32 %v410, %v453
      %v460 = vadd.f32 %v411, %v456
      %v461 = vld [vmem:[%s165 + $0x5] sm:$0xff]
      %v462 = vld [vmem:[%s165 + $0xd] sm:$0xff]
      %v463 = vld [vmem:[%s165 + $0x15] sm:$0xf]
      %s464 = scalar_lea.vmem %s1, 768
      %v465 = vld [vmem:[%s464] sm:$0xff]
      %v466 = vld [vmem:[%s464 + $0x8] sm:$0xff]
      %v467 = vld [vmem:[%s464 + $0x10] sm:$0xff]
      %v468 = vld [vmem:[%s464 + $0x18] sm:$0xff]
      %v469 = vld [vmem:[%s464 + $0x20] sm:$0xff]
      %v470 = vld [vmem:[%s464 + $0x28] sm:$0xff]
      %v471 = vld [vmem:[%s464 + $0x30] sm:$0xff]
      %v472 = vld [vmem:[%s464 + $0x38] sm:$0xff]
      %v473 = vld [vmem:[%s464 + $0x40] sm:$0xff]
      %v474 = vld [vmem:[%s464 + $0x48] sm:$0xff]
      %v475 = vld [vmem:[%s464 + $0x50] sm:$0xff]
      %v476 = vld [vmem:[%s464 + $0x58] sm:$0xff]
      %v477 = vld [vmem:[%s464 + $0x60] sm:$0xff]
      %v478 = vld [vmem:[%s464 + $0x68] sm:$0xff]
      %v479 = vld [vmem:[%s464 + $0x70] sm:$0xff]
      %v480 = vld [vmem:[%s464 + $0x78] sm:$0xff]
      %481 = vmatpush.msra.mxu0 %v480
      %482 = vmatpush.msra.mxu0 %v479
      %483 = vmatpush.msra.mxu0 %v478
      %484 = vmatpush.msra.mxu0 %v477
      %485 = vmatpush.msra.mxu0 %v476
      %486 = vmatpush.msra.mxu0 %v475
      %487 = vmatpush.msra.mxu0 %v474
      %488 = vmatpush.msra.mxu0 %v473
      %489 = vmatpush.msra.mxu0 %v472
      %490 = vmatpush.msra.mxu0 %v471
      %491 = vmatpush.msra.mxu0 %v470
      %492 = vmatpush.msra.mxu0 %v469
      %493 = vmatpush.msra.mxu0 %v468
      %494 = vmatpush.msra.mxu0 %v467
      %495 = vmatpush.msra.mxu0 %v466
      %496 = vmatpush.msra.mxu0 %v465
      %497 = vmatmul.f32.gmra.mxu0 %v461
      %v498 = vpop.f32.mrf.mxu0
      %v499 = vadd.f32 0.0, %v498
      %500 = vmatmul.f32.gmra.mxu0 %v462
      %v501 = vpop.f32.mrf.mxu0
      %v502 = vadd.f32 0.0, %v501
      %503 = vmatmul.f32.gmra.mxu0 %v463
      %v504 = vpop.f32.mrf.mxu0
      %v505 = vadd.f32 0.0, %v504
      %506 = vdwg.mxu0
      %v507 = vadd.f32 %v458, %v499
      %v508 = vadd.f32 %v459, %v502
      %v509 = vadd.f32 %v460, %v505
      %v510 = vld [vmem:[%s190 + $0x5] sm:$0xff]
      %v511 = vld [vmem:[%s190 + $0xd] sm:$0xff]
      %v512 = vld [vmem:[%s190 + $0x15] sm:$0xf]
      %s513 = scalar_lea.vmem %s1, 896
      %v514 = vld [vmem:[%s513] sm:$0xff]
      %v515 = vld [vmem:[%s513 + $0x8] sm:$0xff]
      %v516 = vld [vmem:[%s513 + $0x10] sm:$0xff]
      %v517 = vld [vmem:[%s513 + $0x18] sm:$0xff]
      %v518 = vld [vmem:[%s513 + $0x20] sm:$0xff]
      %v519 = vld [vmem:[%s513 + $0x28] sm:$0xff]
      %v520 = vld [vmem:[%s513 + $0x30] sm:$0xff]
      %v521 = vld [vmem:[%s513 + $0x38] sm:$0xff]
      %v522 = vld [vmem:[%s513 + $0x40] sm:$0xff]
      %v523 = vld [vmem:[%s513 + $0x48] sm:$0xff]
      %v524 = vld [vmem:[%s513 + $0x50] sm:$0xff]
      %v525 = vld [vmem:[%s513 + $0x58] sm:$0xff]
      %v526 = vld [vmem:[%s513 + $0x60] sm:$0xff]
      %v527 = vld [vmem:[%s513 + $0x68] sm:$0xff]
      %v528 = vld [vmem:[%s513 + $0x70] sm:$0xff]
      %v529 = vld [vmem:[%s513 + $0x78] sm:$0xff]
      %530 = vmatpush.msra.mxu0 %v529
      %531 = vmatpush.msra.mxu0 %v528
      %532 = vmatpush.msra.mxu0 %v527
      %533 = vmatpush.msra.mxu0 %v526
      %534 = vmatpush.msra.mxu0 %v525
      %535 = vmatpush.msra.mxu0 %v524
      %536 = vmatpush.msra.mxu0 %v523
      %537 = vmatpush.msra.mxu0 %v522
      %538 = vmatpush.msra.mxu0 %v521
      %539 = vmatpush.msra.mxu0 %v520
      %540 = vmatpush.msra.mxu0 %v519
      %541 = vmatpush.msra.mxu0 %v518
      %542 = vmatpush.msra.mxu0 %v517
      %543 = vmatpush.msra.mxu0 %v516
      %544 = vmatpush.msra.mxu0 %v515
      %545 = vmatpush.msra.mxu0 %v514
      %546 = vmatmul.f32.gmra.mxu0 %v510
      %v547 = vpop.f32.mrf.mxu0
      %v548 = vadd.f32 0.0, %v547
      %549 = vmatmul.f32.gmra.mxu0 %v511
      %v550 = vpop.f32.mrf.mxu0
      %v551 = vadd.f32 0.0, %v550
      %552 = vmatmul.f32.gmra.mxu0 %v512
      %v553 = vpop.f32.mrf.mxu0
      %v554 = vadd.f32 0.0, %v553
      %555 = vdwg.mxu0
      %v556 = vadd.f32 %v507, %v548
      %v557 = vadd.f32 %v508, %v551
      %v558 = vadd.f32 %v509, %v554
      %v559 = vld [vmem:[%s165 + $0x6] sm:$0xff]
      %v560 = vld [vmem:[%s165 + $0xe] sm:$0xff]
      %v561 = vld [vmem:[%s165 + $0x16] sm:$0xf]
      %s562 = scalar_lea.vmem %s1, 1024
      %v563 = vld [vmem:[%s562] sm:$0xff]
      %v564 = vld [vmem:[%s562 + $0x8] sm:$0xff]
      %v565 = vld [vmem:[%s562 + $0x10] sm:$0xff]
      %v566 = vld [vmem:[%s562 + $0x18] sm:$0xff]
      %v567 = vld [vmem:[%s562 + $0x20] sm:$0xff]
      %v568 = vld [vmem:[%s562 + $0x28] sm:$0xff]
      %v569 = vld [vmem:[%s562 + $0x30] sm:$0xff]
      %v570 = vld [vmem:[%s562 + $0x38] sm:$0xff]
      %v571 = vld [vmem:[%s562 + $0x40] sm:$0xff]
      %v572 = vld [vmem:[%s562 + $0x48] sm:$0xff]
      %v573 = vld [vmem:[%s562 + $0x50] sm:$0xff]
      %v574 = vld [vmem:[%s562 + $0x58] sm:$0xff]
      %v575 = vld [vmem:[%s562 + $0x60] sm:$0xff]
      %v576 = vld [vmem:[%s562 + $0x68] sm:$0xff]
      %v577 = vld [vmem:[%s562 + $0x70] sm:$0xff]
      %v578 = vld [vmem:[%s562 + $0x78] sm:$0xff]
      %579 = vmatpush.msra.mxu0 %v578
      %580 = vmatpush.msra.mxu0 %v577
      %581 = vmatpush.msra.mxu0 %v576
      %582 = vmatpush.msra.mxu0 %v575
      %583 = vmatpush.msra.mxu0 %v574
      %584 = vmatpush.msra.mxu0 %v573
      %585 = vmatpush.msra.mxu0 %v572
      %586 = vmatpush.msra.mxu0 %v571
      %587 = vmatpush.msra.mxu0 %v570
      %588 = vmatpush.msra.mxu0 %v569
      %589 = vmatpush.msra.mxu0 %v568
      %590 = vmatpush.msra.mxu0 %v567
      %591 = vmatpush.msra.mxu0 %v566
      %592 = vmatpush.msra.mxu0 %v565
      %593 = vmatpush.msra.mxu0 %v564
      %594 = vmatpush.msra.mxu0 %v563
      %595 = vmatmul.f32.gmra.mxu0 %v559
      %v596 = vpop.f32.mrf.mxu0
      %v597 = vadd.f32 0.0, %v596
      %598 = vmatmul.f32.gmra.mxu0 %v560
      %v599 = vpop.f32.mrf.mxu0
      %v600 = vadd.f32 0.0, %v599
      %601 = vmatmul.f32.gmra.mxu0 %v561
      %v602 = vpop.f32.mrf.mxu0
      %v603 = vadd.f32 0.0, %v602
      %604 = vdwg.mxu0
      %v605 = vadd.f32 %v556, %v597
      %v606 = vadd.f32 %v557, %v600
      %v607 = vadd.f32 %v558, %v603
      %v608 = vld [vmem:[%s2] sm:$0x1]
      %v610 = vperm.slane %v608, 0
      %v612 = vadd.f32 %v605, %v610
      %v613 = vadd.f32 %v606, %v610
      %v614 = vadd.f32 %v607, %v610
      %v615 = vmul.f32 %v612, 0.5
      %v616 = vmul.f32 %v613, 0.5
      %v617 = vmul.f32 %v614, 0.5
      %v618 = vmul.f32 %v612, 0.70710677
      %v619 = vmul.f32 %v613, 0.70710677
      %v620 = vmul.f32 %v614, 0.70710677
      %v621 = vmul.f32 %v618, %v618
      %v622 = vmin.f32 16.0, %v621
      %v623 = vmul.f32 %v622, 2.1237322e-06
      %v624 = vadd.f32 %v623, 0.00028619796
      %v625 = vmul.f32 %v622, %v624
      %v626 = vadd.f32 %v625, 0.0036580483
      %v627 = vmul.f32 %v622, %v626
      %v628 = vadd.f32 %v627, 0.05243302
      %v629 = vmul.f32 %v622, %v628
      %v630 = vadd.f32 %v629, 0.18741608
      %v631 = vmul.f32 %v622, %v630
      %v632 = vadd.f32 %v631, 1.1283791
      %v633 = vmul.f32 %v618, %v632
      %v634 = vmul.f32 %v622, 3.8918573e-05
      %v635 = vadd.f32 %v634, 0.001143296
      %v636 = vmul.f32 %v622, %v635
      %v637 = vadd.f32 %v636, 0.014752088
      %v638 = vmul.f32 %v622, %v637
      %v639 = vadd.f32 %v638, 0.112945676
      %v640 = vmul.f32 %v622, %v639
      %v641 = vadd.f32 %v640, 0.4994258
      %v642 = vmul.f32 %v622, %v641
      %v643 = vadd.f32 %v642, 1.0
      %v644 = vrcp.pop %v643
      %v645 = vmul.f32 %v643, %v644
      %v646 = vsub.f32 1.0, %v645
      %v647 = vmul.f32 %v644, %v646
      %v648 = vadd.f32 %v644, %v647
      %vm649 = vweird.f32 %v643
      %vm650 = vweird.f32 %v644
      %vm651 = vmor %vm649, %vm650
      %v652 = vsel %vm651, %v644, %v648
      %v653 = vand.u32 2147483647, %v643
      %vm654 = vcmp.eq.f32.partialorder %v653, 8.507059e+37
      %v655 = vand.u32 %v643, 2147483648
      %v656 = vor.u32 1.1754944e-38, %v655
      %v657 = vsel %vm654, %v656, %v652
      %v658 = vmul.f32 %v633, %v657
      %v659 = vmin.f32 %v658, 1.0
      %v660 = vmax.f32 %v659, -1.0
      %v661 = vmul.f32 %v619, %v619
      %v662 = vmin.f32 16.0, %v661
      %v663 = vmul.f32 %v662, 2.1237322e-06
      %v664 = vadd.f32 %v663, 0.00028619796
      %v665 = vmul.f32 %v662, %v664
      %v666 = vadd.f32 %v665, 0.0036580483
      %v667 = vmul.f32 %v662, %v666
      %v668 = vadd.f32 %v667, 0.05243302
      %v669 = vmul.f32 %v662, %v668
      %v670 = vadd.f32 %v669, 0.18741608
      %v671 = vmul.f32 %v662, %v670
      %v672 = vadd.f32 %v671, 1.1283791
      %v673 = vmul.f32 %v619, %v672
      %v674 = vmul.f32 %v662, 3.8918573e-05
      %v675 = vadd.f32 %v674, 0.001143296
      %v676 = vmul.f32 %v662, %v675
      %v677 = vadd.f32 %v676, 0.014752088
      %v678 = vmul.f32 %v662, %v677
      %v679 = vadd.f32 %v678, 0.112945676
      %v680 = vmul.f32 %v662, %v679
      %v681 = vadd.f32 %v680, 0.4994258
      %v682 = vmul.f32 %v662, %v681
      %v683 = vadd.f32 %v682, 1.0
      %v684 = vrcp.pop %v683
      %v685 = vmul.f32 %v683, %v684
      %v686 = vsub.f32 1.0, %v685
      %v687 = vmul.f32 %v684, %v686
      %v688 = vadd.f32 %v684, %v687
      %vm689 = vweird.f32 %v683
      %vm690 = vweird.f32 %v684
      %vm691 = vmor %vm689, %vm690
      %v692 = vsel %vm691, %v684, %v688
      %v693 = vand.u32 2147483647, %v683
      %vm694 = vcmp.eq.f32.partialorder %v693, 8.507059e+37
      %v695 = vand.u32 %v683, 2147483648
      %v696 = vor.u32 1.1754944e-38, %v695
      %v697 = vsel %vm694, %v696, %v692
      %v698 = vmul.f32 %v673, %v697
      %v699 = vmin.f32 %v698, 1.0
      %v700 = vmax.f32 %v699, -1.0
      %v701 = vmul.f32 %v620, %v620
      %v702 = vmin.f32 16.0, %v701
      %v703 = vmul.f32 %v702, 2.1237322e-06
      %v704 = vadd.f32 %v703, 0.00028619796
      %v705 = vmul.f32 %v702, %v704
      %v706 = vadd.f32 %v705, 0.0036580483
      %v707 = vmul.f32 %v702, %v706
      %v708 = vadd.f32 %v707, 0.05243302
      %v709 = vmul.f32 %v702, %v708
      %v710 = vadd.f32 %v709, 0.18741608
      %v711 = vmul.f32 %v702, %v710
      %v712 = vadd.f32 %v711, 1.1283791
      %v713 = vmul.f32 %v620, %v712
      %v714 = vmul.f32 %v702, 3.8918573e-05
      %v715 = vadd.f32 %v714, 0.001143296
      %v716 = vmul.f32 %v702, %v715
      %v717 = vadd.f32 %v716, 0.014752088
      %v718 = vmul.f32 %v702, %v717
      %v719 = vadd.f32 %v718, 0.112945676
      %v720 = vmul.f32 %v702, %v719
      %v721 = vadd.f32 %v720, 0.4994258
      %v722 = vmul.f32 %v702, %v721
      %v723 = vadd.f32 %v722, 1.0
      %v724 = vrcp.pop %v723
      %v725 = vmul.f32 %v723, %v724
      %v726 = vsub.f32 1.0, %v725
      %v727 = vmul.f32 %v724, %v726
      %v728 = vadd.f32 %v724, %v727
      %vm729 = vweird.f32 %v723
      %vm730 = vweird.f32 %v724
      %vm731 = vmor %vm729, %vm730
      %v732 = vsel %vm731, %v724, %v728
      %v733 = vand.u32 2147483647, %v723
      %vm734 = vcmp.eq.f32.partialorder %v733, 8.507059e+37
      %v735 = vand.u32 %v723, 2147483648
      %v736 = vor.u32 1.1754944e-38, %v735
      %v737 = vsel %vm734, %v736, %v732
      %v738 = vmul.f32 %v713, %v737
      %v739 = vmin.f32 %v738, 1.0
      %v740 = vmax.f32 %v739, -1.0
      %v741 = vadd.f32 %v660, 1.0
      %v742 = vadd.f32 %v700, 1.0
      %v743 = vadd.f32 %v740, 1.0
      %v744 = vmul.f32 %v615, %v741
      %v745 = vmul.f32 %v616, %v742
      %v746 = vmul.f32 %v617, %v743
      %747 = vst [vmem:[%s170] sm:$0xff] %v744
      %748 = vst [vmem:[%s170 + $0x8] sm:$0xff] %v745
      %749 = vst [vmem:[%s170 + $0x10] sm:$0xf] %v746
      %p750 = scmp.lt.s32.totalorder %s14, 1
      %s751 = scalar_select %p750, %s14, 1
      %s752 = smul.addr %s751, 3
      %s753 = smul.addr %s752, 8
      %s754 = scalar_lea.vmem %s3, %s753
      // Predicated region
      $region33: #{_lambda_.6} parent=31 // pred_check
        %p755 = pneg %p100
      $region34: #{_lambda_.6} parent=31 // pred_check_branch
        %757 = sbr.rel (%p755) target = $region36
      $region35: #{_lambda_.6} parent=31 // pred_region
        _
      $region36: #{_lambda_.6} parent=31 // pred_fallthru
        _
    $region32: #{_lambda_.6} parent=5 // pred_fallthru
      _
    %p758 = scmp.le.s32.totalorder 2, %s9
    // Predicated region
    $region37: #{_lambda_.6} parent=5 // pred_check
      %p759 = pneg %p758
    $region38: #{_lambda_.6} parent=5 // pred_check_branch
      %761 = sbr.rel (%p759) target = $region40
    $region39: #{_lambda_.6} parent=5 // pred_region
      %s762 = ssub.s32 %s9, 2
      // Predicated region
      $region41: #{_lambda_.6} parent=39 // pred_check
        %p763 = pneg %p106
      $region42: #{_lambda_.6} parent=39 // pred_check_branch
        %765 = sbr.rel (%p763) target = $region44
      $region43: #{_lambda_.6} parent=39 // pred_region
        %p766 = scmp.lt.s32.totalorder %s15, 1
        %s767 = scalar_select %p766, %s15, 1
        %s768 = smul.addr %s767, 3
        %s769 = smul.addr %s768, 8
        %s770 = scalar_lea.vmem %s3, %s769
      $region44: #{_lambda_.6} parent=39 // pred_fallthru
        _
    $region40: #{_lambda_.6} parent=5 // pred_fallthru
      _
  $region6: #{_lambda_.6} parent=0 // loop_footer
    %s13 = sadd.s32 1, %s9
  $region7: #{_lambda_.6} parent=0 // loop_footer_branch
    %8 = sbr.rel target = $region3
  $region8: #{_lambda_.6} parent=0 // loop_exit
    _

// kernel: _lambda_.7
$region0: #{_lambda_.7}
  #allocation0 [shape = 'u32[]', space=smem, size = 0x4, offset = 0x4, fixed_abs, tag = 'smem constant byte address 0x4 - core index']
  #allocation1 [shape = 'u32[72,128]{1,0:T(1,128)}', space=vmem, size = 0x9000, scoped, tag = 'internal scratch']
  %s0 = inlined_call_operand.vmem [shape: f32[2,2,2,16,128], index: 0, kind: input, shape index: {}]
  %s1 = inlined_call_operand.vmem [shape: f32[9,128,128], index: 1, kind: input, shape index: {}]
  %s2 = inlined_call_operand.vmem [shape: f32[1,128], index: 2, kind: input, shape index: {}]
  %s3 = inlined_call_operand.vmem [shape: f32[2,6,128], index: 3, kind: output, shape index: {}]
  %s4 = sld [smem:[#allocation0]]
  $region45: #{_lambda_.7} parent=0
    _
  %s6 = ssub.s32 1, %s4
  %s7 = scalar_select 0, %s6, %s4
  loop: start=0, step=1, limit=4
  $region2: #{_lambda_.7} parent=0 // loop_pre_header
    _
  $region3: #{_lambda_.7} parent=0 // loop_header
    %s9 = sphi 0, %s13
    %p10 = scmp.ge.s32.totalorder %s9, 4
    %s19 = sphi 0, %s21
    %s22 = sphi 0, %s19
    %s23 = sphi 0, %s22
    %s39 = sphi 0, %s23
    %s43 = sphi 0, %s43
    %s45 = sphi 0, %s43
    %s46 = sphi 0, %s45
    %s60 = sphi 0, %s46
    %s64 = sphi 0, %s64
    %s66 = sphi 0, %s64
    %s67 = sphi 0, %s66
    %s81 = sphi 0, %s67
    %s87 = sphi 0, %s89
    %s90 = sphi 0, %s87
    %s91 = sphi 0, %s90
    %s107 = sphi 0, %s91
  $region4: #{_lambda_.7} parent=0 // loop_header_branch
    %12 = sbr.rel (%p10) target = $region8
  $region5: #{_lambda_.7} parent=0 // loop_body
    %s14 = ssub.s32 %s9, 1
    %s15 = ssub.s32 %s9, 2
    %s16 = sadd.s32 %s9, 1
    %s17 = ssub.s32 %s9, %s16
    %p18 = scmp.eq.s32.totalorder %s17, 0
    %s20 = sadd.s32 %s19, 1
    %s21 = scalar_select %p18, %s19, %s20
    %p24 = pneg %p18
    %p25 = scmp.eq.s32.totalorder %s9, 1
    %p26 = por %p24, %p25
    %p27 = scmp.ne.s32.totalorder %s19, %s22
    %p28 = scmp.eq.s32.totalorder %s9, 0
    %p29 = por %p27, %p28
    %p30 = scmp.ne.s32.totalorder %s19, %s22
    %p31 = scmp.eq.s32.totalorder %s14, 1
    %p32 = por %p30, %p31
    %p33 = scmp.ne.s32.totalorder %s22, %s23
    %p34 = scmp.eq.s32.totalorder %s14, 0
    %p35 = por %p33, %p34
    %p36 = scmp.ne.s32.totalorder %s22, %s23
    %p37 = scmp.eq.s32.totalorder %s15, 1
    %p38 = por %p36, %p37
    %p40 = scmp.ne.s32.totalorder %s23, %s39
    %p41 = scmp.eq.s32.totalorder %s15, 0
    %p42 = por %p40, %p41
    %s44 = sadd.s32 %s43, 1
    %p47 = scmp.eq.s32.totalorder %s9, 1
    %p48 = scmp.ne.s32.totalorder %s43, %s45
    %p49 = scmp.eq.s32.totalorder %s9, 0
    %p50 = por %p48, %p49
    %p51 = scmp.ne.s32.totalorder %s43, %s45
    %p52 = scmp.eq.s32.totalorder %s14, 1
    %p53 = por %p51, %p52
    %p54 = scmp.ne.s32.totalorder %s45, %s46
    %p55 = scmp.eq.s32.totalorder %s14, 0
    %p56 = por %p54, %p55
    %p57 = scmp.ne.s32.totalorder %s45, %s46
    %p58 = scmp.eq.s32.totalorder %s15, 1
    %p59 = por %p57, %p58
    %p61 = scmp.ne.s32.totalorder %s46, %s60
    %p62 = scmp.eq.s32.totalorder %s15, 0
    %p63 = por %p61, %p62
    %s65 = sadd.s32 %s64, 1
    %p68 = scmp.eq.s32.totalorder %s9, 1
    %p69 = scmp.ne.s32.totalorder %s64, %s66
    %p70 = scmp.eq.s32.totalorder %s9, 0
    %p71 = por %p69, %p70
    %p72 = scmp.ne.s32.totalorder %s64, %s66
    %p73 = scmp.eq.s32.totalorder %s14, 1
    %p74 = por %p72, %p73
    %p75 = scmp.ne.s32.totalorder %s66, %s67
    %p76 = scmp.eq.s32.totalorder %s14, 0
    %p77 = por %p75, %p76
    %p78 = scmp.ne.s32.totalorder %s66, %s67
    %p79 = scmp.eq.s32.totalorder %s15, 1
    %p80 = por %p78, %p79
    %p82 = scmp.ne.s32.totalorder %s67, %s81
    %p83 = scmp.eq.s32.totalorder %s15, 0
    %p84 = por %p82, %p83
    %s85 = ssub.s32 %s9, %s16
    %p86 = scmp.eq.s32.totalorder %s85, 0
    %s88 = sadd.s32 %s87, 1
    %s89 = scalar_select %p86, %s87, %s88
    %p92 = pneg %p86
    %p93 = scmp.eq.s32.totalorder %s9, 1
    %p94 = por %p92, %p93
    %p95 = scmp.ne.s32.totalorder %s87, %s90
    %p96 = scmp.eq.s32.totalorder %s9, 0
    %p97 = por %p95, %p96
    %p98 = scmp.ne.s32.totalorder %s87, %s90
    %p99 = scmp.eq.s32.totalorder %s14, 1
    %p100 = por %p98, %p99
    %p101 = scmp.ne.s32.totalorder %s90, %s91
    %p102 = scmp.eq.s32.totalorder %s14, 0
    %p103 = por %p101, %p102
    %p104 = scmp.ne.s32.totalorder %s90, %s91
    %p105 = scmp.eq.s32.totalorder %s15, 1
    %p106 = por %p104, %p105
    %p108 = scmp.ne.s32.totalorder %s91, %s107
    %p109 = scmp.eq.s32.totalorder %s15, 0
    %p110 = por %p108, %p109
    %p111 = scmp.le.s32.totalorder 1, %s9
    %p112 = scmp.lt.s32.totalorder %s9, 3
    %p113 = pnand %p111, %p112
    %p114 = pneg %p113
    // Predicated region
    $region9: #{_lambda_.7} parent=5 // pred_check
      _
    $region10: #{_lambda_.7} parent=5 // pred_check_branch
      %116 = sbr.rel (%p113) target = $region12
    $region11: #{_lambda_.7} parent=5 // pred_region
      %s117 = ssub.s32 %s9, 1
      // Predicated region
      $region13: #{_lambda_.7} parent=11 // pred_check
        %p118 = pneg %p56
      $region14: #{_lambda_.7} parent=11 // pred_check_branch
        %120 = sbr.rel (%p118) target = $region16
      $region15: #{_lambda_.7} parent=11 // pred_region
        _
      $region16: #{_lambda_.7} parent=11 // pred_fallthru
        _
      // Predicated region
      $region17: #{_lambda_.7} parent=11 // pred_check
        %p121 = pneg %p77
      $region18: #{_lambda_.7} parent=11 // pred_check_branch
        %123 = sbr.rel (%p121) target = $region20
      $region19: #{_lambda_.7} parent=11 // pred_region
        _
      $region20: #{_lambda_.7} parent=11 // pred_fallthru
        _
    $region12: #{_lambda_.7} parent=5 // pred_fallthru
      _
    %p124 = scmp.lt.s32.totalorder %s9, 2
    // Predicated region
    $region21: #{_lambda_.7} parent=5 // pred_check
      %p125 = pneg %p124
    $region22: #{_lambda_.7} parent=5 // pred_check_branch
      %127 = sbr.rel (%p125) target = $region24
    $region23: #{_lambda_.7} parent=5 // pred_region
      // Predicated region
      $region25: #{_lambda_.7} parent=23 // pred_check
        %p128 = pneg %p29
      $region26: #{_lambda_.7} parent=23 // pred_check_branch
        %130 = sbr.rel (%p128) target = $region28
      $region27: #{_lambda_.7} parent=23 // pred_region
        %p131 = scmp.lt.s32.totalorder %s9, 1
        %s132 = scalar_select %p131, %s9, 1
        %s133 = smul.addr %s132, 8
        %s134 = smul.addr %s133, 8
        %s135 = scalar_lea.vmem %s0, %s134
      $region28: #{_lambda_.7} parent=23 // pred_fallthru
        _
    $region24: #{_lambda_.7} parent=5 // pred_fallthru
      _
    %p136 = scmp.le.s32.totalorder 1, %s9
    %p137 = scmp.lt.s32.totalorder %s9, 3
    %p138 = pnand %p136, %p137
    %p139 = pneg %p138
    // Predicated region
    $region29: #{_lambda_.7} parent=5 // pred_check
      _
    $region30: #{_lambda_.7} parent=5 // pred_check_branch
      %141 = sbr.rel (%p138) target = $region32
    $region31: #{_lambda_.7} parent=5 // pred_region
      %s142 = ssub.s32 %s9, 1
      %p143 = scmp.lt.s32.totalorder %s14, 1
      %s144 = scalar_select %p143, %s14, 1
      %s145 = smul.addr %s144, 8
      %s146 = smul.addr %s145, 8
      %s147 = scalar_lea.vmem %s0, %s146
      %p148 = pneg %p35
      %p149 = pneg %p32
      %p150 = pneg %p56
      %p151 = pneg %p53
      %p152 = pneg %p77
      %p153 = pneg %p74
      %p154 = pneg %p103
      %p155 = pneg %p100
      %p156 = scmp.lt.s32.totalorder %s14, 1
      %s157 = scalar_select %p156, %s14, 1
      %s158 = smul.addr %s157, 8
      %s159 = scalar_lea.vmem %s3, %s158
      %p160 = scmp.lt.s32.totalorder %s14, 1
      %s161 = scalar_select %p160, %s14, 1
      %s162 = smul.addr %s161, 8
      %s163 = smul.addr %s162, 8
      %s164 = scalar_lea.vmem %s0, %s163
      %p165 = scmp.lt.s32.totalorder %s14, 1
      %s166 = scalar_select %p165, %s14, 1
      %s167 = smul.addr %s166, 8
      %s168 = scalar_lea.vmem %s3, %s167
      %v169 = vld [vmem:[%s164] sm:$0x3f]
      %v170 = vld [vmem:[%s1] sm:$0xff]
      %v171 = vld [vmem:[%s1 + $0x8] sm:$0xff]
      %v172 = vld [vmem:[%s1 + $0x10] sm:$0xff]
      %v173 = vld [vmem:[%s1 + $0x18] sm:$0xff]
      %v174 = vld [vmem:[%s1 + $0x20] sm:$0xff]
      %v175 = vld [vmem:[%s1 + $0x28] sm:$0xff]
      %v176 = vld [vmem:[%s1 + $0x30] sm:$0xff]
      %v177 = vld [vmem:[%s1 + $0x38] sm:$0xff]
      %v178 = vld [vmem:[%s1 + $0x40] sm:$0xff]
      %v179 = vld [vmem:[%s1 + $0x48] sm:$0xff]
      %v180 = vld [vmem:[%s1 + $0x50] sm:$0xff]
      %v181 = vld [vmem:[%s1 + $0x58] sm:$0xff]
      %v182 = vld [vmem:[%s1 + $0x60] sm:$0xff]
      %v183 = vld [vmem:[%s1 + $0x68] sm:$0xff]
      %v184 = vld [vmem:[%s1 + $0x70] sm:$0xff]
      %v185 = vld [vmem:[%s1 + $0x78] sm:$0xff]
      %s186 = scalar_lea.vmem %s164, 16
      %v187 = vld [vmem:[%s186] sm:$0x3f]
      %s188 = scalar_lea.vmem %s1, 128
      %v189 = vld [vmem:[%s188] sm:$0xff]
      %v190 = vld [vmem:[%s188 + $0x8] sm:$0xff]
      %v191 = vld [vmem:[%s188 + $0x10] sm:$0xff]
      %v192 = vld [vmem:[%s188 + $0x18] sm:$0xff]
      %v193 = vld [vmem:[%s188 + $0x20] sm:$0xff]
      %v194 = vld [vmem:[%s188 + $0x28] sm:$0xff]
      %v195 = vld [vmem:[%s188 + $0x30] sm:$0xff]
      %v196 = vld [vmem:[%s188 + $0x38] sm:$0xff]
      %v197 = vld [vmem:[%s188 + $0x40] sm:$0xff]
      %v198 = vld [vmem:[%s188 + $0x48] sm:$0xff]
      %v199 = vld [vmem:[%s188 + $0x50] sm:$0xff]
      %v200 = vld [vmem:[%s188 + $0x58] sm:$0xff]
      %v201 = vld [vmem:[%s188 + $0x60] sm:$0xff]
      %v202 = vld [vmem:[%s188 + $0x68] sm:$0xff]
      %v203 = vld [vmem:[%s188 + $0x70] sm:$0xff]
      %v204 = vld [vmem:[%s188 + $0x78] sm:$0xff]
      %205 = vmatpush.msra.mxu0 %v204
      %206 = vmatpush.msra.mxu0 %v203
      %207 = vmatpush.msra.mxu0 %v202
      %208 = vmatpush.msra.mxu0 %v201
      %209 = vmatpush.msra.mxu0 %v200
      %210 = vmatpush.msra.mxu0 %v199
      %211 = vmatpush.msra.mxu0 %v198
      %212 = vmatpush.msra.mxu0 %v197
      %213 = vmatpush.msra.mxu0 %v196
      %214 = vmatpush.msra.mxu0 %v195
      %215 = vmatpush.msra.mxu0 %v194
      %216 = vmatpush.msra.mxu0 %v193
      %217 = vmatpush.msra.mxu0 %v192
      %218 = vmatpush.msra.mxu0 %v191
      %219 = vmatpush.msra.mxu0 %v190
      %220 = vmatpush.msra.mxu0 %v189
      %221 = vmatmul.f32.gmra.mxu0 %v187
      %v222 = vpop.f32.mrf.mxu0
      %v223 = vadd.f32 0.0, %v222
      %224 = vdwg.mxu0
      %225 = vmatpush.msra.mxu0 %v185
      %226 = vmatpush.msra.mxu0 %v184
      %227 = vmatpush.msra.mxu0 %v183
      %228 = vmatpush.msra.mxu0 %v182
      %229 = vmatpush.msra.mxu0 %v181
      %230 = vmatpush.msra.mxu0 %v180
      %231 = vmatpush.msra.mxu0 %v179
      %232 = vmatpush.msra.mxu0 %v178
      %233 = vmatpush.msra.mxu0 %v177
      %234 = vmatpush.msra.mxu0 %v176
      %235 = vmatpush.msra.mxu0 %v175
      %236 = vmatpush.msra.mxu0 %v174
      %237 = vmatpush.msra.mxu0 %v173
      %238 = vmatpush.msra.mxu0 %v172
      %239 = vmatpush.msra.mxu0 %v171
      %240 = vmatpush.msra.mxu0 %v170
      %241 = vmatmul.f32.gmra.mxu0 %v169
      %v242 = vpop.f32.mrf.mxu0
      %v243 = vadd.f32 %v223, %v242
      %244 = vdwg.mxu0
      %v245 = vld [vmem:[%s164 + $0x1] sm:$0x3f]
      %s246 = scalar_lea.vmem %s1, 256
      %v247 = vld [vmem:[%s246] sm:$0xff]
      %v248 = vld [vmem:[%s246 + $0x8] sm:$0xff]
      %v249 = vld [vmem:[%s246 + $0x10] sm:$0xff]
      %v250 = vld [vmem:[%s246 + $0x18] sm:$0xff]
      %v251 = vld [vmem:[%s246 + $0x20] sm:$0xff]
      %v252 = vld [vmem:[%s246 + $0x28] sm:$0xff]
      %v253 = vld [vmem:[%s246 + $0x30] sm:$0xff]
      %v254 = vld [vmem:[%s246 + $0x38] sm:$0xff]
      %v255 = vld [vmem:[%s246 + $0x40] sm:$0xff]
      %v256 = vld [vmem:[%s246 + $0x48] sm:$0xff]
      %v257 = vld [vmem:[%s246 + $0x50] sm:$0xff]
      %v258 = vld [vmem:[%s246 + $0x58] sm:$0xff]
      %v259 = vld [vmem:[%s246 + $0x60] sm:$0xff]
      %v260 = vld [vmem:[%s246 + $0x68] sm:$0xff]
      %v261 = vld [vmem:[%s246 + $0x70] sm:$0xff]
      %v262 = vld [vmem:[%s246 + $0x78] sm:$0xff]
      %263 = vmatpush.msra.mxu0 %v262
      %264 = vmatpush.msra.mxu0 %v261
      %265 = vmatpush.msra.mxu0 %v260
      %266 = vmatpush.msra.mxu0 %v259
      %267 = vmatpush.msra.mxu0 %v258
      %268 = vmatpush.msra.mxu0 %v257
      %269 = vmatpush.msra.mxu0 %v256
      %270 = vmatpush.msra.mxu0 %v255
      %271 = vmatpush.msra.mxu0 %v254
      %272 = vmatpush.msra.mxu0 %v253
      %273 = vmatpush.msra.mxu0 %v252
      %274 = vmatpush.msra.mxu0 %v251
      %275 = vmatpush.msra.mxu0 %v250
      %276 = vmatpush.msra.mxu0 %v249
      %277 = vmatpush.msra.mxu0 %v248
      %278 = vmatpush.msra.mxu0 %v247
      %279 = vmatmul.f32.gmra.mxu0 %v245
      %v280 = vpop.f32.mrf.mxu0
      %v281 = vadd.f32 0.0, %v280
      %282 = vdwg.mxu0
      %v283 = vadd.f32 %v243, %v281
      %s284 = scalar_lea.vmem %s164, 32
      %v285 = vld [vmem:[%s284] sm:$0x3f]
      %s286 = scalar_lea.vmem %s1, 384
      %v287 = vld [vmem:[%s286] sm:$0xff]
      %v288 = vld [vmem:[%s286 + $0x8] sm:$0xff]
      %v289 = vld [vmem:[%s286 + $0x10] sm:$0xff]
      %v290 = vld [vmem:[%s286 + $0x18] sm:$0xff]
      %v291 = vld [vmem:[%s286 + $0x20] sm:$0xff]
      %v292 = vld [vmem:[%s286 + $0x28] sm:$0xff]
      %v293 = vld [vmem:[%s286 + $0x30] sm:$0xff]
      %v294 = vld [vmem:[%s286 + $0x38] sm:$0xff]
      %v295 = vld [vmem:[%s286 + $0x40] sm:$0xff]
      %v296 = vld [vmem:[%s286 + $0x48] sm:$0xff]
      %v297 = vld [vmem:[%s286 + $0x50] sm:$0xff]
      %v298 = vld [vmem:[%s286 + $0x58] sm:$0xff]
      %v299 = vld [vmem:[%s286 + $0x60] sm:$0xff]
      %v300 = vld [vmem:[%s286 + $0x68] sm:$0xff]
      %v301 = vld [vmem:[%s286 + $0x70] sm:$0xff]
      %v302 = vld [vmem:[%s286 + $0x78] sm:$0xff]
      %303 = vmatpush.msra.mxu0 %v302
      %304 = vmatpush.msra.mxu0 %v301
      %305 = vmatpush.msra.mxu0 %v300
      %306 = vmatpush.msra.mxu0 %v299
      %307 = vmatpush.msra.mxu0 %v298
      %308 = vmatpush.msra.mxu0 %v297
      %309 = vmatpush.msra.mxu0 %v296
      %310 = vmatpush.msra.mxu0 %v295
      %311 = vmatpush.msra.mxu0 %v294
      %312 = vmatpush.msra.mxu0 %v293
      %313 = vmatpush.msra.mxu0 %v292
      %314 = vmatpush.msra.mxu0 %v291
      %315 = vmatpush.msra.mxu0 %v290
      %316 = vmatpush.msra.mxu0 %v289
      %317 = vmatpush.msra.mxu0 %v288
      %318 = vmatpush.msra.mxu0 %v287
      %319 = vmatmul.f32.gmra.mxu0 %v285
      %v320 = vpop.f32.mrf.mxu0
      %v321 = vadd.f32 0.0, %v320
      %322 = vdwg.mxu0
      %v323 = vadd.f32 %v283, %v321
      %s324 = scalar_lea.vmem %s164, 48
      %v325 = vld [vmem:[%s324] sm:$0x3f]
      %s326 = scalar_lea.vmem %s1, 512
      %v327 = vld [vmem:[%s326] sm:$0xff]
      %v328 = vld [vmem:[%s326 + $0x8] sm:$0xff]
      %v329 = vld [vmem:[%s326 + $0x10] sm:$0xff]
      %v330 = vld [vmem:[%s326 + $0x18] sm:$0xff]
      %v331 = vld [vmem:[%s326 + $0x20] sm:$0xff]
      %v332 = vld [vmem:[%s326 + $0x28] sm:$0xff]
      %v333 = vld [vmem:[%s326 + $0x30] sm:$0xff]
      %v334 = vld [vmem:[%s326 + $0x38] sm:$0xff]
      %v335 = vld [vmem:[%s326 + $0x40] sm:$0xff]
      %v336 = vld [vmem:[%s326 + $0x48] sm:$0xff]
      %v337 = vld [vmem:[%s326 + $0x50] sm:$0xff]
      %v338 = vld [vmem:[%s326 + $0x58] sm:$0xff]
      %v339 = vld [vmem:[%s326 + $0x60] sm:$0xff]
      %v340 = vld [vmem:[%s326 + $0x68] sm:$0xff]
      %v341 = vld [vmem:[%s326 + $0x70] sm:$0xff]
      %v342 = vld [vmem:[%s326 + $0x78] sm:$0xff]
      %343 = vmatpush.msra.mxu0 %v342
      %344 = vmatpush.msra.mxu0 %v341
      %345 = vmatpush.msra.mxu0 %v340
      %346 = vmatpush.msra.mxu0 %v339
      %347 = vmatpush.msra.mxu0 %v338
      %348 = vmatpush.msra.mxu0 %v337
      %349 = vmatpush.msra.mxu0 %v336
      %350 = vmatpush.msra.mxu0 %v335
      %351 = vmatpush.msra.mxu0 %v334
      %352 = vmatpush.msra.mxu0 %v333
      %353 = vmatpush.msra.mxu0 %v332
      %354 = vmatpush.msra.mxu0 %v331
      %355 = vmatpush.msra.mxu0 %v330
      %356 = vmatpush.msra.mxu0 %v329
      %357 = vmatpush.msra.mxu0 %v328
      %358 = vmatpush.msra.mxu0 %v327
      %359 = vmatmul.f32.gmra.mxu0 %v325
      %v360 = vpop.f32.mrf.mxu0
      %v361 = vadd.f32 0.0, %v360
      %362 = vdwg.mxu0
      %v363 = vadd.f32 %v323, %v361
      %v364 = vld [vmem:[%s284 + $0x1] sm:$0x3f]
      %s365 = scalar_lea.vmem %s1, 640
      %v366 = vld [vmem:[%s365] sm:$0xff]
      %v367 = vld [vmem:[%s365 + $0x8] sm:$0xff]
      %v368 = vld [vmem:[%s365 + $0x10] sm:$0xff]
      %v369 = vld [vmem:[%s365 + $0x18] sm:$0xff]
      %v370 = vld [vmem:[%s365 + $0x20] sm:$0xff]
      %v371 = vld [vmem:[%s365 + $0x28] sm:$0xff]
      %v372 = vld [vmem:[%s365 + $0x30] sm:$0xff]
      %v373 = vld [vmem:[%s365 + $0x38] sm:$0xff]
      %v374 = vld [vmem:[%s365 + $0x40] sm:$0xff]
      %v375 = vld [vmem:[%s365 + $0x48] sm:$0xff]
      %v376 = vld [vmem:[%s365 + $0x50] sm:$0xff]
      %v377 = vld [vmem:[%s365 + $0x58] sm:$0xff]
      %v378 = vld [vmem:[%s365 + $0x60] sm:$0xff]
      %v379 = vld [vmem:[%s365 + $0x68] sm:$0xff]
      %v380 = vld [vmem:[%s365 + $0x70] sm:$0xff]
      %v381 = vld [vmem:[%s365 + $0x78] sm:$0xff]
      %382 = vmatpush.msra.mxu0 %v381
      %383 = vmatpush.msra.mxu0 %v380
      %384 = vmatpush.msra.mxu0 %v379
      %385 = vmatpush.msra.mxu0 %v378
      %386 = vmatpush.msra.mxu0 %v377
      %387 = vmatpush.msra.mxu0 %v376
      %388 = vmatpush.msra.mxu0 %v375
      %389 = vmatpush.msra.mxu0 %v374
      %390 = vmatpush.msra.mxu0 %v373
      %391 = vmatpush.msra.mxu0 %v372
      %392 = vmatpush.msra.mxu0 %v371
      %393 = vmatpush.msra.mxu0 %v370
      %394 = vmatpush.msra.mxu0 %v369
      %395 = vmatpush.msra.mxu0 %v368
      %396 = vmatpush.msra.mxu0 %v367
      %397 = vmatpush.msra.mxu0 %v366
      %398 = vmatmul.f32.gmra.mxu0 %v364
      %v399 = vpop.f32.mrf.mxu0
      %v400 = vadd.f32 0.0, %v399
      %401 = vdwg.mxu0
      %v402 = vadd.f32 %v363, %v400
      %v403 = vld [vmem:[%s164 + $0x3] sm:$0x3f]
      %s404 = scalar_lea.vmem %s1, 768
      %v405 = vld [vmem:[%s404] sm:$0xff]
      %v406 = vld [vmem:[%s404 + $0x8] sm:$0xff]
      %v407 = vld [vmem:[%s404 + $0x10] sm:$0xff]
      %v408 = vld [vmem:[%s404 + $0x18] sm:$0xff]
      %v409 = vld [vmem:[%s404 + $0x20] sm:$0xff]
      %v410 = vld [vmem:[%s404 + $0x28] sm:$0xff]
      %v411 = vld [vmem:[%s404 + $0x30] sm:$0xff]
      %v412 = vld [vmem:[%s404 + $0x38] sm:$0xff]
      %v413 = vld [vmem:[%s404 + $0x40] sm:$0xff]
      %v414 = vld [vmem:[%s404 + $0x48] sm:$0xff]
      %v415 = vld [vmem:[%s404 + $0x50] sm:$0xff]
      %v416 = vld [vmem:[%s404 + $0x58] sm:$0xff]
      %v417 = vld [vmem:[%s404 + $0x60] sm:$0xff]
      %v418 = vld [vmem:[%s404 + $0x68] sm:$0xff]
      %v419 = vld [vmem:[%s404 + $0x70] sm:$0xff]
      %v420 = vld [vmem:[%s404 + $0x78] sm:$0xff]
      %421 = vmatpush.msra.mxu0 %v420
      %422 = vmatpush.msra.mxu0 %v419
      %423 = vmatpush.msra.mxu0 %v418
      %424 = vmatpush.msra.mxu0 %v417
      %425 = vmatpush.msra.mxu0 %v416
      %426 = vmatpush.msra.mxu0 %v415
      %427 = vmatpush.msra.mxu0 %v414
      %428 = vmatpush.msra.mxu0 %v413
      %429 = vmatpush.msra.mxu0 %v412
      %430 = vmatpush.msra.mxu0 %v411
      %431 = vmatpush.msra.mxu0 %v410
      %432 = vmatpush.msra.mxu0 %v409
      %433 = vmatpush.msra.mxu0 %v408
      %434 = vmatpush.msra.mxu0 %v407
      %435 = vmatpush.msra.mxu0 %v406
      %436 = vmatpush.msra.mxu0 %v405
      %437 = vmatmul.f32.gmra.mxu0 %v403
      %v438 = vpop.f32.mrf.mxu0
      %v439 = vadd.f32 0.0, %v438
      %440 = vdwg.mxu0
      %v441 = vadd.f32 %v402, %v439
      %v442 = vld [vmem:[%s186 + $0x3] sm:$0x3f]
      %s443 = scalar_lea.vmem %s1, 896
      %v444 = vld [vmem:[%s443] sm:$0xff]
      %v445 = vld [vmem:[%s443 + $0x8] sm:$0xff]
      %v446 = vld [vmem:[%s443 + $0x10] sm:$0xff]
      %v447 = vld [vmem:[%s443 + $0x18] sm:$0xff]
      %v448 = vld [vmem:[%s443 + $0x20] sm:$0xff]
      %v449 = vld [vmem:[%s443 + $0x28] sm:$0xff]
      %v450 = vld [vmem:[%s443 + $0x30] sm:$0xff]
      %v451 = vld [vmem:[%s443 + $0x38] sm:$0xff]
      %v452 = vld [vmem:[%s443 + $0x40] sm:$0xff]
      %v453 = vld [vmem:[%s443 + $0x48] sm:$0xff]
      %v454 = vld [vmem:[%s443 + $0x50] sm:$0xff]
      %v455 = vld [vmem:[%s443 + $0x58] sm:$0xff]
      %v456 = vld [vmem:[%s443 + $0x60] sm:$0xff]
      %v457 = vld [vmem:[%s443 + $0x68] sm:$0xff]
      %v458 = vld [vmem:[%s443 + $0x70] sm:$0xff]
      %v459 = vld [vmem:[%s443 + $0x78] sm:$0xff]
      %460 = vmatpush.msra.mxu0 %v459
      %461 = vmatpush.msra.mxu0 %v458
      %462 = vmatpush.msra.mxu0 %v457
      %463 = vmatpush.msra.mxu0 %v456
      %464 = vmatpush.msra.mxu0 %v455
      %465 = vmatpush.msra.mxu0 %v454
      %466 = vmatpush.msra.mxu0 %v453
      %467 = vmatpush.msra.mxu0 %v452
      %468 = vmatpush.msra.mxu0 %v451
      %469 = vmatpush.msra.mxu0 %v450
      %470 = vmatpush.msra.mxu0 %v449
      %471 = vmatpush.msra.mxu0 %v448
      %472 = vmatpush.msra.mxu0 %v447
      %473 = vmatpush.msra.mxu0 %v446
      %474 = vmatpush.msra.mxu0 %v445
      %475 = vmatpush.msra.mxu0 %v444
      %476 = vmatmul.f32.gmra.mxu0 %v442
      %v477 = vpop.f32.mrf.mxu0
      %v478 = vadd.f32 0.0, %v477
      %479 = vdwg.mxu0
      %v480 = vadd.f32 %v441, %v478
      %v481 = vld [vmem:[%s164 + $0x4] sm:$0x3f]
      %s482 = scalar_lea.vmem %s1, 1024
      %v483 = vld [vmem:[%s482] sm:$0xff]
      %v484 = vld [vmem:[%s482 + $0x8] sm:$0xff]
      %v485 = vld [vmem:[%s482 + $0x10] sm:$0xff]
      %v486 = vld [vmem:[%s482 + $0x18] sm:$0xff]
      %v487 = vld [vmem:[%s482 + $0x20] sm:$0xff]
      %v488 = vld [vmem:[%s482 + $0x28] sm:$0xff]
      %v489 = vld [vmem:[%s482 + $0x30] sm:$0xff]
      %v490 = vld [vmem:[%s482 + $0x38] sm:$0xff]
      %v491 = vld [vmem:[%s482 + $0x40] sm:$0xff]
      %v492 = vld [vmem:[%s482 + $0x48] sm:$0xff]
      %v493 = vld [vmem:[%s482 + $0x50] sm:$0xff]
      %v494 = vld [vmem:[%s482 + $0x58] sm:$0xff]
      %v495 = vld [vmem:[%s482 + $0x60] sm:$0xff]
      %v496 = vld [vmem:[%s482 + $0x68] sm:$0xff]
      %v497 = vld [vmem:[%s482 + $0x70] sm:$0xff]
      %v498 = vld [vmem:[%s482 + $0x78] sm:$0xff]
      %499 = vmatpush.msra.mxu0 %v498
      %500 = vmatpush.msra.mxu0 %v497
      %501 = vmatpush.msra.mxu0 %v496
      %502 = vmatpush.msra.mxu0 %v495
      %503 = vmatpush.msra.mxu0 %v494
      %504 = vmatpush.msra.mxu0 %v493
      %505 = vmatpush.msra.mxu0 %v492
      %506 = vmatpush.msra.mxu0 %v491
      %507 = vmatpush.msra.mxu0 %v490
      %508 = vmatpush.msra.mxu0 %v489
      %509 = vmatpush.msra.mxu0 %v488
      %510 = vmatpush.msra.mxu0 %v487
      %511 = vmatpush.msra.mxu0 %v486
      %512 = vmatpush.msra.mxu0 %v485
      %513 = vmatpush.msra.mxu0 %v484
      %514 = vmatpush.msra.mxu0 %v483
      %515 = vmatmul.f32.gmra.mxu0 %v481
      %v516 = vpop.f32.mrf.mxu0
      %v517 = vadd.f32 0.0, %v516
      %518 = vdwg.mxu0
      %v519 = vadd.f32 %v480, %v517
      %v520 = vld [vmem:[%s2] sm:$0x1]
      %v522 = vperm.slane %v520, 0
      %v524 = vadd.f32 %v519, %v522
      %525 = vst [vmem:[%s168] sm:$0x3f] %v524
      %p526 = scmp.lt.s32.totalorder %s14, 1
      %s527 = scalar_select %p526, %s14, 1
      %s528 = smul.addr %s527, 8
      %s529 = scalar_lea.vmem %s3, %s528
      // Predicated region
      $region33: #{_lambda_.7} parent=31 // pred_check
        %p530 = pneg %p100
      $region34: #{_lambda_.7} parent=31 // pred_check_branch
        %532 = sbr.rel (%p530) target = $region36
      $region35: #{_lambda_.7} parent=31 // pred_region
        _
      $region36: #{_lambda_.7} parent=31 // pred_fallthru
        _
    $region32: #{_lambda_.7} parent=5 // pred_fallthru
      _
    %p533 = scmp.le.s32.totalorder 2, %s9
    // Predicated region
    $region37: #{_lambda_.7} parent=5 // pred_check
      %p534 = pneg %p533
    $region38: #{_lambda_.7} parent=5 // pred_check_branch
      %536 = sbr.rel (%p534) target = $region40
    $region39: #{_lambda_.7} parent=5 // pred_region
      %s537 = ssub.s32 %s9, 2
      // Predicated region
      $region41: #{_lambda_.7} parent=39 // pred_check
        %p538 = pneg %p106
      $region42: #{_lambda_.7} parent=39 // pred_check_branch
        %540 = sbr.rel (%p538) target = $region44
      $region43: #{_lambda_.7} parent=39 // pred_region
        %p541 = scmp.lt.s32.totalorder %s15, 1
        %s542 = scalar_select %p541, %s15, 1
        %s543 = smul.addr %s542, 8
        %s544 = scalar_lea.vmem %s3, %s543
      $region44: #{_lambda_.7} parent=39 // pred_fallthru
        _
    $region40: #{_lambda_.7} parent=5 // pred_fallthru
      _
  $region6: #{_lambda_.7} parent=0 // loop_footer
    %s13 = sadd.s32 1, %s9
  $region7: #{_lambda_.7} parent=0 // loop_footer_branch
    %8 = sbr.rel target = $region3
  $region8: #{_lambda_.7} parent=0 // loop_exit
    _

</llo_original>
